<compile_context>
chip_gen: v6e
topology: v6e:2x2x1
jax: 0.10.0
libtpu: 0.0.40
codegen_flags: <defaults>
</compile_context>

<pallas_src>
import functools
import math

import jax
import jax.numpy as jnp
from jax.experimental import pallas as pl
from jax.experimental.pallas import tpu as pltpu


_VMEM_LIMIT = 32 * 1024 * 1024  # safe default on v5e/v6e (128 MiB) and v7x (64 MiB)
_NEG_INF = -1e9                 # python float -> jaxpr literal (NOT a captured array)
_LN_EPS = 1e-5


# ----------------------------- tiling helpers -----------------------------

def _pick_tile(dim, target, align):
    """Largest tile <= target that divides `dim` and is a multiple of `align`
    (returns the full dim when dim <= target)."""
    if dim <= target:
        return dim
    t = (target // align) * align
    while t >= align:
        if dim % t == 0:
            return t
        t -= align
    return dim


def _replicated_spec(shape):
    """Full-array block, same block for every grid step (loaded into VMEM once)."""
    ndim = len(shape)
    return pl.BlockSpec(shape, lambda b: (0,) * ndim)


# ----------------------------- in-kernel helpers -----------------------------

def _layer_norm_f32(y, g, b):
    mu = jnp.mean(y, axis=-1, keepdims=True)
    var = jnp.mean((y - mu) ** 2, axis=-1, keepdims=True)
    return (y - mu) * jax.lax.rsqrt(var + _LN_EPS) * g + b


def _padding_bias(mask_row, sq):
    """Additive attention bias [sq, sk] from a [1, sk] key-keep mask (built in VMEM)."""
    bias = (1.0 - mask_row) * _NEG_INF               # [1, sk] f32
    return jnp.broadcast_to(bias, (sq, mask_row.shape[-1]))


def _causal_bias(s):
    qi = jax.lax.broadcasted_iota(jnp.int32, (s, s), 0)
    ki = jax.lax.broadcasted_iota(jnp.int32, (s, s), 1)
    return jnp.where(ki <= qi, 0.0, _NEG_INF).astype(jnp.float32)


def _mha_accum(q_src, kv_src, bias, wq_at, wk_at, wv_at, bq_at, bk_at, bv_at,
               wo_at, n_heads, d_model):
    """Head-major multi-head attention accumulated into the output projection.

    q_src: [Sq, D] bf16, kv_src: [Sk, D] bf16, bias: [Sq, Sk] f32.
    `*_at(h)` return the per-head weight/bias blocks (leading-axis selection,
    no lane slicing).  The 1/sqrt(d_head) scale is pre-folded into wq/bq.
    Returns the un-normalized layer output (before o-proj bias) in f32 [Sq, D].
    """
    sq = q_src.shape[0]
    acc = jnp.zeros((sq, d_model), jnp.float32)
    for h in range(n_heads):
        q = jnp.dot(q_src, wq_at(h), preferred_element_type=jnp.float32) + bq_at(h)
        k = jnp.dot(kv_src, wk_at(h), preferred_element_type=jnp.float32) + bk_at(h)
        v = jnp.dot(kv_src, wv_at(h), preferred_element_type=jnp.float32) + bv_at(h)
        # contract the last axes directly (q @ k^T without an explicit transpose).
        s = jax.lax.dot_general(q.astype(jnp.bfloat16), k.astype(jnp.bfloat16),
                                (((1,), (1,)), ((), ())),
                                preferred_element_type=jnp.float32) + bias
        m = jnp.max(s, axis=-1, keepdims=True)
        p = jnp.exp(s - m)
        p = p * pl.reciprocal(jnp.sum(p, axis=-1, keepdims=True), approx=True)
        o = jnp.dot(p.astype(jnp.bfloat16), v.astype(jnp.bfloat16),
                    preferred_element_type=jnp.float32)            # [Sq, d_head]
        acc = acc + jnp.dot(o.astype(jnp.bfloat16), wo_at(h),
                            preferred_element_type=jnp.float32)    # [Sq, D]
    return acc


# ----------------------------- fused layer kernels -----------------------------

def _make_encoder_layer_kernel(n_heads, d_head):
    d_model = n_heads * d_head

    def kernel(x_ref, mask_ref,
               w_qkv_ref, b_qkv_ref, w_o_ref, b_o_ref, ln1_g_ref, ln1_b_ref,
               fc1_w_ref, fc1_b_ref, fc2_w_ref, fc2_b_ref, ln2_g_ref, ln2_b_ref,
               o_ref):
        x = x_ref[0]                                    # [S, D] bf16
        s_len = x.shape[0]
        bias = _padding_bias(mask_ref[0], s_len)        # [S, S] f32

        attn = _mha_accum(
            x, x, bias,
            lambda h: w_qkv_ref[h],
            lambda h: w_qkv_ref[n_heads + h],
            lambda h: w_qkv_ref[2 * n_heads + h],
            lambda h: b_qkv_ref[h],
            lambda h: b_qkv_ref[n_heads + h],
            lambda h: b_qkv_ref[2 * n_heads + h],
            lambda h: w_o_ref[h],
            n_heads, d_model)

        # residual + self-attn LayerNorm (f32 epilogue)
        y = _layer_norm_f32(attn + b_o_ref[...] + x.astype(jnp.float32),
                            ln1_g_ref[...], ln1_b_ref[...])

        # feed-forward (GELU in f32, matmuls bf16 on the MXU)
        f = jnp.dot(y.astype(jnp.bfloat16), fc1_w_ref[...],
                    preferred_element_type=jnp.float32) + fc1_b_ref[...]
        f = jax.nn.gelu(f)   # TODO(synk): HF BART uses exact (erf) GELU
        z = jnp.dot(f.astype(jnp.bfloat16), fc2_w_ref[...],
                    preferred_element_type=jnp.float32) + fc2_b_ref[...]
        o_ref[0] = _layer_norm_f32(z + y, ln2_g_ref[...], ln2_b_ref[...]).astype(o_ref.dtype)

    return kernel


def _make_decoder_layer_kernel(n_heads, d_head):
    d_model = n_heads * d_head

    def kernel(x_ref, enc_ref, enc_mask_ref,
               sa_w_qkv_ref, sa_b_qkv_ref, sa_w_o_ref, sa_b_o_ref,
               ln1_g_ref, ln1_b_ref,
               ca_w_q_ref, ca_b_q_ref, ca_w_kv_ref, ca_b_kv_ref,
               ca_w_o_ref, ca_b_o_ref, lnc_g_ref, lnc_b_ref,
               fc1_w_ref, fc1_b_ref, fc2_w_ref, fc2_b_ref,
               ln2_g_ref, ln2_b_ref, o_ref):
        x = x_ref[0]             # [S, D]  bf16 (decoder hidden)
        enc = enc_ref[0]         # [Se, D] bf16 (encoder hidden)
        s_len = x.shape[0]

        # ---- causal self-attention (decoder_attention_mask=None -> causal only) ----
        attn = _mha_accum(
            x, x, _causal_bias(s_len),
            lambda h: sa_w_qkv_ref[h],
            lambda h: sa_w_qkv_ref[n_heads + h],
            lambda h: sa_w_qkv_ref[2 * n_heads + h],
            lambda h: sa_b_qkv_ref[h],
            lambda h: sa_b_qkv_ref[n_heads + h],
            lambda h: sa_b_qkv_ref[2 * n_heads + h],
            lambda h: sa_w_o_ref[h],
            n_heads, d_model)
        y = _layer_norm_f32(attn + sa_b_o_ref[...] + x.astype(jnp.float32),
                            ln1_g_ref[...], ln1_b_ref[...])

        # ---- cross-attention over encoder states ----
        attn = _mha_accum(
            y.astype(jnp.bfloat16), enc, _padding_bias(enc_mask_ref[0], s_len),
            lambda h: ca_w_q_ref[h],
            lambda h: ca_w_kv_ref[h],
            lambda h: ca_w_kv_ref[n_heads + h],
            lambda h: ca_b_q_ref[h],
            lambda h: ca_b_kv_ref[h],
            lambda h: ca_b_kv_ref[n_heads + h],
            lambda h: ca_w_o_ref[h],
            n_heads, d_model)
        z = _layer_norm_f32(attn + ca_b_o_ref[...] + y,
                            lnc_g_ref[...], lnc_b_ref[...])

        # ---- feed-forward ----
        f = jnp.dot(z.astype(jnp.bfloat16), fc1_w_ref[...],
                    preferred_element_type=jnp.float32) + fc1_b_ref[...]
        f = jax.nn.gelu(f)   # TODO(synk): HF BART uses exact (erf) GELU
        out = jnp.dot(f.astype(jnp.bfloat16), fc2_w_ref[...],
                      preferred_element_type=jnp.float32) + fc2_b_ref[...]
        o_ref[0] = _layer_norm_f32(out + z, ln2_g_ref[...], ln2_b_ref[...]).astype(o_ref.dtype)

    return kernel


# ----------------------------- small standalone kernels -----------------------------

def _ln_kernel(x_ref, g_ref, b_ref, o_ref):
    x = x_ref[...].astype(jnp.float32)
    o_ref[...] = _layer_norm_f32(x, g_ref[...], b_ref[...]).astype(o_ref.dtype)


def _mm_kernel(x_ref, w_ref, b_ref, o_ref, acc_ref):
    """Tiled o = x @ w + b with f32 VMEM accumulator over the K grid axis."""
    @pl.when(pl.program_id(2) == 0)
    def _():
        acc_ref[...] = jnp.zeros_like(acc_ref)

    acc_ref[...] += jnp.dot(x_ref[...], w_ref[...],
                            preferred_element_type=jnp.float32)

    @pl.when(pl.program_id(2) == pl.num_programs(2) - 1)
    def _():
        o_ref[...] = (acc_ref[...] + b_ref[...]).astype(o_ref.dtype)


# ----------------------------- kernel wrappers -----------------------------

def layernorm(x, g, b):
    """LayerNorm over the last dim (embedding LN); bf16 output, f32 math."""
    shape = x.shape
    D = shape[-1]
    x2 = x.reshape(-1, D)
    M = x2.shape[0]
    tm = _pick_tile(M, 256, 8)
    out = pl.pallas_call(
        _ln_kernel,
        out_shape=jax.ShapeDtypeStruct((M, D), jnp.bfloat16),
        grid=(M // tm,),
        in_specs=[pl.BlockSpec((tm, D), lambda i: (i, 0)),
                  pl.BlockSpec((1, D), lambda i: (0, 0)),
                  pl.BlockSpec((1, D), lambda i: (0, 0))],
        out_specs=pl.BlockSpec((tm, D), lambda i: (i, 0)),
        compiler_params=pltpu.CompilerParams(
            dimension_semantics=("parallel",),
            vmem_limit_bytes=_VMEM_LIMIT),
    )(x2, g.reshape(1, D), b.reshape(1, D))
    return out.reshape(shape)


def dense(x, w, b, *, out_dtype=jnp.float32):
    """x: [M, K] (bf16) @ w: [K, N] (bf16) + b: [N] (f32). Used for the LM head."""
    M, K = x.shape
    N = w.shape[1]
    tm = _pick_tile(M, 256, 8)        # no M-halving: single TC grids are serial loops
    tn = _pick_tile(N, 512, 128)
    tk = _pick_tile(K, 512, 128)
    grid = (M // tm, N // tn, K // tk)
    return pl.pallas_call(
        _mm_kernel,
        out_shape=jax.ShapeDtypeStruct((M, N), out_dtype),
        grid=grid,
        in_specs=[pl.BlockSpec((tm, tk), lambda i, j, k: (i, k)),
                  pl.BlockSpec((tk, tn), lambda i, j, k: (k, j)),
                  pl.BlockSpec((1, tn), lambda i, j, k: (0, j))],
        out_specs=pl.BlockSpec((tm, tn), lambda i, j, k: (i, j)),
        scratch_shapes=[pltpu.VMEM((tm, tn), jnp.float32)],
        compiler_params=pltpu.CompilerParams(
            dimension_semantics=("parallel", "parallel", "arbitrary"),
            vmem_limit_bytes=_VMEM_LIMIT),
    )(x, w, b.reshape(1, N))


def encoder_layer(h, lp, enc_mask, cfg):
    B, S, D = h.shape
    H = cfg['n_heads']
    dh = D // H
    dff = cfg['d_ff']
    kernel = _make_encoder_layer_kernel(H, dh)
    return pl.pallas_call(
        kernel,
        out_shape=jax.ShapeDtypeStruct((B, S, D), jnp.bfloat16),
        grid=(B,),
        in_specs=[
            pl.BlockSpec((1, S, D), lambda b: (b, 0, 0)),     # hidden
            pl.BlockSpec((1, 1, S), lambda b: (b, 0, 0)),     # key-keep mask
            _replicated_spec((3 * H, D, dh)),                 # w_qkv (head-major)
            _replicated_spec((3 * H, 1, dh)),                 # b_qkv (scale folded in q)
            _replicated_spec((H, dh, D)),                     # w_o (row blocks per head)
            _replicated_spec((1, D)),                         # b_o
            _replicated_spec((1, D)), _replicated_spec((1, D)),        # ln1 g, b
            _replicated_spec((D, dff)), _replicated_spec((1, dff)),    # fc1
            _replicated_spec((dff, D)), _replicated_spec((1, D)),      # fc2
            _replicated_spec((1, D)), _replicated_spec((1, D)),        # ln2 g, b
        ],
        out_specs=pl.BlockSpec((1, S, D), lambda b: (b, 0, 0)),
        compiler_params=pltpu.CompilerParams(
            dimension_semantics=("parallel",),
            vmem_limit_bytes=_VMEM_LIMIT),
    )(h, enc_mask,
      lp['w_qkv'], lp['b_qkv'], lp['w_o'], lp['b_o'],
      lp['ln1_g'], lp['ln1_b'],
      lp['fc1_w'], lp['fc1_b'], lp['fc2_w'], lp['fc2_b'],
      lp['ln2_g'], lp['ln2_b'])


def decoder_layer(h, enc_h, lp, enc_mask, cfg):
    B, S, D = h.shape
    Se = enc_h.shape[1]
    H = cfg['n_heads']
    dh = D // H
    dff = cfg['d_ff']
    kernel = _make_decoder_layer_kernel(H, dh)
    return pl.pallas_call(
        kernel,
        out_shape=jax.ShapeDtypeStruct((B, S, D), jnp.bfloat16),
        grid=(B,),
        in_specs=[
            pl.BlockSpec((1, S, D), lambda b: (b, 0, 0)),     # decoder hidden
            pl.BlockSpec((1, Se, D), lambda b: (b, 0, 0)),    # encoder hidden
            pl.BlockSpec((1, 1, Se), lambda b: (b, 0, 0)),    # encoder key-keep mask
            _replicated_spec((3 * H, D, dh)), _replicated_spec((3 * H, 1, dh)),  # self qkv
            _replicated_spec((H, dh, D)), _replicated_spec((1, D)),              # self o-proj
            _replicated_spec((1, D)), _replicated_spec((1, D)),                  # ln1
            _replicated_spec((H, D, dh)), _replicated_spec((H, 1, dh)),          # cross q
            _replicated_spec((2 * H, D, dh)), _replicated_spec((2 * H, 1, dh)),  # cross kv
            _replicated_spec((H, dh, D)), _replicated_spec((1, D)),              # cross o-proj
            _replicated_spec((1, D)), _replicated_spec((1, D)),                  # ln cross
            _replicated_spec((D, dff)), _replicated_spec((1, dff)),              # fc1
            _replicated_spec((dff, D)), _replicated_spec((1, D)),                # fc2
            _replicated_spec((1, D)), _replicated_spec((1, D)),                  # ln2
        ],
        out_specs=pl.BlockSpec((1, S, D), lambda b: (b, 0, 0)),
        compiler_params=pltpu.CompilerParams(
            dimension_semantics=("parallel",),
            vmem_limit_bytes=_VMEM_LIMIT),
    )(h, enc_h, enc_mask,
      lp['w_qkv'], lp['b_qkv'], lp['w_o'], lp['b_o'],
      lp['ln1_g'], lp['ln1_b'],
      lp['ca_w_q'], lp['ca_b_q'], lp['ca_w_kv'], lp['ca_b_kv'],
      lp['ca_w_o'], lp['ca_b_o'], lp['lnc_g'], lp['lnc_b'],
      lp['fc1_w'], lp['fc1_b'], lp['fc2_w'], lp['fc2_b'],
      lp['ln2_g'], lp['ln2_b'])


# ----------------------------- mini-BART model -----------------------------

CFG = dict(
    vocab=128,          # lane-aligned
    d_model=128,        # lane-aligned
    n_heads=4,
    d_ff=256,
    n_enc_layers=1,
    n_dec_layers=1,
    max_pos=32,
    pad_id=1,
    decoder_start_id=2,
)


def _normal(key, shape, std=0.02):
    return std * jax.random.normal(key, shape, dtype=jnp.float32)


def _head_major_in(w, n_heads):
    """[D, D] -> [H, D, d_head]: column blocks per head (q/k/v projections)."""
    d = w.shape[0]
    dh = d // n_heads
    return w.reshape(d, n_heads, dh).transpose(1, 0, 2)


def _head_major_out(w, n_heads):
    """[D, D] -> [H, d_head, D]: row blocks per head (output projection)."""
    d = w.shape[0]
    dh = d // n_heads
    return w.reshape(n_heads, dh, d)


def _init_self_attn(key, d, n_heads):
    dh = d // n_heads
    scale = 1.0 / math.sqrt(dh)
    ks = jax.random.split(key, 4)
    wq = _head_major_in(_normal(ks[0], (d, d)), n_heads) * scale   # scale folded in
    wk = _head_major_in(_normal(ks[1], (d, d)), n_heads)
    wv = _head_major_in(_normal(ks[2], (d, d)), n_heads)
    wo = _head_major_out(_normal(ks[3], (d, d)), n_heads)
    return dict(
        w_qkv=jnp.concatenate([wq, wk, wv], axis=0).astype(jnp.bfloat16),  # [3H, D, dh]
        b_qkv=jnp.zeros((3 * n_heads, 1, dh), jnp.float32),
        w_o=wo.astype(jnp.bfloat16),                                        # [H, dh, D]
        b_o=jnp.zeros((1, d), jnp.float32),
    )


def _init_cross_attn(key, d, n_heads):
    dh = d // n_heads
    scale = 1.0 / math.sqrt(dh)
    ks = jax.random.split(key, 4)
    wq = _head_major_in(_normal(ks[0], (d, d)), n_heads) * scale
    wk = _head_major_in(_normal(ks[1], (d, d)), n_heads)
    wv = _head_major_in(_normal(ks[2], (d, d)), n_heads)
    wo = _head_major_out(_normal(ks[3], (d, d)), n_heads)
    return dict(
        ca_w_q=wq.astype(jnp.bfloat16),                                      # [H, D, dh]
        ca_b_q=jnp.zeros((n_heads, 1, dh), jnp.float32),
        ca_w_kv=jnp.concatenate([wk, wv], axis=0).astype(jnp.bfloat16),      # [2H, D, dh]
        ca_b_kv=jnp.zeros((2 * n_heads, 1, dh), jnp.float32),
        ca_w_o=wo.astype(jnp.bfloat16),
        ca_b_o=jnp.zeros((1, d), jnp.float32),
    )


def _init_layer(key, cfg, cross=False):
    d, dff, H = cfg['d_model'], cfg['d_ff'], cfg['n_heads']
    ks = jax.random.split(key, 4)
    p = dict(
        ln1_g=jnp.ones((1, d), jnp.float32), ln1_b=jnp.zeros((1, d), jnp.float32),
        fc1_w=_normal(ks[1], (d, dff)).astype(jnp.bfloat16),
        fc1_b=jnp.zeros((1, dff), jnp.float32),
        fc2_w=_normal(ks[2], (dff, d)).astype(jnp.bfloat16),
        fc2_b=jnp.zeros((1, d), jnp.float32),
        ln2_g=jnp.ones((1, d), jnp.float32), ln2_b=jnp.zeros((1, d), jnp.float32),
    )
    p.update(_init_self_attn(ks[0], d, H))
    if cross:
        p.update(_init_cross_attn(ks[3], d, H))
        p['lnc_g'] = jnp.ones((1, d), jnp.float32)
        p['lnc_b'] = jnp.zeros((1, d), jnp.float32)
    return p


def init_params(key, cfg):
    d = cfg['d_model']
    n_layers = cfg['n_enc_layers'] + cfg['n_dec_layers']
    keys = jax.random.split(key, 3 + n_layers)
    embed_tokens = _normal(keys[0], (cfg['vocab'], d))
    enc_keys = keys[3:3 + cfg['n_enc_layers']]
    dec_keys = keys[3 + cfg['n_enc_layers']:]
    return dict(
        embed_tokens=embed_tokens.astype(jnp.bfloat16),
        lm_head_w=embed_tokens.T.astype(jnp.bfloat16),   # tied weights, transposed ONCE
        embed_pos_enc=_normal(keys[1], (cfg['max_pos'], d)).astype(jnp.bfloat16),
        embed_pos_dec=_normal(keys[2], (cfg['max_pos'], d)).astype(jnp.bfloat16),
        enc_ln_emb_g=jnp.ones((d,), jnp.float32),
        enc_ln_emb_b=jnp.zeros((d,), jnp.float32),
        dec_ln_emb_g=jnp.ones((d,), jnp.float32),
        dec_ln_emb_b=jnp.zeros((d,), jnp.float32),
        final_logits_bias=jnp.zeros((cfg['vocab'],), jnp.float32),
        enc_layers=[_init_layer(k, cfg, cross=False) for k in enc_keys],
        dec_layers=[_init_layer(k, cfg, cross=True) for k in dec_keys],
    )


def shift_tokens_right(input_ids, decoder_start_id):
    shifted = jnp.roll(input_ids, 1, axis=-1)
    return shifted.at[:, 0].set(decoder_start_id)


def summary_brief_forward(params, input_ids, attention_mask=None, cfg=CFG):
    """Mirrors Summary_brief.forward: returns logits [B, S, vocab]."""
    B, S = input_ids.shape
    if attention_mask is None:
        attention_mask = jnp.ones((B, S), dtype=jnp.int32)
    enc_mask = attention_mask.astype(jnp.float32).reshape(B, 1, S)   # key-keep mask

    # decoder inputs default to input_ids shifted right (HF BART behavior).
    decoder_input_ids = shift_tokens_right(input_ids, cfg['decoder_start_id'])
    Sd = decoder_input_ids.shape[1]

    # ---- embeddings (XLA gather glue) + embedding LayerNorm (Pallas) ----
    enc_h = jnp.take(params['embed_tokens'], input_ids, axis=0) \
        + params['embed_pos_enc'][:S][None]
    enc_h = layernorm(enc_h, params['enc_ln_emb_g'], params['enc_ln_emb_b'])

    dec_h = jnp.take(params['embed_tokens'], decoder_input_ids, axis=0) \
        + params['embed_pos_dec'][:Sd][None]
    dec_h = layernorm(dec_h, params['dec_ln_emb_g'], params['dec_ln_emb_b'])

    # ---- encoder: one fused pallas_call per layer ----
    for lp in params['enc_layers']:
        enc_h = encoder_layer(enc_h, lp, enc_mask, cfg)

    # ---- decoder: one fused pallas_call per layer ----
    for lp in params['dec_layers']:
        dec_h = decoder_layer(dec_h, enc_h, lp, enc_mask, cfg)

    # ---- LM head (tied to embed_tokens, pre-transposed at init) ----
    D = cfg['d_model']
    logits = dense(dec_h.reshape(B * Sd, D), params['lm_head_w'],
                   params['final_logits_bias'], out_dtype=jnp.float32)
    return logits.reshape(B, Sd, cfg['vocab'])


# ----------------------------- main -----------------------------

if __name__ == "__main__":
    key = jax.random.PRNGKey(0)
    pkey, ikey = jax.random.split(key)

    params = init_params(pkey, CFG)

    B, S = 2, 8
    input_ids = jax.random.randint(ikey, (B, S), 3, CFG['vocab'], dtype=jnp.int32)
    attention_mask = jnp.ones((B, S), dtype=jnp.int32)

    fwd = jax.jit(functools.partial(summary_brief_forward, params))
    logits = fwd(input_ids, attention_mask)
    jax.block_until_ready(logits)

    assert logits.shape == (B, S, CFG['vocab'])
    assert bool(jnp.all(jnp.isfinite(logits)))
    print("KERNEL_OK")
</pallas_src>

<mosaic_0001>
module attributes {stable_mosaic.version = 11 : i64} {
  func.func @_ln_kernel(%arg0: i32, %arg1: memref<16x128xbf16, #tpu.memory_space<vmem>>, %arg2: memref<1x128xf32, #tpu.memory_space<vmem>>, %arg3: memref<1x128xf32, #tpu.memory_space<vmem>>, %arg4: memref<16x128xbf16, #tpu.memory_space<vmem>>) attributes {dimension_semantics = [#tpu.dimension_semantics<parallel>], iteration_bounds = array<i64: 1>, scalar_prefetch = 0 : i64, scratch_operands = 0 : i64, tpu.core_type = #tpu.core_type<tc>, window_params = [{transform_indices = @transform_0, window_bounds = array<i64: 16, 128>}, {pipeline_mode = #tpu.pipeline_mode<synchronous>, transform_indices = @transform_1, window_bounds = array<i64: 1, 128>}, {pipeline_mode = #tpu.pipeline_mode<synchronous>, transform_indices = @transform_2, window_bounds = array<i64: 1, 128>}, {transform_indices = @transform_3, window_bounds = array<i64: 16, 128>}]} {
    %c0 = arith.constant 0 : index
    %c0_0 = arith.constant 0 : index
    %0 = vector.load %arg1[%c0, %c0_0] : memref<16x128xbf16, #tpu.memory_space<vmem>>, vector<16x128xbf16>
    %1 = arith.extf %0 : vector<16x128xbf16> to vector<16x128xf32>
    %c0_1 = arith.constant 0 : index
    %c0_2 = arith.constant 0 : index
    %2 = vector.load %arg2[%c0_1, %c0_2] : memref<1x128xf32, #tpu.memory_space<vmem>>, vector<1x128xf32>
    %c0_3 = arith.constant 0 : index
    %c0_4 = arith.constant 0 : index
    %3 = vector.load %arg3[%c0_3, %c0_4] : memref<1x128xf32, #tpu.memory_space<vmem>>, vector<1x128xf32>
    %cst = arith.constant dense<0.000000e+00> : vector<16xf32>
    %4 = vector.multi_reduction <add>, %1, %cst [1] : vector<16x128xf32> to vector<16xf32>
    %5 = vector.shape_cast %4 : vector<16xf32> to vector<16x1xf32>
    %cst_5 = arith.constant 1.280000e+02 : f32
    %6 = vector.broadcast %cst_5 : f32 to vector<16x1xf32>
    %7 = arith.divf %5, %6 : vector<16x1xf32>
    %8 = vector.broadcast %7 : vector<16x1xf32> to vector<16x128xf32>
    %9 = arith.subf %1, %8 : vector<16x128xf32>
    %10 = arith.mulf %9, %9 : vector<16x128xf32>
    %cst_6 = arith.constant dense<0.000000e+00> : vector<16xf32>
    %11 = vector.multi_reduction <add>, %10, %cst_6 [1] : vector<16x128xf32> to vector<16xf32>
    %12 = vector.shape_cast %11 : vector<16xf32> to vector<16x1xf32>
    %cst_7 = arith.constant 1.280000e+02 : f32
    %13 = vector.broadcast %cst_7 : f32 to vector<16x1xf32>
    %14 = arith.divf %12, %13 : vector<16x1xf32>
    %15 = vector.broadcast %7 : vector<16x1xf32> to vector<16x128xf32>
    %16 = arith.subf %1, %15 : vector<16x128xf32>
    %cst_8 = arith.constant 9.99999974E-6 : f32
    %17 = vector.broadcast %cst_8 : f32 to vector<16x1xf32>
    %18 = arith.addf %14, %17 : vector<16x1xf32>
    %19 = math.rsqrt %18 : vector<16x1xf32>
    %20 = vector.broadcast %19 : vector<16x1xf32> to vector<16x128xf32>
    %21 = arith.mulf %16, %20 : vector<16x128xf32>
    %22 = vector.broadcast %2 : vector<1x128xf32> to vector<16x128xf32>
    %23 = arith.mulf %21, %22 : vector<16x128xf32>
    %24 = vector.broadcast %3 : vector<1x128xf32> to vector<16x128xf32>
    %25 = arith.addf %23, %24 : vector<16x128xf32>
    %26 = arith.truncf %25 : vector<16x128xf32> to vector<16x128xbf16>
    %c0_9 = arith.constant 0 : index
    %c0_10 = arith.constant 0 : index
    %27 = vector.load %arg4[%c0_9, %c0_10] : memref<16x128xbf16, #tpu.memory_space<vmem>>, vector<16x128xbf16>
    tpu.vector_store %arg4[%c0_9, %c0_10], %26 {strides = array<i32>} : memref<16x128xbf16, #tpu.memory_space<vmem>>, vector<16x128xbf16>,
    return
  }
  func.func @transform_0(%arg0: i32) -> (i32, i32) {
    %c0_i32 = arith.constant 0 : i32
    %c0_i32_0 = arith.constant 0 : i32
    return %arg0, %c0_i32 : i32, i32
  }
  func.func @transform_1(%arg0: i32) -> (i32, i32) {
    %c0_i32 = arith.constant 0 : i32
    %c0_i32_0 = arith.constant 0 : i32
    %c0_i32_1 = arith.constant 0 : i32
    return %c0_i32, %c0_i32_0 : i32, i32
  }
  func.func @transform_2(%arg0: i32) -> (i32, i32) {
    %c0_i32 = arith.constant 0 : i32
    %c0_i32_0 = arith.constant 0 : i32
    %c0_i32_1 = arith.constant 0 : i32
    return %c0_i32, %c0_i32_0 : i32, i32
  }
  func.func @transform_3(%arg0: i32) -> (i32, i32) {
    %c0_i32 = arith.constant 0 : i32
    %c0_i32_0 = arith.constant 0 : i32
    return %arg0, %c0_i32 : i32, i32
  }
}

module attributes {stable_mosaic.version = 11 : i64} {
  func.func @kernel(%arg0: i32, %arg1: memref<1x8x128xbf16, #tpu.memory_space<vmem>>, %arg2: memref<1x1x8xf32, #tpu.memory_space<vmem>>, %arg3: memref<12x128x32xbf16, #tpu.memory_space<vmem>>, %arg4: memref<12x1x32xf32, #tpu.memory_space<vmem>>, %arg5: memref<4x32x128xbf16, #tpu.memory_space<vmem>>, %arg6: memref<1x128xf32, #tpu.memory_space<vmem>>, %arg7: memref<1x128xf32, #tpu.memory_space<vmem>>, %arg8: memref<1x128xf32, #tpu.memory_space<vmem>>, %arg9: memref<128x256xbf16, #tpu.memory_space<vmem>>, %arg10: memref<1x256xf32, #tpu.memory_space<vmem>>, %arg11: memref<256x128xbf16, #tpu.memory_space<vmem>>, %arg12: memref<1x128xf32, #tpu.memory_space<vmem>>, %arg13: memref<1x128xf32, #tpu.memory_space<vmem>>, %arg14: memref<1x128xf32, #tpu.memory_space<vmem>>, %arg15: memref<1x8x128xbf16, #tpu.memory_space<vmem>>) attributes {dimension_semantics = [#tpu.dimension_semantics<parallel>], iteration_bounds = array<i64: 2>, scalar_prefetch = 0 : i64, scratch_operands = 0 : i64, tpu.core_type = #tpu.core_type<tc>, window_params = [{transform_indices = @transform_0, window_bounds = array<i64: 1, 8, 128>}, {transform_indices = @transform_1, window_bounds = array<i64: 1, 1, 8>}, {pipeline_mode = #tpu.pipeline_mode<synchronous>, transform_indices = @transform_2, window_bounds = array<i64: 12, 128, 32>}, {pipeline_mode = #tpu.pipeline_mode<synchronous>, transform_indices = @transform_3, window_bounds = array<i64: 12, 1, 32>}, {pipeline_mode = #tpu.pipeline_mode<synchronous>, transform_indices = @transform_4, window_bounds = array<i64: 4, 32, 128>}, {pipeline_mode = #tpu.pipeline_mode<synchronous>, transform_indices = @transform_5, window_bounds = array<i64: 1, 128>}, {pipeline_mode = #tpu.pipeline_mode<synchronous>, transform_indices = @transform_6, window_bounds = array<i64: 1, 128>}, {pipeline_mode = #tpu.pipeline_mode<synchronous>, transform_indices = @transform_7, window_bounds = array<i64: 1, 128>}, {pipeline_mode = #tpu.pipeline_mode<synchronous>, transform_indices = @transform_8, window_bounds = array<i64: 128, 256>}, {pipeline_mode = #tpu.pipeline_mode<synchronous>, transform_indices = @transform_9, window_bounds = array<i64: 1, 256>}, {pipeline_mode = #tpu.pipeline_mode<synchronous>, transform_indices = @transform_10, window_bounds = array<i64: 256, 128>}, {pipeline_mode = #tpu.pipeline_mode<synchronous>, transform_indices = @transform_11, window_bounds = array<i64: 1, 128>}, {pipeline_mode = #tpu.pipeline_mode<synchronous>, transform_indices = @transform_12, window_bounds = array<i64: 1, 128>}, {pipeline_mode = #tpu.pipeline_mode<synchronous>, transform_indices = @transform_13, window_bounds = array<i64: 1, 128>}, {transform_indices = @transform_14, window_bounds = array<i64: 1, 8, 128>}]} {
    %c0 = arith.constant 0 : index
    %c0_0 = arith.constant 0 : index
    %c0_1 = arith.constant 0 : index
    %0 = vector.load %arg1[%c0, %c0_0, %c0_1] : memref<1x8x128xbf16, #tpu.memory_space<vmem>>, vector<1x8x128xbf16>
    %1 = vector.shape_cast %0 : vector<1x8x128xbf16> to vector<8x128xbf16>
    %c0_2 = arith.constant 0 : index
    %c0_3 = arith.constant 0 : index
    %c0_4 = arith.constant 0 : index
    %2 = vector.load %arg2[%c0_2, %c0_3, %c0_4] : memref<1x1x8xf32, #tpu.memory_space<vmem>>, vector<1x1x8xf32>
    %3 = vector.shape_cast %2 : vector<1x1x8xf32> to vector<1x8xf32>
    %cst = arith.constant 1.000000e+00 : f32
    %4 = vector.broadcast %cst : f32 to vector<1x8xf32>
    %5 = arith.subf %4, %3 : vector<1x8xf32>
    %cst_5 = arith.constant -1.000000e+09 : f32
    %6 = vector.broadcast %cst_5 : f32 to vector<1x8xf32>
    %7 = arith.mulf %5, %6 : vector<1x8xf32>
    %8 = vector.shape_cast %7 : vector<1x8xf32> to vector<1x8xf32>
    %9 = vector.broadcast %8 : vector<1x8xf32> to vector<8x8xf32>
    %cst_6 = arith.constant 0.000000e+00 : f32
    %10 = vector.broadcast %cst_6 : f32 to vector<8x128xf32>
    %c0_7 = arith.constant 0 : index
    %c0_8 = arith.constant 0 : index
    %c0_9 = arith.constant 0 : index
    %11 = vector.load %arg3[%c0_7, %c0_8, %c0_9] : memref<12x128x32xbf16, #tpu.memory_space<vmem>>, vector<1x128x32xbf16>
    %12 = vector.shape_cast %11 : vector<1x128x32xbf16> to vector<128x32xbf16>
    %cst_10 = arith.constant dense<0.000000e+00> : vector<8x32xf32>
    %13 = tpu.matmul %1, %12, %cst_10 {dimension_numbers = #tpu.dot_dimension_numbers<[1], [0], [0], [1], [0, 0, 1, 1], [], []>} : vector<8x128xbf16>, vector<128x32xbf16>, vector<8x32xf32> -> vector<8x32xf32>
    %c0_11 = arith.constant 0 : index
    %c0_12 = arith.constant 0 : index
    %c0_13 = arith.constant 0 : index
    %14 = vector.load %arg4[%c0_11, %c0_12, %c0_13] : memref<12x1x32xf32, #tpu.memory_space<vmem>>, vector<1x1x32xf32>
    %15 = vector.shape_cast %14 : vector<1x1x32xf32> to vector<1x32xf32>
    %16 = vector.broadcast %15 : vector<1x32xf32> to vector<8x32xf32>
    %17 = arith.addf %13, %16 : vector<8x32xf32>
    %c4 = arith.constant 4 : index
    %c0_14 = arith.constant 0 : index
    %c0_15 = arith.constant 0 : index
    %18 = vector.load %arg3[%c4, %c0_14, %c0_15] : memref<12x128x32xbf16, #tpu.memory_space<vmem>>, vector<1x128x32xbf16>
    %19 = vector.shape_cast %18 : vector<1x128x32xbf16> to vector<128x32xbf16>
    %cst_16 = arith.constant dense<0.000000e+00> : vector<8x32xf32>
    %20 = tpu.matmul %1, %19, %cst_16 {dimension_numbers = #tpu.dot_dimension_numbers<[1], [0], [0], [1], [0, 0, 1, 1], [], []>} : vector<8x128xbf16>, vector<128x32xbf16>, vector<8x32xf32> -> vector<8x32xf32>
    %c4_17 = arith.constant 4 : index
    %c0_18 = arith.constant 0 : index
    %c0_19 = arith.constant 0 : index
    %21 = vector.load %arg4[%c4_17, %c0_18, %c0_19] : memref<12x1x32xf32, #tpu.memory_space<vmem>>, vector<1x1x32xf32>
    %22 = vector.shape_cast %21 : vector<1x1x32xf32> to vector<1x32xf32>
    %23 = vector.broadcast %22 : vector<1x32xf32> to vector<8x32xf32>
    %24 = arith.addf %20, %23 : vector<8x32xf32>
    %c8 = arith.constant 8 : index
    %c0_20 = arith.constant 0 : index
    %c0_21 = arith.constant 0 : index
    %25 = vector.load %arg3[%c8, %c0_20, %c0_21] : memref<12x128x32xbf16, #tpu.memory_space<vmem>>, vector<1x128x32xbf16>
    %26 = vector.shape_cast %25 : vector<1x128x32xbf16> to vector<128x32xbf16>
    %cst_22 = arith.constant dense<0.000000e+00> : vector<8x32xf32>
    %27 = tpu.matmul %1, %26, %cst_22 {dimension_numbers = #tpu.dot_dimension_numbers<[1], [0], [0], [1], [0, 0, 1, 1], [], []>} : vector<8x128xbf16>, vector<128x32xbf16>, vector<8x32xf32> -> vector<8x32xf32>
    %c8_23 = arith.constant 8 : index
    %c0_24 = arith.constant 0 : index
    %c0_25 = arith.constant 0 : index
    %28 = vector.load %arg4[%c8_23, %c0_24, %c0_25] : memref<12x1x32xf32, #tpu.memory_space<vmem>>, vector<1x1x32xf32>
    %29 = vector.shape_cast %28 : vector<1x1x32xf32> to vector<1x32xf32>
    %30 = vector.broadcast %29 : vector<1x32xf32> to vector<8x32xf32>
    %31 = arith.addf %27, %30 : vector<8x32xf32>
    %32 = arith.truncf %17 : vector<8x32xf32> to vector<8x32xbf16>
    %33 = arith.truncf %24 : vector<8x32xf32> to vector<8x32xbf16>
    %cst_26 = arith.constant dense<0.000000e+00> : vector<8x8xf32>
    %34 = tpu.matmul %32, %33, %cst_26 {dimension_numbers = #tpu.dot_dimension_numbers<[1], [1], [0], [0], [0, 0, 1, 0], [], []>} : vector<8x32xbf16>, vector<8x32xbf16>, vector<8x8xf32> -> vector<8x8xf32>
    %35 = arith.addf %34, %9 : vector<8x8xf32>
    %cst_27 = arith.constant dense<0xFF800000> : vector<8xf32>
    %36 = vector.multi_reduction <maximumf>, %35, %cst_27 [1] : vector<8x8xf32> to vector<8xf32>
    %37 = vector.shape_cast %36 : vector<8xf32> to vector<8x1xf32>
    %38 = vector.broadcast %37 : vector<8x1xf32> to vector<8x8xf32>
    %39 = arith.subf %35, %38 : vector<8x8xf32>
    %40 = math.exp %39 : vector<8x8xf32>
    %cst_28 = arith.constant dense<0.000000e+00> : vector<8xf32>
    %41 = vector.multi_reduction <add>, %40, %cst_28 [1] : vector<8x8xf32> to vector<8xf32>
    %42 = vector.shape_cast %41 : vector<8xf32> to vector<8x1xf32>
    %43 = tpu.reciprocal %42 {approx = true} : vector<8x1xf32> -> vector<8x1xf32>
    %44 = vector.broadcast %43 : vector<8x1xf32> to vector<8x8xf32>
    %45 = arith.mulf %40, %44 : vector<8x8xf32>
    %46 = arith.truncf %45 : vector<8x8xf32> to vector<8x8xbf16>
    %47 = arith.truncf %31 : vector<8x32xf32> to vector<8x32xbf16>
    %cst_29 = arith.constant dense<0.000000e+00> : vector<8x32xf32>
    %48 = tpu.matmul %46, %47, %cst_29 {dimension_numbers = #tpu.dot_dimension_numbers<[1], [0], [0], [1], [0, 0, 1, 1], [], []>} : vector<8x8xbf16>, vector<8x32xbf16>, vector<8x32xf32> -> vector<8x32xf32>
    %49 = arith.truncf %48 : vector<8x32xf32> to vector<8x32xbf16>
    %c0_30 = arith.constant 0 : index
    %c0_31 = arith.constant 0 : index
    %c0_32 = arith.constant 0 : index
    %50 = vector.load %arg5[%c0_30, %c0_31, %c0_32] : memref<4x32x128xbf16, #tpu.memory_space<vmem>>, vector<1x32x128xbf16>
    %51 = vector.shape_cast %50 : vector<1x32x128xbf16> to vector<32x128xbf16>
    %cst_33 = arith.constant dense<0.000000e+00> : vector<8x128xf32>
    %52 = tpu.matmul %49, %51, %cst_33 {dimension_numbers = #tpu.dot_dimension_numbers<[1], [0], [0], [1], [0, 0, 1, 1], [], []>} : vector<8x32xbf16>, vector<32x128xbf16>, vector<8x128xf32> -> vector<8x128xf32>
    %53 = arith.addf %10, %52 : vector<8x128xf32>
    %c1 = arith.constant 1 : index
    %c0_34 = arith.constant 0 : index
    %c0_35 = arith.constant 0 : index
    %54 = vector.load %arg3[%c1, %c0_34, %c0_35] : memref<12x128x32xbf16, #tpu.memory_space<vmem>>, vector<1x128x32xbf16>
    %55 = vector.shape_cast %54 : vector<1x128x32xbf16> to vector<128x32xbf16>
    %cst_36 = arith.constant dense<0.000000e+00> : vector<8x32xf32>
    %56 = tpu.matmul %1, %55, %cst_36 {dimension_numbers = #tpu.dot_dimension_numbers<[1], [0], [0], [1], [0, 0, 1, 1], [], []>} : vector<8x128xbf16>, vector<128x32xbf16>, vector<8x32xf32> -> vector<8x32xf32>
    %c1_37 = arith.constant 1 : index
    %c0_38 = arith.constant 0 : index
    %c0_39 = arith.constant 0 : index
    %57 = vector.load %arg4[%c1_37, %c0_38, %c0_39] : memref<12x1x32xf32, #tpu.memory_space<vmem>>, vector<1x1x32xf32>
    %58 = vector.shape_cast %57 : vector<1x1x32xf32> to vector<1x32xf32>
    %59 = vector.broadcast %58 : vector<1x32xf32> to vector<8x32xf32>
    %60 = arith.addf %56, %59 : vector<8x32xf32>
    %c5 = arith.constant 5 : index
    %c0_40 = arith.constant 0 : index
    %c0_41 = arith.constant 0 : index
    %61 = vector.load %arg3[%c5, %c0_40, %c0_41] : memref<12x128x32xbf16, #tpu.memory_space<vmem>>, vector<1x128x32xbf16>
    %62 = vector.shape_cast %61 : vector<1x128x32xbf16> to vector<128x32xbf16>
    %cst_42 = arith.constant dense<0.000000e+00> : vector<8x32xf32>
    %63 = tpu.matmul %1, %62, %cst_42 {dimension_numbers = #tpu.dot_dimension_numbers<[1], [0], [0], [1], [0, 0, 1, 1], [], []>} : vector<8x128xbf16>, vector<128x32xbf16>, vector<8x32xf32> -> vector<8x32xf32>
    %c5_43 = arith.constant 5 : index
    %c0_44 = arith.constant 0 : index
    %c0_45 = arith.constant 0 : index
    %64 = vector.load %arg4[%c5_43, %c0_44, %c0_45] : memref<12x1x32xf32, #tpu.memory_space<vmem>>, vector<1x1x32xf32>
    %65 = vector.shape_cast %64 : vector<1x1x32xf32> to vector<1x32xf32>
    %66 = vector.broadcast %65 : vector<1x32xf32> to vector<8x32xf32>
    %67 = arith.addf %63, %66 : vector<8x32xf32>
    %c9 = arith.constant 9 : index
    %c0_46 = arith.constant 0 : index
    %c0_47 = arith.constant 0 : index
    %68 = vector.load %arg3[%c9, %c0_46, %c0_47] : memref<12x128x32xbf16, #tpu.memory_space<vmem>>, vector<1x128x32xbf16>
    %69 = vector.shape_cast %68 : vector<1x128x32xbf16> to vector<128x32xbf16>
    %cst_48 = arith.constant dense<0.000000e+00> : vector<8x32xf32>
    %70 = tpu.matmul %1, %69, %cst_48 {dimension_numbers = #tpu.dot_dimension_numbers<[1], [0], [0], [1], [0, 0, 1, 1], [], []>} : vector<8x128xbf16>, vector<128x32xbf16>, vector<8x32xf32> -> vector<8x32xf32>
    %c9_49 = arith.constant 9 : index
    %c0_50 = arith.constant 0 : index
    %c0_51 = arith.constant 0 : index
    %71 = vector.load %arg4[%c9_49, %c0_50, %c0_51] : memref<12x1x32xf32, #tpu.memory_space<vmem>>, vector<1x1x32xf32>
    %72 = vector.shape_cast %71 : vector<1x1x32xf32> to vector<1x32xf32>
    %73 = vector.broadcast %72 : vector<1x32xf32> to vector<8x32xf32>
    %74 = arith.addf %70, %73 : vector<8x32xf32>
    %75 = arith.truncf %60 : vector<8x32xf32> to vector<8x32xbf16>
    %76 = arith.truncf %67 : vector<8x32xf32> to vector<8x32xbf16>
    %cst_52 = arith.constant dense<0.000000e+00> : vector<8x8xf32>
    %77 = tpu.matmul %75, %76, %cst_52 {dimension_numbers = #tpu.dot_dimension_numbers<[1], [1], [0], [0], [0, 0, 1, 0], [], []>} : vector<8x32xbf16>, vector<8x32xbf16>, vector<8x8xf32> -> vector<8x8xf32>
    %78 = arith.addf %77, %9 : vector<8x8xf32>
    %cst_53 = arith.constant dense<0xFF800000> : vector<8xf32>
    %79 = vector.multi_reduction <maximumf>, %78, %cst_53 [1] : vector<8x8xf32> to vector<8xf32>
    %80 = vector.shape_cast %79 : vector<8xf32> to vector<8x1xf32>
    %81 = vector.broadcast %80 : vector<8x1xf32> to vector<8x8xf32>
    %82 = arith.subf %78, %81 : vector<8x8xf32>
    %83 = math.exp %82 : vector<8x8xf32>
    %cst_54 = arith.constant dense<0.000000e+00> : vector<8xf32>
    %84 = vector.multi_reduction <add>, %83, %cst_54 [1] : vector<8x8xf32> to vector<8xf32>
    %85 = vector.shape_cast %84 : vector<8xf32> to vector<8x1xf32>
    %86 = tpu.reciprocal %85 {approx = true} : vector<8x1xf32> -> vector<8x1xf32>
    %87 = vector.broadcast %86 : vector<8x1xf32> to vector<8x8xf32>
    %88 = arith.mulf %83, %87 : vector<8x8xf32>
    %89 = arith.truncf %88 : vector<8x8xf32> to vector<8x8xbf16>
    %90 = arith.truncf %74 : vector<8x32xf32> to vector<8x32xbf16>
    %cst_55 = arith.constant dense<0.000000e+00> : vector<8x32xf32>
    %91 = tpu.matmul %89, %90, %cst_55 {dimension_numbers = #tpu.dot_dimension_numbers<[1], [0], [0], [1], [0, 0, 1, 1], [], []>} : vector<8x8xbf16>, vector<8x32xbf16>, vector<8x32xf32> -> vector<8x32xf32>
    %92 = arith.truncf %91 : vector<8x32xf32> to vector<8x32xbf16>
    %c1_56 = arith.constant 1 : index
    %c0_57 = arith.constant 0 : index
    %c0_58 = arith.constant 0 : index
    %93 = vector.load %arg5[%c1_56, %c0_57, %c0_58] : memref<4x32x128xbf16, #tpu.memory_space<vmem>>, vector<1x32x128xbf16>
    %94 = vector.shape_cast %93 : vector<1x32x128xbf16> to vector<32x128xbf16>
    %cst_59 = arith.constant dense<0.000000e+00> : vector<8x128xf32>
    %95 = tpu.matmul %92, %94, %cst_59 {dimension_numbers = #tpu.dot_dimension_numbers<[1], [0], [0], [1], [0, 0, 1, 1], [], []>} : vector<8x32xbf16>, vector<32x128xbf16>, vector<8x128xf32> -> vector<8x128xf32>
    %96 = arith.addf %53, %95 : vector<8x128xf32>
    %c2 = arith.constant 2 : index
    %c0_60 = arith.constant 0 : index
    %c0_61 = arith.constant 0 : index
    %97 = vector.load %arg3[%c2, %c0_60, %c0_61] : memref<12x128x32xbf16, #tpu.memory_space<vmem>>, vector<1x128x32xbf16>
    %98 = vector.shape_cast %97 : vector<1x128x32xbf16> to vector<128x32xbf16>
    %cst_62 = arith.constant dense<0.000000e+00> : vector<8x32xf32>
    %99 = tpu.matmul %1, %98, %cst_62 {dimension_numbers = #tpu.dot_dimension_numbers<[1], [0], [0], [1], [0, 0, 1, 1], [], []>} : vector<8x128xbf16>, vector<128x32xbf16>, vector<8x32xf32> -> vector<8x32xf32>
    %c2_63 = arith.constant 2 : index
    %c0_64 = arith.constant 0 : index
    %c0_65 = arith.constant 0 : index
    %100 = vector.load %arg4[%c2_63, %c0_64, %c0_65] : memref<12x1x32xf32, #tpu.memory_space<vmem>>, vector<1x1x32xf32>
    %101 = vector.shape_cast %100 : vector<1x1x32xf32> to vector<1x32xf32>
    %102 = vector.broadcast %101 : vector<1x32xf32> to vector<8x32xf32>
    %103 = arith.addf %99, %102 : vector<8x32xf32>
    %c6 = arith.constant 6 : index
    %c0_66 = arith.constant 0 : index
    %c0_67 = arith.constant 0 : index
    %104 = vector.load %arg3[%c6, %c0_66, %c0_67] : memref<12x128x32xbf16, #tpu.memory_space<vmem>>, vector<1x128x32xbf16>
    %105 = vector.shape_cast %104 : vector<1x128x32xbf16> to vector<128x32xbf16>
    %cst_68 = arith.constant dense<0.000000e+00> : vector<8x32xf32>
    %106 = tpu.matmul %1, %105, %cst_68 {dimension_numbers = #tpu.dot_dimension_numbers<[1], [0], [0], [1], [0, 0, 1, 1], [], []>} : vector<8x128xbf16>, vector<128x32xbf16>, vector<8x32xf32> -> vector<8x32xf32>
    %c6_69 = arith.constant 6 : index
    %c0_70 = arith.constant 0 : index
    %c0_71 = arith.constant 0 : index
    %107 = vector.load %arg4[%c6_69, %c0_70, %c0_71] : memref<12x1x32xf32, #tpu.memory_space<vmem>>, vector<1x1x32xf32>
    %108 = vector.shape_cast %107 : vector<1x1x32xf32> to vector<1x32xf32>
    %109 = vector.broadcast %108 : vector<1x32xf32> to vector<8x32xf32>
    %110 = arith.addf %106, %109 : vector<8x32xf32>
    %c10 = arith.constant 10 : index
    %c0_72 = arith.constant 0 : index
    %c0_73 = arith.constant 0 : index
    %111 = vector.load %arg3[%c10, %c0_72, %c0_73] : memref<12x128x32xbf16, #tpu.memory_space<vmem>>, vector<1x128x32xbf16>
    %112 = vector.shape_cast %111 : vector<1x128x32xbf16> to vector<128x32xbf16>
    %cst_74 = arith.constant dense<0.000000e+00> : vector<8x32xf32>
    %113 = tpu.matmul %1, %112, %cst_74 {dimension_numbers = #tpu.dot_dimension_numbers<[1], [0], [0], [1], [0, 0, 1, 1], [], []>} : vector<8x128xbf16>, vector<128x32xbf16>, vector<8x32xf32> -> vector<8x32xf32>
    %c10_75 = arith.constant 10 : index
    %c0_76 = arith.constant 0 : index
    %c0_77 = arith.constant 0 : index
    %114 = vector.load %arg4[%c10_75, %c0_76, %c0_77] : memref<12x1x32xf32, #tpu.memory_space<vmem>>, vector<1x1x32xf32>
    %115 = vector.shape_cast %114 : vector<1x1x32xf32> to vector<1x32xf32>
    %116 = vector.broadcast %115 : vector<1x32xf32> to vector<8x32xf32>
    %117 = arith.addf %113, %116 : vector<8x32xf32>
    %118 = arith.truncf %103 : vector<8x32xf32> to vector<8x32xbf16>
    %119 = arith.truncf %110 : vector<8x32xf32> to vector<8x32xbf16>
    %cst_78 = arith.constant dense<0.000000e+00> : vector<8x8xf32>
    %120 = tpu.matmul %118, %119, %cst_78 {dimension_numbers = #tpu.dot_dimension_numbers<[1], [1], [0], [0], [0, 0, 1, 0], [], []>} : vector<8x32xbf16>, vector<8x32xbf16>, vector<8x8xf32> -> vector<8x8xf32>
    %121 = arith.addf %120, %9 : vector<8x8xf32>
    %cst_79 = arith.constant dense<0xFF800000> : vector<8xf32>
    %122 = vector.multi_reduction <maximumf>, %121, %cst_79 [1] : vector<8x8xf32> to vector<8xf32>
    %123 = vector.shape_cast %122 : vector<8xf32> to vector<8x1xf32>
    %124 = vector.broadcast %123 : vector<8x1xf32> to vector<8x8xf32>
    %125 = arith.subf %121, %124 : vector<8x8xf32>
    %126 = math.exp %125 : vector<8x8xf32>
    %cst_80 = arith.constant dense<0.000000e+00> : vector<8xf32>
    %127 = vector.multi_reduction <add>, %126, %cst_80 [1] : vector<8x8xf32> to vector<8xf32>
    %128 = vector.shape_cast %127 : vector<8xf32> to vector<8x1xf32>
    %129 = tpu.reciprocal %128 {approx = true} : vector<8x1xf32> -> vector<8x1xf32>
    %130 = vector.broadcast %129 : vector<8x1xf32> to vector<8x8xf32>
    %131 = arith.mulf %126, %130 : vector<8x8xf32>
    %132 = arith.truncf %131 : vector<8x8xf32> to vector<8x8xbf16>
    %133 = arith.truncf %117 : vector<8x32xf32> to vector<8x32xbf16>
    %cst_81 = arith.constant dense<0.000000e+00> : vector<8x32xf32>
    %134 = tpu.matmul %132, %133, %cst_81 {dimension_numbers = #tpu.dot_dimension_numbers<[1], [0], [0], [1], [0, 0, 1, 1], [], []>} : vector<8x8xbf16>, vector<8x32xbf16>, vector<8x32xf32> -> vector<8x32xf32>
    %135 = arith.truncf %134 : vector<8x32xf32> to vector<8x32xbf16>
    %c2_82 = arith.constant 2 : index
    %c0_83 = arith.constant 0 : index
    %c0_84 = arith.constant 0 : index
    %136 = vector.load %arg5[%c2_82, %c0_83, %c0_84] : memref<4x32x128xbf16, #tpu.memory_space<vmem>>, vector<1x32x128xbf16>
    %137 = vector.shape_cast %136 : vector<1x32x128xbf16> to vector<32x128xbf16>
    %cst_85 = arith.constant dense<0.000000e+00> : vector<8x128xf32>
    %138 = tpu.matmul %135, %137, %cst_85 {dimension_numbers = #tpu.dot_dimension_numbers<[1], [0], [0], [1], [0, 0, 1, 1], [], []>} : vector<8x32xbf16>, vector<32x128xbf16>, vector<8x128xf32> -> vector<8x128xf32>
    %139 = arith.addf %96, %138 : vector<8x128xf32>
    %c3 = arith.constant 3 : index
    %c0_86 = arith.constant 0 : index
    %c0_87 = arith.constant 0 : index
    %140 = vector.load %arg3[%c3, %c0_86, %c0_87] : memref<12x128x32xbf16, #tpu.memory_space<vmem>>, vector<1x128x32xbf16>
    %141 = vector.shape_cast %140 : vector<1x128x32xbf16> to vector<128x32xbf16>
    %cst_88 = arith.constant dense<0.000000e+00> : vector<8x32xf32>
    %142 = tpu.matmul %1, %141, %cst_88 {dimension_numbers = #tpu.dot_dimension_numbers<[1], [0], [0], [1], [0, 0, 1, 1], [], []>} : vector<8x128xbf16>, vector<128x32xbf16>, vector<8x32xf32> -> vector<8x32xf32>
    %c3_89 = arith.constant 3 : index
    %c0_90 = arith.constant 0 : index
    %c0_91 = arith.constant 0 : index
    %143 = vector.load %arg4[%c3_89, %c0_90, %c0_91] : memref<12x1x32xf32, #tpu.memory_space<vmem>>, vector<1x1x32xf32>
    %144 = vector.shape_cast %143 : vector<1x1x32xf32> to vector<1x32xf32>
    %145 = vector.broadcast %144 : vector<1x32xf32> to vector<8x32xf32>
    %146 = arith.addf %142, %145 : vector<8x32xf32>
    %c7 = arith.constant 7 : index
    %c0_92 = arith.constant 0 : index
    %c0_93 = arith.constant 0 : index
    %147 = vector.load %arg3[%c7, %c0_92, %c0_93] : memref<12x128x32xbf16, #tpu.memory_space<vmem>>, vector<1x128x32xbf16>
    %148 = vector.shape_cast %147 : vector<1x128x32xbf16> to vector<128x32xbf16>
    %cst_94 = arith.constant dense<0.000000e+00> : vector<8x32xf32>
    %149 = tpu.matmul %1, %148, %cst_94 {dimension_numbers = #tpu.dot_dimension_numbers<[1], [0], [0], [1], [0, 0, 1, 1], [], []>} : vector<8x128xbf16>, vector<128x32xbf16>, vector<8x32xf32> -> vector<8x32xf32>
    %c7_95 = arith.constant 7 : index
    %c0_96 = arith.constant 0 : index
    %c0_97 = arith.constant 0 : index
    %150 = vector.load %arg4[%c7_95, %c0_96, %c0_97] : memref<12x1x32xf32, #tpu.memory_space<vmem>>, vector<1x1x32xf32>
    %151 = vector.shape_cast %150 : vector<1x1x32xf32> to vector<1x32xf32>
    %152 = vector.broadcast %151 : vector<1x32xf32> to vector<8x32xf32>
    %153 = arith.addf %149, %152 : vector<8x32xf32>
    %c11 = arith.constant 11 : index
    %c0_98 = arith.constant 0 : index
    %c0_99 = arith.constant 0 : index
    %154 = vector.load %arg3[%c11, %c0_98, %c0_99] : memref<12x128x32xbf16, #tpu.memory_space<vmem>>, vector<1x128x32xbf16>
    %155 = vector.shape_cast %154 : vector<1x128x32xbf16> to vector<128x32xbf16>
    %cst_100 = arith.constant dense<0.000000e+00> : vector<8x32xf32>
    %156 = tpu.matmul %1, %155, %cst_100 {dimension_numbers = #tpu.dot_dimension_numbers<[1], [0], [0], [1], [0, 0, 1, 1], [], []>} : vector<8x128xbf16>, vector<128x32xbf16>, vector<8x32xf32> -> vector<8x32xf32>
    %c11_101 = arith.constant 11 : index
    %c0_102 = arith.constant 0 : index
    %c0_103 = arith.constant 0 : index
    %157 = vector.load %arg4[%c11_101, %c0_102, %c0_103] : memref<12x1x32xf32, #tpu.memory_space<vmem>>, vector<1x1x32xf32>
    %158 = vector.shape_cast %157 : vector<1x1x32xf32> to vector<1x32xf32>
    %159 = vector.broadcast %158 : vector<1x32xf32> to vector<8x32xf32>
    %160 = arith.addf %156, %159 : vector<8x32xf32>
    %161 = arith.truncf %146 : vector<8x32xf32> to vector<8x32xbf16>
    %162 = arith.truncf %153 : vector<8x32xf32> to vector<8x32xbf16>
    %cst_104 = arith.constant dense<0.000000e+00> : vector<8x8xf32>
    %163 = tpu.matmul %161, %162, %cst_104 {dimension_numbers = #tpu.dot_dimension_numbers<[1], [1], [0], [0], [0, 0, 1, 0], [], []>} : vector<8x32xbf16>, vector<8x32xbf16>, vector<8x8xf32> -> vector<8x8xf32>
    %164 = arith.addf %163, %9 : vector<8x8xf32>
    %cst_105 = arith.constant dense<0xFF800000> : vector<8xf32>
    %165 = vector.multi_reduction <maximumf>, %164, %cst_105 [1] : vector<8x8xf32> to vector<8xf32>
    %166 = vector.shape_cast %165 : vector<8xf32> to vector<8x1xf32>
    %167 = vector.broadcast %166 : vector<8x1xf32> to vector<8x8xf32>
    %168 = arith.subf %164, %167 : vector<8x8xf32>
    %169 = math.exp %168 : vector<8x8xf32>
    %cst_106 = arith.constant dense<0.000000e+00> : vector<8xf32>
    %170 = vector.multi_reduction <add>, %169, %cst_106 [1] : vector<8x8xf32> to vector<8xf32>
    %171 = vector.shape_cast %170 : vector<8xf32> to vector<8x1xf32>
    %172 = tpu.reciprocal %171 {approx = true} : vector<8x1xf32> -> vector<8x1xf32>
    %173 = vector.broadcast %172 : vector<8x1xf32> to vector<8x8xf32>
    %174 = arith.mulf %169, %173 : vector<8x8xf32>
    %175 = arith.truncf %174 : vector<8x8xf32> to vector<8x8xbf16>
    %176 = arith.truncf %160 : vector<8x32xf32> to vector<8x32xbf16>
    %cst_107 = arith.constant dense<0.000000e+00> : vector<8x32xf32>
    %177 = tpu.matmul %175, %176, %cst_107 {dimension_numbers = #tpu.dot_dimension_numbers<[1], [0], [0], [1], [0, 0, 1, 1], [], []>} : vector<8x8xbf16>, vector<8x32xbf16>, vector<8x32xf32> -> vector<8x32xf32>
    %178 = arith.truncf %177 : vector<8x32xf32> to vector<8x32xbf16>
    %c3_108 = arith.constant 3 : index
    %c0_109 = arith.constant 0 : index
    %c0_110 = arith.constant 0 : index
    %179 = vector.load %arg5[%c3_108, %c0_109, %c0_110] : memref<4x32x128xbf16, #tpu.memory_space<vmem>>, vector<1x32x128xbf16>
    %180 = vector.shape_cast %179 : vector<1x32x128xbf16> to vector<32x128xbf16>
    %cst_111 = arith.constant dense<0.000000e+00> : vector<8x128xf32>
    %181 = tpu.matmul %178, %180, %cst_111 {dimension_numbers = #tpu.dot_dimension_numbers<[1], [0], [0], [1], [0, 0, 1, 1], [], []>} : vector<8x32xbf16>, vector<32x128xbf16>, vector<8x128xf32> -> vector<8x128xf32>
    %182 = arith.addf %139, %181 : vector<8x128xf32>
    %c0_112 = arith.constant 0 : index
    %c0_113 = arith.constant 0 : index
    %183 = vector.load %arg6[%c0_112, %c0_113] : memref<1x128xf32, #tpu.memory_space<vmem>>, vector<1x128xf32>
    %184 = vector.broadcast %183 : vector<1x128xf32> to vector<8x128xf32>
    %185 = arith.addf %182, %184 : vector<8x128xf32>
    %186 = arith.extf %1 : vector<8x128xbf16> to vector<8x128xf32>
    %187 = arith.addf %185, %186 : vector<8x128xf32>
    %c0_114 = arith.constant 0 : index
    %c0_115 = arith.constant 0 : index
    %188 = vector.load %arg7[%c0_114, %c0_115] : memref<1x128xf32, #tpu.memory_space<vmem>>, vector<1x128xf32>
    %c0_116 = arith.constant 0 : index
    %c0_117 = arith.constant 0 : index
    %189 = vector.load %arg8[%c0_116, %c0_117] : memref<1x128xf32, #tpu.memory_space<vmem>>, vector<1x128xf32>
    %cst_118 = arith.constant dense<0.000000e+00> : vector<8xf32>
    %190 = vector.multi_reduction <add>, %187, %cst_118 [1] : vector<8x128xf32> to vector<8xf32>
    %191 = vector.shape_cast %190 : vector<8xf32> to vector<8x1xf32>
    %cst_119 = arith.constant 1.280000e+02 : f32
    %192 = vector.broadcast %cst_119 : f32 to vector<8x1xf32>
    %193 = arith.divf %191, %192 : vector<8x1xf32>
    %194 = vector.broadcast %193 : vector<8x1xf32> to vector<8x128xf32>
    %195 = arith.subf %187, %194 : vector<8x128xf32>
    %196 = arith.mulf %195, %195 : vector<8x128xf32>
    %cst_120 = arith.constant dense<0.000000e+00> : vector<8xf32>
    %197 = vector.multi_reduction <add>, %196, %cst_120 [1] : vector<8x128xf32> to vector<8xf32>
    %198 = vector.shape_cast %197 : vector<8xf32> to vector<8x1xf32>
    %cst_121 = arith.constant 1.280000e+02 : f32
    %199 = vector.broadcast %cst_121 : f32 to vector<8x1xf32>
    %200 = arith.divf %198, %199 : vector<8x1xf32>
    %201 = vector.broadcast %193 : vector<8x1xf32> to vector<8x128xf32>
    %202 = arith.subf %187, %201 : vector<8x128xf32>
    %cst_122 = arith.constant 9.99999974E-6 : f32
    %203 = vector.broadcast %cst_122 : f32 to vector<8x1xf32>
    %204 = arith.addf %200, %203 : vector<8x1xf32>
    %205 = math.rsqrt %204 : vector<8x1xf32>
    %206 = vector.broadcast %205 : vector<8x1xf32> to vector<8x128xf32>
    %207 = arith.mulf %202, %206 : vector<8x128xf32>
    %208 = vector.broadcast %188 : vector<1x128xf32> to vector<8x128xf32>
    %209 = arith.mulf %207, %208 : vector<8x128xf32>
    %210 = vector.broadcast %189 : vector<1x128xf32> to vector<8x128xf32>
    %211 = arith.addf %209, %210 : vector<8x128xf32>
    %212 = arith.truncf %211 : vector<8x128xf32> to vector<8x128xbf16>
    %c0_123 = arith.constant 0 : index
    %c0_124 = arith.constant 0 : index
    %213 = vector.load %arg9[%c0_123, %c0_124] : memref<128x256xbf16, #tpu.memory_space<vmem>>, vector<128x256xbf16>
    %cst_125 = arith.constant dense<0.000000e+00> : vector<8x256xf32>
    %214 = tpu.matmul %212, %213, %cst_125 {dimension_numbers = #tpu.dot_dimension_numbers<[1], [0], [0], [1], [0, 0, 1, 1], [], []>} : vector<8x128xbf16>, vector<128x256xbf16>, vector<8x256xf32> -> vector<8x256xf32>
    %c0_126 = arith.constant 0 : index
    %c0_127 = arith.constant 0 : index
    %215 = vector.load %arg10[%c0_126, %c0_127] : memref<1x256xf32, #tpu.memory_space<vmem>>, vector<1x256xf32>
    %216 = vector.broadcast %215 : vector<1x256xf32> to vector<8x256xf32>
    %217 = arith.addf %214, %216 : vector<8x256xf32>
    %218 = arith.mulf %217, %217 : vector<8x256xf32>
    %219 = arith.mulf %217, %218 : vector<8x256xf32>
    %cst_128 = arith.constant 4.471500e-02 : f32
    %220 = vector.broadcast %cst_128 : f32 to vector<8x256xf32>
    %221 = arith.mulf %220, %219 : vector<8x256xf32>
    %222 = arith.addf %217, %221 : vector<8x256xf32>
    %cst_129 = arith.constant 0.797884583 : f32
    %223 = vector.broadcast %cst_129 : f32 to vector<8x256xf32>
    %224 = arith.mulf %223, %222 : vector<8x256xf32>
    %225 = math.tanh %224 : vector<8x256xf32>
    %cst_130 = arith.constant 1.000000e+00 : f32
    %226 = vector.broadcast %cst_130 : f32 to vector<8x256xf32>
    %227 = arith.addf %226, %225 : vector<8x256xf32>
    %cst_131 = arith.constant 5.000000e-01 : f32
    %228 = vector.broadcast %cst_131 : f32 to vector<8x256xf32>
    %229 = arith.mulf %228, %227 : vector<8x256xf32>
    %230 = arith.mulf %217, %229 : vector<8x256xf32>
    %231 = arith.truncf %230 : vector<8x256xf32> to vector<8x256xbf16>
    %c0_132 = arith.constant 0 : index
    %c0_133 = arith.constant 0 : index
    %232 = vector.load %arg11[%c0_132, %c0_133] : memref<256x128xbf16, #tpu.memory_space<vmem>>, vector<256x128xbf16>
    %cst_134 = arith.constant dense<0.000000e+00> : vector<8x128xf32>
    %233 = tpu.matmul %231, %232, %cst_134 {dimension_numbers = #tpu.dot_dimension_numbers<[1], [0], [0], [1], [0, 0, 1, 1], [], []>} : vector<8x256xbf16>, vector<256x128xbf16>, vector<8x128xf32> -> vector<8x128xf32>
    %c0_135 = arith.constant 0 : index
    %c0_136 = arith.constant 0 : index
    %234 = vector.load %arg12[%c0_135, %c0_136] : memref<1x128xf32, #tpu.memory_space<vmem>>, vector<1x128xf32>
    %235 = vector.broadcast %234 : vector<1x128xf32> to vector<8x128xf32>
    %236 = arith.addf %233, %235 : vector<8x128xf32>
    %237 = arith.addf %236, %211 : vector<8x128xf32>
    %c0_137 = arith.constant 0 : index
    %c0_138 = arith.constant 0 : index
    %238 = vector.load %arg13[%c0_137, %c0_138] : memref<1x128xf32, #tpu.memory_space<vmem>>, vector<1x128xf32>
    %c0_139 = arith.constant 0 : index
    %c0_140 = arith.constant 0 : index
    %239 = vector.load %arg14[%c0_139, %c0_140] : memref<1x128xf32, #tpu.memory_space<vmem>>, vector<1x128xf32>
    %cst_141 = arith.constant dense<0.000000e+00> : vector<8xf32>
    %240 = vector.multi_reduction <add>, %237, %cst_141 [1] : vector<8x128xf32> to vector<8xf32>
    %241 = vector.shape_cast %240 : vector<8xf32> to vector<8x1xf32>
    %cst_142 = arith.constant 1.280000e+02 : f32
    %242 = vector.broadcast %cst_142 : f32 to vector<8x1xf32>
    %243 = arith.divf %241, %242 : vector<8x1xf32>
    %244 = vector.broadcast %243 : vector<8x1xf32> to vector<8x128xf32>
    %245 = arith.subf %237, %244 : vector<8x128xf32>
    %246 = arith.mulf %245, %245 : vector<8x128xf32>
    %cst_143 = arith.constant dense<0.000000e+00> : vector<8xf32>
    %247 = vector.multi_reduction <add>, %246, %cst_143 [1] : vector<8x128xf32> to vector<8xf32>
    %248 = vector.shape_cast %247 : vector<8xf32> to vector<8x1xf32>
    %cst_144 = arith.constant 1.280000e+02 : f32
    %249 = vector.broadcast %cst_144 : f32 to vector<8x1xf32>
    %250 = arith.divf %248, %249 : vector<8x1xf32>
    %251 = vector.broadcast %243 : vector<8x1xf32> to vector<8x128xf32>
    %252 = arith.subf %237, %251 : vector<8x128xf32>
    %cst_145 = arith.constant 9.99999974E-6 : f32
    %253 = vector.broadcast %cst_145 : f32 to vector<8x1xf32>
    %254 = arith.addf %250, %253 : vector<8x1xf32>
    %255 = math.rsqrt %254 : vector<8x1xf32>
    %256 = vector.broadcast %255 : vector<8x1xf32> to vector<8x128xf32>
    %257 = arith.mulf %252, %256 : vector<8x128xf32>
    %258 = vector.broadcast %238 : vector<1x128xf32> to vector<8x128xf32>
    %259 = arith.mulf %257, %258 : vector<8x128xf32>
    %260 = vector.broadcast %239 : vector<1x128xf32> to vector<8x128xf32>
    %261 = arith.addf %259, %260 : vector<8x128xf32>
    %262 = arith.truncf %261 : vector<8x128xf32> to vector<8x128xbf16>
    %c0_146 = arith.constant 0 : index
    %c0_147 = arith.constant 0 : index
    %c0_148 = arith.constant 0 : index
    %263 = vector.load %arg15[%c0_146, %c0_147, %c0_148] : memref<1x8x128xbf16, #tpu.memory_space<vmem>>, vector<1x8x128xbf16>
    %264 = vector.shape_cast %263 : vector<1x8x128xbf16> to vector<8x128xbf16>
    %265 = vector.shape_cast %262 : vector<8x128xbf16> to vector<1x8x128xbf16>
    tpu.vector_store %arg15[%c0_146, %c0_147, %c0_148], %265 {strides = array<i32>} : memref<1x8x128xbf16, #tpu.memory_space<vmem>>, vector<1x8x128xbf16>,
    return
  }
  func.func @transform_0(%arg0: i32) -> (i32, i32, i32) {
    %c0_i32 = arith.constant 0 : i32
    %c0_i32_0 = arith.constant 0 : i32
    %c0_i32_1 = arith.constant 0 : i32
    return %arg0, %c0_i32, %c0_i32_0 : i32, i32, i32
  }
  func.func @transform_1(%arg0: i32) -> (i32, i32, i32) {
    %c0_i32 = arith.constant 0 : i32
    %c0_i32_0 = arith.constant 0 : i32
    %c0_i32_1 = arith.constant 0 : i32
    return %arg0, %c0_i32, %c0_i32_0 : i32, i32, i32
  }
  func.func @transform_2(%arg0: i32) -> (i32, i32, i32) {
    %c0_i32 = arith.constant 0 : i32
    %c0_i32_0 = arith.constant 0 : i32
    %c0_i32_1 = arith.constant 0 : i32
    %c0_i32_2 = arith.constant 0 : i32
    return %c0_i32, %c0_i32_0, %c0_i32_1 : i32, i32, i32
  }
  func.func @transform_3(%arg0: i32) -> (i32, i32, i32) {
    %c0_i32 = arith.constant 0 : i32
    %c0_i32_0 = arith.constant 0 : i32
    %c0_i32_1 = arith.constant 0 : i32
    %c0_i32_2 = arith.constant 0 : i32
    return %c0_i32, %c0_i32_0, %c0_i32_1 : i32, i32, i32
  }
  func.func @transform_4(%arg0: i32) -> (i32, i32, i32) {
    %c0_i32 = arith.constant 0 : i32
    %c0_i32_0 = arith.constant 0 : i32
    %c0_i32_1 = arith.constant 0 : i32
    %c0_i32_2 = arith.constant 0 : i32
    return %c0_i32, %c0_i32_0, %c0_i32_1 : i32, i32, i32
  }
  func.func @transform_5(%arg0: i32) -> (i32, i32) {
    %c0_i32 = arith.constant 0 : i32
    %c0_i32_0 = arith.constant 0 : i32
    %c0_i32_1 = arith.constant 0 : i32
    return %c0_i32, %c0_i32_0 : i32, i32
  }
  func.func @transform_6(%arg0: i32) -> (i32, i32) {
    %c0_i32 = arith.constant 0 : i32
    %c0_i32_0 = arith.constant 0 : i32
    %c0_i32_1 = arith.constant 0 : i32
    return %c0_i32, %c0_i32_0 : i32, i32
  }
  func.func @transform_7(%arg0: i32) -> (i32, i32) {
    %c0_i32 = arith.constant 0 : i32
    %c0_i32_0 = arith.constant 0 : i32
    %c0_i32_1 = arith.constant 0 : i32
    return %c0_i32, %c0_i32_0 : i32, i32
  }
  func.func @transform_8(%arg0: i32) -> (i32, i32) {
    %c0_i32 = arith.constant 0 : i32
    %c0_i32_0 = arith.constant 0 : i32
    %c0_i32_1 = arith.constant 0 : i32
    return %c0_i32, %c0_i32_0 : i32, i32
  }
  func.func @transform_9(%arg0: i32) -> (i32, i32) {
    %c0_i32 = arith.constant 0 : i32
    %c0_i32_0 = arith.constant 0 : i32
    %c0_i32_1 = arith.constant 0 : i32
    return %c0_i32, %c0_i32_0 : i32, i32
  }
  func.func @transform_10(%arg0: i32) -> (i32, i32) {
    %c0_i32 = arith.constant 0 : i32
    %c0_i32_0 = arith.constant 0 : i32
    %c0_i32_1 = arith.constant 0 : i32
    return %c0_i32, %c0_i32_0 : i32, i32
  }
  func.func @transform_11(%arg0: i32) -> (i32, i32) {
    %c0_i32 = arith.constant 0 : i32
    %c0_i32_0 = arith.constant 0 : i32
    %c0_i32_1 = arith.constant 0 : i32
    return %c0_i32, %c0_i32_0 : i32, i32
  }
  func.func @transform_12(%arg0: i32) -> (i32, i32) {
    %c0_i32 = arith.constant 0 : i32
    %c0_i32_0 = arith.constant 0 : i32
    %c0_i32_1 = arith.constant 0 : i32
    return %c0_i32, %c0_i32_0 : i32, i32
  }
  func.func @transform_13(%arg0: i32) -> (i32, i32) {
    %c0_i32 = arith.constant 0 : i32
    %c0_i32_0 = arith.constant 0 : i32
    %c0_i32_1 = arith.constant 0 : i32
    return %c0_i32, %c0_i32_0 : i32, i32
  }
  func.func @transform_14(%arg0: i32) -> (i32, i32, i32) {
    %c0_i32 = arith.constant 0 : i32
    %c0_i32_0 = arith.constant 0 : i32
    %c0_i32_1 = arith.constant 0 : i32
    return %arg0, %c0_i32, %c0_i32_0 : i32, i32, i32
  }
}

module attributes {stable_mosaic.version = 11 : i64} {
  func.func @_mm_kernel(%arg0: i32, %arg1: i32, %arg2: i32, %arg3: memref<16x128xbf16, #tpu.memory_space<vmem>>, %arg4: memref<128x128xbf16, #tpu.memory_space<vmem>>, %arg5: memref<1x128xf32, #tpu.memory_space<vmem>>, %arg6: memref<16x128xf32, #tpu.memory_space<vmem>>, %arg7: memref<16x128xf32, #tpu.memory_space<vmem>>) attributes {dimension_semantics = [#tpu.dimension_semantics<parallel>, #tpu.dimension_semantics<parallel>, #tpu.dimension_semantics<arbitrary>], iteration_bounds = array<i64: 1, 1, 1>, scalar_prefetch = 0 : i64, scratch_operands = 1 : i64, tpu.core_type = #tpu.core_type<tc>, window_params = [{transform_indices = @transform_0, window_bounds = array<i64: 16, 128>}, {transform_indices = @transform_1, window_bounds = array<i64: 128, 128>}, {transform_indices = @transform_2, window_bounds = array<i64: 1, 128>}, {transform_indices = @transform_3, window_bounds = array<i64: 16, 128>}]} {
    %c0_i32 = arith.constant 0 : i32
    %0 = arith.cmpi eq, %arg2, %c0_i32 : i32
    %1 = arith.extui %0 : i1 to i32
    %c0_i32_0 = arith.constant 0 : i32
    %2 = arith.cmpi ne, %1, %c0_i32_0 : i32
    scf.if %2 {
      %cst_10 = arith.constant 0.000000e+00 : f32
      %12 = vector.broadcast %cst_10 : f32 to vector<16x128xf32>
      %c0_11 = arith.constant 0 : index
      %c0_12 = arith.constant 0 : index
      %13 = vector.load %arg7[%c0_11, %c0_12] : memref<16x128xf32, #tpu.memory_space<vmem>>, vector<16x128xf32>
      tpu.vector_store %arg7[%c0_11, %c0_12], %12 {strides = array<i32>} : memref<16x128xf32, #tpu.memory_space<vmem>>, vector<16x128xf32>,
    } else {
    }
    %c0 = arith.constant 0 : index
    %c0_1 = arith.constant 0 : index
    %3 = vector.load %arg7[%c0, %c0_1] : memref<16x128xf32, #tpu.memory_space<vmem>>, vector<16x128xf32>
    %c0_2 = arith.constant 0 : index
    %c0_3 = arith.constant 0 : index
    %4 = vector.load %arg3[%c0_2, %c0_3] : memref<16x128xbf16, #tpu.memory_space<vmem>>, vector<16x128xbf16>
    %c0_4 = arith.constant 0 : index
    %c0_5 = arith.constant 0 : index
    %5 = vector.load %arg4[%c0_4, %c0_5] : memref<128x128xbf16, #tpu.memory_space<vmem>>, vector<128x128xbf16>
    %cst = arith.constant dense<0.000000e+00> : vector<16x128xf32>
    %6 = tpu.matmul %4, %5, %cst {dimension_numbers = #tpu.dot_dimension_numbers<[1], [0], [0], [1], [0, 0, 1, 1], [], []>} : vector<16x128xbf16>, vector<128x128xbf16>, vector<16x128xf32> -> vector<16x128xf32>
    %7 = arith.addf %3, %6 : vector<16x128xf32>
    %c0_6 = arith.constant 0 : index
    %c0_7 = arith.constant 0 : index
    %8 = vector.load %arg7[%c0_6, %c0_7] : memref<16x128xf32, #tpu.memory_space<vmem>>, vector<16x128xf32>
    tpu.vector_store %arg7[%c0_6, %c0_7], %7 {strides = array<i32>} : memref<16x128xf32, #tpu.memory_space<vmem>>, vector<16x128xf32>,
    %c0_i32_8 = arith.constant 0 : i32
    %9 = arith.cmpi eq, %arg2, %c0_i32_8 : i32
    %10 = arith.extui %9 : i1 to i32
    %c0_i32_9 = arith.constant 0 : i32
    %11 = arith.cmpi ne, %10, %c0_i32_9 : i32
    scf.if %11 {
      %c0_10 = arith.constant 0 : index
      %c0_11 = arith.constant 0 : index
      %12 = vector.load %arg7[%c0_10, %c0_11] : memref<16x128xf32, #tpu.memory_space<vmem>>, vector<16x128xf32>
      %c0_12 = arith.constant 0 : index
      %c0_13 = arith.constant 0 : index
      %13 = vector.load %arg5[%c0_12, %c0_13] : memref<1x128xf32, #tpu.memory_space<vmem>>, vector<1x128xf32>
      %14 = vector.broadcast %13 : vector<1x128xf32> to vector<16x128xf32>
      %15 = arith.addf %12, %14 : vector<16x128xf32>
      %c0_14 = arith.constant 0 : index
      %c0_15 = arith.constant 0 : index
      %16 = vector.load %arg6[%c0_14, %c0_15] : memref<16x128xf32, #tpu.memory_space<vmem>>, vector<16x128xf32>
      tpu.vector_store %arg6[%c0_14, %c0_15], %15 {strides = array<i32>} : memref<16x128xf32, #tpu.memory_space<vmem>>, vector<16x128xf32>,
    } else {
    }
    return
  }
  func.func @transform_0(%arg0: i32, %arg1: i32, %arg2: i32) -> (i32, i32) {
    %c0_i32 = arith.constant 0 : i32
    return %arg0, %arg2 : i32, i32
  }
  func.func @transform_1(%arg0: i32, %arg1: i32, %arg2: i32) -> (i32, i32) {
    %c0_i32 = arith.constant 0 : i32
    return %arg2, %arg1 : i32, i32
  }
  func.func @transform_2(%arg0: i32, %arg1: i32, %arg2: i32) -> (i32, i32) {
    %c0_i32 = arith.constant 0 : i32
    %c0_i32_0 = arith.constant 0 : i32
    return %c0_i32, %arg1 : i32, i32
  }
  func.func @transform_3(%arg0: i32, %arg1: i32, %arg2: i32) -> (i32, i32) {
    %c0_i32 = arith.constant 0 : i32
    return %arg0, %arg1 : i32, i32
  }
}

module attributes {stable_mosaic.version = 11 : i64} {
  func.func @kernel(%arg0: i32, %arg1: memref<1x8x128xbf16, #tpu.memory_space<vmem>>, %arg2: memref<1x8x128xbf16, #tpu.memory_space<vmem>>, %arg3: memref<1x1x8xf32, #tpu.memory_space<vmem>>, %arg4: memref<12x128x32xbf16, #tpu.memory_space<vmem>>, %arg5: memref<12x1x32xf32, #tpu.memory_space<vmem>>, %arg6: memref<4x32x128xbf16, #tpu.memory_space<vmem>>, %arg7: memref<1x128xf32, #tpu.memory_space<vmem>>, %arg8: memref<1x128xf32, #tpu.memory_space<vmem>>, %arg9: memref<1x128xf32, #tpu.memory_space<vmem>>, %arg10: memref<4x128x32xbf16, #tpu.memory_space<vmem>>, %arg11: memref<4x1x32xf32, #tpu.memory_space<vmem>>, %arg12: memref<8x128x32xbf16, #tpu.memory_space<vmem>>, %arg13: memref<8x1x32xf32, #tpu.memory_space<vmem>>, %arg14: memref<4x32x128xbf16, #tpu.memory_space<vmem>>, %arg15: memref<1x128xf32, #tpu.memory_space<vmem>>, %arg16: memref<1x128xf32, #tpu.memory_space<vmem>>, %arg17: memref<1x128xf32, #tpu.memory_space<vmem>>, %arg18: memref<128x256xbf16, #tpu.memory_space<vmem>>, %arg19: memref<1x256xf32, #tpu.memory_space<vmem>>, %arg20: memref<256x128xbf16, #tpu.memory_space<vmem>>, %arg21: memref<1x128xf32, #tpu.memory_space<vmem>>, %arg22: memref<1x128xf32, #tpu.memory_space<vmem>>, %arg23: memref<1x128xf32, #tpu.memory_space<vmem>>, %arg24: memref<1x8x128xbf16, #tpu.memory_space<vmem>>) attributes {dimension_semantics = [#tpu.dimension_semantics<parallel>], iteration_bounds = array<i64: 2>, scalar_prefetch = 0 : i64, scratch_operands = 0 : i64, tpu.core_type = #tpu.core_type<tc>, window_params = [{transform_indices = @transform_0, window_bounds = array<i64: 1, 8, 128>}, {transform_indices = @transform_1, window_bounds = array<i64: 1, 8, 128>}, {transform_indices = @transform_2, window_bounds = array<i64: 1, 1, 8>}, {pipeline_mode = #tpu.pipeline_mode<synchronous>, transform_indices = @transform_3, window_bounds = array<i64: 12, 128, 32>}, {pipeline_mode = #tpu.pipeline_mode<synchronous>, transform_indices = @transform_4, window_bounds = array<i64: 12, 1, 32>}, {pipeline_mode = #tpu.pipeline_mode<synchronous>, transform_indices = @transform_5, window_bounds = array<i64: 4, 32, 128>}, {pipeline_mode = #tpu.pipeline_mode<synchronous>, transform_indices = @transform_6, window_bounds = array<i64: 1, 128>}, {pipeline_mode = #tpu.pipeline_mode<synchronous>, transform_indices = @transform_7, window_bounds = array<i64: 1, 128>}, {pipeline_mode = #tpu.pipeline_mode<synchronous>, transform_indices = @transform_8, window_bounds = array<i64: 1, 128>}, {pipeline_mode = #tpu.pipeline_mode<synchronous>, transform_indices = @transform_9, window_bounds = array<i64: 4, 128, 32>}, {pipeline_mode = #tpu.pipeline_mode<synchronous>, transform_indices = @transform_10, window_bounds = array<i64: 4, 1, 32>}, {pipeline_mode = #tpu.pipeline_mode<synchronous>, transform_indices = @transform_11, window_bounds = array<i64: 8, 128, 32>}, {pipeline_mode = #tpu.pipeline_mode<synchronous>, transform_indices = @transform_12, window_bounds = array<i64: 8, 1, 32>}, {pipeline_mode = #tpu.pipeline_mode<synchronous>, transform_indices = @transform_13, window_bounds = array<i64: 4, 32, 128>}, {pipeline_mode = #tpu.pipeline_mode<synchronous>, transform_indices = @transform_14, window_bounds = array<i64: 1, 128>}, {pipeline_mode = #tpu.pipeline_mode<synchronous>, transform_indices = @transform_15, window_bounds = array<i64: 1, 128>}, {pipeline_mode = #tpu.pipeline_mode<synchronous>, transform_indices = @transform_16, window_bounds = array<i64: 1, 128>}, {pipeline_mode = #tpu.pipeline_mode<synchronous>, transform_indices = @transform_17, window_bounds = array<i64: 128, 256>}, {pipeline_mode = #tpu.pipeline_mode<synchronous>, transform_indices = @transform_18, window_bounds = array<i64: 1, 256>}, {pipeline_mode = #tpu.pipeline_mode<synchronous>, transform_indices = @transform_19, window_bounds = array<i64: 256, 128>}, {pipeline_mode = #tpu.pipeline_mode<synchronous>, transform_indices = @transform_20, window_bounds = array<i64: 1, 128>}, {pipeline_mode = #tpu.pipeline_mode<synchronous>, transform_indices = @transform_21, window_bounds = array<i64: 1, 128>}, {pipeline_mode = #tpu.pipeline_mode<synchronous>, transform_indices = @transform_22, window_bounds = array<i64: 1, 128>}, {transform_indices = @transform_23, window_bounds = array<i64: 1, 8, 128>}]} {
    %c0 = arith.constant 0 : index
    %c0_0 = arith.constant 0 : index
    %c0_1 = arith.constant 0 : index
    %0 = vector.load %arg1[%c0, %c0_0, %c0_1] : memref<1x8x128xbf16, #tpu.memory_space<vmem>>, vector<1x8x128xbf16>
    %1 = vector.shape_cast %0 : vector<1x8x128xbf16> to vector<8x128xbf16>
    %c0_2 = arith.constant 0 : index
    %c0_3 = arith.constant 0 : index
    %c0_4 = arith.constant 0 : index
    %2 = vector.load %arg2[%c0_2, %c0_3, %c0_4] : memref<1x8x128xbf16, #tpu.memory_space<vmem>>, vector<1x8x128xbf16>
    %3 = vector.shape_cast %2 : vector<1x8x128xbf16> to vector<8x128xbf16>
    %4 = tpu.iota {dimensions = array<i32: 0>} : vector<8x8xi32>
    %5 = tpu.iota {dimensions = array<i32: 1>} : vector<8x8xi32>
    %6 = arith.cmpi sle, %5, %4 : vector<8x8xi32>
    %cst = arith.constant 0.000000e+00 : f32
    %cst_5 = arith.constant -1.000000e+09 : f32
    %7 = vector.broadcast %cst : f32 to vector<8x8xf32>
    %8 = vector.broadcast %cst_5 : f32 to vector<8x8xf32>
    %9 = arith.select %6, %7, %8 : vector<8x8xi1>, vector<8x8xf32>
    %cst_6 = arith.constant 0.000000e+00 : f32
    %10 = vector.broadcast %cst_6 : f32 to vector<8x128xf32>
    %c0_7 = arith.constant 0 : index
    %c0_8 = arith.constant 0 : index
    %c0_9 = arith.constant 0 : index
    %11 = vector.load %arg4[%c0_7, %c0_8, %c0_9] : memref<12x128x32xbf16, #tpu.memory_space<vmem>>, vector<1x128x32xbf16>
    %12 = vector.shape_cast %11 : vector<1x128x32xbf16> to vector<128x32xbf16>
    %cst_10 = arith.constant dense<0.000000e+00> : vector<8x32xf32>
    %13 = tpu.matmul %1, %12, %cst_10 {dimension_numbers = #tpu.dot_dimension_numbers<[1], [0], [0], [1], [0, 0, 1, 1], [], []>} : vector<8x128xbf16>, vector<128x32xbf16>, vector<8x32xf32> -> vector<8x32xf32>
    %c0_11 = arith.constant 0 : index
    %c0_12 = arith.constant 0 : index
    %c0_13 = arith.constant 0 : index
    %14 = vector.load %arg5[%c0_11, %c0_12, %c0_13] : memref<12x1x32xf32, #tpu.memory_space<vmem>>, vector<1x1x32xf32>
    %15 = vector.shape_cast %14 : vector<1x1x32xf32> to vector<1x32xf32>
    %16 = vector.broadcast %15 : vector<1x32xf32> to vector<8x32xf32>
    %17 = arith.addf %13, %16 : vector<8x32xf32>
    %c4 = arith.constant 4 : index
    %c0_14 = arith.constant 0 : index
    %c0_15 = arith.constant 0 : index
    %18 = vector.load %arg4[%c4, %c0_14, %c0_15] : memref<12x128x32xbf16, #tpu.memory_space<vmem>>, vector<1x128x32xbf16>
    %19 = vector.shape_cast %18 : vector<1x128x32xbf16> to vector<128x32xbf16>
    %cst_16 = arith.constant dense<0.000000e+00> : vector<8x32xf32>
    %20 = tpu.matmul %1, %19, %cst_16 {dimension_numbers = #tpu.dot_dimension_numbers<[1], [0], [0], [1], [0, 0, 1, 1], [], []>} : vector<8x128xbf16>, vector<128x32xbf16>, vector<8x32xf32> -> vector<8x32xf32>
    %c4_17 = arith.constant 4 : index
    %c0_18 = arith.constant 0 : index
    %c0_19 = arith.constant 0 : index
    %21 = vector.load %arg5[%c4_17, %c0_18, %c0_19] : memref<12x1x32xf32, #tpu.memory_space<vmem>>, vector<1x1x32xf32>
    %22 = vector.shape_cast %21 : vector<1x1x32xf32> to vector<1x32xf32>
    %23 = vector.broadcast %22 : vector<1x32xf32> to vector<8x32xf32>
    %24 = arith.addf %20, %23 : vector<8x32xf32>
    %c8 = arith.constant 8 : index
    %c0_20 = arith.constant 0 : index
    %c0_21 = arith.constant 0 : index
    %25 = vector.load %arg4[%c8, %c0_20, %c0_21] : memref<12x128x32xbf16, #tpu.memory_space<vmem>>, vector<1x128x32xbf16>
    %26 = vector.shape_cast %25 : vector<1x128x32xbf16> to vector<128x32xbf16>
    %cst_22 = arith.constant dense<0.000000e+00> : vector<8x32xf32>
    %27 = tpu.matmul %1, %26, %cst_22 {dimension_numbers = #tpu.dot_dimension_numbers<[1], [0], [0], [1], [0, 0, 1, 1], [], []>} : vector<8x128xbf16>, vector<128x32xbf16>, vector<8x32xf32> -> vector<8x32xf32>
    %c8_23 = arith.constant 8 : index
    %c0_24 = arith.constant 0 : index
    %c0_25 = arith.constant 0 : index
    %28 = vector.load %arg5[%c8_23, %c0_24, %c0_25] : memref<12x1x32xf32, #tpu.memory_space<vmem>>, vector<1x1x32xf32>
    %29 = vector.shape_cast %28 : vector<1x1x32xf32> to vector<1x32xf32>
    %30 = vector.broadcast %29 : vector<1x32xf32> to vector<8x32xf32>
    %31 = arith.addf %27, %30 : vector<8x32xf32>
    %32 = arith.truncf %17 : vector<8x32xf32> to vector<8x32xbf16>
    %33 = arith.truncf %24 : vector<8x32xf32> to vector<8x32xbf16>
    %cst_26 = arith.constant dense<0.000000e+00> : vector<8x8xf32>
    %34 = tpu.matmul %32, %33, %cst_26 {dimension_numbers = #tpu.dot_dimension_numbers<[1], [1], [0], [0], [0, 0, 1, 0], [], []>} : vector<8x32xbf16>, vector<8x32xbf16>, vector<8x8xf32> -> vector<8x8xf32>
    %35 = arith.addf %34, %9 : vector<8x8xf32>
    %cst_27 = arith.constant dense<0xFF800000> : vector<8xf32>
    %36 = vector.multi_reduction <maximumf>, %35, %cst_27 [1] : vector<8x8xf32> to vector<8xf32>
    %37 = vector.shape_cast %36 : vector<8xf32> to vector<8x1xf32>
    %38 = vector.broadcast %37 : vector<8x1xf32> to vector<8x8xf32>
    %39 = arith.subf %35, %38 : vector<8x8xf32>
    %40 = math.exp %39 : vector<8x8xf32>
    %cst_28 = arith.constant dense<0.000000e+00> : vector<8xf32>
    %41 = vector.multi_reduction <add>, %40, %cst_28 [1] : vector<8x8xf32> to vector<8xf32>
    %42 = vector.shape_cast %41 : vector<8xf32> to vector<8x1xf32>
    %43 = tpu.reciprocal %42 {approx = true} : vector<8x1xf32> -> vector<8x1xf32>
    %44 = vector.broadcast %43 : vector<8x1xf32> to vector<8x8xf32>
    %45 = arith.mulf %40, %44 : vector<8x8xf32>
    %46 = arith.truncf %45 : vector<8x8xf32> to vector<8x8xbf16>
    %47 = arith.truncf %31 : vector<8x32xf32> to vector<8x32xbf16>
    %cst_29 = arith.constant dense<0.000000e+00> : vector<8x32xf32>
    %48 = tpu.matmul %46, %47, %cst_29 {dimension_numbers = #tpu.dot_dimension_numbers<[1], [0], [0], [1], [0, 0, 1, 1], [], []>} : vector<8x8xbf16>, vector<8x32xbf16>, vector<8x32xf32> -> vector<8x32xf32>
    %49 = arith.truncf %48 : vector<8x32xf32> to vector<8x32xbf16>
    %c0_30 = arith.constant 0 : index
    %c0_31 = arith.constant 0 : index
    %c0_32 = arith.constant 0 : index
    %50 = vector.load %arg6[%c0_30, %c0_31, %c0_32] : memref<4x32x128xbf16, #tpu.memory_space<vmem>>, vector<1x32x128xbf16>
    %51 = vector.shape_cast %50 : vector<1x32x128xbf16> to vector<32x128xbf16>
    %cst_33 = arith.constant dense<0.000000e+00> : vector<8x128xf32>
    %52 = tpu.matmul %49, %51, %cst_33 {dimension_numbers = #tpu.dot_dimension_numbers<[1], [0], [0], [1], [0, 0, 1, 1], [], []>} : vector<8x32xbf16>, vector<32x128xbf16>, vector<8x128xf32> -> vector<8x128xf32>
    %53 = arith.addf %10, %52 : vector<8x128xf32>
    %c1 = arith.constant 1 : index
    %c0_34 = arith.constant 0 : index
    %c0_35 = arith.constant 0 : index
    %54 = vector.load %arg4[%c1, %c0_34, %c0_35] : memref<12x128x32xbf16, #tpu.memory_space<vmem>>, vector<1x128x32xbf16>
    %55 = vector.shape_cast %54 : vector<1x128x32xbf16> to vector<128x32xbf16>
    %cst_36 = arith.constant dense<0.000000e+00> : vector<8x32xf32>
    %56 = tpu.matmul %1, %55, %cst_36 {dimension_numbers = #tpu.dot_dimension_numbers<[1], [0], [0], [1], [0, 0, 1, 1], [], []>} : vector<8x128xbf16>, vector<128x32xbf16>, vector<8x32xf32> -> vector<8x32xf32>
    %c1_37 = arith.constant 1 : index
    %c0_38 = arith.constant 0 : index
    %c0_39 = arith.constant 0 : index
    %57 = vector.load %arg5[%c1_37, %c0_38, %c0_39] : memref<12x1x32xf32, #tpu.memory_space<vmem>>, vector<1x1x32xf32>
    %58 = vector.shape_cast %57 : vector<1x1x32xf32> to vector<1x32xf32>
    %59 = vector.broadcast %58 : vector<1x32xf32> to vector<8x32xf32>
    %60 = arith.addf %56, %59 : vector<8x32xf32>
    %c5 = arith.constant 5 : index
    %c0_40 = arith.constant 0 : index
    %c0_41 = arith.constant 0 : index
    %61 = vector.load %arg4[%c5, %c0_40, %c0_41] : memref<12x128x32xbf16, #tpu.memory_space<vmem>>, vector<1x128x32xbf16>
    %62 = vector.shape_cast %61 : vector<1x128x32xbf16> to vector<128x32xbf16>
    %cst_42 = arith.constant dense<0.000000e+00> : vector<8x32xf32>
    %63 = tpu.matmul %1, %62, %cst_42 {dimension_numbers = #tpu.dot_dimension_numbers<[1], [0], [0], [1], [0, 0, 1, 1], [], []>} : vector<8x128xbf16>, vector<128x32xbf16>, vector<8x32xf32> -> vector<8x32xf32>
    %c5_43 = arith.constant 5 : index
    %c0_44 = arith.constant 0 : index
    %c0_45 = arith.constant 0 : index
    %64 = vector.load %arg5[%c5_43, %c0_44, %c0_45] : memref<12x1x32xf32, #tpu.memory_space<vmem>>, vector<1x1x32xf32>
    %65 = vector.shape_cast %64 : vector<1x1x32xf32> to vector<1x32xf32>
    %66 = vector.broadcast %65 : vector<1x32xf32> to vector<8x32xf32>
    %67 = arith.addf %63, %66 : vector<8x32xf32>
    %c9 = arith.constant 9 : index
    %c0_46 = arith.constant 0 : index
    %c0_47 = arith.constant 0 : index
    %68 = vector.load %arg4[%c9, %c0_46, %c0_47] : memref<12x128x32xbf16, #tpu.memory_space<vmem>>, vector<1x128x32xbf16>
    %69 = vector.shape_cast %68 : vector<1x128x32xbf16> to vector<128x32xbf16>
    %cst_48 = arith.constant dense<0.000000e+00> : vector<8x32xf32>
    %70 = tpu.matmul %1, %69, %cst_48 {dimension_numbers = #tpu.dot_dimension_numbers<[1], [0], [0], [1], [0, 0, 1, 1], [], []>} : vector<8x128xbf16>, vector<128x32xbf16>, vector<8x32xf32> -> vector<8x32xf32>
    %c9_49 = arith.constant 9 : index
    %c0_50 = arith.constant 0 : index
    %c0_51 = arith.constant 0 : index
    %71 = vector.load %arg5[%c9_49, %c0_50, %c0_51] : memref<12x1x32xf32, #tpu.memory_space<vmem>>, vector<1x1x32xf32>
    %72 = vector.shape_cast %71 : vector<1x1x32xf32> to vector<1x32xf32>
    %73 = vector.broadcast %72 : vector<1x32xf32> to vector<8x32xf32>
    %74 = arith.addf %70, %73 : vector<8x32xf32>
    %75 = arith.truncf %60 : vector<8x32xf32> to vector<8x32xbf16>
    %76 = arith.truncf %67 : vector<8x32xf32> to vector<8x32xbf16>
    %cst_52 = arith.constant dense<0.000000e+00> : vector<8x8xf32>
    %77 = tpu.matmul %75, %76, %cst_52 {dimension_numbers = #tpu.dot_dimension_numbers<[1], [1], [0], [0], [0, 0, 1, 0], [], []>} : vector<8x32xbf16>, vector<8x32xbf16>, vector<8x8xf32> -> vector<8x8xf32>
    %78 = arith.addf %77, %9 : vector<8x8xf32>
    %cst_53 = arith.constant dense<0xFF800000> : vector<8xf32>
    %79 = vector.multi_reduction <maximumf>, %78, %cst_53 [1] : vector<8x8xf32> to vector<8xf32>
    %80 = vector.shape_cast %79 : vector<8xf32> to vector<8x1xf32>
    %81 = vector.broadcast %80 : vector<8x1xf32> to vector<8x8xf32>
    %82 = arith.subf %78, %81 : vector<8x8xf32>
    %83 = math.exp %82 : vector<8x8xf32>
    %cst_54 = arith.constant dense<0.000000e+00> : vector<8xf32>
    %84 = vector.multi_reduction <add>, %83, %cst_54 [1] : vector<8x8xf32> to vector<8xf32>
    %85 = vector.shape_cast %84 : vector<8xf32> to vector<8x1xf32>
    %86 = tpu.reciprocal %85 {approx = true} : vector<8x1xf32> -> vector<8x1xf32>
    %87 = vector.broadcast %86 : vector<8x1xf32> to vector<8x8xf32>
    %88 = arith.mulf %83, %87 : vector<8x8xf32>
    %89 = arith.truncf %88 : vector<8x8xf32> to vector<8x8xbf16>
    %90 = arith.truncf %74 : vector<8x32xf32> to vector<8x32xbf16>
    %cst_55 = arith.constant dense<0.000000e+00> : vector<8x32xf32>
    %91 = tpu.matmul %89, %90, %cst_55 {dimension_numbers = #tpu.dot_dimension_numbers<[1], [0], [0], [1], [0, 0, 1, 1], [], []>} : vector<8x8xbf16>, vector<8x32xbf16>, vector<8x32xf32> -> vector<8x32xf32>
    %92 = arith.truncf %91 : vector<8x32xf32> to vector<8x32xbf16>
    %c1_56 = arith.constant 1 : index
    %c0_57 = arith.constant 0 : index
    %c0_58 = arith.constant 0 : index
    %93 = vector.load %arg6[%c1_56, %c0_57, %c0_58] : memref<4x32x128xbf16, #tpu.memory_space<vmem>>, vector<1x32x128xbf16>
    %94 = vector.shape_cast %93 : vector<1x32x128xbf16> to vector<32x128xbf16>
    %cst_59 = arith.constant dense<0.000000e+00> : vector<8x128xf32>
    %95 = tpu.matmul %92, %94, %cst_59 {dimension_numbers = #tpu.dot_dimension_numbers<[1], [0], [0], [1], [0, 0, 1, 1], [], []>} : vector<8x32xbf16>, vector<32x128xbf16>, vector<8x128xf32> -> vector<8x128xf32>
    %96 = arith.addf %53, %95 : vector<8x128xf32>
    %c2 = arith.constant 2 : index
    %c0_60 = arith.constant 0 : index
    %c0_61 = arith.constant 0 : index
    %97 = vector.load %arg4[%c2, %c0_60, %c0_61] : memref<12x128x32xbf16, #tpu.memory_space<vmem>>, vector<1x128x32xbf16>
    %98 = vector.shape_cast %97 : vector<1x128x32xbf16> to vector<128x32xbf16>
    %cst_62 = arith.constant dense<0.000000e+00> : vector<8x32xf32>
    %99 = tpu.matmul %1, %98, %cst_62 {dimension_numbers = #tpu.dot_dimension_numbers<[1], [0], [0], [1], [0, 0, 1, 1], [], []>} : vector<8x128xbf16>, vector<128x32xbf16>, vector<8x32xf32> -> vector<8x32xf32>
    %c2_63 = arith.constant 2 : index
    %c0_64 = arith.constant 0 : index
    %c0_65 = arith.constant 0 : index
    %100 = vector.load %arg5[%c2_63, %c0_64, %c0_65] : memref<12x1x32xf32, #tpu.memory_space<vmem>>, vector<1x1x32xf32>
    %101 = vector.shape_cast %100 : vector<1x1x32xf32> to vector<1x32xf32>
    %102 = vector.broadcast %101 : vector<1x32xf32> to vector<8x32xf32>
    %103 = arith.addf %99, %102 : vector<8x32xf32>
    %c6 = arith.constant 6 : index
    %c0_66 = arith.constant 0 : index
    %c0_67 = arith.constant 0 : index
    %104 = vector.load %arg4[%c6, %c0_66, %c0_67] : memref<12x128x32xbf16, #tpu.memory_space<vmem>>, vector<1x128x32xbf16>
    %105 = vector.shape_cast %104 : vector<1x128x32xbf16> to vector<128x32xbf16>
    %cst_68 = arith.constant dense<0.000000e+00> : vector<8x32xf32>
    %106 = tpu.matmul %1, %105, %cst_68 {dimension_numbers = #tpu.dot_dimension_numbers<[1], [0], [0], [1], [0, 0, 1, 1], [], []>} : vector<8x128xbf16>, vector<128x32xbf16>, vector<8x32xf32> -> vector<8x32xf32>
    %c6_69 = arith.constant 6 : index
    %c0_70 = arith.constant 0 : index
    %c0_71 = arith.constant 0 : index
    %107 = vector.load %arg5[%c6_69, %c0_70, %c0_71] : memref<12x1x32xf32, #tpu.memory_space<vmem>>, vector<1x1x32xf32>
    %108 = vector.shape_cast %107 : vector<1x1x32xf32> to vector<1x32xf32>
    %109 = vector.broadcast %108 : vector<1x32xf32> to vector<8x32xf32>
    %110 = arith.addf %106, %109 : vector<8x32xf32>
    %c10 = arith.constant 10 : index
    %c0_72 = arith.constant 0 : index
    %c0_73 = arith.constant 0 : index
    %111 = vector.load %arg4[%c10, %c0_72, %c0_73] : memref<12x128x32xbf16, #tpu.memory_space<vmem>>, vector<1x128x32xbf16>
    %112 = vector.shape_cast %111 : vector<1x128x32xbf16> to vector<128x32xbf16>
    %cst_74 = arith.constant dense<0.000000e+00> : vector<8x32xf32>
    %113 = tpu.matmul %1, %112, %cst_74 {dimension_numbers = #tpu.dot_dimension_numbers<[1], [0], [0], [1], [0, 0, 1, 1], [], []>} : vector<8x128xbf16>, vector<128x32xbf16>, vector<8x32xf32> -> vector<8x32xf32>
    %c10_75 = arith.constant 10 : index
    %c0_76 = arith.constant 0 : index
    %c0_77 = arith.constant 0 : index
    %114 = vector.load %arg5[%c10_75, %c0_76, %c0_77] : memref<12x1x32xf32, #tpu.memory_space<vmem>>, vector<1x1x32xf32>
    %115 = vector.shape_cast %114 : vector<1x1x32xf32> to vector<1x32xf32>
    %116 = vector.broadcast %115 : vector<1x32xf32> to vector<8x32xf32>
    %117 = arith.addf %113, %116 : vector<8x32xf32>
    %118 = arith.truncf %103 : vector<8x32xf32> to vector<8x32xbf16>
    %119 = arith.truncf %110 : vector<8x32xf32> to vector<8x32xbf16>
    %cst_78 = arith.constant dense<0.000000e+00> : vector<8x8xf32>
    %120 = tpu.matmul %118, %119, %cst_78 {dimension_numbers = #tpu.dot_dimension_numbers<[1], [1], [0], [0], [0, 0, 1, 0], [], []>} : vector<8x32xbf16>, vector<8x32xbf16>, vector<8x8xf32> -> vector<8x8xf32>
    %121 = arith.addf %120, %9 : vector<8x8xf32>
    %cst_79 = arith.constant dense<0xFF800000> : vector<8xf32>
    %122 = vector.multi_reduction <maximumf>, %121, %cst_79 [1] : vector<8x8xf32> to vector<8xf32>
    %123 = vector.shape_cast %122 : vector<8xf32> to vector<8x1xf32>
    %124 = vector.broadcast %123 : vector<8x1xf32> to vector<8x8xf32>
    %125 = arith.subf %121, %124 : vector<8x8xf32>
    %126 = math.exp %125 : vector<8x8xf32>
    %cst_80 = arith.constant dense<0.000000e+00> : vector<8xf32>
    %127 = vector.multi_reduction <add>, %126, %cst_80 [1] : vector<8x8xf32> to vector<8xf32>
    %128 = vector.shape_cast %127 : vector<8xf32> to vector<8x1xf32>
    %129 = tpu.reciprocal %128 {approx = true} : vector<8x1xf32> -> vector<8x1xf32>
    %130 = vector.broadcast %129 : vector<8x1xf32> to vector<8x8xf32>
    %131 = arith.mulf %126, %130 : vector<8x8xf32>
    %132 = arith.truncf %131 : vector<8x8xf32> to vector<8x8xbf16>
    %133 = arith.truncf %117 : vector<8x32xf32> to vector<8x32xbf16>
    %cst_81 = arith.constant dense<0.000000e+00> : vector<8x32xf32>
    %134 = tpu.matmul %132, %133, %cst_81 {dimension_numbers = #tpu.dot_dimension_numbers<[1], [0], [0], [1], [0, 0, 1, 1], [], []>} : vector<8x8xbf16>, vector<8x32xbf16>, vector<8x32xf32> -> vector<8x32xf32>
    %135 = arith.truncf %134 : vector<8x32xf32> to vector<8x32xbf16>
    %c2_82 = arith.constant 2 : index
    %c0_83 = arith.constant 0 : index
    %c0_84 = arith.constant 0 : index
    %136 = vector.load %arg6[%c2_82, %c0_83, %c0_84] : memref<4x32x128xbf16, #tpu.memory_space<vmem>>, vector<1x32x128xbf16>
    %137 = vector.shape_cast %136 : vector<1x32x128xbf16> to vector<32x128xbf16>
    %cst_85 = arith.constant dense<0.000000e+00> : vector<8x128xf32>
    %138 = tpu.matmul %135, %137, %cst_85 {dimension_numbers = #tpu.dot_dimension_numbers<[1], [0], [0], [1], [0, 0, 1, 1], [], []>} : vector<8x32xbf16>, vector<32x128xbf16>, vector<8x128xf32> -> vector<8x128xf32>
    %139 = arith.addf %96, %138 : vector<8x128xf32>
    %c3 = arith.constant 3 : index
    %c0_86 = arith.constant 0 : index
    %c0_87 = arith.constant 0 : index
    %140 = vector.load %arg4[%c3, %c0_86, %c0_87] : memref<12x128x32xbf16, #tpu.memory_space<vmem>>, vector<1x128x32xbf16>
    %141 = vector.shape_cast %140 : vector<1x128x32xbf16> to vector<128x32xbf16>
    %cst_88 = arith.constant dense<0.000000e+00> : vector<8x32xf32>
    %142 = tpu.matmul %1, %141, %cst_88 {dimension_numbers = #tpu.dot_dimension_numbers<[1], [0], [0], [1], [0, 0, 1, 1], [], []>} : vector<8x128xbf16>, vector<128x32xbf16>, vector<8x32xf32> -> vector<8x32xf32>
    %c3_89 = arith.constant 3 : index
    %c0_90 = arith.constant 0 : index
    %c0_91 = arith.constant 0 : index
    %143 = vector.load %arg5[%c3_89, %c0_90, %c0_91] : memref<12x1x32xf32, #tpu.memory_space<vmem>>, vector<1x1x32xf32>
    %144 = vector.shape_cast %143 : vector<1x1x32xf32> to vector<1x32xf32>
    %145 = vector.broadcast %144 : vector<1x32xf32> to vector<8x32xf32>
    %146 = arith.addf %142, %145 : vector<8x32xf32>
    %c7 = arith.constant 7 : index
    %c0_92 = arith.constant 0 : index
    %c0_93 = arith.constant 0 : index
    %147 = vector.load %arg4[%c7, %c0_92, %c0_93] : memref<12x128x32xbf16, #tpu.memory_space<vmem>>, vector<1x128x32xbf16>
    %148 = vector.shape_cast %147 : vector<1x128x32xbf16> to vector<128x32xbf16>
    %cst_94 = arith.constant dense<0.000000e+00> : vector<8x32xf32>
    %149 = tpu.matmul %1, %148, %cst_94 {dimension_numbers = #tpu.dot_dimension_numbers<[1], [0], [0], [1], [0, 0, 1, 1], [], []>} : vector<8x128xbf16>, vector<128x32xbf16>, vector<8x32xf32> -> vector<8x32xf32>
    %c7_95 = arith.constant 7 : index
    %c0_96 = arith.constant 0 : index
    %c0_97 = arith.constant 0 : index
    %150 = vector.load %arg5[%c7_95, %c0_96, %c0_97] : memref<12x1x32xf32, #tpu.memory_space<vmem>>, vector<1x1x32xf32>
    %151 = vector.shape_cast %150 : vector<1x1x32xf32> to vector<1x32xf32>
    %152 = vector.broadcast %151 : vector<1x32xf32> to vector<8x32xf32>
    %153 = arith.addf %149, %152 : vector<8x32xf32>
    %c11 = arith.constant 11 : index
    %c0_98 = arith.constant 0 : index
    %c0_99 = arith.constant 0 : index
    %154 = vector.load %arg4[%c11, %c0_98, %c0_99] : memref<12x128x32xbf16, #tpu.memory_space<vmem>>, vector<1x128x32xbf16>
    %155 = vector.shape_cast %154 : vector<1x128x32xbf16> to vector<128x32xbf16>
    %cst_100 = arith.constant dense<0.000000e+00> : vector<8x32xf32>
    %156 = tpu.matmul %1, %155, %cst_100 {dimension_numbers = #tpu.dot_dimension_numbers<[1], [0], [0], [1], [0, 0, 1, 1], [], []>} : vector<8x128xbf16>, vector<128x32xbf16>, vector<8x32xf32> -> vector<8x32xf32>
    %c11_101 = arith.constant 11 : index
    %c0_102 = arith.constant 0 : index
    %c0_103 = arith.constant 0 : index
    %157 = vector.load %arg5[%c11_101, %c0_102, %c0_103] : memref<12x1x32xf32, #tpu.memory_space<vmem>>, vector<1x1x32xf32>
    %158 = vector.shape_cast %157 : vector<1x1x32xf32> to vector<1x32xf32>
    %159 = vector.broadcast %158 : vector<1x32xf32> to vector<8x32xf32>
    %160 = arith.addf %156, %159 : vector<8x32xf32>
    %161 = arith.truncf %146 : vector<8x32xf32> to vector<8x32xbf16>
    %162 = arith.truncf %153 : vector<8x32xf32> to vector<8x32xbf16>
    %cst_104 = arith.constant dense<0.000000e+00> : vector<8x8xf32>
    %163 = tpu.matmul %161, %162, %cst_104 {dimension_numbers = #tpu.dot_dimension_numbers<[1], [1], [0], [0], [0, 0, 1, 0], [], []>} : vector<8x32xbf16>, vector<8x32xbf16>, vector<8x8xf32> -> vector<8x8xf32>
    %164 = arith.addf %163, %9 : vector<8x8xf32>
    %cst_105 = arith.constant dense<0xFF800000> : vector<8xf32>
    %165 = vector.multi_reduction <maximumf>, %164, %cst_105 [1] : vector<8x8xf32> to vector<8xf32>
    %166 = vector.shape_cast %165 : vector<8xf32> to vector<8x1xf32>
    %167 = vector.broadcast %166 : vector<8x1xf32> to vector<8x8xf32>
    %168 = arith.subf %164, %167 : vector<8x8xf32>
    %169 = math.exp %168 : vector<8x8xf32>
    %cst_106 = arith.constant dense<0.000000e+00> : vector<8xf32>
    %170 = vector.multi_reduction <add>, %169, %cst_106 [1] : vector<8x8xf32> to vector<8xf32>
    %171 = vector.shape_cast %170 : vector<8xf32> to vector<8x1xf32>
    %172 = tpu.reciprocal %171 {approx = true} : vector<8x1xf32> -> vector<8x1xf32>
    %173 = vector.broadcast %172 : vector<8x1xf32> to vector<8x8xf32>
    %174 = arith.mulf %169, %173 : vector<8x8xf32>
    %175 = arith.truncf %174 : vector<8x8xf32> to vector<8x8xbf16>
    %176 = arith.truncf %160 : vector<8x32xf32> to vector<8x32xbf16>
    %cst_107 = arith.constant dense<0.000000e+00> : vector<8x32xf32>
    %177 = tpu.matmul %175, %176, %cst_107 {dimension_numbers = #tpu.dot_dimension_numbers<[1], [0], [0], [1], [0, 0, 1, 1], [], []>} : vector<8x8xbf16>, vector<8x32xbf16>, vector<8x32xf32> -> vector<8x32xf32>
    %178 = arith.truncf %177 : vector<8x32xf32> to vector<8x32xbf16>
    %c3_108 = arith.constant 3 : index
    %c0_109 = arith.constant 0 : index
    %c0_110 = arith.constant 0 : index
    %179 = vector.load %arg6[%c3_108, %c0_109, %c0_110] : memref<4x32x128xbf16, #tpu.memory_space<vmem>>, vector<1x32x128xbf16>
    %180 = vector.shape_cast %179 : vector<1x32x128xbf16> to vector<32x128xbf16>
    %cst_111 = arith.constant dense<0.000000e+00> : vector<8x128xf32>
    %181 = tpu.matmul %178, %180, %cst_111 {dimension_numbers = #tpu.dot_dimension_numbers<[1], [0], [0], [1], [0, 0, 1, 1], [], []>} : vector<8x32xbf16>, vector<32x128xbf16>, vector<8x128xf32> -> vector<8x128xf32>
    %182 = arith.addf %139, %181 : vector<8x128xf32>
    %c0_112 = arith.constant 0 : index
    %c0_113 = arith.constant 0 : index
    %183 = vector.load %arg7[%c0_112, %c0_113] : memref<1x128xf32, #tpu.memory_space<vmem>>, vector<1x128xf32>
    %184 = vector.broadcast %183 : vector<1x128xf32> to vector<8x128xf32>
    %185 = arith.addf %182, %184 : vector<8x128xf32>
    %186 = arith.extf %1 : vector<8x128xbf16> to vector<8x128xf32>
    %187 = arith.addf %185, %186 : vector<8x128xf32>
    %c0_114 = arith.constant 0 : index
    %c0_115 = arith.constant 0 : index
    %188 = vector.load %arg8[%c0_114, %c0_115] : memref<1x128xf32, #tpu.memory_space<vmem>>, vector<1x128xf32>
    %c0_116 = arith.constant 0 : index
    %c0_117 = arith.constant 0 : index
    %189 = vector.load %arg9[%c0_116, %c0_117] : memref<1x128xf32, #tpu.memory_space<vmem>>, vector<1x128xf32>
    %cst_118 = arith.constant dense<0.000000e+00> : vector<8xf32>
    %190 = vector.multi_reduction <add>, %187, %cst_118 [1] : vector<8x128xf32> to vector<8xf32>
    %191 = vector.shape_cast %190 : vector<8xf32> to vector<8x1xf32>
    %cst_119 = arith.constant 1.280000e+02 : f32
    %192 = vector.broadcast %cst_119 : f32 to vector<8x1xf32>
    %193 = arith.divf %191, %192 : vector<8x1xf32>
    %194 = vector.broadcast %193 : vector<8x1xf32> to vector<8x128xf32>
    %195 = arith.subf %187, %194 : vector<8x128xf32>
    %196 = arith.mulf %195, %195 : vector<8x128xf32>
    %cst_120 = arith.constant dense<0.000000e+00> : vector<8xf32>
    %197 = vector.multi_reduction <add>, %196, %cst_120 [1] : vector<8x128xf32> to vector<8xf32>
    %198 = vector.shape_cast %197 : vector<8xf32> to vector<8x1xf32>
    %cst_121 = arith.constant 1.280000e+02 : f32
    %199 = vector.broadcast %cst_121 : f32 to vector<8x1xf32>
    %200 = arith.divf %198, %199 : vector<8x1xf32>
    %201 = vector.broadcast %193 : vector<8x1xf32> to vector<8x128xf32>
    %202 = arith.subf %187, %201 : vector<8x128xf32>
    %cst_122 = arith.constant 9.99999974E-6 : f32
    %203 = vector.broadcast %cst_122 : f32 to vector<8x1xf32>
    %204 = arith.addf %200, %203 : vector<8x1xf32>
    %205 = math.rsqrt %204 : vector<8x1xf32>
    %206 = vector.broadcast %205 : vector<8x1xf32> to vector<8x128xf32>
    %207 = arith.mulf %202, %206 : vector<8x128xf32>
    %208 = vector.broadcast %188 : vector<1x128xf32> to vector<8x128xf32>
    %209 = arith.mulf %207, %208 : vector<8x128xf32>
    %210 = vector.broadcast %189 : vector<1x128xf32> to vector<8x128xf32>
    %211 = arith.addf %209, %210 : vector<8x128xf32>
    %212 = arith.truncf %211 : vector<8x128xf32> to vector<8x128xbf16>
    %c0_123 = arith.constant 0 : index
    %c0_124 = arith.constant 0 : index
    %c0_125 = arith.constant 0 : index
    %213 = vector.load %arg3[%c0_123, %c0_124, %c0_125] : memref<1x1x8xf32, #tpu.memory_space<vmem>>, vector<1x1x8xf32>
    %214 = vector.shape_cast %213 : vector<1x1x8xf32> to vector<1x8xf32>
    %cst_126 = arith.constant 1.000000e+00 : f32
    %215 = vector.broadcast %cst_126 : f32 to vector<1x8xf32>
    %216 = arith.subf %215, %214 : vector<1x8xf32>
    %cst_127 = arith.constant -1.000000e+09 : f32
    %217 = vector.broadcast %cst_127 : f32 to vector<1x8xf32>
    %218 = arith.mulf %216, %217 : vector<1x8xf32>
    %219 = vector.shape_cast %218 : vector<1x8xf32> to vector<1x8xf32>
    %220 = vector.broadcast %219 : vector<1x8xf32> to vector<8x8xf32>
    %cst_128 = arith.constant 0.000000e+00 : f32
    %221 = vector.broadcast %cst_128 : f32 to vector<8x128xf32>
    %c0_129 = arith.constant 0 : index
    %c0_130 = arith.constant 0 : index
    %c0_131 = arith.constant 0 : index
    %222 = vector.load %arg10[%c0_129, %c0_130, %c0_131] : memref<4x128x32xbf16, #tpu.memory_space<vmem>>, vector<1x128x32xbf16>
    %223 = vector.shape_cast %222 : vector<1x128x32xbf16> to vector<128x32xbf16>
    %cst_132 = arith.constant dense<0.000000e+00> : vector<8x32xf32>
    %224 = tpu.matmul %212, %223, %cst_132 {dimension_numbers = #tpu.dot_dimension_numbers<[1], [0], [0], [1], [0, 0, 1, 1], [], []>} : vector<8x128xbf16>, vector<128x32xbf16>, vector<8x32xf32> -> vector<8x32xf32>
    %c0_133 = arith.constant 0 : index
    %c0_134 = arith.constant 0 : index
    %c0_135 = arith.constant 0 : index
    %225 = vector.load %arg11[%c0_133, %c0_134, %c0_135] : memref<4x1x32xf32, #tpu.memory_space<vmem>>, vector<1x1x32xf32>
    %226 = vector.shape_cast %225 : vector<1x1x32xf32> to vector<1x32xf32>
    %227 = vector.broadcast %226 : vector<1x32xf32> to vector<8x32xf32>
    %228 = arith.addf %224, %227 : vector<8x32xf32>
    %c0_136 = arith.constant 0 : index
    %c0_137 = arith.constant 0 : index
    %c0_138 = arith.constant 0 : index
    %229 = vector.load %arg12[%c0_136, %c0_137, %c0_138] : memref<8x128x32xbf16, #tpu.memory_space<vmem>>, vector<1x128x32xbf16>
    %230 = vector.shape_cast %229 : vector<1x128x32xbf16> to vector<128x32xbf16>
    %cst_139 = arith.constant dense<0.000000e+00> : vector<8x32xf32>
    %231 = tpu.matmul %3, %230, %cst_139 {dimension_numbers = #tpu.dot_dimension_numbers<[1], [0], [0], [1], [0, 0, 1, 1], [], []>} : vector<8x128xbf16>, vector<128x32xbf16>, vector<8x32xf32> -> vector<8x32xf32>
    %c0_140 = arith.constant 0 : index
    %c0_141 = arith.constant 0 : index
    %c0_142 = arith.constant 0 : index
    %232 = vector.load %arg13[%c0_140, %c0_141, %c0_142] : memref<8x1x32xf32, #tpu.memory_space<vmem>>, vector<1x1x32xf32>
    %233 = vector.shape_cast %232 : vector<1x1x32xf32> to vector<1x32xf32>
    %234 = vector.broadcast %233 : vector<1x32xf32> to vector<8x32xf32>
    %235 = arith.addf %231, %234 : vector<8x32xf32>
    %c4_143 = arith.constant 4 : index
    %c0_144 = arith.constant 0 : index
    %c0_145 = arith.constant 0 : index
    %236 = vector.load %arg12[%c4_143, %c0_144, %c0_145] : memref<8x128x32xbf16, #tpu.memory_space<vmem>>, vector<1x128x32xbf16>
    %237 = vector.shape_cast %236 : vector<1x128x32xbf16> to vector<128x32xbf16>
    %cst_146 = arith.constant dense<0.000000e+00> : vector<8x32xf32>
    %238 = tpu.matmul %3, %237, %cst_146 {dimension_numbers = #tpu.dot_dimension_numbers<[1], [0], [0], [1], [0, 0, 1, 1], [], []>} : vector<8x128xbf16>, vector<128x32xbf16>, vector<8x32xf32> -> vector<8x32xf32>
    %c4_147 = arith.constant 4 : index
    %c0_148 = arith.constant 0 : index
    %c0_149 = arith.constant 0 : index
    %239 = vector.load %arg13[%c4_147, %c0_148, %c0_149] : memref<8x1x32xf32, #tpu.memory_space<vmem>>, vector<1x1x32xf32>
    %240 = vector.shape_cast %239 : vector<1x1x32xf32> to vector<1x32xf32>
    %241 = vector.broadcast %240 : vector<1x32xf32> to vector<8x32xf32>
    %242 = arith.addf %238, %241 : vector<8x32xf32>
    %243 = arith.truncf %228 : vector<8x32xf32> to vector<8x32xbf16>
    %244 = arith.truncf %235 : vector<8x32xf32> to vector<8x32xbf16>
    %cst_150 = arith.constant dense<0.000000e+00> : vector<8x8xf32>
    %245 = tpu.matmul %243, %244, %cst_150 {dimension_numbers = #tpu.dot_dimension_numbers<[1], [1], [0], [0], [0, 0, 1, 0], [], []>} : vector<8x32xbf16>, vector<8x32xbf16>, vector<8x8xf32> -> vector<8x8xf32>
    %246 = arith.addf %245, %220 : vector<8x8xf32>
    %cst_151 = arith.constant dense<0xFF800000> : vector<8xf32>
    %247 = vector.multi_reduction <maximumf>, %246, %cst_151 [1] : vector<8x8xf32> to vector<8xf32>
    %248 = vector.shape_cast %247 : vector<8xf32> to vector<8x1xf32>
    %249 = vector.broadcast %248 : vector<8x1xf32> to vector<8x8xf32>
    %250 = arith.subf %246, %249 : vector<8x8xf32>
    %251 = math.exp %250 : vector<8x8xf32>
    %cst_152 = arith.constant dense<0.000000e+00> : vector<8xf32>
    %252 = vector.multi_reduction <add>, %251, %cst_152 [1] : vector<8x8xf32> to vector<8xf32>
    %253 = vector.shape_cast %252 : vector<8xf32> to vector<8x1xf32>
    %254 = tpu.reciprocal %253 {approx = true} : vector<8x1xf32> -> vector<8x1xf32>
    %255 = vector.broadcast %254 : vector<8x1xf32> to vector<8x8xf32>
    %256 = arith.mulf %251, %255 : vector<8x8xf32>
    %257 = arith.truncf %256 : vector<8x8xf32> to vector<8x8xbf16>
    %258 = arith.truncf %242 : vector<8x32xf32> to vector<8x32xbf16>
    %cst_153 = arith.constant dense<0.000000e+00> : vector<8x32xf32>
    %259 = tpu.matmul %257, %258, %cst_153 {dimension_numbers = #tpu.dot_dimension_numbers<[1], [0], [0], [1], [0, 0, 1, 1], [], []>} : vector<8x8xbf16>, vector<8x32xbf16>, vector<8x32xf32> -> vector<8x32xf32>
    %260 = arith.truncf %259 : vector<8x32xf32> to vector<8x32xbf16>
    %c0_154 = arith.constant 0 : index
    %c0_155 = arith.constant 0 : index
    %c0_156 = arith.constant 0 : index
    %261 = vector.load %arg14[%c0_154, %c0_155, %c0_156] : memref<4x32x128xbf16, #tpu.memory_space<vmem>>, vector<1x32x128xbf16>
    %262 = vector.shape_cast %261 : vector<1x32x128xbf16> to vector<32x128xbf16>
    %cst_157 = arith.constant dense<0.000000e+00> : vector<8x128xf32>
    %263 = tpu.matmul %260, %262, %cst_157 {dimension_numbers = #tpu.dot_dimension_numbers<[1], [0], [0], [1], [0, 0, 1, 1], [], []>} : vector<8x32xbf16>, vector<32x128xbf16>, vector<8x128xf32> -> vector<8x128xf32>
    %264 = arith.addf %221, %263 : vector<8x128xf32>
    %c1_158 = arith.constant 1 : index
    %c0_159 = arith.constant 0 : index
    %c0_160 = arith.constant 0 : index
    %265 = vector.load %arg10[%c1_158, %c0_159, %c0_160] : memref<4x128x32xbf16, #tpu.memory_space<vmem>>, vector<1x128x32xbf16>
    %266 = vector.shape_cast %265 : vector<1x128x32xbf16> to vector<128x32xbf16>
    %cst_161 = arith.constant dense<0.000000e+00> : vector<8x32xf32>
    %267 = tpu.matmul %212, %266, %cst_161 {dimension_numbers = #tpu.dot_dimension_numbers<[1], [0], [0], [1], [0, 0, 1, 1], [], []>} : vector<8x128xbf16>, vector<128x32xbf16>, vector<8x32xf32> -> vector<8x32xf32>
    %c1_162 = arith.constant 1 : index
    %c0_163 = arith.constant 0 : index
    %c0_164 = arith.constant 0 : index
    %268 = vector.load %arg11[%c1_162, %c0_163, %c0_164] : memref<4x1x32xf32, #tpu.memory_space<vmem>>, vector<1x1x32xf32>
    %269 = vector.shape_cast %268 : vector<1x1x32xf32> to vector<1x32xf32>
    %270 = vector.broadcast %269 : vector<1x32xf32> to vector<8x32xf32>
    %271 = arith.addf %267, %270 : vector<8x32xf32>
    %c1_165 = arith.constant 1 : index
    %c0_166 = arith.constant 0 : index
    %c0_167 = arith.constant 0 : index
    %272 = vector.load %arg12[%c1_165, %c0_166, %c0_167] : memref<8x128x32xbf16, #tpu.memory_space<vmem>>, vector<1x128x32xbf16>
    %273 = vector.shape_cast %272 : vector<1x128x32xbf16> to vector<128x32xbf16>
    %cst_168 = arith.constant dense<0.000000e+00> : vector<8x32xf32>
    %274 = tpu.matmul %3, %273, %cst_168 {dimension_numbers = #tpu.dot_dimension_numbers<[1], [0], [0], [1], [0, 0, 1, 1], [], []>} : vector<8x128xbf16>, vector<128x32xbf16>, vector<8x32xf32> -> vector<8x32xf32>
    %c1_169 = arith.constant 1 : index
    %c0_170 = arith.constant 0 : index
    %c0_171 = arith.constant 0 : index
    %275 = vector.load %arg13[%c1_169, %c0_170, %c0_171] : memref<8x1x32xf32, #tpu.memory_space<vmem>>, vector<1x1x32xf32>
    %276 = vector.shape_cast %275 : vector<1x1x32xf32> to vector<1x32xf32>
    %277 = vector.broadcast %276 : vector<1x32xf32> to vector<8x32xf32>
    %278 = arith.addf %274, %277 : vector<8x32xf32>
    %c5_172 = arith.constant 5 : index
    %c0_173 = arith.constant 0 : index
    %c0_174 = arith.constant 0 : index
    %279 = vector.load %arg12[%c5_172, %c0_173, %c0_174] : memref<8x128x32xbf16, #tpu.memory_space<vmem>>, vector<1x128x32xbf16>
    %280 = vector.shape_cast %279 : vector<1x128x32xbf16> to vector<128x32xbf16>
    %cst_175 = arith.constant dense<0.000000e+00> : vector<8x32xf32>
    %281 = tpu.matmul %3, %280, %cst_175 {dimension_numbers = #tpu.dot_dimension_numbers<[1], [0], [0], [1], [0, 0, 1, 1], [], []>} : vector<8x128xbf16>, vector<128x32xbf16>, vector<8x32xf32> -> vector<8x32xf32>
    %c5_176 = arith.constant 5 : index
    %c0_177 = arith.constant 0 : index
    %c0_178 = arith.constant 0 : index
    %282 = vector.load %arg13[%c5_176, %c0_177, %c0_178] : memref<8x1x32xf32, #tpu.memory_space<vmem>>, vector<1x1x32xf32>
    %283 = vector.shape_cast %282 : vector<1x1x32xf32> to vector<1x32xf32>
    %284 = vector.broadcast %283 : vector<1x32xf32> to vector<8x32xf32>
    %285 = arith.addf %281, %284 : vector<8x32xf32>
    %286 = arith.truncf %271 : vector<8x32xf32> to vector<8x32xbf16>
    %287 = arith.truncf %278 : vector<8x32xf32> to vector<8x32xbf16>
    %cst_179 = arith.constant dense<0.000000e+00> : vector<8x8xf32>
    %288 = tpu.matmul %286, %287, %cst_179 {dimension_numbers = #tpu.dot_dimension_numbers<[1], [1], [0], [0], [0, 0, 1, 0], [], []>} : vector<8x32xbf16>, vector<8x32xbf16>, vector<8x8xf32> -> vector<8x8xf32>
    %289 = arith.addf %288, %220 : vector<8x8xf32>
    %cst_180 = arith.constant dense<0xFF800000> : vector<8xf32>
    %290 = vector.multi_reduction <maximumf>, %289, %cst_180 [1] : vector<8x8xf32> to vector<8xf32>
    %291 = vector.shape_cast %290 : vector<8xf32> to vector<8x1xf32>
    %292 = vector.broadcast %291 : vector<8x1xf32> to vector<8x8xf32>
    %293 = arith.subf %289, %292 : vector<8x8xf32>
    %294 = math.exp %293 : vector<8x8xf32>
    %cst_181 = arith.constant dense<0.000000e+00> : vector<8xf32>
    %295 = vector.multi_reduction <add>, %294, %cst_181 [1] : vector<8x8xf32> to vector<8xf32>
    %296 = vector.shape_cast %295 : vector<8xf32> to vector<8x1xf32>
    %297 = tpu.reciprocal %296 {approx = true} : vector<8x1xf32> -> vector<8x1xf32>
    %298 = vector.broadcast %297 : vector<8x1xf32> to vector<8x8xf32>
    %299 = arith.mulf %294, %298 : vector<8x8xf32>
    %300 = arith.truncf %299 : vector<8x8xf32> to vector<8x8xbf16>
    %301 = arith.truncf %285 : vector<8x32xf32> to vector<8x32xbf16>
    %cst_182 = arith.constant dense<0.000000e+00> : vector<8x32xf32>
    %302 = tpu.matmul %300, %301, %cst_182 {dimension_numbers = #tpu.dot_dimension_numbers<[1], [0], [0], [1], [0, 0, 1, 1], [], []>} : vector<8x8xbf16>, vector<8x32xbf16>, vector<8x32xf32> -> vector<8x32xf32>
    %303 = arith.truncf %302 : vector<8x32xf32> to vector<8x32xbf16>
    %c1_183 = arith.constant 1 : index
    %c0_184 = arith.constant 0 : index
    %c0_185 = arith.constant 0 : index
    %304 = vector.load %arg14[%c1_183, %c0_184, %c0_185] : memref<4x32x128xbf16, #tpu.memory_space<vmem>>, vector<1x32x128xbf16>
    %305 = vector.shape_cast %304 : vector<1x32x128xbf16> to vector<32x128xbf16>
    %cst_186 = arith.constant dense<0.000000e+00> : vector<8x128xf32>
    %306 = tpu.matmul %303, %305, %cst_186 {dimension_numbers = #tpu.dot_dimension_numbers<[1], [0], [0], [1], [0, 0, 1, 1], [], []>} : vector<8x32xbf16>, vector<32x128xbf16>, vector<8x128xf32> -> vector<8x128xf32>
    %307 = arith.addf %264, %306 : vector<8x128xf32>
    %c2_187 = arith.constant 2 : index
    %c0_188 = arith.constant 0 : index
    %c0_189 = arith.constant 0 : index
    %308 = vector.load %arg10[%c2_187, %c0_188, %c0_189] : memref<4x128x32xbf16, #tpu.memory_space<vmem>>, vector<1x128x32xbf16>
    %309 = vector.shape_cast %308 : vector<1x128x32xbf16> to vector<128x32xbf16>
    %cst_190 = arith.constant dense<0.000000e+00> : vector<8x32xf32>
    %310 = tpu.matmul %212, %309, %cst_190 {dimension_numbers = #tpu.dot_dimension_numbers<[1], [0], [0], [1], [0, 0, 1, 1], [], []>} : vector<8x128xbf16>, vector<128x32xbf16>, vector<8x32xf32> -> vector<8x32xf32>
    %c2_191 = arith.constant 2 : index
    %c0_192 = arith.constant 0 : index
    %c0_193 = arith.constant 0 : index
    %311 = vector.load %arg11[%c2_191, %c0_192, %c0_193] : memref<4x1x32xf32, #tpu.memory_space<vmem>>, vector<1x1x32xf32>
    %312 = vector.shape_cast %311 : vector<1x1x32xf32> to vector<1x32xf32>
    %313 = vector.broadcast %312 : vector<1x32xf32> to vector<8x32xf32>
    %314 = arith.addf %310, %313 : vector<8x32xf32>
    %c2_194 = arith.constant 2 : index
    %c0_195 = arith.constant 0 : index
    %c0_196 = arith.constant 0 : index
    %315 = vector.load %arg12[%c2_194, %c0_195, %c0_196] : memref<8x128x32xbf16, #tpu.memory_space<vmem>>, vector<1x128x32xbf16>
    %316 = vector.shape_cast %315 : vector<1x128x32xbf16> to vector<128x32xbf16>
    %cst_197 = arith.constant dense<0.000000e+00> : vector<8x32xf32>
    %317 = tpu.matmul %3, %316, %cst_197 {dimension_numbers = #tpu.dot_dimension_numbers<[1], [0], [0], [1], [0, 0, 1, 1], [], []>} : vector<8x128xbf16>, vector<128x32xbf16>, vector<8x32xf32> -> vector<8x32xf32>
    %c2_198 = arith.constant 2 : index
    %c0_199 = arith.constant 0 : index
    %c0_200 = arith.constant 0 : index
    %318 = vector.load %arg13[%c2_198, %c0_199, %c0_200] : memref<8x1x32xf32, #tpu.memory_space<vmem>>, vector<1x1x32xf32>
    %319 = vector.shape_cast %318 : vector<1x1x32xf32> to vector<1x32xf32>
    %320 = vector.broadcast %319 : vector<1x32xf32> to vector<8x32xf32>
    %321 = arith.addf %317, %320 : vector<8x32xf32>
    %c6_201 = arith.constant 6 : index
    %c0_202 = arith.constant 0 : index
    %c0_203 = arith.constant 0 : index
    %322 = vector.load %arg12[%c6_201, %c0_202, %c0_203] : memref<8x128x32xbf16, #tpu.memory_space<vmem>>, vector<1x128x32xbf16>
    %323 = vector.shape_cast %322 : vector<1x128x32xbf16> to vector<128x32xbf16>
    %cst_204 = arith.constant dense<0.000000e+00> : vector<8x32xf32>
    %324 = tpu.matmul %3, %323, %cst_204 {dimension_numbers = #tpu.dot_dimension_numbers<[1], [0], [0], [1], [0, 0, 1, 1], [], []>} : vector<8x128xbf16>, vector<128x32xbf16>, vector<8x32xf32> -> vector<8x32xf32>
    %c6_205 = arith.constant 6 : index
    %c0_206 = arith.constant 0 : index
    %c0_207 = arith.constant 0 : index
    %325 = vector.load %arg13[%c6_205, %c0_206, %c0_207] : memref<8x1x32xf32, #tpu.memory_space<vmem>>, vector<1x1x32xf32>
    %326 = vector.shape_cast %325 : vector<1x1x32xf32> to vector<1x32xf32>
    %327 = vector.broadcast %326 : vector<1x32xf32> to vector<8x32xf32>
    %328 = arith.addf %324, %327 : vector<8x32xf32>
    %329 = arith.truncf %314 : vector<8x32xf32> to vector<8x32xbf16>
    %330 = arith.truncf %321 : vector<8x32xf32> to vector<8x32xbf16>
    %cst_208 = arith.constant dense<0.000000e+00> : vector<8x8xf32>
    %331 = tpu.matmul %329, %330, %cst_208 {dimension_numbers = #tpu.dot_dimension_numbers<[1], [1], [0], [0], [0, 0, 1, 0], [], []>} : vector<8x32xbf16>, vector<8x32xbf16>, vector<8x8xf32> -> vector<8x8xf32>
    %332 = arith.addf %331, %220 : vector<8x8xf32>
    %cst_209 = arith.constant dense<0xFF800000> : vector<8xf32>
    %333 = vector.multi_reduction <maximumf>, %332, %cst_209 [1] : vector<8x8xf32> to vector<8xf32>
    %334 = vector.shape_cast %333 : vector<8xf32> to vector<8x1xf32>
    %335 = vector.broadcast %334 : vector<8x1xf32> to vector<8x8xf32>
    %336 = arith.subf %332, %335 : vector<8x8xf32>
    %337 = math.exp %336 : vector<8x8xf32>
    %cst_210 = arith.constant dense<0.000000e+00> : vector<8xf32>
    %338 = vector.multi_reduction <add>, %337, %cst_210 [1] : vector<8x8xf32> to vector<8xf32>
    %339 = vector.shape_cast %338 : vector<8xf32> to vector<8x1xf32>
    %340 = tpu.reciprocal %339 {approx = true} : vector<8x1xf32> -> vector<8x1xf32>
    %341 = vector.broadcast %340 : vector<8x1xf32> to vector<8x8xf32>
    %342 = arith.mulf %337, %341 : vector<8x8xf32>
    %343 = arith.truncf %342 : vector<8x8xf32> to vector<8x8xbf16>
    %344 = arith.truncf %328 : vector<8x32xf32> to vector<8x32xbf16>
    %cst_211 = arith.constant dense<0.000000e+00> : vector<8x32xf32>
    %345 = tpu.matmul %343, %344, %cst_211 {dimension_numbers = #tpu.dot_dimension_numbers<[1], [0], [0], [1], [0, 0, 1, 1], [], []>} : vector<8x8xbf16>, vector<8x32xbf16>, vector<8x32xf32> -> vector<8x32xf32>
    %346 = arith.truncf %345 : vector<8x32xf32> to vector<8x32xbf16>
    %c2_212 = arith.constant 2 : index
    %c0_213 = arith.constant 0 : index
    %c0_214 = arith.constant 0 : index
    %347 = vector.load %arg14[%c2_212, %c0_213, %c0_214] : memref<4x32x128xbf16, #tpu.memory_space<vmem>>, vector<1x32x128xbf16>
    %348 = vector.shape_cast %347 : vector<1x32x128xbf16> to vector<32x128xbf16>
    %cst_215 = arith.constant dense<0.000000e+00> : vector<8x128xf32>
    %349 = tpu.matmul %346, %348, %cst_215 {dimension_numbers = #tpu.dot_dimension_numbers<[1], [0], [0], [1], [0, 0, 1, 1], [], []>} : vector<8x32xbf16>, vector<32x128xbf16>, vector<8x128xf32> -> vector<8x128xf32>
    %350 = arith.addf %307, %349 : vector<8x128xf32>
    %c3_216 = arith.constant 3 : index
    %c0_217 = arith.constant 0 : index
    %c0_218 = arith.constant 0 : index
    %351 = vector.load %arg10[%c3_216, %c0_217, %c0_218] : memref<4x128x32xbf16, #tpu.memory_space<vmem>>, vector<1x128x32xbf16>
    %352 = vector.shape_cast %351 : vector<1x128x32xbf16> to vector<128x32xbf16>
    %cst_219 = arith.constant dense<0.000000e+00> : vector<8x32xf32>
    %353 = tpu.matmul %212, %352, %cst_219 {dimension_numbers = #tpu.dot_dimension_numbers<[1], [0], [0], [1], [0, 0, 1, 1], [], []>} : vector<8x128xbf16>, vector<128x32xbf16>, vector<8x32xf32> -> vector<8x32xf32>
    %c3_220 = arith.constant 3 : index
    %c0_221 = arith.constant 0 : index
    %c0_222 = arith.constant 0 : index
    %354 = vector.load %arg11[%c3_220, %c0_221, %c0_222] : memref<4x1x32xf32, #tpu.memory_space<vmem>>, vector<1x1x32xf32>
    %355 = vector.shape_cast %354 : vector<1x1x32xf32> to vector<1x32xf32>
    %356 = vector.broadcast %355 : vector<1x32xf32> to vector<8x32xf32>
    %357 = arith.addf %353, %356 : vector<8x32xf32>
    %c3_223 = arith.constant 3 : index
    %c0_224 = arith.constant 0 : index
    %c0_225 = arith.constant 0 : index
    %358 = vector.load %arg12[%c3_223, %c0_224, %c0_225] : memref<8x128x32xbf16, #tpu.memory_space<vmem>>, vector<1x128x32xbf16>
    %359 = vector.shape_cast %358 : vector<1x128x32xbf16> to vector<128x32xbf16>
    %cst_226 = arith.constant dense<0.000000e+00> : vector<8x32xf32>
    %360 = tpu.matmul %3, %359, %cst_226 {dimension_numbers = #tpu.dot_dimension_numbers<[1], [0], [0], [1], [0, 0, 1, 1], [], []>} : vector<8x128xbf16>, vector<128x32xbf16>, vector<8x32xf32> -> vector<8x32xf32>
    %c3_227 = arith.constant 3 : index
    %c0_228 = arith.constant 0 : index
    %c0_229 = arith.constant 0 : index
    %361 = vector.load %arg13[%c3_227, %c0_228, %c0_229] : memref<8x1x32xf32, #tpu.memory_space<vmem>>, vector<1x1x32xf32>
    %362 = vector.shape_cast %361 : vector<1x1x32xf32> to vector<1x32xf32>
    %363 = vector.broadcast %362 : vector<1x32xf32> to vector<8x32xf32>
    %364 = arith.addf %360, %363 : vector<8x32xf32>
    %c7_230 = arith.constant 7 : index
    %c0_231 = arith.constant 0 : index
    %c0_232 = arith.constant 0 : index
    %365 = vector.load %arg12[%c7_230, %c0_231, %c0_232] : memref<8x128x32xbf16, #tpu.memory_space<vmem>>, vector<1x128x32xbf16>
    %366 = vector.shape_cast %365 : vector<1x128x32xbf16> to vector<128x32xbf16>
    %cst_233 = arith.constant dense<0.000000e+00> : vector<8x32xf32>
    %367 = tpu.matmul %3, %366, %cst_233 {dimension_numbers = #tpu.dot_dimension_numbers<[1], [0], [0], [1], [0, 0, 1, 1], [], []>} : vector<8x128xbf16>, vector<128x32xbf16>, vector<8x32xf32> -> vector<8x32xf32>
    %c7_234 = arith.constant 7 : index
    %c0_235 = arith.constant 0 : index
    %c0_236 = arith.constant 0 : index
    %368 = vector.load %arg13[%c7_234, %c0_235, %c0_236] : memref<8x1x32xf32, #tpu.memory_space<vmem>>, vector<1x1x32xf32>
    %369 = vector.shape_cast %368 : vector<1x1x32xf32> to vector<1x32xf32>
    %370 = vector.broadcast %369 : vector<1x32xf32> to vector<8x32xf32>
    %371 = arith.addf %367, %370 : vector<8x32xf32>
    %372 = arith.truncf %357 : vector<8x32xf32> to vector<8x32xbf16>
    %373 = arith.truncf %364 : vector<8x32xf32> to vector<8x32xbf16>
    %cst_237 = arith.constant dense<0.000000e+00> : vector<8x8xf32>
    %374 = tpu.matmul %372, %373, %cst_237 {dimension_numbers = #tpu.dot_dimension_numbers<[1], [1], [0], [0], [0, 0, 1, 0], [], []>} : vector<8x32xbf16>, vector<8x32xbf16>, vector<8x8xf32> -> vector<8x8xf32>
    %375 = arith.addf %374, %220 : vector<8x8xf32>
    %cst_238 = arith.constant dense<0xFF800000> : vector<8xf32>
    %376 = vector.multi_reduction <maximumf>, %375, %cst_238 [1] : vector<8x8xf32> to vector<8xf32>
    %377 = vector.shape_cast %376 : vector<8xf32> to vector<8x1xf32>
    %378 = vector.broadcast %377 : vector<8x1xf32> to vector<8x8xf32>
    %379 = arith.subf %375, %378 : vector<8x8xf32>
    %380 = math.exp %379 : vector<8x8xf32>
    %cst_239 = arith.constant dense<0.000000e+00> : vector<8xf32>
    %381 = vector.multi_reduction <add>, %380, %cst_239 [1] : vector<8x8xf32> to vector<8xf32>
    %382 = vector.shape_cast %381 : vector<8xf32> to vector<8x1xf32>
    %383 = tpu.reciprocal %382 {approx = true} : vector<8x1xf32> -> vector<8x1xf32>
    %384 = vector.broadcast %383 : vector<8x1xf32> to vector<8x8xf32>
    %385 = arith.mulf %380, %384 : vector<8x8xf32>
    %386 = arith.truncf %385 : vector<8x8xf32> to vector<8x8xbf16>
    %387 = arith.truncf %371 : vector<8x32xf32> to vector<8x32xbf16>
    %cst_240 = arith.constant dense<0.000000e+00> : vector<8x32xf32>
    %388 = tpu.matmul %386, %387, %cst_240 {dimension_numbers = #tpu.dot_dimension_numbers<[1], [0], [0], [1], [0, 0, 1, 1], [], []>} : vector<8x8xbf16>, vector<8x32xbf16>, vector<8x32xf32> -> vector<8x32xf32>
    %389 = arith.truncf %388 : vector<8x32xf32> to vector<8x32xbf16>
    %c3_241 = arith.constant 3 : index
    %c0_242 = arith.constant 0 : index
    %c0_243 = arith.constant 0 : index
    %390 = vector.load %arg14[%c3_241, %c0_242, %c0_243] : memref<4x32x128xbf16, #tpu.memory_space<vmem>>, vector<1x32x128xbf16>
    %391 = vector.shape_cast %390 : vector<1x32x128xbf16> to vector<32x128xbf16>
    %cst_244 = arith.constant dense<0.000000e+00> : vector<8x128xf32>
    %392 = tpu.matmul %389, %391, %cst_244 {dimension_numbers = #tpu.dot_dimension_numbers<[1], [0], [0], [1], [0, 0, 1, 1], [], []>} : vector<8x32xbf16>, vector<32x128xbf16>, vector<8x128xf32> -> vector<8x128xf32>
    %393 = arith.addf %350, %392 : vector<8x128xf32>
    %c0_245 = arith.constant 0 : index
    %c0_246 = arith.constant 0 : index
    %394 = vector.load %arg15[%c0_245, %c0_246] : memref<1x128xf32, #tpu.memory_space<vmem>>, vector<1x128xf32>
    %395 = vector.broadcast %394 : vector<1x128xf32> to vector<8x128xf32>
    %396 = arith.addf %393, %395 : vector<8x128xf32>
    %397 = arith.addf %396, %211 : vector<8x128xf32>
    %c0_247 = arith.constant 0 : index
    %c0_248 = arith.constant 0 : index
    %398 = vector.load %arg16[%c0_247, %c0_248] : memref<1x128xf32, #tpu.memory_space<vmem>>, vector<1x128xf32>
    %c0_249 = arith.constant 0 : index
    %c0_250 = arith.constant 0 : index
    %399 = vector.load %arg17[%c0_249, %c0_250] : memref<1x128xf32, #tpu.memory_space<vmem>>, vector<1x128xf32>
    %cst_251 = arith.constant dense<0.000000e+00> : vector<8xf32>
    %400 = vector.multi_reduction <add>, %397, %cst_251 [1] : vector<8x128xf32> to vector<8xf32>
    %401 = vector.shape_cast %400 : vector<8xf32> to vector<8x1xf32>
    %cst_252 = arith.constant 1.280000e+02 : f32
    %402 = vector.broadcast %cst_252 : f32 to vector<8x1xf32>
    %403 = arith.divf %401, %402 : vector<8x1xf32>
    %404 = vector.broadcast %403 : vector<8x1xf32> to vector<8x128xf32>
    %405 = arith.subf %397, %404 : vector<8x128xf32>
    %406 = arith.mulf %405, %405 : vector<8x128xf32>
    %cst_253 = arith.constant dense<0.000000e+00> : vector<8xf32>
    %407 = vector.multi_reduction <add>, %406, %cst_253 [1] : vector<8x128xf32> to vector<8xf32>
    %408 = vector.shape_cast %407 : vector<8xf32> to vector<8x1xf32>
    %cst_254 = arith.constant 1.280000e+02 : f32
    %409 = vector.broadcast %cst_254 : f32 to vector<8x1xf32>
    %410 = arith.divf %408, %409 : vector<8x1xf32>
    %411 = vector.broadcast %403 : vector<8x1xf32> to vector<8x128xf32>
    %412 = arith.subf %397, %411 : vector<8x128xf32>
    %cst_255 = arith.constant 9.99999974E-6 : f32
    %413 = vector.broadcast %cst_255 : f32 to vector<8x1xf32>
    %414 = arith.addf %410, %413 : vector<8x1xf32>
    %415 = math.rsqrt %414 : vector<8x1xf32>
    %416 = vector.broadcast %415 : vector<8x1xf32> to vector<8x128xf32>
    %417 = arith.mulf %412, %416 : vector<8x128xf32>
    %418 = vector.broadcast %398 : vector<1x128xf32> to vector<8x128xf32>
    %419 = arith.mulf %417, %418 : vector<8x128xf32>
    %420 = vector.broadcast %399 : vector<1x128xf32> to vector<8x128xf32>
    %421 = arith.addf %419, %420 : vector<8x128xf32>
    %422 = arith.truncf %421 : vector<8x128xf32> to vector<8x128xbf16>
    %c0_256 = arith.constant 0 : index
    %c0_257 = arith.constant 0 : index
    %423 = vector.load %arg18[%c0_256, %c0_257] : memref<128x256xbf16, #tpu.memory_space<vmem>>, vector<128x256xbf16>
    %cst_258 = arith.constant dense<0.000000e+00> : vector<8x256xf32>
    %424 = tpu.matmul %422, %423, %cst_258 {dimension_numbers = #tpu.dot_dimension_numbers<[1], [0], [0], [1], [0, 0, 1, 1], [], []>} : vector<8x128xbf16>, vector<128x256xbf16>, vector<8x256xf32> -> vector<8x256xf32>
    %c0_259 = arith.constant 0 : index
    %c0_260 = arith.constant 0 : index
    %425 = vector.load %arg19[%c0_259, %c0_260] : memref<1x256xf32, #tpu.memory_space<vmem>>, vector<1x256xf32>
    %426 = vector.broadcast %425 : vector<1x256xf32> to vector<8x256xf32>
    %427 = arith.addf %424, %426 : vector<8x256xf32>
    %428 = arith.mulf %427, %427 : vector<8x256xf32>
    %429 = arith.mulf %427, %428 : vector<8x256xf32>
    %cst_261 = arith.constant 4.471500e-02 : f32
    %430 = vector.broadcast %cst_261 : f32 to vector<8x256xf32>
    %431 = arith.mulf %430, %429 : vector<8x256xf32>
    %432 = arith.addf %427, %431 : vector<8x256xf32>
    %cst_262 = arith.constant 0.797884583 : f32
    %433 = vector.broadcast %cst_262 : f32 to vector<8x256xf32>
    %434 = arith.mulf %433, %432 : vector<8x256xf32>
    %435 = math.tanh %434 : vector<8x256xf32>
    %cst_263 = arith.constant 1.000000e+00 : f32
    %436 = vector.broadcast %cst_263 : f32 to vector<8x256xf32>
    %437 = arith.addf %436, %435 : vector<8x256xf32>
    %cst_264 = arith.constant 5.000000e-01 : f32
    %438 = vector.broadcast %cst_264 : f32 to vector<8x256xf32>
    %439 = arith.mulf %438, %437 : vector<8x256xf32>
    %440 = arith.mulf %427, %439 : vector<8x256xf32>
    %441 = arith.truncf %440 : vector<8x256xf32> to vector<8x256xbf16>
    %c0_265 = arith.constant 0 : index
    %c0_266 = arith.constant 0 : index
    %442 = vector.load %arg20[%c0_265, %c0_266] : memref<256x128xbf16, #tpu.memory_space<vmem>>, vector<256x128xbf16>
    %cst_267 = arith.constant dense<0.000000e+00> : vector<8x128xf32>
    %443 = tpu.matmul %441, %442, %cst_267 {dimension_numbers = #tpu.dot_dimension_numbers<[1], [0], [0], [1], [0, 0, 1, 1], [], []>} : vector<8x256xbf16>, vector<256x128xbf16>, vector<8x128xf32> -> vector<8x128xf32>
    %c0_268 = arith.constant 0 : index
    %c0_269 = arith.constant 0 : index
    %444 = vector.load %arg21[%c0_268, %c0_269] : memref<1x128xf32, #tpu.memory_space<vmem>>, vector<1x128xf32>
    %445 = vector.broadcast %444 : vector<1x128xf32> to vector<8x128xf32>
    %446 = arith.addf %443, %445 : vector<8x128xf32>
    %447 = arith.addf %446, %421 : vector<8x128xf32>
    %c0_270 = arith.constant 0 : index
    %c0_271 = arith.constant 0 : index
    %448 = vector.load %arg22[%c0_270, %c0_271] : memref<1x128xf32, #tpu.memory_space<vmem>>, vector<1x128xf32>
    %c0_272 = arith.constant 0 : index
    %c0_273 = arith.constant 0 : index
    %449 = vector.load %arg23[%c0_272, %c0_273] : memref<1x128xf32, #tpu.memory_space<vmem>>, vector<1x128xf32>
    %cst_274 = arith.constant dense<0.000000e+00> : vector<8xf32>
    %450 = vector.multi_reduction <add>, %447, %cst_274 [1] : vector<8x128xf32> to vector<8xf32>
    %451 = vector.shape_cast %450 : vector<8xf32> to vector<8x1xf32>
    %cst_275 = arith.constant 1.280000e+02 : f32
    %452 = vector.broadcast %cst_275 : f32 to vector<8x1xf32>
    %453 = arith.divf %451, %452 : vector<8x1xf32>
    %454 = vector.broadcast %453 : vector<8x1xf32> to vector<8x128xf32>
    %455 = arith.subf %447, %454 : vector<8x128xf32>
    %456 = arith.mulf %455, %455 : vector<8x128xf32>
    %cst_276 = arith.constant dense<0.000000e+00> : vector<8xf32>
    %457 = vector.multi_reduction <add>, %456, %cst_276 [1] : vector<8x128xf32> to vector<8xf32>
    %458 = vector.shape_cast %457 : vector<8xf32> to vector<8x1xf32>
    %cst_277 = arith.constant 1.280000e+02 : f32
    %459 = vector.broadcast %cst_277 : f32 to vector<8x1xf32>
    %460 = arith.divf %458, %459 : vector<8x1xf32>
    %461 = vector.broadcast %453 : vector<8x1xf32> to vector<8x128xf32>
    %462 = arith.subf %447, %461 : vector<8x128xf32>
    %cst_278 = arith.constant 9.99999974E-6 : f32
    %463 = vector.broadcast %cst_278 : f32 to vector<8x1xf32>
    %464 = arith.addf %460, %463 : vector<8x1xf32>
    %465 = math.rsqrt %464 : vector<8x1xf32>
    %466 = vector.broadcast %465 : vector<8x1xf32> to vector<8x128xf32>
    %467 = arith.mulf %462, %466 : vector<8x128xf32>
    %468 = vector.broadcast %448 : vector<1x128xf32> to vector<8x128xf32>
    %469 = arith.mulf %467, %468 : vector<8x128xf32>
    %470 = vector.broadcast %449 : vector<1x128xf32> to vector<8x128xf32>
    %471 = arith.addf %469, %470 : vector<8x128xf32>
    %472 = arith.truncf %471 : vector<8x128xf32> to vector<8x128xbf16>
    %c0_279 = arith.constant 0 : index
    %c0_280 = arith.constant 0 : index
    %c0_281 = arith.constant 0 : index
    %473 = vector.load %arg24[%c0_279, %c0_280, %c0_281] : memref<1x8x128xbf16, #tpu.memory_space<vmem>>, vector<1x8x128xbf16>
    %474 = vector.shape_cast %473 : vector<1x8x128xbf16> to vector<8x128xbf16>
    %475 = vector.shape_cast %472 : vector<8x128xbf16> to vector<1x8x128xbf16>
    tpu.vector_store %arg24[%c0_279, %c0_280, %c0_281], %475 {strides = array<i32>} : memref<1x8x128xbf16, #tpu.memory_space<vmem>>, vector<1x8x128xbf16>,
    return
  }
  func.func @transform_0(%arg0: i32) -> (i32, i32, i32) {
    %c0_i32 = arith.constant 0 : i32
    %c0_i32_0 = arith.constant 0 : i32
    %c0_i32_1 = arith.constant 0 : i32
    return %arg0, %c0_i32, %c0_i32_0 : i32, i32, i32
  }
  func.func @transform_1(%arg0: i32) -> (i32, i32, i32) {
    %c0_i32 = arith.constant 0 : i32
    %c0_i32_0 = arith.constant 0 : i32
    %c0_i32_1 = arith.constant 0 : i32
    return %arg0, %c0_i32, %c0_i32_0 : i32, i32, i32
  }
  func.func @transform_2(%arg0: i32) -> (i32, i32, i32) {
    %c0_i32 = arith.constant 0 : i32
    %c0_i32_0 = arith.constant 0 : i32
    %c0_i32_1 = arith.constant 0 : i32
    return %arg0, %c0_i32, %c0_i32_0 : i32, i32, i32
  }
  func.func @transform_3(%arg0: i32) -> (i32, i32, i32) {
    %c0_i32 = arith.constant 0 : i32
    %c0_i32_0 = arith.constant 0 : i32
    %c0_i32_1 = arith.constant 0 : i32
    %c0_i32_2 = arith.constant 0 : i32
    return %c0_i32, %c0_i32_0, %c0_i32_1 : i32, i32, i32
  }
  func.func @transform_4(%arg0: i32) -> (i32, i32, i32) {
    %c0_i32 = arith.constant 0 : i32
    %c0_i32_0 = arith.constant 0 : i32
    %c0_i32_1 = arith.constant 0 : i32
    %c0_i32_2 = arith.constant 0 : i32
    return %c0_i32, %c0_i32_0, %c0_i32_1 : i32, i32, i32
  }
  func.func @transform_5(%arg0: i32) -> (i32, i32, i32) {
    %c0_i32 = arith.constant 0 : i32
    %c0_i32_0 = arith.constant 0 : i32
    %c0_i32_1 = arith.constant 0 : i32
    %c0_i32_2 = arith.constant 0 : i32
    return %c0_i32, %c0_i32_0, %c0_i32_1 : i32, i32, i32
  }
  func.func @transform_6(%arg0: i32) -> (i32, i32) {
    %c0_i32 = arith.constant 0 : i32
    %c0_i32_0 = arith.constant 0 : i32
    %c0_i32_1 = arith.constant 0 : i32
    return %c0_i32, %c0_i32_0 : i32, i32
  }
  func.func @transform_7(%arg0: i32) -> (i32, i32) {
    %c0_i32 = arith.constant 0 : i32
    %c0_i32_0 = arith.constant 0 : i32
    %c0_i32_1 = arith.constant 0 : i32
    return %c0_i32, %c0_i32_0 : i32, i32
  }
  func.func @transform_8(%arg0: i32) -> (i32, i32) {
    %c0_i32 = arith.constant 0 : i32
    %c0_i32_0 = arith.constant 0 : i32
    %c0_i32_1 = arith.constant 0 : i32
    return %c0_i32, %c0_i32_0 : i32, i32
  }
  func.func @transform_9(%arg0: i32) -> (i32, i32, i32) {
    %c0_i32 = arith.constant 0 : i32
    %c0_i32_0 = arith.constant 0 : i32
    %c0_i32_1 = arith.constant 0 : i32
    %c0_i32_2 = arith.constant 0 : i32
    return %c0_i32, %c0_i32_0, %c0_i32_1 : i32, i32, i32
  }
  func.func @transform_10(%arg0: i32) -> (i32, i32, i32) {
    %c0_i32 = arith.constant 0 : i32
    %c0_i32_0 = arith.constant 0 : i32
    %c0_i32_1 = arith.constant 0 : i32
    %c0_i32_2 = arith.constant 0 : i32
    return %c0_i32, %c0_i32_0, %c0_i32_1 : i32, i32, i32
  }
  func.func @transform_11(%arg0: i32) -> (i32, i32, i32) {
    %c0_i32 = arith.constant 0 : i32
    %c0_i32_0 = arith.constant 0 : i32
    %c0_i32_1 = arith.constant 0 : i32
    %c0_i32_2 = arith.constant 0 : i32
    return %c0_i32, %c0_i32_0, %c0_i32_1 : i32, i32, i32
  }
  func.func @transform_12(%arg0: i32) -> (i32, i32, i32) {
    %c0_i32 = arith.constant 0 : i32
    %c0_i32_0 = arith.constant 0 : i32
    %c0_i32_1 = arith.constant 0 : i32
    %c0_i32_2 = arith.constant 0 : i32
    return %c0_i32, %c0_i32_0, %c0_i32_1 : i32, i32, i32
  }
  func.func @transform_13(%arg0: i32) -> (i32, i32, i32) {
    %c0_i32 = arith.constant 0 : i32
    %c0_i32_0 = arith.constant 0 : i32
    %c0_i32_1 = arith.constant 0 : i32
    %c0_i32_2 = arith.constant 0 : i32
    return %c0_i32, %c0_i32_0, %c0_i32_1 : i32, i32, i32
  }
  func.func @transform_14(%arg0: i32) -> (i32, i32) {
    %c0_i32 = arith.constant 0 : i32
    %c0_i32_0 = arith.constant 0 : i32
    %c0_i32_1 = arith.constant 0 : i32
    return %c0_i32, %c0_i32_0 : i32, i32
  }
  func.func @transform_15(%arg0: i32) -> (i32, i32) {
    %c0_i32 = arith.constant 0 : i32
    %c0_i32_0 = arith.constant 0 : i32
    %c0_i32_1 = arith.constant 0 : i32
    return %c0_i32, %c0_i32_0 : i32, i32
  }
  func.func @transform_16(%arg0: i32) -> (i32, i32) {
    %c0_i32 = arith.constant 0 : i32
    %c0_i32_0 = arith.constant 0 : i32
    %c0_i32_1 = arith.constant 0 : i32
    return %c0_i32, %c0_i32_0 : i32, i32
  }
  func.func @transform_17(%arg0: i32) -> (i32, i32) {
    %c0_i32 = arith.constant 0 : i32
    %c0_i32_0 = arith.constant 0 : i32
    %c0_i32_1 = arith.constant 0 : i32
    return %c0_i32, %c0_i32_0 : i32, i32
  }
  func.func @transform_18(%arg0: i32) -> (i32, i32) {
    %c0_i32 = arith.constant 0 : i32
    %c0_i32_0 = arith.constant 0 : i32
    %c0_i32_1 = arith.constant 0 : i32
    return %c0_i32, %c0_i32_0 : i32, i32
  }
  func.func @transform_19(%arg0: i32) -> (i32, i32) {
    %c0_i32 = arith.constant 0 : i32
    %c0_i32_0 = arith.constant 0 : i32
    %c0_i32_1 = arith.constant 0 : i32
    return %c0_i32, %c0_i32_0 : i32, i32
  }
  func.func @transform_20(%arg0: i32) -> (i32, i32) {
    %c0_i32 = arith.constant 0 : i32
    %c0_i32_0 = arith.constant 0 : i32
    %c0_i32_1 = arith.constant 0 : i32
    return %c0_i32, %c0_i32_0 : i32, i32
  }
  func.func @transform_21(%arg0: i32) -> (i32, i32) {
    %c0_i32 = arith.constant 0 : i32
    %c0_i32_0 = arith.constant 0 : i32
    %c0_i32_1 = arith.constant 0 : i32
    return %c0_i32, %c0_i32_0 : i32, i32
  }
  func.func @transform_22(%arg0: i32) -> (i32, i32) {
    %c0_i32 = arith.constant 0 : i32
    %c0_i32_0 = arith.constant 0 : i32
    %c0_i32_1 = arith.constant 0 : i32
    return %c0_i32, %c0_i32_0 : i32, i32
  }
  func.func @transform_23(%arg0: i32) -> (i32, i32, i32) {
    %c0_i32 = arith.constant 0 : i32
    %c0_i32_0 = arith.constant 0 : i32
    %c0_i32_1 = arith.constant 0 : i32
    return %arg0, %c0_i32, %c0_i32_0 : i32, i32, i32
  }
}

</mosaic_0001>

<llo_original>
// kernel: summary_brief_forward.6
$region0: #{summary_brief_forward.6}
  #allocation0 [shape = 'u32[]', space=smem, size = 0x4, offset = 0x4, fixed_abs, tag = 'smem constant byte address 0x4 - core index']
  #allocation1 [shape = 'u32[144,128]{1,0:T(1,128)}', space=vmem, size = 0x12000, scoped, tag = 'internal scratch']
  %s0 = inlined_call_operand.vmem [shape: bf16[16,128], index: 0, kind: input, shape index: {}]
  %s1 = inlined_call_operand.vmem [shape: f32[1,128], index: 1, kind: input, shape index: {}]
  %s2 = inlined_call_operand.vmem [shape: f32[1,128], index: 2, kind: input, shape index: {}]
  %s3 = inlined_call_operand.vmem [shape: bf16[16,128], index: 3, kind: output, shape index: {}]
  %s4 = sld [smem:[#allocation0]]
  $region22: #{summary_brief_forward.6} parent=0
    _
  %s6 = ssub.s32 1, %s4
  %s7 = scalar_select 0, %s6, %s4
  // Predicated region
  $region2: #{summary_brief_forward.6} parent=0 // pred_check
    _
  $region3: #{summary_brief_forward.6} parent=0 // pred_check_branch
    %9 = sbr.rel (0) target = $region5
  $region4: #{summary_brief_forward.6} parent=0 // pred_region
    _
  $region5: #{summary_brief_forward.6} parent=0 // pred_fallthru
    _
  // Predicated region
  $region6: #{summary_brief_forward.6} parent=0 // pred_check
    _
  $region7: #{summary_brief_forward.6} parent=0 // pred_check_branch
    %11 = sbr.rel (0) target = $region9
  $region8: #{summary_brief_forward.6} parent=0 // pred_region
    _
  $region9: #{summary_brief_forward.6} parent=0 // pred_fallthru
    _
  // Predicated region
  $region10: #{summary_brief_forward.6} parent=0 // pred_check
    _
  $region11: #{summary_brief_forward.6} parent=0 // pred_check_branch
    %13 = sbr.rel (0) target = $region13
  $region12: #{summary_brief_forward.6} parent=0 // pred_region
    _
  $region13: #{summary_brief_forward.6} parent=0 // pred_fallthru
    _
  %v14 = vld [vmem:[%s0] sm:$0xf]
  %v15 = vld [vmem:[%s0 + $0x4] sm:$0xf]
  %v16 = vunpack.c.l.bf16 %v14
  %v17 = vunpack.c.l.bf16 %v15
  %v18 = vld [vmem:[%s1] sm:$0x1]
  %v19 = vld [vmem:[%s2] sm:$0x1]
  %20 = vadd.xlane.f32.xlu0 %v16
  %v21 = vpop.xlane.xlu0 %20
  %22 = vadd.xlane.f32.xlu0 %v17
  %v23 = vpop.xlane.xlu0 %22
  %v24 = vrcp.pop 128.0
  %v25 = vmul.f32 %v21, %v24
  %v26 = vmul.f32 %v23, %v24
  %v27 = vsub.f32 %v16, %v25
  %v28 = vsub.f32 %v17, %v26
  %v29 = vmul.f32 %v27, %v27
  %v30 = vmul.f32 %v28, %v28
  %31 = vadd.xlane.f32.xlu0 %v29
  %v32 = vpop.xlane.xlu0 %31
  %33 = vadd.xlane.f32.xlu0 %v30
  %v34 = vpop.xlane.xlu0 %33
  %v35 = vmul.f32 %v32, %v24
  %v36 = vmul.f32 %v34, %v24
  %v37 = vadd.f32 %v35, 1e-05
  %v38 = vadd.f32 %v36, 1e-05
  %v39 = vrsqrt.pop %v37
  %v40 = vrsqrt.pop %v38
  %v41 = vmul.f32 %v27, %v39
  %v42 = vmul.f32 %v28, %v40
  %v44 = vlaneseq
  %v45 = vshrl.u32 %v44, 7
  %v46 = vsub.s32 0, %v45
  %v47 = vrot.slane %v18, %v46
  %v49 = vmul.f32 %v41, %v47
  %v50 = vmul.f32 %v42, %v47
  %v52 = vlaneseq
  %v53 = vshrl.u32 %v52, 7
  %v54 = vsub.s32 0, %v53
  %v55 = vrot.slane %v19, %v54
  %v57 = vadd.f32 %v49, %v55
  %v58 = vadd.f32 %v50, %v55
  %v59 = vpack.c.bf16 %v58, %v57
  %v61 = vunpack.c.l.b16 %v59
  %v62 = vunpack.c.h.b16 %v59
  %v63 = vpack.c.b16 %v61, %v61
  %v64 = vpack.c.b16 %v62, %v62
  %67 = vst [vmem:[%s3] sm:$0xf] %v63
  %68 = vst [vmem:[%s3 + $0x4] sm:$0xf] %v64
  // Predicated region
  $region14: #{summary_brief_forward.6} parent=0 // pred_check
    _
  $region15: #{summary_brief_forward.6} parent=0 // pred_check_branch
    %70 = sbr.rel (0) target = $region17
  $region16: #{summary_brief_forward.6} parent=0 // pred_region
    _
  $region17: #{summary_brief_forward.6} parent=0 // pred_fallthru
    _
  // Predicated region
  $region18: #{summary_brief_forward.6} parent=0 // pred_check
    _
  $region19: #{summary_brief_forward.6} parent=0 // pred_check_branch
    %72 = sbr.rel (0) target = $region21
  $region20: #{summary_brief_forward.6} parent=0 // pred_region
    _
  $region21: #{summary_brief_forward.6} parent=0 // pred_fallthru
    _

// kernel: summary_brief_forward.9
$region0: #{summary_brief_forward.9}
  #allocation0 [shape = 'u32[]', space=smem, size = 0x4, offset = 0x4, fixed_abs, tag = 'smem constant byte address 0x4 - core index']
  #allocation1 [shape = 'u32[144,128]{1,0:T(1,128)}', space=vmem, size = 0x12000, scoped, tag = 'internal scratch']
  #allocation2 [shape = 'f32[16,128]{1,0:T(8,128)}', space=vmem, size = 0x2000, scoped, tag = 'scratch operand']
  %s0 = inlined_call_operand.vmem [shape: bf16[16,128], index: 0, kind: input, shape index: {}]
  %s1 = inlined_call_operand.vmem [shape: bf16[128,128], index: 1, kind: input, shape index: {}]
  %s2 = inlined_call_operand.vmem [shape: f32[1,128], index: 2, kind: input, shape index: {}]
  %s3 = inlined_call_operand.hbm [shape: f32[16,128], index: 3, kind: output, shape index: {}]
  %s4 = sld [smem:[#allocation0]]
  $region30: #{summary_brief_forward.9} parent=0
    _
  %s6 = ssub.s32 1, %s4
  %s7 = scalar_select 0, %s6, %s4
  $region1: #{summary_brief_forward.9} parent=0
    #allocation3 [shape = 'u8[8192]{0}', space=vmem, size = 0x2000, scoped, tag = 'output window, operand 0, single buffered']
    #allocation4 [shape = 's32[1]{0}', space=sflag, size = 0x4, scoped, tag = 'scoped memory for summary_brief_forward.9']
    %8 = vsyncpa [#allocation4], 0
    // Predicated region
    $region2: #{summary_brief_forward.9} parent=1 // pred_check
      _
    $region3: #{summary_brief_forward.9} parent=1 // pred_check_branch
      %10 = sbr.rel (0) target = $region5
    $region4: #{summary_brief_forward.9} parent=1 // pred_region
      _
    $region5: #{summary_brief_forward.9} parent=1 // pred_fallthru
      _
    // Predicated region
    $region6: #{summary_brief_forward.9} parent=1 // pred_check
      _
    $region7: #{summary_brief_forward.9} parent=1 // pred_check_branch
      %12 = sbr.rel (0) target = $region9
    $region8: #{summary_brief_forward.9} parent=1 // pred_region
      _
    $region9: #{summary_brief_forward.9} parent=1 // pred_fallthru
      _
    // Predicated region
    $region10: #{summary_brief_forward.9} parent=1 // pred_check
      _
    $region11: #{summary_brief_forward.9} parent=1 // pred_check_branch
      %14 = sbr.rel (0) target = $region13
    $region12: #{summary_brief_forward.9} parent=1 // pred_region
      _
    $region13: #{summary_brief_forward.9} parent=1 // pred_fallthru
      _
    %p16 = scmp.eq.s32.totalorder 0, 0
    // Predicated region
    $region14: #{summary_brief_forward.9} parent=1 // pred_check
      %p17 = pneg %p16
    $region15: #{summary_brief_forward.9} parent=1 // pred_check_branch
      %19 = sbr.rel (%p17) target = $region17
    $region16: #{summary_brief_forward.9} parent=1 // pred_region
      %20 = vst [vmem:[#allocation2] sm:$0xff] 0.0
      %21 = vst [vmem:[#allocation2 + $0x8] sm:$0xff] 0.0
    $region17: #{summary_brief_forward.9} parent=1 // pred_fallthru
      _
    %v22 = vld [vmem:[#allocation2] sm:$0xff]
    %v23 = vld [vmem:[#allocation2 + $0x8] sm:$0xff]
    %v24 = vld [vmem:[%s0] sm:$0xf]
    %v25 = vld [vmem:[%s0 + $0x4] sm:$0xf]
    %v26 = vld [vmem:[%s1] sm:$0xf]
    %v27 = vld [vmem:[%s1 + $0x4] sm:$0xf]
    %v28 = vld [vmem:[%s1 + $0x8] sm:$0xf]
    %v29 = vld [vmem:[%s1 + $0xc] sm:$0xf]
    %v30 = vld [vmem:[%s1 + $0x10] sm:$0xf]
    %v31 = vld [vmem:[%s1 + $0x14] sm:$0xf]
    %v32 = vld [vmem:[%s1 + $0x18] sm:$0xf]
    %v33 = vld [vmem:[%s1 + $0x1c] sm:$0xf]
    %v34 = vld [vmem:[%s1 + $0x20] sm:$0xf]
    %v35 = vld [vmem:[%s1 + $0x24] sm:$0xf]
    %v36 = vld [vmem:[%s1 + $0x28] sm:$0xf]
    %v37 = vld [vmem:[%s1 + $0x2c] sm:$0xf]
    %v38 = vld [vmem:[%s1 + $0x30] sm:$0xf]
    %v39 = vld [vmem:[%s1 + $0x34] sm:$0xf]
    %v40 = vld [vmem:[%s1 + $0x38] sm:$0xf]
    %v41 = vld [vmem:[%s1 + $0x3c] sm:$0xf]
    %v44 = vunpack.c.l.b16 %v24
    %v45 = vunpack.c.l.b16 %v25
    %v46 = vpack.c.b16 %v45, %v44
    %v64 = vunpack.c.l.b16 %v26
    %v65 = vunpack.c.l.b16 %v27
    %v66 = vunpack.c.l.b16 %v28
    %v67 = vunpack.c.l.b16 %v29
    %v68 = vunpack.c.l.b16 %v30
    %v69 = vunpack.c.l.b16 %v31
    %v70 = vunpack.c.l.b16 %v32
    %v71 = vunpack.c.l.b16 %v33
    %v72 = vunpack.c.l.b16 %v34
    %v73 = vunpack.c.l.b16 %v35
    %v74 = vunpack.c.l.b16 %v36
    %v75 = vunpack.c.l.b16 %v37
    %v76 = vunpack.c.l.b16 %v38
    %v77 = vunpack.c.l.b16 %v39
    %v78 = vunpack.c.l.b16 %v40
    %v79 = vunpack.c.l.b16 %v41
    %v80 = vpack.c.b16 %v65, %v64
    %v81 = vpack.c.b16 %v67, %v66
    %v82 = vpack.c.b16 %v69, %v68
    %v83 = vpack.c.b16 %v71, %v70
    %v84 = vpack.c.b16 %v73, %v72
    %v85 = vpack.c.b16 %v75, %v74
    %v86 = vpack.c.b16 %v77, %v76
    %v87 = vpack.c.b16 %v79, %v78
    %96 = vmatprep.subr.bf16.mxu0 0
    %97 = vmatpush1.bf16.msra.mxu0 %v87
    %98 = vmatprep.subr.bf16.mxu0 0
    %99 = vmatpush1.bf16.msra.mxu0 %v86
    %100 = vmatprep.subr.bf16.mxu0 0
    %101 = vmatpush1.bf16.msra.mxu0 %v85
    %102 = vmatprep.subr.bf16.mxu0 0
    %103 = vmatpush1.bf16.msra.mxu0 %v84
    %104 = vmatprep.subr.bf16.mxu0 0
    %105 = vmatpush1.bf16.msra.mxu0 %v83
    %106 = vmatprep.subr.bf16.mxu0 0
    %107 = vmatpush1.bf16.msra.mxu0 %v82
    %108 = vmatprep.subr.bf16.mxu0 0
    %109 = vmatpush1.bf16.msra.mxu0 %v81
    %110 = vmatprep.subr.bf16.mxu0 0
    %111 = vmatpush1.bf16.msra.mxu0 %v80
    %112 = vmatprep.subr.bf16.mxu0 0
    %113 = vmatpush2.bf16.msra.mxu0 0
    %114 = vmatprep.subr.bf16.mxu0 0
    %115 = vmatpush2.bf16.msra.mxu0 0
    %116 = vmatprep.subr.bf16.mxu0 0
    %117 = vmatpush2.bf16.msra.mxu0 0
    %118 = vmatprep.subr.bf16.mxu0 0
    %119 = vmatpush2.bf16.msra.mxu0 0
    %120 = vmatprep.subr.bf16.mxu0 0
    %121 = vmatpush2.bf16.msra.mxu0 0
    %122 = vmatprep.subr.bf16.mxu0 0
    %123 = vmatpush2.bf16.msra.mxu0 0
    %124 = vmatprep.subr.bf16.mxu0 0
    %125 = vmatpush2.bf16.msra.mxu0 0
    %126 = vmatprep.subr.bf16.mxu0 0
    %127 = vmatpush2.bf16.msra.mxu0 0
    %128 = vmatprep.mubr.bf16.mxu0 0
    %129 = vmatmul.mubr.bf16.gmra.mxu0 %v46
    %v130 = vpop.f32.mrf.mxu0
    %v131 = vadd.f32 0.0, %v130
    %v132 = vpop.f32.mrf.mxu0
    %v133 = vpop.f32.mrf.mxu0
    %v134 = vadd.f32 0.0, %v133
    %v135 = vpop.f32.mrf.mxu0
    %136 = vdwg.mxu0
    %v137 = vadd.f32 %v22, %v131
    %v138 = vadd.f32 %v23, %v134
    %139 = vst [vmem:[#allocation2] sm:$0xff] %v137
    %140 = vst [vmem:[#allocation2 + $0x8] sm:$0xff] %v138
    // Predicated region
    $region18: #{summary_brief_forward.9} parent=1 // pred_check
      %p141 = pneg %p16
    $region19: #{summary_brief_forward.9} parent=1 // pred_check_branch
      %143 = sbr.rel (%p141) target = $region21
    $region20: #{summary_brief_forward.9} parent=1 // pred_region
      %v144 = vld [vmem:[#allocation2] sm:$0xff]
      %v145 = vld [vmem:[#allocation2 + $0x8] sm:$0xff]
      %v146 = vld [vmem:[%s2] sm:$0x1]
      %v148 = vlaneseq
      %v149 = vshrl.u32 %v148, 7
      %v150 = vsub.s32 0, %v149
      %v151 = vrot.slane %v146, %v150
      %v153 = vadd.f32 %v144, %v151
      %v154 = vadd.f32 %v145, %v151
      %155 = vst [vmem:[#allocation3] sm:$0xff] %v153
      %156 = vst [vmem:[#allocation3 + $0x8] sm:$0xff] %v154
    $region21: #{summary_brief_forward.9} parent=1 // pred_fallthru
      _
    // Predicated region
    $region22: #{summary_brief_forward.9} parent=1 // pred_check
      _
    $region23: #{summary_brief_forward.9} parent=1 // pred_check_branch
      %158 = sbr.rel (0) target = $region25
    $region24: #{summary_brief_forward.9} parent=1 // pred_region
      %s160 = ssub.s32 256, 256
      %161 = vsyncadd [#allocation4], %s160
      %s162 = sshll.u32 [#allocation3], 4
      %s163 = int_to_ptr.vmem [resolvable:$true] %s162
      %168 = dma.vmem_to_hbm [thread:$0]  %s163, 256, %s3, [#allocation4], 128, 128, 8
    $region25: #{summary_brief_forward.9} parent=1 // pred_fallthru
      _
    // Predicated region
    $region26: #{summary_brief_forward.9} parent=1 // pred_check
      _
    $region27: #{summary_brief_forward.9} parent=1 // pred_check_branch
      %170 = sbr.rel (0) target = $region29
    $region28: #{summary_brief_forward.9} parent=1 // pred_region
      %171 = dma.done [#allocation4], 256
    $region29: #{summary_brief_forward.9} parent=1 // pred_fallthru
      _
    %172 = vsyncpa [#allocation4], 1

// kernel: summary_brief_forward.7
$region0: #{summary_brief_forward.7}
  #allocation0 [shape = 'u32[]', space=smem, size = 0x4, offset = 0x4, fixed_abs, tag = 'smem constant byte address 0x4 - core index']
  #allocation1 [shape = 'u32[144,128]{1,0:T(1,128)}', space=vmem, size = 0x12000, scoped, tag = 'internal scratch']
  %s0 = inlined_call_operand.vmem [shape: bf16[2,8,128], index: 0, kind: input, shape index: {}]
  %s1 = inlined_call_operand.vmem [shape: f32[2,1,8], index: 1, kind: input, shape index: {}]
  %s2 = inlined_call_operand.hbm [shape: bf16[12,128,32], index: 2, kind: input, shape index: {}]
  %s3 = inlined_call_operand.vmem [shape: f32[12,1,32], index: 3, kind: input, shape index: {}]
  %s4 = inlined_call_operand.hbm [shape: bf16[4,32,128], index: 4, kind: input, shape index: {}]
  %s5 = inlined_call_operand.vmem [shape: f32[1,128], index: 5, kind: input, shape index: {}, may-alias: {5,7,11,13}]
  %s6 = inlined_call_operand.vmem [shape: f32[1,128], index: 6, kind: input, shape index: {}, may-alias: {6,12}]
  %s7 = inlined_call_operand.vmem [shape: f32[1,128], index: 7, kind: input, shape index: {}, may-alias: {5,7,11,13}]
  %s8 = inlined_call_operand.hbm [shape: bf16[128,256], index: 8, kind: input, shape index: {}]
  %s9 = inlined_call_operand.vmem [shape: f32[1,256], index: 9, kind: input, shape index: {}]
  %s10 = inlined_call_operand.hbm [shape: bf16[256,128], index: 10, kind: input, shape index: {}]
  %s11 = inlined_call_operand.vmem [shape: f32[1,128], index: 11, kind: input, shape index: {}, may-alias: {5,7,11,13}]
  %s12 = inlined_call_operand.vmem [shape: f32[1,128], index: 12, kind: input, shape index: {}, may-alias: {6,12}]
  %s13 = inlined_call_operand.vmem [shape: f32[1,128], index: 13, kind: input, shape index: {}, may-alias: {5,7,11,13}]
  %s14 = inlined_call_operand.vmem [shape: bf16[2,8,128], index: 14, kind: output, shape index: {}]
  %s15 = sld [smem:[#allocation0]]
  $region105: #{summary_brief_forward.7} parent=0
    _
  %s17 = ssub.s32 1, %s15
  %s18 = scalar_select 0, %s17, %s15
  $region1: #{summary_brief_forward.7} parent=0
    #allocation2 [shape = 'u8[393216]{0}', space=vmem, size = 0x60000, scoped, tag = 'input window, operand 2, single buffered']
    #allocation3 [shape = 's32[2]{0}', space=sflag, size = 0x8, scoped, tag = 'scoped memory for summary_brief_forward.7']
    #allocation4 [shape = 'u8[32768]{0}', space=vmem, size = 0x8000, scoped, tag = 'input window, operand 4, single buffered']
    #allocation5 [shape = 's32[1]{0}', space=sflag, size = 0x4, scoped, tag = 'scoped memory for summary_brief_forward.7']
    #allocation6 [shape = 'u8[65536]{0}', space=vmem, size = 0x10000, scoped, tag = 'input window, operand 8, single buffered']
    #allocation7 [shape = 'u8[65536]{0}', space=vmem, size = 0x10000, scoped, tag = 'input window, operand 10, single buffered']
    #allocation8 [shape = 's32[1]{0}', space=sflag, size = 0x4, scoped, tag = 'scoped memory for summary_brief_forward.7']
    %19 = vsyncpa [#allocation3], 0
    %20 = vsyncpa [#allocation5], 0
    %21 = vsyncpa [#allocation8], 0
    loop: start=0, step=1, limit=4
    $region2: #{summary_brief_forward.7} parent=1 // loop_pre_header
      _
    $region3: #{summary_brief_forward.7} parent=1 // loop_header
      %s23 = sphi 0, %s27
      %p24 = scmp.ge.s32.totalorder %s23, 4
      %s33 = sphi 0, %s35
      %s36 = sphi 0, %s33
      %s37 = sphi 0, %s36
      %s53 = sphi 0, %s37
      %s59 = sphi 0, %s61
      %s62 = sphi 0, %s59
      %s63 = sphi 0, %s62
      %s79 = sphi 0, %s63
      %s83 = sphi 0, %s83
      %s85 = sphi 0, %s83
      %s86 = sphi 0, %s85
      %s100 = sphi 0, %s86
      %s104 = sphi 0, %s104
      %s106 = sphi 0, %s104
      %s107 = sphi 0, %s106
      %s121 = sphi 0, %s107
      %s125 = sphi 0, %s125
      %s127 = sphi 0, %s125
      %s128 = sphi 0, %s127
      %s142 = sphi 0, %s128
      %s146 = sphi 0, %s146
      %s148 = sphi 0, %s146
      %s149 = sphi 0, %s148
      %s163 = sphi 0, %s149
      %s167 = sphi 0, %s167
      %s169 = sphi 0, %s167
      %s170 = sphi 0, %s169
      %s184 = sphi 0, %s170
      %s188 = sphi 0, %s188
      %s190 = sphi 0, %s188
      %s191 = sphi 0, %s190
      %s205 = sphi 0, %s191
      %s209 = sphi 0, %s209
      %s211 = sphi 0, %s209
      %s212 = sphi 0, %s211
      %s226 = sphi 0, %s212
      %s230 = sphi 0, %s230
      %s232 = sphi 0, %s230
      %s233 = sphi 0, %s232
      %s247 = sphi 0, %s233
      %s251 = sphi 0, %s251
      %s253 = sphi 0, %s251
      %s254 = sphi 0, %s253
      %s268 = sphi 0, %s254
      %s272 = sphi 0, %s272
      %s274 = sphi 0, %s272
      %s275 = sphi 0, %s274
      %s289 = sphi 0, %s275
      %s293 = sphi 0, %s293
      %s295 = sphi 0, %s293
      %s296 = sphi 0, %s295
      %s310 = sphi 0, %s296
      %s314 = sphi 0, %s314
      %s316 = sphi 0, %s314
      %s317 = sphi 0, %s316
      %s331 = sphi 0, %s317
      %s337 = sphi 0, %s339
      %s340 = sphi 0, %s337
      %s341 = sphi 0, %s340
      %s357 = sphi 0, %s341
    $region4: #{summary_brief_forward.7} parent=1 // loop_header_branch
      %26 = sbr.rel (%p24) target = $region8
    $region5: #{summary_brief_forward.7} parent=1 // loop_body
      %s28 = ssub.s32 %s23, 1
      %s29 = ssub.s32 %s23, 2
      %s30 = sadd.s32 %s23, 1
      %s31 = ssub.s32 %s23, %s30
      %p32 = scmp.eq.s32.totalorder %s31, 0
      %s34 = sadd.s32 %s33, 1
      %s35 = scalar_select %p32, %s33, %s34
      %p38 = pneg %p32
      %p39 = scmp.eq.s32.totalorder %s23, 1
      %p40 = por %p38, %p39
      %p41 = scmp.ne.s32.totalorder %s33, %s36
      %p42 = scmp.eq.s32.totalorder %s23, 0
      %p43 = por %p41, %p42
      %p44 = scmp.ne.s32.totalorder %s33, %s36
      %p45 = scmp.eq.s32.totalorder %s28, 1
      %p46 = por %p44, %p45
      %p47 = scmp.ne.s32.totalorder %s36, %s37
      %p48 = scmp.eq.s32.totalorder %s28, 0
      %p49 = por %p47, %p48
      %p50 = scmp.ne.s32.totalorder %s36, %s37
      %p51 = scmp.eq.s32.totalorder %s29, 1
      %p52 = por %p50, %p51
      %p54 = scmp.ne.s32.totalorder %s37, %s53
      %p55 = scmp.eq.s32.totalorder %s29, 0
      %p56 = por %p54, %p55
      %s57 = ssub.s32 %s23, %s30
      %p58 = scmp.eq.s32.totalorder %s57, 0
      %s60 = sadd.s32 %s59, 1
      %s61 = scalar_select %p58, %s59, %s60
      %p64 = pneg %p58
      %p65 = scmp.eq.s32.totalorder %s23, 1
      %p66 = por %p64, %p65
      %p67 = scmp.ne.s32.totalorder %s59, %s62
      %p68 = scmp.eq.s32.totalorder %s23, 0
      %p69 = por %p67, %p68
      %p70 = scmp.ne.s32.totalorder %s59, %s62
      %p71 = scmp.eq.s32.totalorder %s28, 1
      %p72 = por %p70, %p71
      %p73 = scmp.ne.s32.totalorder %s62, %s63
      %p74 = scmp.eq.s32.totalorder %s28, 0
      %p75 = por %p73, %p74
      %p76 = scmp.ne.s32.totalorder %s62, %s63
      %p77 = scmp.eq.s32.totalorder %s29, 1
      %p78 = por %p76, %p77
      %p80 = scmp.ne.s32.totalorder %s63, %s79
      %p81 = scmp.eq.s32.totalorder %s29, 0
      %p82 = por %p80, %p81
      %s84 = sadd.s32 %s83, 1
      %p87 = scmp.eq.s32.totalorder %s23, 1
      %p88 = scmp.ne.s32.totalorder %s83, %s85
      %p89 = scmp.eq.s32.totalorder %s23, 0
      %p90 = por %p88, %p89
      %p91 = scmp.ne.s32.totalorder %s83, %s85
      %p92 = scmp.eq.s32.totalorder %s28, 1
      %p93 = por %p91, %p92
      %p94 = scmp.ne.s32.totalorder %s85, %s86
      %p95 = scmp.eq.s32.totalorder %s28, 0
      %p96 = por %p94, %p95
      %p97 = scmp.ne.s32.totalorder %s85, %s86
      %p98 = scmp.eq.s32.totalorder %s29, 1
      %p99 = por %p97, %p98
      %p101 = scmp.ne.s32.totalorder %s86, %s100
      %p102 = scmp.eq.s32.totalorder %s29, 0
      %p103 = por %p101, %p102
      %s105 = sadd.s32 %s104, 1
      %p108 = scmp.eq.s32.totalorder %s23, 1
      %p109 = scmp.ne.s32.totalorder %s104, %s106
      %p110 = scmp.eq.s32.totalorder %s23, 0
      %p111 = por %p109, %p110
      %p112 = scmp.ne.s32.totalorder %s104, %s106
      %p113 = scmp.eq.s32.totalorder %s28, 1
      %p114 = por %p112, %p113
      %p115 = scmp.ne.s32.totalorder %s106, %s107
      %p116 = scmp.eq.s32.totalorder %s28, 0
      %p117 = por %p115, %p116
      %p118 = scmp.ne.s32.totalorder %s106, %s107
      %p119 = scmp.eq.s32.totalorder %s29, 1
      %p120 = por %p118, %p119
      %p122 = scmp.ne.s32.totalorder %s107, %s121
      %p123 = scmp.eq.s32.totalorder %s29, 0
      %p124 = por %p122, %p123
      %s126 = sadd.s32 %s125, 1
      %p129 = scmp.eq.s32.totalorder %s23, 1
      %p130 = scmp.ne.s32.totalorder %s125, %s127
      %p131 = scmp.eq.s32.totalorder %s23, 0
      %p132 = por %p130, %p131
      %p133 = scmp.ne.s32.totalorder %s125, %s127
      %p134 = scmp.eq.s32.totalorder %s28, 1
      %p135 = por %p133, %p134
      %p136 = scmp.ne.s32.totalorder %s127, %s128
      %p137 = scmp.eq.s32.totalorder %s28, 0
      %p138 = por %p136, %p137
      %p139 = scmp.ne.s32.totalorder %s127, %s128
      %p140 = scmp.eq.s32.totalorder %s29, 1
      %p141 = por %p139, %p140
      %p143 = scmp.ne.s32.totalorder %s128, %s142
      %p144 = scmp.eq.s32.totalorder %s29, 0
      %p145 = por %p143, %p144
      %s147 = sadd.s32 %s146, 1
      %p150 = scmp.eq.s32.totalorder %s23, 1
      %p151 = scmp.ne.s32.totalorder %s146, %s148
      %p152 = scmp.eq.s32.totalorder %s23, 0
      %p153 = por %p151, %p152
      %p154 = scmp.ne.s32.totalorder %s146, %s148
      %p155 = scmp.eq.s32.totalorder %s28, 1
      %p156 = por %p154, %p155
      %p157 = scmp.ne.s32.totalorder %s148, %s149
      %p158 = scmp.eq.s32.totalorder %s28, 0
      %p159 = por %p157, %p158
      %p160 = scmp.ne.s32.totalorder %s148, %s149
      %p161 = scmp.eq.s32.totalorder %s29, 1
      %p162 = por %p160, %p161
      %p164 = scmp.ne.s32.totalorder %s149, %s163
      %p165 = scmp.eq.s32.totalorder %s29, 0
      %p166 = por %p164, %p165
      %s168 = sadd.s32 %s167, 1
      %p171 = scmp.eq.s32.totalorder %s23, 1
      %p172 = scmp.ne.s32.totalorder %s167, %s169
      %p173 = scmp.eq.s32.totalorder %s23, 0
      %p174 = por %p172, %p173
      %p175 = scmp.ne.s32.totalorder %s167, %s169
      %p176 = scmp.eq.s32.totalorder %s28, 1
      %p177 = por %p175, %p176
      %p178 = scmp.ne.s32.totalorder %s169, %s170
      %p179 = scmp.eq.s32.totalorder %s28, 0
      %p180 = por %p178, %p179
      %p181 = scmp.ne.s32.totalorder %s169, %s170
      %p182 = scmp.eq.s32.totalorder %s29, 1
      %p183 = por %p181, %p182
      %p185 = scmp.ne.s32.totalorder %s170, %s184
      %p186 = scmp.eq.s32.totalorder %s29, 0
      %p187 = por %p185, %p186
      %s189 = sadd.s32 %s188, 1
      %p192 = scmp.eq.s32.totalorder %s23, 1
      %p193 = scmp.ne.s32.totalorder %s188, %s190
      %p194 = scmp.eq.s32.totalorder %s23, 0
      %p195 = por %p193, %p194
      %p196 = scmp.ne.s32.totalorder %s188, %s190
      %p197 = scmp.eq.s32.totalorder %s28, 1
      %p198 = por %p196, %p197
      %p199 = scmp.ne.s32.totalorder %s190, %s191
      %p200 = scmp.eq.s32.totalorder %s28, 0
      %p201 = por %p199, %p200
      %p202 = scmp.ne.s32.totalorder %s190, %s191
      %p203 = scmp.eq.s32.totalorder %s29, 1
      %p204 = por %p202, %p203
      %p206 = scmp.ne.s32.totalorder %s191, %s205
      %p207 = scmp.eq.s32.totalorder %s29, 0
      %p208 = por %p206, %p207
      %s210 = sadd.s32 %s209, 1
      %p213 = scmp.eq.s32.totalorder %s23, 1
      %p214 = scmp.ne.s32.totalorder %s209, %s211
      %p215 = scmp.eq.s32.totalorder %s23, 0
      %p216 = por %p214, %p215
      %p217 = scmp.ne.s32.totalorder %s209, %s211
      %p218 = scmp.eq.s32.totalorder %s28, 1
      %p219 = por %p217, %p218
      %p220 = scmp.ne.s32.totalorder %s211, %s212
      %p221 = scmp.eq.s32.totalorder %s28, 0
      %p222 = por %p220, %p221
      %p223 = scmp.ne.s32.totalorder %s211, %s212
      %p224 = scmp.eq.s32.totalorder %s29, 1
      %p225 = por %p223, %p224
      %p227 = scmp.ne.s32.totalorder %s212, %s226
      %p228 = scmp.eq.s32.totalorder %s29, 0
      %p229 = por %p227, %p228
      %s231 = sadd.s32 %s230, 1
      %p234 = scmp.eq.s32.totalorder %s23, 1
      %p235 = scmp.ne.s32.totalorder %s230, %s232
      %p236 = scmp.eq.s32.totalorder %s23, 0
      %p237 = por %p235, %p236
      %p238 = scmp.ne.s32.totalorder %s230, %s232
      %p239 = scmp.eq.s32.totalorder %s28, 1
      %p240 = por %p238, %p239
      %p241 = scmp.ne.s32.totalorder %s232, %s233
      %p242 = scmp.eq.s32.totalorder %s28, 0
      %p243 = por %p241, %p242
      %p244 = scmp.ne.s32.totalorder %s232, %s233
      %p245 = scmp.eq.s32.totalorder %s29, 1
      %p246 = por %p244, %p245
      %p248 = scmp.ne.s32.totalorder %s233, %s247
      %p249 = scmp.eq.s32.totalorder %s29, 0
      %p250 = por %p248, %p249
      %s252 = sadd.s32 %s251, 1
      %p255 = scmp.eq.s32.totalorder %s23, 1
      %p256 = scmp.ne.s32.totalorder %s251, %s253
      %p257 = scmp.eq.s32.totalorder %s23, 0
      %p258 = por %p256, %p257
      %p259 = scmp.ne.s32.totalorder %s251, %s253
      %p260 = scmp.eq.s32.totalorder %s28, 1
      %p261 = por %p259, %p260
      %p262 = scmp.ne.s32.totalorder %s253, %s254
      %p263 = scmp.eq.s32.totalorder %s28, 0
      %p264 = por %p262, %p263
      %p265 = scmp.ne.s32.totalorder %s253, %s254
      %p266 = scmp.eq.s32.totalorder %s29, 1
      %p267 = por %p265, %p266
      %p269 = scmp.ne.s32.totalorder %s254, %s268
      %p270 = scmp.eq.s32.totalorder %s29, 0
      %p271 = por %p269, %p270
      %s273 = sadd.s32 %s272, 1
      %p276 = scmp.eq.s32.totalorder %s23, 1
      %p277 = scmp.ne.s32.totalorder %s272, %s274
      %p278 = scmp.eq.s32.totalorder %s23, 0
      %p279 = por %p277, %p278
      %p280 = scmp.ne.s32.totalorder %s272, %s274
      %p281 = scmp.eq.s32.totalorder %s28, 1
      %p282 = por %p280, %p281
      %p283 = scmp.ne.s32.totalorder %s274, %s275
      %p284 = scmp.eq.s32.totalorder %s28, 0
      %p285 = por %p283, %p284
      %p286 = scmp.ne.s32.totalorder %s274, %s275
      %p287 = scmp.eq.s32.totalorder %s29, 1
      %p288 = por %p286, %p287
      %p290 = scmp.ne.s32.totalorder %s275, %s289
      %p291 = scmp.eq.s32.totalorder %s29, 0
      %p292 = por %p290, %p291
      %s294 = sadd.s32 %s293, 1
      %p297 = scmp.eq.s32.totalorder %s23, 1
      %p298 = scmp.ne.s32.totalorder %s293, %s295
      %p299 = scmp.eq.s32.totalorder %s23, 0
      %p300 = por %p298, %p299
      %p301 = scmp.ne.s32.totalorder %s293, %s295
      %p302 = scmp.eq.s32.totalorder %s28, 1
      %p303 = por %p301, %p302
      %p304 = scmp.ne.s32.totalorder %s295, %s296
      %p305 = scmp.eq.s32.totalorder %s28, 0
      %p306 = por %p304, %p305
      %p307 = scmp.ne.s32.totalorder %s295, %s296
      %p308 = scmp.eq.s32.totalorder %s29, 1
      %p309 = por %p307, %p308
      %p311 = scmp.ne.s32.totalorder %s296, %s310
      %p312 = scmp.eq.s32.totalorder %s29, 0
      %p313 = por %p311, %p312
      %s315 = sadd.s32 %s314, 1
      %p318 = scmp.eq.s32.totalorder %s23, 1
      %p319 = scmp.ne.s32.totalorder %s314, %s316
      %p320 = scmp.eq.s32.totalorder %s23, 0
      %p321 = por %p319, %p320
      %p322 = scmp.ne.s32.totalorder %s314, %s316
      %p323 = scmp.eq.s32.totalorder %s28, 1
      %p324 = por %p322, %p323
      %p325 = scmp.ne.s32.totalorder %s316, %s317
      %p326 = scmp.eq.s32.totalorder %s28, 0
      %p327 = por %p325, %p326
      %p328 = scmp.ne.s32.totalorder %s316, %s317
      %p329 = scmp.eq.s32.totalorder %s29, 1
      %p330 = por %p328, %p329
      %p332 = scmp.ne.s32.totalorder %s317, %s331
      %p333 = scmp.eq.s32.totalorder %s29, 0
      %p334 = por %p332, %p333
      %s335 = ssub.s32 %s23, %s30
      %p336 = scmp.eq.s32.totalorder %s335, 0
      %s338 = sadd.s32 %s337, 1
      %s339 = scalar_select %p336, %s337, %s338
      %p342 = pneg %p336
      %p343 = scmp.eq.s32.totalorder %s23, 1
      %p344 = por %p342, %p343
      %p345 = scmp.ne.s32.totalorder %s337, %s340
      %p346 = scmp.eq.s32.totalorder %s23, 0
      %p347 = por %p345, %p346
      %p348 = scmp.ne.s32.totalorder %s337, %s340
      %p349 = scmp.eq.s32.totalorder %s28, 1
      %p350 = por %p348, %p349
      %p351 = scmp.ne.s32.totalorder %s340, %s341
      %p352 = scmp.eq.s32.totalorder %s28, 0
      %p353 = por %p351, %p352
      %p354 = scmp.ne.s32.totalorder %s340, %s341
      %p355 = scmp.eq.s32.totalorder %s29, 1
      %p356 = por %p354, %p355
      %p358 = scmp.ne.s32.totalorder %s341, %s357
      %p359 = scmp.eq.s32.totalorder %s29, 0
      %p360 = por %p358, %p359
      %p361 = scmp.le.s32.totalorder 1, %s23
      %p362 = scmp.lt.s32.totalorder %s23, 3
      %p363 = pnand %p361, %p362
      %p364 = pneg %p363
      // Predicated region
      $region9: #{summary_brief_forward.7} parent=5 // pred_check
        _
      $region10: #{summary_brief_forward.7} parent=5 // pred_check_branch
        %366 = sbr.rel (%p363) target = $region12
      $region11: #{summary_brief_forward.7} parent=5 // pred_region
        %s367 = ssub.s32 %s23, 1
        // Predicated region
        $region13: #{summary_brief_forward.7} parent=11 // pred_check
          %p368 = pneg %p96
        $region14: #{summary_brief_forward.7} parent=11 // pred_check_branch
          %370 = sbr.rel (%p368) target = $region16
        $region15: #{summary_brief_forward.7} parent=11 // pred_region
          %s372 = ssub.s32 12288, 12288
          %373 = vsyncadd [#allocation3], %s372
          %s374 = sshll.u32 [#allocation2], 4
          %s375 = int_to_ptr.vmem [resolvable:$true] %s374
          %380 = dma.hbm_to_vmem [thread:$0]  %s2, 12288, %s375, [#allocation3], 64, 64, 4
        $region16: #{summary_brief_forward.7} parent=11 // pred_fallthru
          _
        // Predicated region
        $region17: #{summary_brief_forward.7} parent=11 // pred_check
          %p381 = pneg %p117
        $region18: #{summary_brief_forward.7} parent=11 // pred_check_branch
          %383 = sbr.rel (%p381) target = $region20
        $region19: #{summary_brief_forward.7} parent=11 // pred_region
          _
        $region20: #{summary_brief_forward.7} parent=11 // pred_fallthru
          _
        // Predicated region
        $region21: #{summary_brief_forward.7} parent=11 // pred_check
          %p384 = pneg %p138
        $region22: #{summary_brief_forward.7} parent=11 // pred_check_branch
          %386 = sbr.rel (%p384) target = $region24
        $region23: #{summary_brief_forward.7} parent=11 // pred_region
          %s388 = ssub.s32 1024, 1024
          %389 = vsyncadd [#allocation5], %s388
          %s390 = sshll.u32 [#allocation4], 4
          %s391 = int_to_ptr.vmem [resolvable:$true] %s390
          %396 = dma.hbm_to_vmem [thread:$0]  %s4, 1024, %s391, [#allocation5], 64, 64, 4
        $region24: #{summary_brief_forward.7} parent=11 // pred_fallthru
          _
        // Predicated region
        $region25: #{summary_brief_forward.7} parent=11 // pred_check
          %p397 = pneg %p159
        $region26: #{summary_brief_forward.7} parent=11 // pred_check_branch
          %399 = sbr.rel (%p397) target = $region28
        $region27: #{summary_brief_forward.7} parent=11 // pred_region
          _
        $region28: #{summary_brief_forward.7} parent=11 // pred_fallthru
          _
        // Predicated region
        $region29: #{summary_brief_forward.7} parent=11 // pred_check
          %p400 = pneg %p180
        $region30: #{summary_brief_forward.7} parent=11 // pred_check_branch
          %402 = sbr.rel (%p400) target = $region32
        $region31: #{summary_brief_forward.7} parent=11 // pred_region
          _
        $region32: #{summary_brief_forward.7} parent=11 // pred_fallthru
          _
        // Predicated region
        $region33: #{summary_brief_forward.7} parent=11 // pred_check
          %p403 = pneg %p201
        $region34: #{summary_brief_forward.7} parent=11 // pred_check_branch
          %405 = sbr.rel (%p403) target = $region36
        $region35: #{summary_brief_forward.7} parent=11 // pred_region
          _
        $region36: #{summary_brief_forward.7} parent=11 // pred_fallthru
          _
        // Predicated region
        $region37: #{summary_brief_forward.7} parent=11 // pred_check
          %p406 = pneg %p222
        $region38: #{summary_brief_forward.7} parent=11 // pred_check_branch
          %408 = sbr.rel (%p406) target = $region40
        $region39: #{summary_brief_forward.7} parent=11 // pred_region
          %s410 = ssub.s32 2048, 2048
          %411 = vsyncadd [#allocation5], %s410
          %s412 = sshll.u32 [#allocation6], 4
          %s413 = int_to_ptr.vmem [resolvable:$true] %s412
          %418 = dma.hbm_to_vmem [thread:$0]  %s8, 2048, %s413, [#allocation5], 128, 128, 8
        $region40: #{summary_brief_forward.7} parent=11 // pred_fallthru
          _
        // Predicated region
        $region41: #{summary_brief_forward.7} parent=11 // pred_check
          %p419 = pneg %p243
        $region42: #{summary_brief_forward.7} parent=11 // pred_check_branch
          %421 = sbr.rel (%p419) target = $region44
        $region43: #{summary_brief_forward.7} parent=11 // pred_region
          _
        $region44: #{summary_brief_forward.7} parent=11 // pred_fallthru
          _
        // Predicated region
        $region45: #{summary_brief_forward.7} parent=11 // pred_check
          %p422 = pneg %p264
        $region46: #{summary_brief_forward.7} parent=11 // pred_check_branch
          %424 = sbr.rel (%p422) target = $region48
        $region47: #{summary_brief_forward.7} parent=11 // pred_region
          %s426 = ssub.s32 2048, 2048
          %427 = vsyncadd [#allocation8], %s426
          %s428 = sshll.u32 [#allocation7], 4
          %s429 = int_to_ptr.vmem [resolvable:$true] %s428
          %434 = dma.hbm_to_vmem [thread:$0]  %s10, 2048, %s429, [#allocation8], 64, 64, 4
        $region48: #{summary_brief_forward.7} parent=11 // pred_fallthru
          _
        // Predicated region
        $region49: #{summary_brief_forward.7} parent=11 // pred_check
          %p435 = pneg %p285
        $region50: #{summary_brief_forward.7} parent=11 // pred_check_branch
          %437 = sbr.rel (%p435) target = $region52
        $region51: #{summary_brief_forward.7} parent=11 // pred_region
          _
        $region52: #{summary_brief_forward.7} parent=11 // pred_fallthru
          _
        // Predicated region
        $region53: #{summary_brief_forward.7} parent=11 // pred_check
          %p438 = pneg %p306
        $region54: #{summary_brief_forward.7} parent=11 // pred_check_branch
          %440 = sbr.rel (%p438) target = $region56
        $region55: #{summary_brief_forward.7} parent=11 // pred_region
          _
        $region56: #{summary_brief_forward.7} parent=11 // pred_fallthru
          _
        // Predicated region
        $region57: #{summary_brief_forward.7} parent=11 // pred_check
          %p441 = pneg %p327
        $region58: #{summary_brief_forward.7} parent=11 // pred_check_branch
          %443 = sbr.rel (%p441) target = $region60
        $region59: #{summary_brief_forward.7} parent=11 // pred_region
          _
        $region60: #{summary_brief_forward.7} parent=11 // pred_fallthru
          _
      $region12: #{summary_brief_forward.7} parent=5 // pred_fallthru
        _
      %p444 = scmp.lt.s32.totalorder %s23, 2
      // Predicated region
      $region61: #{summary_brief_forward.7} parent=5 // pred_check
        %p445 = pneg %p444
      $region62: #{summary_brief_forward.7} parent=5 // pred_check_branch
        %447 = sbr.rel (%p445) target = $region64
      $region63: #{summary_brief_forward.7} parent=5 // pred_region
        // Predicated region
        $region65: #{summary_brief_forward.7} parent=63 // pred_check
          %p448 = pneg %p43
        $region66: #{summary_brief_forward.7} parent=63 // pred_check_branch
          %450 = sbr.rel (%p448) target = $region68
        $region67: #{summary_brief_forward.7} parent=63 // pred_region
          %p451 = scmp.lt.s32.totalorder %s23, 1
          %s452 = scalar_select %p451, %s23, 1
          %s453 = smul.addr %s452, 4
          %s454 = scalar_lea.vmem %s0, %s453
        $region68: #{summary_brief_forward.7} parent=63 // pred_fallthru
          _
        // Predicated region
        $region69: #{summary_brief_forward.7} parent=63 // pred_check
          %p455 = pneg %p69
        $region70: #{summary_brief_forward.7} parent=63 // pred_check_branch
          %457 = sbr.rel (%p455) target = $region72
        $region71: #{summary_brief_forward.7} parent=63 // pred_region
          %p458 = scmp.lt.s32.totalorder %s23, 1
          %s459 = scalar_select %p458, %s23, 1
          %s460 = scalar_lea.vmem %s1, %s459
        $region72: #{summary_brief_forward.7} parent=63 // pred_fallthru
          _
      $region64: #{summary_brief_forward.7} parent=5 // pred_fallthru
        _
      %p461 = scmp.le.s32.totalorder 1, %s23
      %p462 = scmp.lt.s32.totalorder %s23, 3
      %p463 = pnand %p461, %p462
      %p464 = pneg %p463
      // Predicated region
      $region73: #{summary_brief_forward.7} parent=5 // pred_check
        _
      $region74: #{summary_brief_forward.7} parent=5 // pred_check_branch
        %466 = sbr.rel (%p463) target = $region76
      $region75: #{summary_brief_forward.7} parent=5 // pred_region
        %s467 = ssub.s32 %s23, 1
        // Predicated region
        $region77: #{summary_brief_forward.7} parent=75 // pred_check
          %p468 = pneg %p96
        $region78: #{summary_brief_forward.7} parent=75 // pred_check_branch
          %470 = sbr.rel (%p468) target = $region80
        $region79: #{summary_brief_forward.7} parent=75 // pred_region
          %471 = dma.done [#allocation3], 12288
        $region80: #{summary_brief_forward.7} parent=75 // pred_fallthru
          _
        // Predicated region
        $region81: #{summary_brief_forward.7} parent=75 // pred_check
          %p472 = pneg %p138
        $region82: #{summary_brief_forward.7} parent=75 // pred_check_branch
          %474 = sbr.rel (%p472) target = $region84
        $region83: #{summary_brief_forward.7} parent=75 // pred_region
          %475 = dma.done [#allocation5], 1024
        $region84: #{summary_brief_forward.7} parent=75 // pred_fallthru
          _
        // Predicated region
        $region85: #{summary_brief_forward.7} parent=75 // pred_check
          %p476 = pneg %p222
        $region86: #{summary_brief_forward.7} parent=75 // pred_check_branch
          %478 = sbr.rel (%p476) target = $region88
        $region87: #{summary_brief_forward.7} parent=75 // pred_region
          %479 = dma.done [#allocation5], 2048
        $region88: #{summary_brief_forward.7} parent=75 // pred_fallthru
          _
        // Predicated region
        $region89: #{summary_brief_forward.7} parent=75 // pred_check
          %p480 = pneg %p264
        $region90: #{summary_brief_forward.7} parent=75 // pred_check_branch
          %482 = sbr.rel (%p480) target = $region92
        $region91: #{summary_brief_forward.7} parent=75 // pred_region
          %483 = dma.done [#allocation8], 2048
        $region92: #{summary_brief_forward.7} parent=75 // pred_fallthru
          _
        %p484 = scmp.lt.s32.totalorder %s28, 1
        %s485 = scalar_select %p484, %s28, 1
        %s486 = smul.addr %s485, 4
        %s487 = scalar_lea.vmem %s0, %s486
        %p488 = pneg %p49
        %p489 = pneg %p46
        %p490 = scmp.lt.s32.totalorder %s28, 1
        %s491 = scalar_select %p490, %s28, 1
        %s492 = scalar_lea.vmem %s1, %s491
        %p493 = pneg %p75
        %p494 = pneg %p72
        %p495 = pneg %p96
        %p496 = pneg %p93
        %p497 = pneg %p117
        %p498 = pneg %p114
        %p499 = pneg %p138
        %p500 = pneg %p135
        %p501 = pneg %p159
        %p502 = pneg %p156
        %p503 = pneg %p180
        %p504 = pneg %p177
        %p505 = pneg %p201
        %p506 = pneg %p198
        %p507 = pneg %p222
        %p508 = pneg %p219
        %p509 = pneg %p243
        %p510 = pneg %p240
        %p511 = pneg %p264
        %p512 = pneg %p261
        %p513 = pneg %p285
        %p514 = pneg %p282
        %p515 = pneg %p306
        %p516 = pneg %p303
        %p517 = pneg %p327
        %p518 = pneg %p324
        %p519 = pneg %p353
        %p520 = pneg %p350
        %p521 = scmp.lt.s32.totalorder %s28, 1
        %s522 = scalar_select %p521, %s28, 1
        %s523 = smul.addr %s522, 4
        %s524 = scalar_lea.vmem %s14, %s523
        %p525 = scmp.lt.s32.totalorder %s28, 1
        %s526 = scalar_select %p525, %s28, 1
        %s527 = smul.addr %s526, 4
        %s528 = scalar_lea.vmem %s0, %s527
        %p529 = scmp.lt.s32.totalorder %s28, 1
        %s530 = scalar_select %p529, %s28, 1
        %s531 = scalar_lea.vmem %s1, %s530
        %p532 = scmp.lt.s32.totalorder %s28, 1
        %s533 = scalar_select %p532, %s28, 1
        %s534 = smul.addr %s533, 4
        %s535 = scalar_lea.vmem %s14, %s534
        %v537 = vld [vmem:[%s528] sm:$0xf]
        %v538 = vld [vmem:[%s531] sm:$0x1]
        %v539 = vsub.f32 1.0, %v538
        %v540 = vmul.f32 %v539, -1e+09
        %v542 = vlaneseq
        %v543 = vshrl.u32 %v542, 7
        %v544 = vsub.s32 0, %v543
        %v545 = vrot.slane %v540, %v544
        %v547 = vld [vmem:[#allocation2] sm:$0xf]
        %v548 = vld [vmem:[#allocation2 + $0x4] sm:$0xf]
        %v549 = vld [vmem:[#allocation2 + $0x8] sm:$0xf]
        %v550 = vld [vmem:[#allocation2 + $0xc] sm:$0xf]
        %v551 = vld [vmem:[#allocation2 + $0x10] sm:$0xf]
        %v552 = vld [vmem:[#allocation2 + $0x14] sm:$0xf]
        %v553 = vld [vmem:[#allocation2 + $0x18] sm:$0xf]
        %v554 = vld [vmem:[#allocation2 + $0x1c] sm:$0xf]
        %v555 = vld [vmem:[#allocation2 + $0x20] sm:$0xf]
        %v556 = vld [vmem:[#allocation2 + $0x24] sm:$0xf]
        %v557 = vld [vmem:[#allocation2 + $0x28] sm:$0xf]
        %v558 = vld [vmem:[#allocation2 + $0x2c] sm:$0xf]
        %v559 = vld [vmem:[#allocation2 + $0x30] sm:$0xf]
        %v560 = vld [vmem:[#allocation2 + $0x34] sm:$0xf]
        %v561 = vld [vmem:[#allocation2 + $0x38] sm:$0xf]
        %v562 = vld [vmem:[#allocation2 + $0x3c] sm:$0xf]
        %v563 = vld [vmem:[%s3] sm:$0x1]
        %v565 = vlaneseq
        %v566 = vshrl.u32 %v565, 7
        %v567 = vsub.s32 0, %v566
        %v568 = vrot.slane %v563, %v567
        %v586 = vunpack.c.l.b16 %v547
        %v587 = vunpack.c.l.b16 %v548
        %v588 = vunpack.c.l.b16 %v549
        %v589 = vunpack.c.l.b16 %v550
        %v590 = vunpack.c.l.b16 %v551
        %v591 = vunpack.c.l.b16 %v552
        %v592 = vunpack.c.l.b16 %v553
        %v593 = vunpack.c.l.b16 %v554
        %v594 = vunpack.c.l.b16 %v555
        %v595 = vunpack.c.l.b16 %v556
        %v596 = vunpack.c.l.b16 %v557
        %v597 = vunpack.c.l.b16 %v558
        %v598 = vunpack.c.l.b16 %v559
        %v599 = vunpack.c.l.b16 %v560
        %v600 = vunpack.c.l.b16 %v561
        %v601 = vunpack.c.l.b16 %v562
        %v602 = vpack.c.b16 %v587, %v586
        %v603 = vpack.c.b16 %v589, %v588
        %v604 = vpack.c.b16 %v591, %v590
        %v605 = vpack.c.b16 %v593, %v592
        %v606 = vpack.c.b16 %v595, %v594
        %v607 = vpack.c.b16 %v597, %v596
        %v608 = vpack.c.b16 %v599, %v598
        %v609 = vpack.c.b16 %v601, %v600
        %618 = vmatprep.subr.bf16.mxu0 0
        %619 = vmatpush1.bf16.msra.mxu0 %v609
        %620 = vmatprep.subr.bf16.mxu0 0
        %621 = vmatpush1.bf16.msra.mxu0 %v608
        %622 = vmatprep.subr.bf16.mxu0 0
        %623 = vmatpush1.bf16.msra.mxu0 %v607
        %624 = vmatprep.subr.bf16.mxu0 0
        %625 = vmatpush1.bf16.msra.mxu0 %v606
        %626 = vmatprep.subr.bf16.mxu0 0
        %627 = vmatpush1.bf16.msra.mxu0 %v605
        %628 = vmatprep.subr.bf16.mxu0 0
        %629 = vmatpush1.bf16.msra.mxu0 %v604
        %630 = vmatprep.subr.bf16.mxu0 0
        %631 = vmatpush1.bf16.msra.mxu0 %v603
        %632 = vmatprep.subr.bf16.mxu0 0
        %633 = vmatpush1.bf16.msra.mxu0 %v602
        %634 = vmatprep.subr.bf16.mxu0 0
        %635 = vmatpush2.bf16.msra.mxu0 0
        %636 = vmatprep.subr.bf16.mxu0 0
        %637 = vmatpush2.bf16.msra.mxu0 0
        %638 = vmatprep.subr.bf16.mxu0 0
        %639 = vmatpush2.bf16.msra.mxu0 0
        %640 = vmatprep.subr.bf16.mxu0 0
        %641 = vmatpush2.bf16.msra.mxu0 0
        %642 = vmatprep.subr.bf16.mxu0 0
        %643 = vmatpush2.bf16.msra.mxu0 0
        %644 = vmatprep.subr.bf16.mxu0 0
        %645 = vmatpush2.bf16.msra.mxu0 0
        %646 = vmatprep.subr.bf16.mxu0 0
        %647 = vmatpush2.bf16.msra.mxu0 0
        %648 = vmatprep.subr.bf16.mxu0 0
        %649 = vmatpush2.bf16.msra.mxu0 0
        %650 = vmatprep.mubr.bf16.mxu0 0
        %651 = vmatmul.mubr.bf16.gmra.mxu0 %v537
        %v652 = vpop.f32.mrf.mxu0
        %v653 = vadd.f32 %v568, %v652
        %v654 = vpop.f32.mrf.mxu0
        %v655 = vpop.f32.mrf.mxu0
        %v656 = vpop.f32.mrf.mxu0
        %657 = vdwg.mxu0
        %s658 = scalar_lea.vmem [#allocation2], 256
        %v659 = vld [vmem:[%s658] sm:$0xf]
        %v660 = vld [vmem:[%s658 + $0x4] sm:$0xf]
        %v661 = vld [vmem:[%s658 + $0x8] sm:$0xf]
        %v662 = vld [vmem:[%s658 + $0xc] sm:$0xf]
        %v663 = vld [vmem:[%s658 + $0x10] sm:$0xf]
        %v664 = vld [vmem:[%s658 + $0x14] sm:$0xf]
        %v665 = vld [vmem:[%s658 + $0x18] sm:$0xf]
        %v666 = vld [vmem:[%s658 + $0x1c] sm:$0xf]
        %v667 = vld [vmem:[%s658 + $0x20] sm:$0xf]
        %v668 = vld [vmem:[%s658 + $0x24] sm:$0xf]
        %v669 = vld [vmem:[%s658 + $0x28] sm:$0xf]
        %v670 = vld [vmem:[%s658 + $0x2c] sm:$0xf]
        %v671 = vld [vmem:[%s658 + $0x30] sm:$0xf]
        %v672 = vld [vmem:[%s658 + $0x34] sm:$0xf]
        %v673 = vld [vmem:[%s658 + $0x38] sm:$0xf]
        %v674 = vld [vmem:[%s658 + $0x3c] sm:$0xf]
        %s675 = scalar_lea.vmem %s3, 4
        %v676 = vld [vmem:[%s675] sm:$0x1]
        %v678 = vlaneseq
        %v679 = vshrl.u32 %v678, 7
        %v680 = vsub.s32 0, %v679
        %v681 = vrot.slane %v676, %v680
        %v699 = vunpack.c.l.b16 %v659
        %v700 = vunpack.c.l.b16 %v660
        %v701 = vunpack.c.l.b16 %v661
        %v702 = vunpack.c.l.b16 %v662
        %v703 = vunpack.c.l.b16 %v663
        %v704 = vunpack.c.l.b16 %v664
        %v705 = vunpack.c.l.b16 %v665
        %v706 = vunpack.c.l.b16 %v666
        %v707 = vunpack.c.l.b16 %v667
        %v708 = vunpack.c.l.b16 %v668
        %v709 = vunpack.c.l.b16 %v669
        %v710 = vunpack.c.l.b16 %v670
        %v711 = vunpack.c.l.b16 %v671
        %v712 = vunpack.c.l.b16 %v672
        %v713 = vunpack.c.l.b16 %v673
        %v714 = vunpack.c.l.b16 %v674
        %v715 = vpack.c.b16 %v700, %v699
        %v716 = vpack.c.b16 %v702, %v701
        %v717 = vpack.c.b16 %v704, %v703
        %v718 = vpack.c.b16 %v706, %v705
        %v719 = vpack.c.b16 %v708, %v707
        %v720 = vpack.c.b16 %v710, %v709
        %v721 = vpack.c.b16 %v712, %v711
        %v722 = vpack.c.b16 %v714, %v713
        %731 = vmatprep.subr.bf16.mxu0 0
        %732 = vmatpush1.bf16.msra.mxu0 %v722
        %733 = vmatprep.subr.bf16.mxu0 0
        %734 = vmatpush1.bf16.msra.mxu0 %v721
        %735 = vmatprep.subr.bf16.mxu0 0
        %736 = vmatpush1.bf16.msra.mxu0 %v720
        %737 = vmatprep.subr.bf16.mxu0 0
        %738 = vmatpush1.bf16.msra.mxu0 %v719
        %739 = vmatprep.subr.bf16.mxu0 0
        %740 = vmatpush1.bf16.msra.mxu0 %v718
        %741 = vmatprep.subr.bf16.mxu0 0
        %742 = vmatpush1.bf16.msra.mxu0 %v717
        %743 = vmatprep.subr.bf16.mxu0 0
        %744 = vmatpush1.bf16.msra.mxu0 %v716
        %745 = vmatprep.subr.bf16.mxu0 0
        %746 = vmatpush1.bf16.msra.mxu0 %v715
        %747 = vmatprep.subr.bf16.mxu0 0
        %748 = vmatpush2.bf16.msra.mxu0 0
        %749 = vmatprep.subr.bf16.mxu0 0
        %750 = vmatpush2.bf16.msra.mxu0 0
        %751 = vmatprep.subr.bf16.mxu0 0
        %752 = vmatpush2.bf16.msra.mxu0 0
        %753 = vmatprep.subr.bf16.mxu0 0
        %754 = vmatpush2.bf16.msra.mxu0 0
        %755 = vmatprep.subr.bf16.mxu0 0
        %756 = vmatpush2.bf16.msra.mxu0 0
        %757 = vmatprep.subr.bf16.mxu0 0
        %758 = vmatpush2.bf16.msra.mxu0 0
        %759 = vmatprep.subr.bf16.mxu0 0
        %760 = vmatpush2.bf16.msra.mxu0 0
        %761 = vmatprep.subr.bf16.mxu0 0
        %762 = vmatpush2.bf16.msra.mxu0 0
        %763 = vmatprep.mubr.bf16.mxu0 0
        %764 = vmatmul.mubr.bf16.gmra.mxu0 %v537
        %v765 = vpop.f32.mrf.mxu0
        %v766 = vadd.f32 %v681, %v765
        %v767 = vpop.f32.mrf.mxu0
        %v768 = vpop.f32.mrf.mxu0
        %v769 = vpop.f32.mrf.mxu0
        %770 = vdwg.mxu0
        %s771 = scalar_lea.vmem [#allocation2], 512
        %v772 = vld [vmem:[%s771] sm:$0xf]
        %v773 = vld [vmem:[%s771 + $0x4] sm:$0xf]
        %v774 = vld [vmem:[%s771 + $0x8] sm:$0xf]
        %v775 = vld [vmem:[%s771 + $0xc] sm:$0xf]
        %v776 = vld [vmem:[%s771 + $0x10] sm:$0xf]
        %v777 = vld [vmem:[%s771 + $0x14] sm:$0xf]
        %v778 = vld [vmem:[%s771 + $0x18] sm:$0xf]
        %v779 = vld [vmem:[%s771 + $0x1c] sm:$0xf]
        %v780 = vld [vmem:[%s771 + $0x20] sm:$0xf]
        %v781 = vld [vmem:[%s771 + $0x24] sm:$0xf]
        %v782 = vld [vmem:[%s771 + $0x28] sm:$0xf]
        %v783 = vld [vmem:[%s771 + $0x2c] sm:$0xf]
        %v784 = vld [vmem:[%s771 + $0x30] sm:$0xf]
        %v785 = vld [vmem:[%s771 + $0x34] sm:$0xf]
        %v786 = vld [vmem:[%s771 + $0x38] sm:$0xf]
        %v787 = vld [vmem:[%s771 + $0x3c] sm:$0xf]
        %s788 = scalar_lea.vmem %s3, 8
        %v789 = vld [vmem:[%s788] sm:$0x1]
        %v791 = vlaneseq
        %v792 = vshrl.u32 %v791, 7
        %v793 = vsub.s32 0, %v792
        %v794 = vrot.slane %v789, %v793
        %v812 = vunpack.c.l.b16 %v772
        %v813 = vunpack.c.l.b16 %v773
        %v814 = vunpack.c.l.b16 %v774
        %v815 = vunpack.c.l.b16 %v775
        %v816 = vunpack.c.l.b16 %v776
        %v817 = vunpack.c.l.b16 %v777
        %v818 = vunpack.c.l.b16 %v778
        %v819 = vunpack.c.l.b16 %v779
        %v820 = vunpack.c.l.b16 %v780
        %v821 = vunpack.c.l.b16 %v781
        %v822 = vunpack.c.l.b16 %v782
        %v823 = vunpack.c.l.b16 %v783
        %v824 = vunpack.c.l.b16 %v784
        %v825 = vunpack.c.l.b16 %v785
        %v826 = vunpack.c.l.b16 %v786
        %v827 = vunpack.c.l.b16 %v787
        %v828 = vpack.c.b16 %v813, %v812
        %v829 = vpack.c.b16 %v815, %v814
        %v830 = vpack.c.b16 %v817, %v816
        %v831 = vpack.c.b16 %v819, %v818
        %v832 = vpack.c.b16 %v821, %v820
        %v833 = vpack.c.b16 %v823, %v822
        %v834 = vpack.c.b16 %v825, %v824
        %v835 = vpack.c.b16 %v827, %v826
        %844 = vmatprep.subr.bf16.mxu0 0
        %845 = vmatpush1.bf16.msra.mxu0 %v835
        %846 = vmatprep.subr.bf16.mxu0 0
        %847 = vmatpush1.bf16.msra.mxu0 %v834
        %848 = vmatprep.subr.bf16.mxu0 0
        %849 = vmatpush1.bf16.msra.mxu0 %v833
        %850 = vmatprep.subr.bf16.mxu0 0
        %851 = vmatpush1.bf16.msra.mxu0 %v832
        %852 = vmatprep.subr.bf16.mxu0 0
        %853 = vmatpush1.bf16.msra.mxu0 %v831
        %854 = vmatprep.subr.bf16.mxu0 0
        %855 = vmatpush1.bf16.msra.mxu0 %v830
        %856 = vmatprep.subr.bf16.mxu0 0
        %857 = vmatpush1.bf16.msra.mxu0 %v829
        %858 = vmatprep.subr.bf16.mxu0 0
        %859 = vmatpush1.bf16.msra.mxu0 %v828
        %860 = vmatprep.subr.bf16.mxu0 0
        %861 = vmatpush2.bf16.msra.mxu0 0
        %862 = vmatprep.subr.bf16.mxu0 0
        %863 = vmatpush2.bf16.msra.mxu0 0
        %864 = vmatprep.subr.bf16.mxu0 0
        %865 = vmatpush2.bf16.msra.mxu0 0
        %866 = vmatprep.subr.bf16.mxu0 0
        %867 = vmatpush2.bf16.msra.mxu0 0
        %868 = vmatprep.subr.bf16.mxu0 0
        %869 = vmatpush2.bf16.msra.mxu0 0
        %870 = vmatprep.subr.bf16.mxu0 0
        %871 = vmatpush2.bf16.msra.mxu0 0
        %872 = vmatprep.subr.bf16.mxu0 0
        %873 = vmatpush2.bf16.msra.mxu0 0
        %874 = vmatprep.subr.bf16.mxu0 0
        %875 = vmatpush2.bf16.msra.mxu0 0
        %876 = vmatprep.mubr.bf16.mxu0 0
        %877 = vmatmul.mubr.bf16.gmra.mxu0 %v537
        %v878 = vpop.f32.mrf.mxu0
        %v879 = vadd.f32 %v794, %v878
        %v880 = vpop.f32.mrf.mxu0
        %v881 = vpop.f32.mrf.mxu0
        %v882 = vpop.f32.mrf.mxu0
        %883 = vdwg.mxu0
        %v884 = vpack.c.bf16 %v653, %v653
        %v885 = vpack.c.bf16 %v766, %v766
        %vm886 = vcmask 261120
        %v888 = vsel %vm886, %v884, 0
        %v891 = vsel %vm886, %v885, 0
        %893 = vmatprep.subr.bf16.mxu0 0
        %894 = vmatpush1.bf16.xpose.msra.mxu0 0
        %895 = vmatprep.subr.bf16.mxu0 0
        %896 = vmatpush1.bf16.xpose.msra.mxu0 0
        %897 = vmatprep.subr.bf16.mxu0 0
        %898 = vmatpush1.bf16.xpose.msra.mxu0 0
        %899 = vmatprep.subr.bf16.mxu0 0
        %900 = vmatpush1.bf16.xpose.msra.mxu0 0
        %901 = vmatprep.subr.bf16.mxu0 0
        %902 = vmatpush1.bf16.xpose.msra.mxu0 0
        %903 = vmatprep.subr.bf16.mxu0 0
        %904 = vmatpush1.bf16.xpose.msra.mxu0 0
        %905 = vmatprep.subr.bf16.mxu0 0
        %906 = vmatpush1.bf16.xpose.msra.mxu0 0
        %907 = vmatprep.subr.bf16.mxu0 0
        %908 = vmatpush1.bf16.xpose.msra.mxu0 %v891
        %909 = vmatprep.subr.bf16.mxu0 0
        %910 = vmatpush2.bf16.xpose.msra.mxu0 0
        %911 = vmatprep.subr.bf16.mxu0 0
        %912 = vmatpush2.bf16.xpose.msra.mxu0 0
        %913 = vmatprep.subr.bf16.mxu0 0
        %914 = vmatpush2.bf16.xpose.msra.mxu0 0
        %915 = vmatprep.subr.bf16.mxu0 0
        %916 = vmatpush2.bf16.xpose.msra.mxu0 0
        %917 = vmatprep.subr.bf16.mxu0 0
        %918 = vmatpush2.bf16.xpose.msra.mxu0 0
        %919 = vmatprep.subr.bf16.mxu0 0
        %920 = vmatpush2.bf16.xpose.msra.mxu0 0
        %921 = vmatprep.subr.bf16.mxu0 0
        %922 = vmatpush2.bf16.xpose.msra.mxu0 0
        %923 = vmatprep.subr.bf16.mxu0 0
        %924 = vmatpush2.bf16.xpose.msra.mxu0 0
        %925 = vmatprep.mubr.bf16.mxu0 0
        %926 = vmatmul.mubr.bf16.gmra.mxu0 %v888
        %v927 = vpop.f32.mrf.mxu0
        %v928 = vadd.f32 %v545, %v927
        %v929 = vpop.f32.mrf.mxu0
        %v930 = vpop.f32.mrf.mxu0
        %v931 = vpop.f32.mrf.mxu0
        %932 = vdwg.mxu0
        %vm933 = vcmask 64512
        %v934 = vsel %vm933, %v928, -inf
        %935 = vmax.xlane.f32.xlu0 %v934
        %v936 = vpop.xlane.xlu0 %935
        %v937 = vsub.f32 %v928, %v936
        %v938 = vmul.f32 %v937, 1.442695
        %v939 = vpow.pop %v938
        %v940 = vsel %vm933, %v939, 0.0
        %941 = vadd.xlane.f32.xlu0 %v940
        %v942 = vpop.xlane.xlu0 %941
        %v943 = vrcp.pop %v942
        %v944 = vmul.f32 %v939, %v943
        %v945 = vpack.c.bf16 %v944, %v944
        %v946 = vpack.c.bf16 %v879, %v879
        %v948 = vsel %vm933, %v945, 0
        %vm950 = vcmask 1043456
        %v952 = vsel %vm950, %v946, 0
        %954 = vmatprep.subr.bf16.mxu0 0
        %955 = vmatpush1.bf16.msra.mxu0 0
        %956 = vmatprep.subr.bf16.mxu0 0
        %957 = vmatpush1.bf16.msra.mxu0 0
        %958 = vmatprep.subr.bf16.mxu0 0
        %959 = vmatpush1.bf16.msra.mxu0 0
        %960 = vmatprep.subr.bf16.mxu0 0
        %961 = vmatpush1.bf16.msra.mxu0 0
        %962 = vmatprep.subr.bf16.mxu0 0
        %963 = vmatpush1.bf16.msra.mxu0 0
        %964 = vmatprep.subr.bf16.mxu0 0
        %965 = vmatpush1.bf16.msra.mxu0 0
        %966 = vmatprep.subr.bf16.mxu0 0
        %967 = vmatpush1.bf16.msra.mxu0 0
        %968 = vmatprep.subr.bf16.mxu0 0
        %969 = vmatpush1.bf16.msra.mxu0 %v952
        %970 = vmatprep.subr.bf16.mxu0 0
        %971 = vmatpush2.bf16.msra.mxu0 0
        %972 = vmatprep.subr.bf16.mxu0 0
        %973 = vmatpush2.bf16.msra.mxu0 0
        %974 = vmatprep.subr.bf16.mxu0 0
        %975 = vmatpush2.bf16.msra.mxu0 0
        %976 = vmatprep.subr.bf16.mxu0 0
        %977 = vmatpush2.bf16.msra.mxu0 0
        %978 = vmatprep.subr.bf16.mxu0 0
        %979 = vmatpush2.bf16.msra.mxu0 0
        %980 = vmatprep.subr.bf16.mxu0 0
        %981 = vmatpush2.bf16.msra.mxu0 0
        %982 = vmatprep.subr.bf16.mxu0 0
        %983 = vmatpush2.bf16.msra.mxu0 0
        %984 = vmatprep.subr.bf16.mxu0 0
        %985 = vmatpush2.bf16.msra.mxu0 0
        %986 = vmatprep.mubr.bf16.mxu0 0
        %987 = vmatmul.mubr.bf16.gmra.mxu0 %v948
        %v988 = vpop.f32.mrf.mxu0
        %v989 = vadd.f32 0.0, %v988
        %v990 = vpop.f32.mrf.mxu0
        %v991 = vpop.f32.mrf.mxu0
        %v992 = vpop.f32.mrf.mxu0
        %993 = vdwg.mxu0
        %v994 = vpack.c.bf16 %v989, %v989
        %v995 = vld [vmem:[#allocation4] sm:$0xf]
        %v996 = vld [vmem:[#allocation4 + $0x4] sm:$0xf]
        %v997 = vld [vmem:[#allocation4 + $0x8] sm:$0xf]
        %v998 = vld [vmem:[#allocation4 + $0xc] sm:$0xf]
        %s999 = scalar_lea.vmem [#allocation2], 64
        %v1000 = vld [vmem:[%s999] sm:$0xf]
        %v1001 = vld [vmem:[%s999 + $0x4] sm:$0xf]
        %v1002 = vld [vmem:[%s999 + $0x8] sm:$0xf]
        %v1003 = vld [vmem:[%s999 + $0xc] sm:$0xf]
        %v1004 = vld [vmem:[%s999 + $0x10] sm:$0xf]
        %v1005 = vld [vmem:[%s999 + $0x14] sm:$0xf]
        %v1006 = vld [vmem:[%s999 + $0x18] sm:$0xf]
        %v1007 = vld [vmem:[%s999 + $0x1c] sm:$0xf]
        %v1008 = vld [vmem:[%s999 + $0x20] sm:$0xf]
        %v1009 = vld [vmem:[%s999 + $0x24] sm:$0xf]
        %v1010 = vld [vmem:[%s999 + $0x28] sm:$0xf]
        %v1011 = vld [vmem:[%s999 + $0x2c] sm:$0xf]
        %v1012 = vld [vmem:[%s999 + $0x30] sm:$0xf]
        %v1013 = vld [vmem:[%s999 + $0x34] sm:$0xf]
        %v1014 = vld [vmem:[%s999 + $0x38] sm:$0xf]
        %v1015 = vld [vmem:[%s999 + $0x3c] sm:$0xf]
        %s1016 = scalar_lea.vmem %s3, 1
        %v1017 = vld [vmem:[%s1016] sm:$0x1]
        %v1019 = vlaneseq
        %v1020 = vshrl.u32 %v1019, 7
        %v1021 = vsub.s32 0, %v1020
        %v1022 = vrot.slane %v1017, %v1021
        %v1040 = vunpack.c.l.b16 %v1000
        %v1041 = vunpack.c.l.b16 %v1001
        %v1042 = vunpack.c.l.b16 %v1002
        %v1043 = vunpack.c.l.b16 %v1003
        %v1044 = vunpack.c.l.b16 %v1004
        %v1045 = vunpack.c.l.b16 %v1005
        %v1046 = vunpack.c.l.b16 %v1006
        %v1047 = vunpack.c.l.b16 %v1007
        %v1048 = vunpack.c.l.b16 %v1008
        %v1049 = vunpack.c.l.b16 %v1009
        %v1050 = vunpack.c.l.b16 %v1010
        %v1051 = vunpack.c.l.b16 %v1011
        %v1052 = vunpack.c.l.b16 %v1012
        %v1053 = vunpack.c.l.b16 %v1013
        %v1054 = vunpack.c.l.b16 %v1014
        %v1055 = vunpack.c.l.b16 %v1015
        %v1056 = vpack.c.b16 %v1041, %v1040
        %v1057 = vpack.c.b16 %v1043, %v1042
        %v1058 = vpack.c.b16 %v1045, %v1044
        %v1059 = vpack.c.b16 %v1047, %v1046
        %v1060 = vpack.c.b16 %v1049, %v1048
        %v1061 = vpack.c.b16 %v1051, %v1050
        %v1062 = vpack.c.b16 %v1053, %v1052
        %v1063 = vpack.c.b16 %v1055, %v1054
        %1072 = vmatprep.subr.bf16.mxu0 0
        %1073 = vmatpush1.bf16.msra.mxu0 %v1063
        %1074 = vmatprep.subr.bf16.mxu0 0
        %1075 = vmatpush1.bf16.msra.mxu0 %v1062
        %1076 = vmatprep.subr.bf16.mxu0 0
        %1077 = vmatpush1.bf16.msra.mxu0 %v1061
        %1078 = vmatprep.subr.bf16.mxu0 0
        %1079 = vmatpush1.bf16.msra.mxu0 %v1060
        %1080 = vmatprep.subr.bf16.mxu0 0
        %1081 = vmatpush1.bf16.msra.mxu0 %v1059
        %1082 = vmatprep.subr.bf16.mxu0 0
        %1083 = vmatpush1.bf16.msra.mxu0 %v1058
        %1084 = vmatprep.subr.bf16.mxu0 0
        %1085 = vmatpush1.bf16.msra.mxu0 %v1057
        %1086 = vmatprep.subr.bf16.mxu0 0
        %1087 = vmatpush1.bf16.msra.mxu0 %v1056
        %1088 = vmatprep.subr.bf16.mxu0 0
        %1089 = vmatpush2.bf16.msra.mxu0 0
        %1090 = vmatprep.subr.bf16.mxu0 0
        %1091 = vmatpush2.bf16.msra.mxu0 0
        %1092 = vmatprep.subr.bf16.mxu0 0
        %1093 = vmatpush2.bf16.msra.mxu0 0
        %1094 = vmatprep.subr.bf16.mxu0 0
        %1095 = vmatpush2.bf16.msra.mxu0 0
        %1096 = vmatprep.subr.bf16.mxu0 0
        %1097 = vmatpush2.bf16.msra.mxu0 0
        %1098 = vmatprep.subr.bf16.mxu0 0
        %1099 = vmatpush2.bf16.msra.mxu0 0
        %1100 = vmatprep.subr.bf16.mxu0 0
        %1101 = vmatpush2.bf16.msra.mxu0 0
        %1102 = vmatprep.subr.bf16.mxu0 0
        %1103 = vmatpush2.bf16.msra.mxu0 0
        %1104 = vmatprep.mubr.bf16.mxu0 0
        %1105 = vmatmul.mubr.bf16.gmra.mxu0 %v537
        %v1106 = vpop.f32.mrf.mxu0
        %v1107 = vadd.f32 %v1022, %v1106
        %v1108 = vpop.f32.mrf.mxu0
        %v1109 = vpop.f32.mrf.mxu0
        %v1110 = vpop.f32.mrf.mxu0
        %1111 = vdwg.mxu0
        %s1112 = scalar_lea.vmem [#allocation2], 320
        %v1113 = vld [vmem:[%s1112] sm:$0xf]
        %v1114 = vld [vmem:[%s1112 + $0x4] sm:$0xf]
        %v1115 = vld [vmem:[%s1112 + $0x8] sm:$0xf]
        %v1116 = vld [vmem:[%s1112 + $0xc] sm:$0xf]
        %v1117 = vld [vmem:[%s1112 + $0x10] sm:$0xf]
        %v1118 = vld [vmem:[%s1112 + $0x14] sm:$0xf]
        %v1119 = vld [vmem:[%s1112 + $0x18] sm:$0xf]
        %v1120 = vld [vmem:[%s1112 + $0x1c] sm:$0xf]
        %v1121 = vld [vmem:[%s1112 + $0x20] sm:$0xf]
        %v1122 = vld [vmem:[%s1112 + $0x24] sm:$0xf]
        %v1123 = vld [vmem:[%s1112 + $0x28] sm:$0xf]
        %v1124 = vld [vmem:[%s1112 + $0x2c] sm:$0xf]
        %v1125 = vld [vmem:[%s1112 + $0x30] sm:$0xf]
        %v1126 = vld [vmem:[%s1112 + $0x34] sm:$0xf]
        %v1127 = vld [vmem:[%s1112 + $0x38] sm:$0xf]
        %v1128 = vld [vmem:[%s1112 + $0x3c] sm:$0xf]
        %s1129 = scalar_lea.vmem %s3, 5
        %v1130 = vld [vmem:[%s1129] sm:$0x1]
        %v1132 = vlaneseq
        %v1133 = vshrl.u32 %v1132, 7
        %v1134 = vsub.s32 0, %v1133
        %v1135 = vrot.slane %v1130, %v1134
        %v1153 = vunpack.c.l.b16 %v1113
        %v1154 = vunpack.c.l.b16 %v1114
        %v1155 = vunpack.c.l.b16 %v1115
        %v1156 = vunpack.c.l.b16 %v1116
        %v1157 = vunpack.c.l.b16 %v1117
        %v1158 = vunpack.c.l.b16 %v1118
        %v1159 = vunpack.c.l.b16 %v1119
        %v1160 = vunpack.c.l.b16 %v1120
        %v1161 = vunpack.c.l.b16 %v1121
        %v1162 = vunpack.c.l.b16 %v1122
        %v1163 = vunpack.c.l.b16 %v1123
        %v1164 = vunpack.c.l.b16 %v1124
        %v1165 = vunpack.c.l.b16 %v1125
        %v1166 = vunpack.c.l.b16 %v1126
        %v1167 = vunpack.c.l.b16 %v1127
        %v1168 = vunpack.c.l.b16 %v1128
        %v1169 = vpack.c.b16 %v1154, %v1153
        %v1170 = vpack.c.b16 %v1156, %v1155
        %v1171 = vpack.c.b16 %v1158, %v1157
        %v1172 = vpack.c.b16 %v1160, %v1159
        %v1173 = vpack.c.b16 %v1162, %v1161
        %v1174 = vpack.c.b16 %v1164, %v1163
        %v1175 = vpack.c.b16 %v1166, %v1165
        %v1176 = vpack.c.b16 %v1168, %v1167
        %1185 = vmatprep.subr.bf16.mxu0 0
        %1186 = vmatpush1.bf16.msra.mxu0 %v1176
        %1187 = vmatprep.subr.bf16.mxu0 0
        %1188 = vmatpush1.bf16.msra.mxu0 %v1175
        %1189 = vmatprep.subr.bf16.mxu0 0
        %1190 = vmatpush1.bf16.msra.mxu0 %v1174
        %1191 = vmatprep.subr.bf16.mxu0 0
        %1192 = vmatpush1.bf16.msra.mxu0 %v1173
        %1193 = vmatprep.subr.bf16.mxu0 0
        %1194 = vmatpush1.bf16.msra.mxu0 %v1172
        %1195 = vmatprep.subr.bf16.mxu0 0
        %1196 = vmatpush1.bf16.msra.mxu0 %v1171
        %1197 = vmatprep.subr.bf16.mxu0 0
        %1198 = vmatpush1.bf16.msra.mxu0 %v1170
        %1199 = vmatprep.subr.bf16.mxu0 0
        %1200 = vmatpush1.bf16.msra.mxu0 %v1169
        %1201 = vmatprep.subr.bf16.mxu0 0
        %1202 = vmatpush2.bf16.msra.mxu0 0
        %1203 = vmatprep.subr.bf16.mxu0 0
        %1204 = vmatpush2.bf16.msra.mxu0 0
        %1205 = vmatprep.subr.bf16.mxu0 0
        %1206 = vmatpush2.bf16.msra.mxu0 0
        %1207 = vmatprep.subr.bf16.mxu0 0
        %1208 = vmatpush2.bf16.msra.mxu0 0
        %1209 = vmatprep.subr.bf16.mxu0 0
        %1210 = vmatpush2.bf16.msra.mxu0 0
        %1211 = vmatprep.subr.bf16.mxu0 0
        %1212 = vmatpush2.bf16.msra.mxu0 0
        %1213 = vmatprep.subr.bf16.mxu0 0
        %1214 = vmatpush2.bf16.msra.mxu0 0
        %1215 = vmatprep.subr.bf16.mxu0 0
        %1216 = vmatpush2.bf16.msra.mxu0 0
        %1217 = vmatprep.mubr.bf16.mxu0 0
        %1218 = vmatmul.mubr.bf16.gmra.mxu0 %v537
        %v1219 = vpop.f32.mrf.mxu0
        %v1220 = vadd.f32 %v1135, %v1219
        %v1221 = vpop.f32.mrf.mxu0
        %v1222 = vpop.f32.mrf.mxu0
        %v1223 = vpop.f32.mrf.mxu0
        %1224 = vdwg.mxu0
        %s1225 = scalar_lea.vmem [#allocation2], 576
        %v1226 = vld [vmem:[%s1225] sm:$0xf]
        %v1227 = vld [vmem:[%s1225 + $0x4] sm:$0xf]
        %v1228 = vld [vmem:[%s1225 + $0x8] sm:$0xf]
        %v1229 = vld [vmem:[%s1225 + $0xc] sm:$0xf]
        %v1230 = vld [vmem:[%s1225 + $0x10] sm:$0xf]
        %v1231 = vld [vmem:[%s1225 + $0x14] sm:$0xf]
        %v1232 = vld [vmem:[%s1225 + $0x18] sm:$0xf]
        %v1233 = vld [vmem:[%s1225 + $0x1c] sm:$0xf]
        %v1234 = vld [vmem:[%s1225 + $0x20] sm:$0xf]
        %v1235 = vld [vmem:[%s1225 + $0x24] sm:$0xf]
        %v1236 = vld [vmem:[%s1225 + $0x28] sm:$0xf]
        %v1237 = vld [vmem:[%s1225 + $0x2c] sm:$0xf]
        %v1238 = vld [vmem:[%s1225 + $0x30] sm:$0xf]
        %v1239 = vld [vmem:[%s1225 + $0x34] sm:$0xf]
        %v1240 = vld [vmem:[%s1225 + $0x38] sm:$0xf]
        %v1241 = vld [vmem:[%s1225 + $0x3c] sm:$0xf]
        %s1242 = scalar_lea.vmem %s3, 9
        %v1243 = vld [vmem:[%s1242] sm:$0x1]
        %v1245 = vlaneseq
        %v1246 = vshrl.u32 %v1245, 7
        %v1247 = vsub.s32 0, %v1246
        %v1248 = vrot.slane %v1243, %v1247
        %v1266 = vunpack.c.l.b16 %v1226
        %v1267 = vunpack.c.l.b16 %v1227
        %v1268 = vunpack.c.l.b16 %v1228
        %v1269 = vunpack.c.l.b16 %v1229
        %v1270 = vunpack.c.l.b16 %v1230
        %v1271 = vunpack.c.l.b16 %v1231
        %v1272 = vunpack.c.l.b16 %v1232
        %v1273 = vunpack.c.l.b16 %v1233
        %v1274 = vunpack.c.l.b16 %v1234
        %v1275 = vunpack.c.l.b16 %v1235
        %v1276 = vunpack.c.l.b16 %v1236
        %v1277 = vunpack.c.l.b16 %v1237
        %v1278 = vunpack.c.l.b16 %v1238
        %v1279 = vunpack.c.l.b16 %v1239
        %v1280 = vunpack.c.l.b16 %v1240
        %v1281 = vunpack.c.l.b16 %v1241
        %v1282 = vpack.c.b16 %v1267, %v1266
        %v1283 = vpack.c.b16 %v1269, %v1268
        %v1284 = vpack.c.b16 %v1271, %v1270
        %v1285 = vpack.c.b16 %v1273, %v1272
        %v1286 = vpack.c.b16 %v1275, %v1274
        %v1287 = vpack.c.b16 %v1277, %v1276
        %v1288 = vpack.c.b16 %v1279, %v1278
        %v1289 = vpack.c.b16 %v1281, %v1280
        %1298 = vmatprep.subr.bf16.mxu0 0
        %1299 = vmatpush1.bf16.msra.mxu0 %v1289
        %1300 = vmatprep.subr.bf16.mxu0 0
        %1301 = vmatpush1.bf16.msra.mxu0 %v1288
        %1302 = vmatprep.subr.bf16.mxu0 0
        %1303 = vmatpush1.bf16.msra.mxu0 %v1287
        %1304 = vmatprep.subr.bf16.mxu0 0
        %1305 = vmatpush1.bf16.msra.mxu0 %v1286
        %1306 = vmatprep.subr.bf16.mxu0 0
        %1307 = vmatpush1.bf16.msra.mxu0 %v1285
        %1308 = vmatprep.subr.bf16.mxu0 0
        %1309 = vmatpush1.bf16.msra.mxu0 %v1284
        %1310 = vmatprep.subr.bf16.mxu0 0
        %1311 = vmatpush1.bf16.msra.mxu0 %v1283
        %1312 = vmatprep.subr.bf16.mxu0 0
        %1313 = vmatpush1.bf16.msra.mxu0 %v1282
        %1314 = vmatprep.subr.bf16.mxu0 0
        %1315 = vmatpush2.bf16.msra.mxu0 0
        %1316 = vmatprep.subr.bf16.mxu0 0
        %1317 = vmatpush2.bf16.msra.mxu0 0
        %1318 = vmatprep.subr.bf16.mxu0 0
        %1319 = vmatpush2.bf16.msra.mxu0 0
        %1320 = vmatprep.subr.bf16.mxu0 0
        %1321 = vmatpush2.bf16.msra.mxu0 0
        %1322 = vmatprep.subr.bf16.mxu0 0
        %1323 = vmatpush2.bf16.msra.mxu0 0
        %1324 = vmatprep.subr.bf16.mxu0 0
        %1325 = vmatpush2.bf16.msra.mxu0 0
        %1326 = vmatprep.subr.bf16.mxu0 0
        %1327 = vmatpush2.bf16.msra.mxu0 0
        %1328 = vmatprep.subr.bf16.mxu0 0
        %1329 = vmatpush2.bf16.msra.mxu0 0
        %1330 = vmatprep.mubr.bf16.mxu0 0
        %1331 = vmatmul.mubr.bf16.gmra.mxu0 %v537
        %v1332 = vpop.f32.mrf.mxu0
        %v1333 = vadd.f32 %v1248, %v1332
        %v1334 = vpop.f32.mrf.mxu0
        %v1335 = vpop.f32.mrf.mxu0
        %v1336 = vpop.f32.mrf.mxu0
        %1337 = vdwg.mxu0
        %v1338 = vpack.c.bf16 %v1107, %v1107
        %v1339 = vpack.c.bf16 %v1220, %v1220
        %v1341 = vsel %vm886, %v1338, 0
        %v1344 = vsel %vm886, %v1339, 0
        %1346 = vmatprep.subr.bf16.mxu0 0
        %1347 = vmatpush1.bf16.xpose.msra.mxu0 0
        %1348 = vmatprep.subr.bf16.mxu0 0
        %1349 = vmatpush1.bf16.xpose.msra.mxu0 0
        %1350 = vmatprep.subr.bf16.mxu0 0
        %1351 = vmatpush1.bf16.xpose.msra.mxu0 0
        %1352 = vmatprep.subr.bf16.mxu0 0
        %1353 = vmatpush1.bf16.xpose.msra.mxu0 0
        %1354 = vmatprep.subr.bf16.mxu0 0
        %1355 = vmatpush1.bf16.xpose.msra.mxu0 0
        %1356 = vmatprep.subr.bf16.mxu0 0
        %1357 = vmatpush1.bf16.xpose.msra.mxu0 0
        %1358 = vmatprep.subr.bf16.mxu0 0
        %1359 = vmatpush1.bf16.xpose.msra.mxu0 0
        %1360 = vmatprep.subr.bf16.mxu0 0
        %1361 = vmatpush1.bf16.xpose.msra.mxu0 %v1344
        %1362 = vmatprep.subr.bf16.mxu0 0
        %1363 = vmatpush2.bf16.xpose.msra.mxu0 0
        %1364 = vmatprep.subr.bf16.mxu0 0
        %1365 = vmatpush2.bf16.xpose.msra.mxu0 0
        %1366 = vmatprep.subr.bf16.mxu0 0
        %1367 = vmatpush2.bf16.xpose.msra.mxu0 0
        %1368 = vmatprep.subr.bf16.mxu0 0
        %1369 = vmatpush2.bf16.xpose.msra.mxu0 0
        %1370 = vmatprep.subr.bf16.mxu0 0
        %1371 = vmatpush2.bf16.xpose.msra.mxu0 0
        %1372 = vmatprep.subr.bf16.mxu0 0
        %1373 = vmatpush2.bf16.xpose.msra.mxu0 0
        %1374 = vmatprep.subr.bf16.mxu0 0
        %1375 = vmatpush2.bf16.xpose.msra.mxu0 0
        %1376 = vmatprep.subr.bf16.mxu0 0
        %1377 = vmatpush2.bf16.xpose.msra.mxu0 0
        %1378 = vmatprep.mubr.bf16.mxu0 0
        %1379 = vmatmul.mubr.bf16.gmra.mxu0 %v1341
        %v1380 = vpop.f32.mrf.mxu0
        %v1381 = vadd.f32 %v545, %v1380
        %v1382 = vpop.f32.mrf.mxu0
        %v1383 = vpop.f32.mrf.mxu0
        %v1384 = vpop.f32.mrf.mxu0
        %1385 = vdwg.mxu0
        %v1386 = vsel %vm933, %v1381, -inf
        %1387 = vmax.xlane.f32.xlu0 %v1386
        %v1388 = vpop.xlane.xlu0 %1387
        %v1389 = vsub.f32 %v1381, %v1388
        %v1390 = vmul.f32 %v1389, 1.442695
        %v1391 = vpow.pop %v1390
        %v1392 = vsel %vm933, %v1391, 0.0
        %1393 = vadd.xlane.f32.xlu0 %v1392
        %v1394 = vpop.xlane.xlu0 %1393
        %v1395 = vrcp.pop %v1394
        %v1396 = vmul.f32 %v1391, %v1395
        %v1397 = vpack.c.bf16 %v1396, %v1396
        %v1398 = vpack.c.bf16 %v1333, %v1333
        %v1400 = vsel %vm933, %v1397, 0
        %v1403 = vsel %vm950, %v1398, 0
        %1405 = vmatprep.subr.bf16.mxu0 0
        %1406 = vmatpush1.bf16.msra.mxu0 0
        %1407 = vmatprep.subr.bf16.mxu0 0
        %1408 = vmatpush1.bf16.msra.mxu0 0
        %1409 = vmatprep.subr.bf16.mxu0 0
        %1410 = vmatpush1.bf16.msra.mxu0 0
        %1411 = vmatprep.subr.bf16.mxu0 0
        %1412 = vmatpush1.bf16.msra.mxu0 0
        %1413 = vmatprep.subr.bf16.mxu0 0
        %1414 = vmatpush1.bf16.msra.mxu0 0
        %1415 = vmatprep.subr.bf16.mxu0 0
        %1416 = vmatpush1.bf16.msra.mxu0 0
        %1417 = vmatprep.subr.bf16.mxu0 0
        %1418 = vmatpush1.bf16.msra.mxu0 0
        %1419 = vmatprep.subr.bf16.mxu0 0
        %1420 = vmatpush1.bf16.msra.mxu0 %v1403
        %1421 = vmatprep.subr.bf16.mxu0 0
        %1422 = vmatpush2.bf16.msra.mxu0 0
        %1423 = vmatprep.subr.bf16.mxu0 0
        %1424 = vmatpush2.bf16.msra.mxu0 0
        %1425 = vmatprep.subr.bf16.mxu0 0
        %1426 = vmatpush2.bf16.msra.mxu0 0
        %1427 = vmatprep.subr.bf16.mxu0 0
        %1428 = vmatpush2.bf16.msra.mxu0 0
        %1429 = vmatprep.subr.bf16.mxu0 0
        %1430 = vmatpush2.bf16.msra.mxu0 0
        %1431 = vmatprep.subr.bf16.mxu0 0
        %1432 = vmatpush2.bf16.msra.mxu0 0
        %1433 = vmatprep.subr.bf16.mxu0 0
        %1434 = vmatpush2.bf16.msra.mxu0 0
        %1435 = vmatprep.subr.bf16.mxu0 0
        %1436 = vmatpush2.bf16.msra.mxu0 0
        %1437 = vmatprep.mubr.bf16.mxu0 0
        %1438 = vmatmul.mubr.bf16.gmra.mxu0 %v1400
        %v1439 = vpop.f32.mrf.mxu0
        %v1440 = vadd.f32 0.0, %v1439
        %v1441 = vpop.f32.mrf.mxu0
        %v1442 = vpop.f32.mrf.mxu0
        %v1443 = vpop.f32.mrf.mxu0
        %1444 = vdwg.mxu0
        %v1445 = vpack.c.bf16 %v1440, %v1440
        %s1446 = scalar_lea.vmem [#allocation4], 16
        %v1447 = vld [vmem:[%s1446] sm:$0xf]
        %v1448 = vld [vmem:[%s1446 + $0x4] sm:$0xf]
        %v1449 = vld [vmem:[%s1446 + $0x8] sm:$0xf]
        %v1450 = vld [vmem:[%s1446 + $0xc] sm:$0xf]
        %v1455 = vunpack.c.l.b16 %v1447
        %v1456 = vunpack.c.l.b16 %v1448
        %v1457 = vunpack.c.l.b16 %v1449
        %v1458 = vunpack.c.l.b16 %v1450
        %v1459 = vpack.c.b16 %v1456, %v1455
        %v1460 = vpack.c.b16 %v1458, %v1457
        %v1464 = vsel %vm886, %v1445, 0
        %1466 = vmatprep.subr.bf16.mxu0 0
        %1467 = vmatpush1.bf16.msra.mxu0 0
        %1468 = vmatprep.subr.bf16.mxu0 0
        %1469 = vmatpush1.bf16.msra.mxu0 0
        %1470 = vmatprep.subr.bf16.mxu0 0
        %1471 = vmatpush1.bf16.msra.mxu0 0
        %1472 = vmatprep.subr.bf16.mxu0 0
        %1473 = vmatpush1.bf16.msra.mxu0 0
        %1474 = vmatprep.subr.bf16.mxu0 0
        %1475 = vmatpush1.bf16.msra.mxu0 0
        %1476 = vmatprep.subr.bf16.mxu0 0
        %1477 = vmatpush1.bf16.msra.mxu0 0
        %1478 = vmatprep.subr.bf16.mxu0 0
        %1479 = vmatpush1.bf16.msra.mxu0 %v1460
        %1480 = vmatprep.subr.bf16.mxu0 0
        %1481 = vmatpush1.bf16.msra.mxu0 %v1459
        %1482 = vmatprep.subr.bf16.mxu0 0
        %1483 = vmatpush2.bf16.msra.mxu0 0
        %1484 = vmatprep.subr.bf16.mxu0 0
        %1485 = vmatpush2.bf16.msra.mxu0 0
        %1486 = vmatprep.subr.bf16.mxu0 0
        %1487 = vmatpush2.bf16.msra.mxu0 0
        %1488 = vmatprep.subr.bf16.mxu0 0
        %1489 = vmatpush2.bf16.msra.mxu0 0
        %1490 = vmatprep.subr.bf16.mxu0 0
        %1491 = vmatpush2.bf16.msra.mxu0 0
        %1492 = vmatprep.subr.bf16.mxu0 0
        %1493 = vmatpush2.bf16.msra.mxu0 0
        %1494 = vmatprep.subr.bf16.mxu0 0
        %1495 = vmatpush2.bf16.msra.mxu0 0
        %1496 = vmatprep.subr.bf16.mxu0 0
        %1497 = vmatpush2.bf16.msra.mxu0 0
        %1498 = vmatprep.mubr.bf16.mxu0 0
        %1499 = vmatmul.mubr.bf16.gmra.mxu0 %v1464
        %v1500 = vpop.f32.mrf.mxu0
        %v1501 = vadd.f32 0.0, %v1500
        %v1502 = vpop.f32.mrf.mxu0
        %v1503 = vpop.f32.mrf.mxu0
        %v1504 = vpop.f32.mrf.mxu0
        %1505 = vdwg.mxu0
        %v1510 = vunpack.c.l.b16 %v995
        %v1511 = vunpack.c.l.b16 %v996
        %v1512 = vunpack.c.l.b16 %v997
        %v1513 = vunpack.c.l.b16 %v998
        %v1514 = vpack.c.b16 %v1511, %v1510
        %v1515 = vpack.c.b16 %v1513, %v1512
        %v1519 = vsel %vm886, %v994, 0
        %1521 = vmatprep.subr.bf16.mxu0 0
        %1522 = vmatpush1.bf16.msra.mxu0 0
        %1523 = vmatprep.subr.bf16.mxu0 0
        %1524 = vmatpush1.bf16.msra.mxu0 0
        %1525 = vmatprep.subr.bf16.mxu0 0
        %1526 = vmatpush1.bf16.msra.mxu0 0
        %1527 = vmatprep.subr.bf16.mxu0 0
        %1528 = vmatpush1.bf16.msra.mxu0 0
        %1529 = vmatprep.subr.bf16.mxu0 0
        %1530 = vmatpush1.bf16.msra.mxu0 0
        %1531 = vmatprep.subr.bf16.mxu0 0
        %1532 = vmatpush1.bf16.msra.mxu0 0
        %1533 = vmatprep.subr.bf16.mxu0 0
        %1534 = vmatpush1.bf16.msra.mxu0 %v1515
        %1535 = vmatprep.subr.bf16.mxu0 0
        %1536 = vmatpush1.bf16.msra.mxu0 %v1514
        %1537 = vmatprep.subr.bf16.mxu0 0
        %1538 = vmatpush2.bf16.msra.mxu0 0
        %1539 = vmatprep.subr.bf16.mxu0 0
        %1540 = vmatpush2.bf16.msra.mxu0 0
        %1541 = vmatprep.subr.bf16.mxu0 0
        %1542 = vmatpush2.bf16.msra.mxu0 0
        %1543 = vmatprep.subr.bf16.mxu0 0
        %1544 = vmatpush2.bf16.msra.mxu0 0
        %1545 = vmatprep.subr.bf16.mxu0 0
        %1546 = vmatpush2.bf16.msra.mxu0 0
        %1547 = vmatprep.subr.bf16.mxu0 0
        %1548 = vmatpush2.bf16.msra.mxu0 0
        %1549 = vmatprep.subr.bf16.mxu0 0
        %1550 = vmatpush2.bf16.msra.mxu0 0
        %1551 = vmatprep.subr.bf16.mxu0 0
        %1552 = vmatpush2.bf16.msra.mxu0 0
        %1553 = vmatprep.mubr.bf16.mxu0 0
        %1554 = vmatmul.mubr.bf16.gmra.mxu0 %v1519
        %v1555 = vpop.f32.mrf.mxu0
        %v1556 = vadd.f32 %v1501, %v1555
        %v1557 = vpop.f32.mrf.mxu0
        %v1558 = vpop.f32.mrf.mxu0
        %v1559 = vpop.f32.mrf.mxu0
        %1560 = vdwg.mxu0
        %s1561 = scalar_lea.vmem [#allocation2], 128
        %v1562 = vld [vmem:[%s1561] sm:$0xf]
        %v1563 = vld [vmem:[%s1561 + $0x4] sm:$0xf]
        %v1564 = vld [vmem:[%s1561 + $0x8] sm:$0xf]
        %v1565 = vld [vmem:[%s1561 + $0xc] sm:$0xf]
        %v1566 = vld [vmem:[%s1561 + $0x10] sm:$0xf]
        %v1567 = vld [vmem:[%s1561 + $0x14] sm:$0xf]
        %v1568 = vld [vmem:[%s1561 + $0x18] sm:$0xf]
        %v1569 = vld [vmem:[%s1561 + $0x1c] sm:$0xf]
        %v1570 = vld [vmem:[%s1561 + $0x20] sm:$0xf]
        %v1571 = vld [vmem:[%s1561 + $0x24] sm:$0xf]
        %v1572 = vld [vmem:[%s1561 + $0x28] sm:$0xf]
        %v1573 = vld [vmem:[%s1561 + $0x2c] sm:$0xf]
        %v1574 = vld [vmem:[%s1561 + $0x30] sm:$0xf]
        %v1575 = vld [vmem:[%s1561 + $0x34] sm:$0xf]
        %v1576 = vld [vmem:[%s1561 + $0x38] sm:$0xf]
        %v1577 = vld [vmem:[%s1561 + $0x3c] sm:$0xf]
        %s1578 = scalar_lea.vmem %s3, 2
        %v1579 = vld [vmem:[%s1578] sm:$0x1]
        %v1581 = vlaneseq
        %v1582 = vshrl.u32 %v1581, 7
        %v1583 = vsub.s32 0, %v1582
        %v1584 = vrot.slane %v1579, %v1583
        %v1602 = vunpack.c.l.b16 %v1562
        %v1603 = vunpack.c.l.b16 %v1563
        %v1604 = vunpack.c.l.b16 %v1564
        %v1605 = vunpack.c.l.b16 %v1565
        %v1606 = vunpack.c.l.b16 %v1566
        %v1607 = vunpack.c.l.b16 %v1567
        %v1608 = vunpack.c.l.b16 %v1568
        %v1609 = vunpack.c.l.b16 %v1569
        %v1610 = vunpack.c.l.b16 %v1570
        %v1611 = vunpack.c.l.b16 %v1571
        %v1612 = vunpack.c.l.b16 %v1572
        %v1613 = vunpack.c.l.b16 %v1573
        %v1614 = vunpack.c.l.b16 %v1574
        %v1615 = vunpack.c.l.b16 %v1575
        %v1616 = vunpack.c.l.b16 %v1576
        %v1617 = vunpack.c.l.b16 %v1577
        %v1618 = vpack.c.b16 %v1603, %v1602
        %v1619 = vpack.c.b16 %v1605, %v1604
        %v1620 = vpack.c.b16 %v1607, %v1606
        %v1621 = vpack.c.b16 %v1609, %v1608
        %v1622 = vpack.c.b16 %v1611, %v1610
        %v1623 = vpack.c.b16 %v1613, %v1612
        %v1624 = vpack.c.b16 %v1615, %v1614
        %v1625 = vpack.c.b16 %v1617, %v1616
        %1634 = vmatprep.subr.bf16.mxu0 0
        %1635 = vmatpush1.bf16.msra.mxu0 %v1625
        %1636 = vmatprep.subr.bf16.mxu0 0
        %1637 = vmatpush1.bf16.msra.mxu0 %v1624
        %1638 = vmatprep.subr.bf16.mxu0 0
        %1639 = vmatpush1.bf16.msra.mxu0 %v1623
        %1640 = vmatprep.subr.bf16.mxu0 0
        %1641 = vmatpush1.bf16.msra.mxu0 %v1622
        %1642 = vmatprep.subr.bf16.mxu0 0
        %1643 = vmatpush1.bf16.msra.mxu0 %v1621
        %1644 = vmatprep.subr.bf16.mxu0 0
        %1645 = vmatpush1.bf16.msra.mxu0 %v1620
        %1646 = vmatprep.subr.bf16.mxu0 0
        %1647 = vmatpush1.bf16.msra.mxu0 %v1619
        %1648 = vmatprep.subr.bf16.mxu0 0
        %1649 = vmatpush1.bf16.msra.mxu0 %v1618
        %1650 = vmatprep.subr.bf16.mxu0 0
        %1651 = vmatpush2.bf16.msra.mxu0 0
        %1652 = vmatprep.subr.bf16.mxu0 0
        %1653 = vmatpush2.bf16.msra.mxu0 0
        %1654 = vmatprep.subr.bf16.mxu0 0
        %1655 = vmatpush2.bf16.msra.mxu0 0
        %1656 = vmatprep.subr.bf16.mxu0 0
        %1657 = vmatpush2.bf16.msra.mxu0 0
        %1658 = vmatprep.subr.bf16.mxu0 0
        %1659 = vmatpush2.bf16.msra.mxu0 0
        %1660 = vmatprep.subr.bf16.mxu0 0
        %1661 = vmatpush2.bf16.msra.mxu0 0
        %1662 = vmatprep.subr.bf16.mxu0 0
        %1663 = vmatpush2.bf16.msra.mxu0 0
        %1664 = vmatprep.subr.bf16.mxu0 0
        %1665 = vmatpush2.bf16.msra.mxu0 0
        %1666 = vmatprep.mubr.bf16.mxu0 0
        %1667 = vmatmul.mubr.bf16.gmra.mxu0 %v537
        %v1668 = vpop.f32.mrf.mxu0
        %v1669 = vadd.f32 %v1584, %v1668
        %v1670 = vpop.f32.mrf.mxu0
        %v1671 = vpop.f32.mrf.mxu0
        %v1672 = vpop.f32.mrf.mxu0
        %1673 = vdwg.mxu0
        %s1674 = scalar_lea.vmem [#allocation2], 384
        %v1675 = vld [vmem:[%s1674] sm:$0xf]
        %v1676 = vld [vmem:[%s1674 + $0x4] sm:$0xf]
        %v1677 = vld [vmem:[%s1674 + $0x8] sm:$0xf]
        %v1678 = vld [vmem:[%s1674 + $0xc] sm:$0xf]
        %v1679 = vld [vmem:[%s1674 + $0x10] sm:$0xf]
        %v1680 = vld [vmem:[%s1674 + $0x14] sm:$0xf]
        %v1681 = vld [vmem:[%s1674 + $0x18] sm:$0xf]
        %v1682 = vld [vmem:[%s1674 + $0x1c] sm:$0xf]
        %v1683 = vld [vmem:[%s1674 + $0x20] sm:$0xf]
        %v1684 = vld [vmem:[%s1674 + $0x24] sm:$0xf]
        %v1685 = vld [vmem:[%s1674 + $0x28] sm:$0xf]
        %v1686 = vld [vmem:[%s1674 + $0x2c] sm:$0xf]
        %v1687 = vld [vmem:[%s1674 + $0x30] sm:$0xf]
        %v1688 = vld [vmem:[%s1674 + $0x34] sm:$0xf]
        %v1689 = vld [vmem:[%s1674 + $0x38] sm:$0xf]
        %v1690 = vld [vmem:[%s1674 + $0x3c] sm:$0xf]
        %s1691 = scalar_lea.vmem %s3, 6
        %v1692 = vld [vmem:[%s1691] sm:$0x1]
        %v1694 = vlaneseq
        %v1695 = vshrl.u32 %v1694, 7
        %v1696 = vsub.s32 0, %v1695
        %v1697 = vrot.slane %v1692, %v1696
        %v1715 = vunpack.c.l.b16 %v1675
        %v1716 = vunpack.c.l.b16 %v1676
        %v1717 = vunpack.c.l.b16 %v1677
        %v1718 = vunpack.c.l.b16 %v1678
        %v1719 = vunpack.c.l.b16 %v1679
        %v1720 = vunpack.c.l.b16 %v1680
        %v1721 = vunpack.c.l.b16 %v1681
        %v1722 = vunpack.c.l.b16 %v1682
        %v1723 = vunpack.c.l.b16 %v1683
        %v1724 = vunpack.c.l.b16 %v1684
        %v1725 = vunpack.c.l.b16 %v1685
        %v1726 = vunpack.c.l.b16 %v1686
        %v1727 = vunpack.c.l.b16 %v1687
        %v1728 = vunpack.c.l.b16 %v1688
        %v1729 = vunpack.c.l.b16 %v1689
        %v1730 = vunpack.c.l.b16 %v1690
        %v1731 = vpack.c.b16 %v1716, %v1715
        %v1732 = vpack.c.b16 %v1718, %v1717
        %v1733 = vpack.c.b16 %v1720, %v1719
        %v1734 = vpack.c.b16 %v1722, %v1721
        %v1735 = vpack.c.b16 %v1724, %v1723
        %v1736 = vpack.c.b16 %v1726, %v1725
        %v1737 = vpack.c.b16 %v1728, %v1727
        %v1738 = vpack.c.b16 %v1730, %v1729
        %1747 = vmatprep.subr.bf16.mxu0 0
        %1748 = vmatpush1.bf16.msra.mxu0 %v1738
        %1749 = vmatprep.subr.bf16.mxu0 0
        %1750 = vmatpush1.bf16.msra.mxu0 %v1737
        %1751 = vmatprep.subr.bf16.mxu0 0
        %1752 = vmatpush1.bf16.msra.mxu0 %v1736
        %1753 = vmatprep.subr.bf16.mxu0 0
        %1754 = vmatpush1.bf16.msra.mxu0 %v1735
        %1755 = vmatprep.subr.bf16.mxu0 0
        %1756 = vmatpush1.bf16.msra.mxu0 %v1734
        %1757 = vmatprep.subr.bf16.mxu0 0
        %1758 = vmatpush1.bf16.msra.mxu0 %v1733
        %1759 = vmatprep.subr.bf16.mxu0 0
        %1760 = vmatpush1.bf16.msra.mxu0 %v1732
        %1761 = vmatprep.subr.bf16.mxu0 0
        %1762 = vmatpush1.bf16.msra.mxu0 %v1731
        %1763 = vmatprep.subr.bf16.mxu0 0
        %1764 = vmatpush2.bf16.msra.mxu0 0
        %1765 = vmatprep.subr.bf16.mxu0 0
        %1766 = vmatpush2.bf16.msra.mxu0 0
        %1767 = vmatprep.subr.bf16.mxu0 0
        %1768 = vmatpush2.bf16.msra.mxu0 0
        %1769 = vmatprep.subr.bf16.mxu0 0
        %1770 = vmatpush2.bf16.msra.mxu0 0
        %1771 = vmatprep.subr.bf16.mxu0 0
        %1772 = vmatpush2.bf16.msra.mxu0 0
        %1773 = vmatprep.subr.bf16.mxu0 0
        %1774 = vmatpush2.bf16.msra.mxu0 0
        %1775 = vmatprep.subr.bf16.mxu0 0
        %1776 = vmatpush2.bf16.msra.mxu0 0
        %1777 = vmatprep.subr.bf16.mxu0 0
        %1778 = vmatpush2.bf16.msra.mxu0 0
        %1779 = vmatprep.mubr.bf16.mxu0 0
        %1780 = vmatmul.mubr.bf16.gmra.mxu0 %v537
        %v1781 = vpop.f32.mrf.mxu0
        %v1782 = vadd.f32 %v1697, %v1781
        %v1783 = vpop.f32.mrf.mxu0
        %v1784 = vpop.f32.mrf.mxu0
        %v1785 = vpop.f32.mrf.mxu0
        %1786 = vdwg.mxu0
        %s1787 = scalar_lea.vmem [#allocation2], 640
        %v1788 = vld [vmem:[%s1787] sm:$0xf]
        %v1789 = vld [vmem:[%s1787 + $0x4] sm:$0xf]
        %v1790 = vld [vmem:[%s1787 + $0x8] sm:$0xf]
        %v1791 = vld [vmem:[%s1787 + $0xc] sm:$0xf]
        %v1792 = vld [vmem:[%s1787 + $0x10] sm:$0xf]
        %v1793 = vld [vmem:[%s1787 + $0x14] sm:$0xf]
        %v1794 = vld [vmem:[%s1787 + $0x18] sm:$0xf]
        %v1795 = vld [vmem:[%s1787 + $0x1c] sm:$0xf]
        %v1796 = vld [vmem:[%s1787 + $0x20] sm:$0xf]
        %v1797 = vld [vmem:[%s1787 + $0x24] sm:$0xf]
        %v1798 = vld [vmem:[%s1787 + $0x28] sm:$0xf]
        %v1799 = vld [vmem:[%s1787 + $0x2c] sm:$0xf]
        %v1800 = vld [vmem:[%s1787 + $0x30] sm:$0xf]
        %v1801 = vld [vmem:[%s1787 + $0x34] sm:$0xf]
        %v1802 = vld [vmem:[%s1787 + $0x38] sm:$0xf]
        %v1803 = vld [vmem:[%s1787 + $0x3c] sm:$0xf]
        %s1804 = scalar_lea.vmem %s3, 10
        %v1805 = vld [vmem:[%s1804] sm:$0x1]
        %v1807 = vlaneseq
        %v1808 = vshrl.u32 %v1807, 7
        %v1809 = vsub.s32 0, %v1808
        %v1810 = vrot.slane %v1805, %v1809
        %v1828 = vunpack.c.l.b16 %v1788
        %v1829 = vunpack.c.l.b16 %v1789
        %v1830 = vunpack.c.l.b16 %v1790
        %v1831 = vunpack.c.l.b16 %v1791
        %v1832 = vunpack.c.l.b16 %v1792
        %v1833 = vunpack.c.l.b16 %v1793
        %v1834 = vunpack.c.l.b16 %v1794
        %v1835 = vunpack.c.l.b16 %v1795
        %v1836 = vunpack.c.l.b16 %v1796
        %v1837 = vunpack.c.l.b16 %v1797
        %v1838 = vunpack.c.l.b16 %v1798
        %v1839 = vunpack.c.l.b16 %v1799
        %v1840 = vunpack.c.l.b16 %v1800
        %v1841 = vunpack.c.l.b16 %v1801
        %v1842 = vunpack.c.l.b16 %v1802
        %v1843 = vunpack.c.l.b16 %v1803
        %v1844 = vpack.c.b16 %v1829, %v1828
        %v1845 = vpack.c.b16 %v1831, %v1830
        %v1846 = vpack.c.b16 %v1833, %v1832
        %v1847 = vpack.c.b16 %v1835, %v1834
        %v1848 = vpack.c.b16 %v1837, %v1836
        %v1849 = vpack.c.b16 %v1839, %v1838
        %v1850 = vpack.c.b16 %v1841, %v1840
        %v1851 = vpack.c.b16 %v1843, %v1842
        %1860 = vmatprep.subr.bf16.mxu0 0
        %1861 = vmatpush1.bf16.msra.mxu0 %v1851
        %1862 = vmatprep.subr.bf16.mxu0 0
        %1863 = vmatpush1.bf16.msra.mxu0 %v1850
        %1864 = vmatprep.subr.bf16.mxu0 0
        %1865 = vmatpush1.bf16.msra.mxu0 %v1849
        %1866 = vmatprep.subr.bf16.mxu0 0
        %1867 = vmatpush1.bf16.msra.mxu0 %v1848
        %1868 = vmatprep.subr.bf16.mxu0 0
        %1869 = vmatpush1.bf16.msra.mxu0 %v1847
        %1870 = vmatprep.subr.bf16.mxu0 0
        %1871 = vmatpush1.bf16.msra.mxu0 %v1846
        %1872 = vmatprep.subr.bf16.mxu0 0
        %1873 = vmatpush1.bf16.msra.mxu0 %v1845
        %1874 = vmatprep.subr.bf16.mxu0 0
        %1875 = vmatpush1.bf16.msra.mxu0 %v1844
        %1876 = vmatprep.subr.bf16.mxu0 0
        %1877 = vmatpush2.bf16.msra.mxu0 0
        %1878 = vmatprep.subr.bf16.mxu0 0
        %1879 = vmatpush2.bf16.msra.mxu0 0
        %1880 = vmatprep.subr.bf16.mxu0 0
        %1881 = vmatpush2.bf16.msra.mxu0 0
        %1882 = vmatprep.subr.bf16.mxu0 0
        %1883 = vmatpush2.bf16.msra.mxu0 0
        %1884 = vmatprep.subr.bf16.mxu0 0
        %1885 = vmatpush2.bf16.msra.mxu0 0
        %1886 = vmatprep.subr.bf16.mxu0 0
        %1887 = vmatpush2.bf16.msra.mxu0 0
        %1888 = vmatprep.subr.bf16.mxu0 0
        %1889 = vmatpush2.bf16.msra.mxu0 0
        %1890 = vmatprep.subr.bf16.mxu0 0
        %1891 = vmatpush2.bf16.msra.mxu0 0
        %1892 = vmatprep.mubr.bf16.mxu0 0
        %1893 = vmatmul.mubr.bf16.gmra.mxu0 %v537
        %v1894 = vpop.f32.mrf.mxu0
        %v1895 = vadd.f32 %v1810, %v1894
        %v1896 = vpop.f32.mrf.mxu0
        %v1897 = vpop.f32.mrf.mxu0
        %v1898 = vpop.f32.mrf.mxu0
        %1899 = vdwg.mxu0
        %v1900 = vpack.c.bf16 %v1669, %v1669
        %v1901 = vpack.c.bf16 %v1782, %v1782
        %v1903 = vsel %vm886, %v1900, 0
        %v1906 = vsel %vm886, %v1901, 0
        %1908 = vmatprep.subr.bf16.mxu0 0
        %1909 = vmatpush1.bf16.xpose.msra.mxu0 0
        %1910 = vmatprep.subr.bf16.mxu0 0
        %1911 = vmatpush1.bf16.xpose.msra.mxu0 0
        %1912 = vmatprep.subr.bf16.mxu0 0
        %1913 = vmatpush1.bf16.xpose.msra.mxu0 0
        %1914 = vmatprep.subr.bf16.mxu0 0
        %1915 = vmatpush1.bf16.xpose.msra.mxu0 0
        %1916 = vmatprep.subr.bf16.mxu0 0
        %1917 = vmatpush1.bf16.xpose.msra.mxu0 0
        %1918 = vmatprep.subr.bf16.mxu0 0
        %1919 = vmatpush1.bf16.xpose.msra.mxu0 0
        %1920 = vmatprep.subr.bf16.mxu0 0
        %1921 = vmatpush1.bf16.xpose.msra.mxu0 0
        %1922 = vmatprep.subr.bf16.mxu0 0
        %1923 = vmatpush1.bf16.xpose.msra.mxu0 %v1906
        %1924 = vmatprep.subr.bf16.mxu0 0
        %1925 = vmatpush2.bf16.xpose.msra.mxu0 0
        %1926 = vmatprep.subr.bf16.mxu0 0
        %1927 = vmatpush2.bf16.xpose.msra.mxu0 0
        %1928 = vmatprep.subr.bf16.mxu0 0
        %1929 = vmatpush2.bf16.xpose.msra.mxu0 0
        %1930 = vmatprep.subr.bf16.mxu0 0
        %1931 = vmatpush2.bf16.xpose.msra.mxu0 0
        %1932 = vmatprep.subr.bf16.mxu0 0
        %1933 = vmatpush2.bf16.xpose.msra.mxu0 0
        %1934 = vmatprep.subr.bf16.mxu0 0
        %1935 = vmatpush2.bf16.xpose.msra.mxu0 0
        %1936 = vmatprep.subr.bf16.mxu0 0
        %1937 = vmatpush2.bf16.xpose.msra.mxu0 0
        %1938 = vmatprep.subr.bf16.mxu0 0
        %1939 = vmatpush2.bf16.xpose.msra.mxu0 0
        %1940 = vmatprep.mubr.bf16.mxu0 0
        %1941 = vmatmul.mubr.bf16.gmra.mxu0 %v1903
        %v1942 = vpop.f32.mrf.mxu0
        %v1943 = vadd.f32 %v545, %v1942
        %v1944 = vpop.f32.mrf.mxu0
        %v1945 = vpop.f32.mrf.mxu0
        %v1946 = vpop.f32.mrf.mxu0
        %1947 = vdwg.mxu0
        %v1948 = vsel %vm933, %v1943, -inf
        %1949 = vmax.xlane.f32.xlu0 %v1948
        %v1950 = vpop.xlane.xlu0 %1949
        %v1951 = vsub.f32 %v1943, %v1950
        %v1952 = vmul.f32 %v1951, 1.442695
        %v1953 = vpow.pop %v1952
        %v1954 = vsel %vm933, %v1953, 0.0
        %1955 = vadd.xlane.f32.xlu0 %v1954
        %v1956 = vpop.xlane.xlu0 %1955
        %v1957 = vrcp.pop %v1956
        %v1958 = vmul.f32 %v1953, %v1957
        %v1959 = vpack.c.bf16 %v1958, %v1958
        %v1960 = vpack.c.bf16 %v1895, %v1895
        %v1962 = vsel %vm933, %v1959, 0
        %v1965 = vsel %vm950, %v1960, 0
        %1967 = vmatprep.subr.bf16.mxu0 0
        %1968 = vmatpush1.bf16.msra.mxu0 0
        %1969 = vmatprep.subr.bf16.mxu0 0
        %1970 = vmatpush1.bf16.msra.mxu0 0
        %1971 = vmatprep.subr.bf16.mxu0 0
        %1972 = vmatpush1.bf16.msra.mxu0 0
        %1973 = vmatprep.subr.bf16.mxu0 0
        %1974 = vmatpush1.bf16.msra.mxu0 0
        %1975 = vmatprep.subr.bf16.mxu0 0
        %1976 = vmatpush1.bf16.msra.mxu0 0
        %1977 = vmatprep.subr.bf16.mxu0 0
        %1978 = vmatpush1.bf16.msra.mxu0 0
        %1979 = vmatprep.subr.bf16.mxu0 0
        %1980 = vmatpush1.bf16.msra.mxu0 0
        %1981 = vmatprep.subr.bf16.mxu0 0
        %1982 = vmatpush1.bf16.msra.mxu0 %v1965
        %1983 = vmatprep.subr.bf16.mxu0 0
        %1984 = vmatpush2.bf16.msra.mxu0 0
        %1985 = vmatprep.subr.bf16.mxu0 0
        %1986 = vmatpush2.bf16.msra.mxu0 0
        %1987 = vmatprep.subr.bf16.mxu0 0
        %1988 = vmatpush2.bf16.msra.mxu0 0
        %1989 = vmatprep.subr.bf16.mxu0 0
        %1990 = vmatpush2.bf16.msra.mxu0 0
        %1991 = vmatprep.subr.bf16.mxu0 0
        %1992 = vmatpush2.bf16.msra.mxu0 0
        %1993 = vmatprep.subr.bf16.mxu0 0
        %1994 = vmatpush2.bf16.msra.mxu0 0
        %1995 = vmatprep.subr.bf16.mxu0 0
        %1996 = vmatpush2.bf16.msra.mxu0 0
        %1997 = vmatprep.subr.bf16.mxu0 0
        %1998 = vmatpush2.bf16.msra.mxu0 0
        %1999 = vmatprep.mubr.bf16.mxu0 0
        %2000 = vmatmul.mubr.bf16.gmra.mxu0 %v1962
        %v2001 = vpop.f32.mrf.mxu0
        %v2002 = vadd.f32 0.0, %v2001
        %v2003 = vpop.f32.mrf.mxu0
        %v2004 = vpop.f32.mrf.mxu0
        %v2005 = vpop.f32.mrf.mxu0
        %2006 = vdwg.mxu0
        %v2007 = vpack.c.bf16 %v2002, %v2002
        %s2008 = scalar_lea.vmem [#allocation4], 32
        %v2009 = vld [vmem:[%s2008] sm:$0xf]
        %v2010 = vld [vmem:[%s2008 + $0x4] sm:$0xf]
        %v2011 = vld [vmem:[%s2008 + $0x8] sm:$0xf]
        %v2012 = vld [vmem:[%s2008 + $0xc] sm:$0xf]
        %v2017 = vunpack.c.l.b16 %v2009
        %v2018 = vunpack.c.l.b16 %v2010
        %v2019 = vunpack.c.l.b16 %v2011
        %v2020 = vunpack.c.l.b16 %v2012
        %v2021 = vpack.c.b16 %v2018, %v2017
        %v2022 = vpack.c.b16 %v2020, %v2019
        %v2026 = vsel %vm886, %v2007, 0
        %2028 = vmatprep.subr.bf16.mxu0 0
        %2029 = vmatpush1.bf16.msra.mxu0 0
        %2030 = vmatprep.subr.bf16.mxu0 0
        %2031 = vmatpush1.bf16.msra.mxu0 0
        %2032 = vmatprep.subr.bf16.mxu0 0
        %2033 = vmatpush1.bf16.msra.mxu0 0
        %2034 = vmatprep.subr.bf16.mxu0 0
        %2035 = vmatpush1.bf16.msra.mxu0 0
        %2036 = vmatprep.subr.bf16.mxu0 0
        %2037 = vmatpush1.bf16.msra.mxu0 0
        %2038 = vmatprep.subr.bf16.mxu0 0
        %2039 = vmatpush1.bf16.msra.mxu0 0
        %2040 = vmatprep.subr.bf16.mxu0 0
        %2041 = vmatpush1.bf16.msra.mxu0 %v2022
        %2042 = vmatprep.subr.bf16.mxu0 0
        %2043 = vmatpush1.bf16.msra.mxu0 %v2021
        %2044 = vmatprep.subr.bf16.mxu0 0
        %2045 = vmatpush2.bf16.msra.mxu0 0
        %2046 = vmatprep.subr.bf16.mxu0 0
        %2047 = vmatpush2.bf16.msra.mxu0 0
        %2048 = vmatprep.subr.bf16.mxu0 0
        %2049 = vmatpush2.bf16.msra.mxu0 0
        %2050 = vmatprep.subr.bf16.mxu0 0
        %2051 = vmatpush2.bf16.msra.mxu0 0
        %2052 = vmatprep.subr.bf16.mxu0 0
        %2053 = vmatpush2.bf16.msra.mxu0 0
        %2054 = vmatprep.subr.bf16.mxu0 0
        %2055 = vmatpush2.bf16.msra.mxu0 0
        %2056 = vmatprep.subr.bf16.mxu0 0
        %2057 = vmatpush2.bf16.msra.mxu0 0
        %2058 = vmatprep.subr.bf16.mxu0 0
        %2059 = vmatpush2.bf16.msra.mxu0 0
        %2060 = vmatprep.mubr.bf16.mxu0 0
        %2061 = vmatmul.mubr.bf16.gmra.mxu0 %v2026
        %v2062 = vpop.f32.mrf.mxu0
        %v2063 = vadd.f32 0.0, %v2062
        %v2064 = vpop.f32.mrf.mxu0
        %v2065 = vpop.f32.mrf.mxu0
        %v2066 = vpop.f32.mrf.mxu0
        %2067 = vdwg.mxu0
        %v2068 = vadd.f32 %v1556, %v2063
        %s2069 = scalar_lea.vmem [#allocation2], 192
        %v2070 = vld [vmem:[%s2069] sm:$0xf]
        %v2071 = vld [vmem:[%s2069 + $0x4] sm:$0xf]
        %v2072 = vld [vmem:[%s2069 + $0x8] sm:$0xf]
        %v2073 = vld [vmem:[%s2069 + $0xc] sm:$0xf]
        %v2074 = vld [vmem:[%s2069 + $0x10] sm:$0xf]
        %v2075 = vld [vmem:[%s2069 + $0x14] sm:$0xf]
        %v2076 = vld [vmem:[%s2069 + $0x18] sm:$0xf]
        %v2077 = vld [vmem:[%s2069 + $0x1c] sm:$0xf]
        %v2078 = vld [vmem:[%s2069 + $0x20] sm:$0xf]
        %v2079 = vld [vmem:[%s2069 + $0x24] sm:$0xf]
        %v2080 = vld [vmem:[%s2069 + $0x28] sm:$0xf]
        %v2081 = vld [vmem:[%s2069 + $0x2c] sm:$0xf]
        %v2082 = vld [vmem:[%s2069 + $0x30] sm:$0xf]
        %v2083 = vld [vmem:[%s2069 + $0x34] sm:$0xf]
        %v2084 = vld [vmem:[%s2069 + $0x38] sm:$0xf]
        %v2085 = vld [vmem:[%s2069 + $0x3c] sm:$0xf]
        %s2086 = scalar_lea.vmem %s3, 3
        %v2087 = vld [vmem:[%s2086] sm:$0x1]
        %v2089 = vlaneseq
        %v2090 = vshrl.u32 %v2089, 7
        %v2091 = vsub.s32 0, %v2090
        %v2092 = vrot.slane %v2087, %v2091
        %v2110 = vunpack.c.l.b16 %v2070
        %v2111 = vunpack.c.l.b16 %v2071
        %v2112 = vunpack.c.l.b16 %v2072
        %v2113 = vunpack.c.l.b16 %v2073
        %v2114 = vunpack.c.l.b16 %v2074
        %v2115 = vunpack.c.l.b16 %v2075
        %v2116 = vunpack.c.l.b16 %v2076
        %v2117 = vunpack.c.l.b16 %v2077
        %v2118 = vunpack.c.l.b16 %v2078
        %v2119 = vunpack.c.l.b16 %v2079
        %v2120 = vunpack.c.l.b16 %v2080
        %v2121 = vunpack.c.l.b16 %v2081
        %v2122 = vunpack.c.l.b16 %v2082
        %v2123 = vunpack.c.l.b16 %v2083
        %v2124 = vunpack.c.l.b16 %v2084
        %v2125 = vunpack.c.l.b16 %v2085
        %v2126 = vpack.c.b16 %v2111, %v2110
        %v2127 = vpack.c.b16 %v2113, %v2112
        %v2128 = vpack.c.b16 %v2115, %v2114
        %v2129 = vpack.c.b16 %v2117, %v2116
        %v2130 = vpack.c.b16 %v2119, %v2118
        %v2131 = vpack.c.b16 %v2121, %v2120
        %v2132 = vpack.c.b16 %v2123, %v2122
        %v2133 = vpack.c.b16 %v2125, %v2124
        %2142 = vmatprep.subr.bf16.mxu0 0
        %2143 = vmatpush1.bf16.msra.mxu0 %v2133
        %2144 = vmatprep.subr.bf16.mxu0 0
        %2145 = vmatpush1.bf16.msra.mxu0 %v2132
        %2146 = vmatprep.subr.bf16.mxu0 0
        %2147 = vmatpush1.bf16.msra.mxu0 %v2131
        %2148 = vmatprep.subr.bf16.mxu0 0
        %2149 = vmatpush1.bf16.msra.mxu0 %v2130
        %2150 = vmatprep.subr.bf16.mxu0 0
        %2151 = vmatpush1.bf16.msra.mxu0 %v2129
        %2152 = vmatprep.subr.bf16.mxu0 0
        %2153 = vmatpush1.bf16.msra.mxu0 %v2128
        %2154 = vmatprep.subr.bf16.mxu0 0
        %2155 = vmatpush1.bf16.msra.mxu0 %v2127
        %2156 = vmatprep.subr.bf16.mxu0 0
        %2157 = vmatpush1.bf16.msra.mxu0 %v2126
        %2158 = vmatprep.subr.bf16.mxu0 0
        %2159 = vmatpush2.bf16.msra.mxu0 0
        %2160 = vmatprep.subr.bf16.mxu0 0
        %2161 = vmatpush2.bf16.msra.mxu0 0
        %2162 = vmatprep.subr.bf16.mxu0 0
        %2163 = vmatpush2.bf16.msra.mxu0 0
        %2164 = vmatprep.subr.bf16.mxu0 0
        %2165 = vmatpush2.bf16.msra.mxu0 0
        %2166 = vmatprep.subr.bf16.mxu0 0
        %2167 = vmatpush2.bf16.msra.mxu0 0
        %2168 = vmatprep.subr.bf16.mxu0 0
        %2169 = vmatpush2.bf16.msra.mxu0 0
        %2170 = vmatprep.subr.bf16.mxu0 0
        %2171 = vmatpush2.bf16.msra.mxu0 0
        %2172 = vmatprep.subr.bf16.mxu0 0
        %2173 = vmatpush2.bf16.msra.mxu0 0
        %2174 = vmatprep.mubr.bf16.mxu0 0
        %2175 = vmatmul.mubr.bf16.gmra.mxu0 %v537
        %v2176 = vpop.f32.mrf.mxu0
        %v2177 = vadd.f32 %v2092, %v2176
        %v2178 = vpop.f32.mrf.mxu0
        %v2179 = vpop.f32.mrf.mxu0
        %v2180 = vpop.f32.mrf.mxu0
        %2181 = vdwg.mxu0
        %s2182 = scalar_lea.vmem [#allocation2], 448
        %v2183 = vld [vmem:[%s2182] sm:$0xf]
        %v2184 = vld [vmem:[%s2182 + $0x4] sm:$0xf]
        %v2185 = vld [vmem:[%s2182 + $0x8] sm:$0xf]
        %v2186 = vld [vmem:[%s2182 + $0xc] sm:$0xf]
        %v2187 = vld [vmem:[%s2182 + $0x10] sm:$0xf]
        %v2188 = vld [vmem:[%s2182 + $0x14] sm:$0xf]
        %v2189 = vld [vmem:[%s2182 + $0x18] sm:$0xf]
        %v2190 = vld [vmem:[%s2182 + $0x1c] sm:$0xf]
        %v2191 = vld [vmem:[%s2182 + $0x20] sm:$0xf]
        %v2192 = vld [vmem:[%s2182 + $0x24] sm:$0xf]
        %v2193 = vld [vmem:[%s2182 + $0x28] sm:$0xf]
        %v2194 = vld [vmem:[%s2182 + $0x2c] sm:$0xf]
        %v2195 = vld [vmem:[%s2182 + $0x30] sm:$0xf]
        %v2196 = vld [vmem:[%s2182 + $0x34] sm:$0xf]
        %v2197 = vld [vmem:[%s2182 + $0x38] sm:$0xf]
        %v2198 = vld [vmem:[%s2182 + $0x3c] sm:$0xf]
        %s2199 = scalar_lea.vmem %s3, 7
        %v2200 = vld [vmem:[%s2199] sm:$0x1]
        %v2202 = vlaneseq
        %v2203 = vshrl.u32 %v2202, 7
        %v2204 = vsub.s32 0, %v2203
        %v2205 = vrot.slane %v2200, %v2204
        %v2223 = vunpack.c.l.b16 %v2183
        %v2224 = vunpack.c.l.b16 %v2184
        %v2225 = vunpack.c.l.b16 %v2185
        %v2226 = vunpack.c.l.b16 %v2186
        %v2227 = vunpack.c.l.b16 %v2187
        %v2228 = vunpack.c.l.b16 %v2188
        %v2229 = vunpack.c.l.b16 %v2189
        %v2230 = vunpack.c.l.b16 %v2190
        %v2231 = vunpack.c.l.b16 %v2191
        %v2232 = vunpack.c.l.b16 %v2192
        %v2233 = vunpack.c.l.b16 %v2193
        %v2234 = vunpack.c.l.b16 %v2194
        %v2235 = vunpack.c.l.b16 %v2195
        %v2236 = vunpack.c.l.b16 %v2196
        %v2237 = vunpack.c.l.b16 %v2197
        %v2238 = vunpack.c.l.b16 %v2198
        %v2239 = vpack.c.b16 %v2224, %v2223
        %v2240 = vpack.c.b16 %v2226, %v2225
        %v2241 = vpack.c.b16 %v2228, %v2227
        %v2242 = vpack.c.b16 %v2230, %v2229
        %v2243 = vpack.c.b16 %v2232, %v2231
        %v2244 = vpack.c.b16 %v2234, %v2233
        %v2245 = vpack.c.b16 %v2236, %v2235
        %v2246 = vpack.c.b16 %v2238, %v2237
        %2255 = vmatprep.subr.bf16.mxu0 0
        %2256 = vmatpush1.bf16.msra.mxu0 %v2246
        %2257 = vmatprep.subr.bf16.mxu0 0
        %2258 = vmatpush1.bf16.msra.mxu0 %v2245
        %2259 = vmatprep.subr.bf16.mxu0 0
        %2260 = vmatpush1.bf16.msra.mxu0 %v2244
        %2261 = vmatprep.subr.bf16.mxu0 0
        %2262 = vmatpush1.bf16.msra.mxu0 %v2243
        %2263 = vmatprep.subr.bf16.mxu0 0
        %2264 = vmatpush1.bf16.msra.mxu0 %v2242
        %2265 = vmatprep.subr.bf16.mxu0 0
        %2266 = vmatpush1.bf16.msra.mxu0 %v2241
        %2267 = vmatprep.subr.bf16.mxu0 0
        %2268 = vmatpush1.bf16.msra.mxu0 %v2240
        %2269 = vmatprep.subr.bf16.mxu0 0
        %2270 = vmatpush1.bf16.msra.mxu0 %v2239
        %2271 = vmatprep.subr.bf16.mxu0 0
        %2272 = vmatpush2.bf16.msra.mxu0 0
        %2273 = vmatprep.subr.bf16.mxu0 0
        %2274 = vmatpush2.bf16.msra.mxu0 0
        %2275 = vmatprep.subr.bf16.mxu0 0
        %2276 = vmatpush2.bf16.msra.mxu0 0
        %2277 = vmatprep.subr.bf16.mxu0 0
        %2278 = vmatpush2.bf16.msra.mxu0 0
        %2279 = vmatprep.subr.bf16.mxu0 0
        %2280 = vmatpush2.bf16.msra.mxu0 0
        %2281 = vmatprep.subr.bf16.mxu0 0
        %2282 = vmatpush2.bf16.msra.mxu0 0
        %2283 = vmatprep.subr.bf16.mxu0 0
        %2284 = vmatpush2.bf16.msra.mxu0 0
        %2285 = vmatprep.subr.bf16.mxu0 0
        %2286 = vmatpush2.bf16.msra.mxu0 0
        %2287 = vmatprep.mubr.bf16.mxu0 0
        %2288 = vmatmul.mubr.bf16.gmra.mxu0 %v537
        %v2289 = vpop.f32.mrf.mxu0
        %v2290 = vadd.f32 %v2205, %v2289
        %v2291 = vpop.f32.mrf.mxu0
        %v2292 = vpop.f32.mrf.mxu0
        %v2293 = vpop.f32.mrf.mxu0
        %2294 = vdwg.mxu0
        %s2295 = scalar_lea.vmem [#allocation2], 704
        %v2296 = vld [vmem:[%s2295] sm:$0xf]
        %v2297 = vld [vmem:[%s2295 + $0x4] sm:$0xf]
        %v2298 = vld [vmem:[%s2295 + $0x8] sm:$0xf]
        %v2299 = vld [vmem:[%s2295 + $0xc] sm:$0xf]
        %v2300 = vld [vmem:[%s2295 + $0x10] sm:$0xf]
        %v2301 = vld [vmem:[%s2295 + $0x14] sm:$0xf]
        %v2302 = vld [vmem:[%s2295 + $0x18] sm:$0xf]
        %v2303 = vld [vmem:[%s2295 + $0x1c] sm:$0xf]
        %v2304 = vld [vmem:[%s2295 + $0x20] sm:$0xf]
        %v2305 = vld [vmem:[%s2295 + $0x24] sm:$0xf]
        %v2306 = vld [vmem:[%s2295 + $0x28] sm:$0xf]
        %v2307 = vld [vmem:[%s2295 + $0x2c] sm:$0xf]
        %v2308 = vld [vmem:[%s2295 + $0x30] sm:$0xf]
        %v2309 = vld [vmem:[%s2295 + $0x34] sm:$0xf]
        %v2310 = vld [vmem:[%s2295 + $0x38] sm:$0xf]
        %v2311 = vld [vmem:[%s2295 + $0x3c] sm:$0xf]
        %s2312 = scalar_lea.vmem %s3, 11
        %v2313 = vld [vmem:[%s2312] sm:$0x1]
        %v2315 = vlaneseq
        %v2316 = vshrl.u32 %v2315, 7
        %v2317 = vsub.s32 0, %v2316
        %v2318 = vrot.slane %v2313, %v2317
        %v2336 = vunpack.c.l.b16 %v2296
        %v2337 = vunpack.c.l.b16 %v2297
        %v2338 = vunpack.c.l.b16 %v2298
        %v2339 = vunpack.c.l.b16 %v2299
        %v2340 = vunpack.c.l.b16 %v2300
        %v2341 = vunpack.c.l.b16 %v2301
        %v2342 = vunpack.c.l.b16 %v2302
        %v2343 = vunpack.c.l.b16 %v2303
        %v2344 = vunpack.c.l.b16 %v2304
        %v2345 = vunpack.c.l.b16 %v2305
        %v2346 = vunpack.c.l.b16 %v2306
        %v2347 = vunpack.c.l.b16 %v2307
        %v2348 = vunpack.c.l.b16 %v2308
        %v2349 = vunpack.c.l.b16 %v2309
        %v2350 = vunpack.c.l.b16 %v2310
        %v2351 = vunpack.c.l.b16 %v2311
        %v2352 = vpack.c.b16 %v2337, %v2336
        %v2353 = vpack.c.b16 %v2339, %v2338
        %v2354 = vpack.c.b16 %v2341, %v2340
        %v2355 = vpack.c.b16 %v2343, %v2342
        %v2356 = vpack.c.b16 %v2345, %v2344
        %v2357 = vpack.c.b16 %v2347, %v2346
        %v2358 = vpack.c.b16 %v2349, %v2348
        %v2359 = vpack.c.b16 %v2351, %v2350
        %2368 = vmatprep.subr.bf16.mxu0 0
        %2369 = vmatpush1.bf16.msra.mxu0 %v2359
        %2370 = vmatprep.subr.bf16.mxu0 0
        %2371 = vmatpush1.bf16.msra.mxu0 %v2358
        %2372 = vmatprep.subr.bf16.mxu0 0
        %2373 = vmatpush1.bf16.msra.mxu0 %v2357
        %2374 = vmatprep.subr.bf16.mxu0 0
        %2375 = vmatpush1.bf16.msra.mxu0 %v2356
        %2376 = vmatprep.subr.bf16.mxu0 0
        %2377 = vmatpush1.bf16.msra.mxu0 %v2355
        %2378 = vmatprep.subr.bf16.mxu0 0
        %2379 = vmatpush1.bf16.msra.mxu0 %v2354
        %2380 = vmatprep.subr.bf16.mxu0 0
        %2381 = vmatpush1.bf16.msra.mxu0 %v2353
        %2382 = vmatprep.subr.bf16.mxu0 0
        %2383 = vmatpush1.bf16.msra.mxu0 %v2352
        %2384 = vmatprep.subr.bf16.mxu0 0
        %2385 = vmatpush2.bf16.msra.mxu0 0
        %2386 = vmatprep.subr.bf16.mxu0 0
        %2387 = vmatpush2.bf16.msra.mxu0 0
        %2388 = vmatprep.subr.bf16.mxu0 0
        %2389 = vmatpush2.bf16.msra.mxu0 0
        %2390 = vmatprep.subr.bf16.mxu0 0
        %2391 = vmatpush2.bf16.msra.mxu0 0
        %2392 = vmatprep.subr.bf16.mxu0 0
        %2393 = vmatpush2.bf16.msra.mxu0 0
        %2394 = vmatprep.subr.bf16.mxu0 0
        %2395 = vmatpush2.bf16.msra.mxu0 0
        %2396 = vmatprep.subr.bf16.mxu0 0
        %2397 = vmatpush2.bf16.msra.mxu0 0
        %2398 = vmatprep.subr.bf16.mxu0 0
        %2399 = vmatpush2.bf16.msra.mxu0 0
        %2400 = vmatprep.mubr.bf16.mxu0 0
        %2401 = vmatmul.mubr.bf16.gmra.mxu0 %v537
        %v2402 = vpop.f32.mrf.mxu0
        %v2403 = vadd.f32 %v2318, %v2402
        %v2404 = vpop.f32.mrf.mxu0
        %v2405 = vpop.f32.mrf.mxu0
        %v2406 = vpop.f32.mrf.mxu0
        %2407 = vdwg.mxu0
        %v2408 = vpack.c.bf16 %v2177, %v2177
        %v2409 = vpack.c.bf16 %v2290, %v2290
        %v2411 = vsel %vm886, %v2408, 0
        %v2414 = vsel %vm886, %v2409, 0
        %2416 = vmatprep.subr.bf16.mxu0 0
        %2417 = vmatpush1.bf16.xpose.msra.mxu0 0
        %2418 = vmatprep.subr.bf16.mxu0 0
        %2419 = vmatpush1.bf16.xpose.msra.mxu0 0
        %2420 = vmatprep.subr.bf16.mxu0 0
        %2421 = vmatpush1.bf16.xpose.msra.mxu0 0
        %2422 = vmatprep.subr.bf16.mxu0 0
        %2423 = vmatpush1.bf16.xpose.msra.mxu0 0
        %2424 = vmatprep.subr.bf16.mxu0 0
        %2425 = vmatpush1.bf16.xpose.msra.mxu0 0
        %2426 = vmatprep.subr.bf16.mxu0 0
        %2427 = vmatpush1.bf16.xpose.msra.mxu0 0
        %2428 = vmatprep.subr.bf16.mxu0 0
        %2429 = vmatpush1.bf16.xpose.msra.mxu0 0
        %2430 = vmatprep.subr.bf16.mxu0 0
        %2431 = vmatpush1.bf16.xpose.msra.mxu0 %v2414
        %2432 = vmatprep.subr.bf16.mxu0 0
        %2433 = vmatpush2.bf16.xpose.msra.mxu0 0
        %2434 = vmatprep.subr.bf16.mxu0 0
        %2435 = vmatpush2.bf16.xpose.msra.mxu0 0
        %2436 = vmatprep.subr.bf16.mxu0 0
        %2437 = vmatpush2.bf16.xpose.msra.mxu0 0
        %2438 = vmatprep.subr.bf16.mxu0 0
        %2439 = vmatpush2.bf16.xpose.msra.mxu0 0
        %2440 = vmatprep.subr.bf16.mxu0 0
        %2441 = vmatpush2.bf16.xpose.msra.mxu0 0
        %2442 = vmatprep.subr.bf16.mxu0 0
        %2443 = vmatpush2.bf16.xpose.msra.mxu0 0
        %2444 = vmatprep.subr.bf16.mxu0 0
        %2445 = vmatpush2.bf16.xpose.msra.mxu0 0
        %2446 = vmatprep.subr.bf16.mxu0 0
        %2447 = vmatpush2.bf16.xpose.msra.mxu0 0
        %2448 = vmatprep.mubr.bf16.mxu0 0
        %2449 = vmatmul.mubr.bf16.gmra.mxu0 %v2411
        %v2450 = vpop.f32.mrf.mxu0
        %v2451 = vadd.f32 %v545, %v2450
        %v2452 = vpop.f32.mrf.mxu0
        %v2453 = vpop.f32.mrf.mxu0
        %v2454 = vpop.f32.mrf.mxu0
        %2455 = vdwg.mxu0
        %v2456 = vsel %vm933, %v2451, -inf
        %2457 = vmax.xlane.f32.xlu0 %v2456
        %v2458 = vpop.xlane.xlu0 %2457
        %v2459 = vsub.f32 %v2451, %v2458
        %v2460 = vmul.f32 %v2459, 1.442695
        %v2461 = vpow.pop %v2460
        %v2462 = vsel %vm933, %v2461, 0.0
        %2463 = vadd.xlane.f32.xlu0 %v2462
        %v2464 = vpop.xlane.xlu0 %2463
        %v2465 = vrcp.pop %v2464
        %v2466 = vmul.f32 %v2461, %v2465
        %v2467 = vpack.c.bf16 %v2466, %v2466
        %v2468 = vpack.c.bf16 %v2403, %v2403
        %v2470 = vsel %vm933, %v2467, 0
        %v2473 = vsel %vm950, %v2468, 0
        %2475 = vmatprep.subr.bf16.mxu0 0
        %2476 = vmatpush1.bf16.msra.mxu0 0
        %2477 = vmatprep.subr.bf16.mxu0 0
        %2478 = vmatpush1.bf16.msra.mxu0 0
        %2479 = vmatprep.subr.bf16.mxu0 0
        %2480 = vmatpush1.bf16.msra.mxu0 0
        %2481 = vmatprep.subr.bf16.mxu0 0
        %2482 = vmatpush1.bf16.msra.mxu0 0
        %2483 = vmatprep.subr.bf16.mxu0 0
        %2484 = vmatpush1.bf16.msra.mxu0 0
        %2485 = vmatprep.subr.bf16.mxu0 0
        %2486 = vmatpush1.bf16.msra.mxu0 0
        %2487 = vmatprep.subr.bf16.mxu0 0
        %2488 = vmatpush1.bf16.msra.mxu0 0
        %2489 = vmatprep.subr.bf16.mxu0 0
        %2490 = vmatpush1.bf16.msra.mxu0 %v2473
        %2491 = vmatprep.subr.bf16.mxu0 0
        %2492 = vmatpush2.bf16.msra.mxu0 0
        %2493 = vmatprep.subr.bf16.mxu0 0
        %2494 = vmatpush2.bf16.msra.mxu0 0
        %2495 = vmatprep.subr.bf16.mxu0 0
        %2496 = vmatpush2.bf16.msra.mxu0 0
        %2497 = vmatprep.subr.bf16.mxu0 0
        %2498 = vmatpush2.bf16.msra.mxu0 0
        %2499 = vmatprep.subr.bf16.mxu0 0
        %2500 = vmatpush2.bf16.msra.mxu0 0
        %2501 = vmatprep.subr.bf16.mxu0 0
        %2502 = vmatpush2.bf16.msra.mxu0 0
        %2503 = vmatprep.subr.bf16.mxu0 0
        %2504 = vmatpush2.bf16.msra.mxu0 0
        %2505 = vmatprep.subr.bf16.mxu0 0
        %2506 = vmatpush2.bf16.msra.mxu0 0
        %2507 = vmatprep.mubr.bf16.mxu0 0
        %2508 = vmatmul.mubr.bf16.gmra.mxu0 %v2470
        %v2509 = vpop.f32.mrf.mxu0
        %v2510 = vadd.f32 0.0, %v2509
        %v2511 = vpop.f32.mrf.mxu0
        %v2512 = vpop.f32.mrf.mxu0
        %v2513 = vpop.f32.mrf.mxu0
        %2514 = vdwg.mxu0
        %v2515 = vpack.c.bf16 %v2510, %v2510
        %s2516 = scalar_lea.vmem [#allocation4], 48
        %v2517 = vld [vmem:[%s2516] sm:$0xf]
        %v2518 = vld [vmem:[%s2516 + $0x4] sm:$0xf]
        %v2519 = vld [vmem:[%s2516 + $0x8] sm:$0xf]
        %v2520 = vld [vmem:[%s2516 + $0xc] sm:$0xf]
        %v2525 = vunpack.c.l.b16 %v2517
        %v2526 = vunpack.c.l.b16 %v2518
        %v2527 = vunpack.c.l.b16 %v2519
        %v2528 = vunpack.c.l.b16 %v2520
        %v2529 = vpack.c.b16 %v2526, %v2525
        %v2530 = vpack.c.b16 %v2528, %v2527
        %v2534 = vsel %vm886, %v2515, 0
        %2536 = vmatprep.subr.bf16.mxu0 0
        %2537 = vmatpush1.bf16.msra.mxu0 0
        %2538 = vmatprep.subr.bf16.mxu0 0
        %2539 = vmatpush1.bf16.msra.mxu0 0
        %2540 = vmatprep.subr.bf16.mxu0 0
        %2541 = vmatpush1.bf16.msra.mxu0 0
        %2542 = vmatprep.subr.bf16.mxu0 0
        %2543 = vmatpush1.bf16.msra.mxu0 0
        %2544 = vmatprep.subr.bf16.mxu0 0
        %2545 = vmatpush1.bf16.msra.mxu0 0
        %2546 = vmatprep.subr.bf16.mxu0 0
        %2547 = vmatpush1.bf16.msra.mxu0 0
        %2548 = vmatprep.subr.bf16.mxu0 0
        %2549 = vmatpush1.bf16.msra.mxu0 %v2530
        %2550 = vmatprep.subr.bf16.mxu0 0
        %2551 = vmatpush1.bf16.msra.mxu0 %v2529
        %2552 = vmatprep.subr.bf16.mxu0 0
        %2553 = vmatpush2.bf16.msra.mxu0 0
        %2554 = vmatprep.subr.bf16.mxu0 0
        %2555 = vmatpush2.bf16.msra.mxu0 0
        %2556 = vmatprep.subr.bf16.mxu0 0
        %2557 = vmatpush2.bf16.msra.mxu0 0
        %2558 = vmatprep.subr.bf16.mxu0 0
        %2559 = vmatpush2.bf16.msra.mxu0 0
        %2560 = vmatprep.subr.bf16.mxu0 0
        %2561 = vmatpush2.bf16.msra.mxu0 0
        %2562 = vmatprep.subr.bf16.mxu0 0
        %2563 = vmatpush2.bf16.msra.mxu0 0
        %2564 = vmatprep.subr.bf16.mxu0 0
        %2565 = vmatpush2.bf16.msra.mxu0 0
        %2566 = vmatprep.subr.bf16.mxu0 0
        %2567 = vmatpush2.bf16.msra.mxu0 0
        %2568 = vmatprep.mubr.bf16.mxu0 0
        %2569 = vmatmul.mubr.bf16.gmra.mxu0 %v2534
        %v2570 = vpop.f32.mrf.mxu0
        %v2571 = vadd.f32 0.0, %v2570
        %v2572 = vpop.f32.mrf.mxu0
        %v2573 = vpop.f32.mrf.mxu0
        %v2574 = vpop.f32.mrf.mxu0
        %2575 = vdwg.mxu0
        %v2576 = vadd.f32 %v2068, %v2571
        %v2577 = vld [vmem:[%s5] sm:$0x1]
        %v2579 = vlaneseq
        %v2580 = vshrl.u32 %v2579, 7
        %v2581 = vsub.s32 0, %v2580
        %v2582 = vrot.slane %v2577, %v2581
        %v2584 = vadd.f32 %v2576, %v2582
        %v2585 = vunpack.c.l.bf16 %v537
        %v2586 = vadd.f32 %v2584, %v2585
        %v2587 = vld [vmem:[%s6] sm:$0x1]
        %v2588 = vld [vmem:[%s7] sm:$0x1]
        %2589 = vadd.xlane.f32.xlu0 %v2586
        %v2590 = vpop.xlane.xlu0 %2589
        %v2591 = vrcp.pop 128.0
        %v2592 = vmul.f32 %v2590, %v2591
        %v2593 = vsub.f32 %v2586, %v2592
        %v2594 = vmul.f32 %v2593, %v2593
        %2595 = vadd.xlane.f32.xlu0 %v2594
        %v2596 = vpop.xlane.xlu0 %2595
        %v2597 = vmul.f32 %v2596, %v2591
        %v2598 = vadd.f32 %v2597, 1e-05
        %v2599 = vrsqrt.pop %v2598
        %v2600 = vmul.f32 %v2593, %v2599
        %v2602 = vlaneseq
        %v2603 = vshrl.u32 %v2602, 7
        %v2604 = vsub.s32 0, %v2603
        %v2605 = vrot.slane %v2587, %v2604
        %v2607 = vmul.f32 %v2600, %v2605
        %v2609 = vlaneseq
        %v2610 = vshrl.u32 %v2609, 7
        %v2611 = vsub.s32 0, %v2610
        %v2612 = vrot.slane %v2588, %v2611
        %v2614 = vadd.f32 %v2607, %v2612
        %v2615 = vpack.c.bf16 %v2614, %v2614
        %v2616 = vld [vmem:[#allocation6] sm:$0xff]
        %v2617 = vld [vmem:[#allocation6 + $0x8] sm:$0xff]
        %v2618 = vld [vmem:[#allocation6 + $0x10] sm:$0xff]
        %v2619 = vld [vmem:[#allocation6 + $0x18] sm:$0xff]
        %v2620 = vld [vmem:[#allocation6 + $0x20] sm:$0xff]
        %v2621 = vld [vmem:[#allocation6 + $0x28] sm:$0xff]
        %v2622 = vld [vmem:[#allocation6 + $0x30] sm:$0xff]
        %v2623 = vld [vmem:[#allocation6 + $0x38] sm:$0xff]
        %v2624 = vld [vmem:[#allocation6 + $0x40] sm:$0xff]
        %v2625 = vld [vmem:[#allocation6 + $0x48] sm:$0xff]
        %v2626 = vld [vmem:[#allocation6 + $0x50] sm:$0xff]
        %v2627 = vld [vmem:[#allocation6 + $0x58] sm:$0xff]
        %v2628 = vld [vmem:[#allocation6 + $0x60] sm:$0xff]
        %v2629 = vld [vmem:[#allocation6 + $0x68] sm:$0xff]
        %v2630 = vld [vmem:[#allocation6 + $0x70] sm:$0xff]
        %v2631 = vld [vmem:[#allocation6 + $0x78] sm:$0xff]
        %v2632 = vld [vmem:[%s9] sm:$0x3]
        %v2634 = vlaneseq
        %v2635 = vshrl.u32 %v2634, 7
        %v2636 = vsub.s32 0, %v2635
        %v2637 = vrot.slane %v2632, %v2636
        %v2638 = vlaneseq
        %v2639 = vshrl.u32 %v2638, 7
        %v2640 = vsub.s32 1, %v2639
        %v2641 = vrot.slane %v2632, %v2640
        %v2660 = vunpack.c.l.b16 %v2616
        %v2661 = vunpack.c.h.b16 %v2616
        %v2662 = vunpack.c.l.b16 %v2617
        %v2663 = vunpack.c.h.b16 %v2617
        %v2664 = vunpack.c.l.b16 %v2618
        %v2665 = vunpack.c.h.b16 %v2618
        %v2666 = vunpack.c.l.b16 %v2619
        %v2667 = vunpack.c.h.b16 %v2619
        %v2668 = vunpack.c.l.b16 %v2620
        %v2669 = vunpack.c.h.b16 %v2620
        %v2670 = vunpack.c.l.b16 %v2621
        %v2671 = vunpack.c.h.b16 %v2621
        %v2672 = vunpack.c.l.b16 %v2622
        %v2673 = vunpack.c.h.b16 %v2622
        %v2674 = vunpack.c.l.b16 %v2623
        %v2675 = vunpack.c.h.b16 %v2623
        %v2676 = vunpack.c.l.b16 %v2624
        %v2677 = vunpack.c.h.b16 %v2624
        %v2678 = vunpack.c.l.b16 %v2625
        %v2679 = vunpack.c.h.b16 %v2625
        %v2680 = vunpack.c.l.b16 %v2626
        %v2681 = vunpack.c.h.b16 %v2626
        %v2682 = vunpack.c.l.b16 %v2627
        %v2683 = vunpack.c.h.b16 %v2627
        %v2684 = vunpack.c.l.b16 %v2628
        %v2685 = vunpack.c.h.b16 %v2628
        %v2686 = vunpack.c.l.b16 %v2629
        %v2687 = vunpack.c.h.b16 %v2629
        %v2688 = vunpack.c.l.b16 %v2630
        %v2689 = vunpack.c.h.b16 %v2630
        %v2690 = vunpack.c.l.b16 %v2631
        %v2691 = vunpack.c.h.b16 %v2631
        %v2692 = vpack.c.b16 %v2662, %v2660
        %v2693 = vpack.c.b16 %v2663, %v2661
        %v2694 = vpack.c.b16 %v2666, %v2664
        %v2695 = vpack.c.b16 %v2667, %v2665
        %v2696 = vpack.c.b16 %v2670, %v2668
        %v2697 = vpack.c.b16 %v2671, %v2669
        %v2698 = vpack.c.b16 %v2674, %v2672
        %v2699 = vpack.c.b16 %v2675, %v2673
        %v2700 = vpack.c.b16 %v2678, %v2676
        %v2701 = vpack.c.b16 %v2679, %v2677
        %v2702 = vpack.c.b16 %v2682, %v2680
        %v2703 = vpack.c.b16 %v2683, %v2681
        %v2704 = vpack.c.b16 %v2686, %v2684
        %v2705 = vpack.c.b16 %v2687, %v2685
        %v2706 = vpack.c.b16 %v2690, %v2688
        %v2707 = vpack.c.b16 %v2691, %v2689
        %2724 = vmatprep.subr.bf16.mxu0 %v2707
        %2725 = vmatpush1.bf16.msra.mxu0 %v2706
        %2726 = vmatprep.subr.bf16.mxu0 %v2705
        %2727 = vmatpush1.bf16.msra.mxu0 %v2704
        %2728 = vmatprep.subr.bf16.mxu0 %v2703
        %2729 = vmatpush1.bf16.msra.mxu0 %v2702
        %2730 = vmatprep.subr.bf16.mxu0 %v2701
        %2731 = vmatpush1.bf16.msra.mxu0 %v2700
        %2732 = vmatprep.subr.bf16.mxu0 %v2699
        %2733 = vmatpush1.bf16.msra.mxu0 %v2698
        %2734 = vmatprep.subr.bf16.mxu0 %v2697
        %2735 = vmatpush1.bf16.msra.mxu0 %v2696
        %2736 = vmatprep.subr.bf16.mxu0 %v2695
        %2737 = vmatpush1.bf16.msra.mxu0 %v2694
        %2738 = vmatprep.subr.bf16.mxu0 %v2693
        %2739 = vmatpush1.bf16.msra.mxu0 %v2692
        %2740 = vmatprep.subr.bf16.mxu0 0
        %2741 = vmatpush2.bf16.msra.mxu0 0
        %2742 = vmatprep.subr.bf16.mxu0 0
        %2743 = vmatpush2.bf16.msra.mxu0 0
        %2744 = vmatprep.subr.bf16.mxu0 0
        %2745 = vmatpush2.bf16.msra.mxu0 0
        %2746 = vmatprep.subr.bf16.mxu0 0
        %2747 = vmatpush2.bf16.msra.mxu0 0
        %2748 = vmatprep.subr.bf16.mxu0 0
        %2749 = vmatpush2.bf16.msra.mxu0 0
        %2750 = vmatprep.subr.bf16.mxu0 0
        %2751 = vmatpush2.bf16.msra.mxu0 0
        %2752 = vmatprep.subr.bf16.mxu0 0
        %2753 = vmatpush2.bf16.msra.mxu0 0
        %2754 = vmatprep.subr.bf16.mxu0 0
        %2755 = vmatpush2.bf16.msra.mxu0 0
        %2756 = vmatprep.mubr.bf16.mxu0 0
        %2757 = vmatmul.mubr.bf16.gmra.mxu0 %v2615
        %v2758 = vpop.f32.mrf.mxu0
        %v2759 = vadd.f32 %v2637, %v2758
        %v2760 = vpop.f32.mrf.mxu0
        %v2761 = vadd.f32 %v2641, %v2760
        %v2762 = vpop.f32.mrf.mxu0
        %v2763 = vpop.f32.mrf.mxu0
        %2764 = vdwg.mxu0
        %v2765 = vmul.f32 %v2759, %v2759
        %v2766 = vmul.f32 %v2761, %v2761
        %v2767 = vmul.f32 %v2759, %v2765
        %v2768 = vmul.f32 %v2761, %v2766
        %v2769 = vmul.f32 %v2767, 0.044715
        %v2770 = vmul.f32 %v2768, 0.044715
        %v2771 = vadd.f32 %v2759, %v2769
        %v2772 = vadd.f32 %v2761, %v2770
        %v2773 = vmul.f32 %v2771, 0.7978846
        %v2774 = vmul.f32 %v2772, 0.7978846
        %v2775 = vtanh.pop %v2773
        %v2776 = vtanh.pop %v2774
        %v2777 = vadd.f32 %v2775, 1.0
        %v2778 = vadd.f32 %v2776, 1.0
        %v2779 = vmul.f32 %v2777, 0.5
        %v2780 = vmul.f32 %v2778, 0.5
        %v2781 = vmul.f32 %v2759, %v2779
        %v2782 = vmul.f32 %v2761, %v2780
        %v2783 = vpack.c.bf16 %v2781, %v2781
        %v2784 = vpack.c.bf16 %v2782, %v2782
        %v2785 = vld [vmem:[#allocation7] sm:$0xf]
        %v2786 = vld [vmem:[#allocation7 + $0x4] sm:$0xf]
        %v2787 = vld [vmem:[#allocation7 + $0x8] sm:$0xf]
        %v2788 = vld [vmem:[#allocation7 + $0xc] sm:$0xf]
        %v2789 = vld [vmem:[#allocation7 + $0x10] sm:$0xf]
        %v2790 = vld [vmem:[#allocation7 + $0x14] sm:$0xf]
        %v2791 = vld [vmem:[#allocation7 + $0x18] sm:$0xf]
        %v2792 = vld [vmem:[#allocation7 + $0x1c] sm:$0xf]
        %v2793 = vld [vmem:[#allocation7 + $0x20] sm:$0xf]
        %v2794 = vld [vmem:[#allocation7 + $0x24] sm:$0xf]
        %v2795 = vld [vmem:[#allocation7 + $0x28] sm:$0xf]
        %v2796 = vld [vmem:[#allocation7 + $0x2c] sm:$0xf]
        %v2797 = vld [vmem:[#allocation7 + $0x30] sm:$0xf]
        %v2798 = vld [vmem:[#allocation7 + $0x34] sm:$0xf]
        %v2799 = vld [vmem:[#allocation7 + $0x38] sm:$0xf]
        %v2800 = vld [vmem:[#allocation7 + $0x3c] sm:$0xf]
        %v2801 = vld [vmem:[#allocation7 + $0x40] sm:$0xf]
        %v2802 = vld [vmem:[#allocation7 + $0x44] sm:$0xf]
        %v2803 = vld [vmem:[#allocation7 + $0x48] sm:$0xf]
        %v2804 = vld [vmem:[#allocation7 + $0x4c] sm:$0xf]
        %v2805 = vld [vmem:[#allocation7 + $0x50] sm:$0xf]
        %v2806 = vld [vmem:[#allocation7 + $0x54] sm:$0xf]
        %v2807 = vld [vmem:[#allocation7 + $0x58] sm:$0xf]
        %v2808 = vld [vmem:[#allocation7 + $0x5c] sm:$0xf]
        %v2809 = vld [vmem:[#allocation7 + $0x60] sm:$0xf]
        %v2810 = vld [vmem:[#allocation7 + $0x64] sm:$0xf]
        %v2811 = vld [vmem:[#allocation7 + $0x68] sm:$0xf]
        %v2812 = vld [vmem:[#allocation7 + $0x6c] sm:$0xf]
        %v2813 = vld [vmem:[#allocation7 + $0x70] sm:$0xf]
        %v2814 = vld [vmem:[#allocation7 + $0x74] sm:$0xf]
        %v2815 = vld [vmem:[#allocation7 + $0x78] sm:$0xf]
        %v2816 = vld [vmem:[#allocation7 + $0x7c] sm:$0xf]
        %v2817 = vld [vmem:[%s11] sm:$0x1]
        %v2819 = vlaneseq
        %v2820 = vshrl.u32 %v2819, 7
        %v2821 = vsub.s32 0, %v2820
        %v2822 = vrot.slane %v2817, %v2821
        %v2856 = vunpack.c.l.b16 %v2785
        %v2857 = vunpack.c.l.b16 %v2786
        %v2858 = vunpack.c.l.b16 %v2787
        %v2859 = vunpack.c.l.b16 %v2788
        %v2860 = vunpack.c.l.b16 %v2789
        %v2861 = vunpack.c.l.b16 %v2790
        %v2862 = vunpack.c.l.b16 %v2791
        %v2863 = vunpack.c.l.b16 %v2792
        %v2864 = vunpack.c.l.b16 %v2793
        %v2865 = vunpack.c.l.b16 %v2794
        %v2866 = vunpack.c.l.b16 %v2795
        %v2867 = vunpack.c.l.b16 %v2796
        %v2868 = vunpack.c.l.b16 %v2797
        %v2869 = vunpack.c.l.b16 %v2798
        %v2870 = vunpack.c.l.b16 %v2799
        %v2871 = vunpack.c.l.b16 %v2800
        %v2872 = vunpack.c.l.b16 %v2801
        %v2873 = vunpack.c.l.b16 %v2802
        %v2874 = vunpack.c.l.b16 %v2803
        %v2875 = vunpack.c.l.b16 %v2804
        %v2876 = vunpack.c.l.b16 %v2805
        %v2877 = vunpack.c.l.b16 %v2806
        %v2878 = vunpack.c.l.b16 %v2807
        %v2879 = vunpack.c.l.b16 %v2808
        %v2880 = vunpack.c.l.b16 %v2809
        %v2881 = vunpack.c.l.b16 %v2810
        %v2882 = vunpack.c.l.b16 %v2811
        %v2883 = vunpack.c.l.b16 %v2812
        %v2884 = vunpack.c.l.b16 %v2813
        %v2885 = vunpack.c.l.b16 %v2814
        %v2886 = vunpack.c.l.b16 %v2815
        %v2887 = vunpack.c.l.b16 %v2816
        %v2888 = vpack.c.b16 %v2857, %v2856
        %v2889 = vpack.c.b16 %v2859, %v2858
        %v2890 = vpack.c.b16 %v2861, %v2860
        %v2891 = vpack.c.b16 %v2863, %v2862
        %v2892 = vpack.c.b16 %v2865, %v2864
        %v2893 = vpack.c.b16 %v2867, %v2866
        %v2894 = vpack.c.b16 %v2869, %v2868
        %v2895 = vpack.c.b16 %v2871, %v2870
        %v2896 = vpack.c.b16 %v2873, %v2872
        %v2897 = vpack.c.b16 %v2875, %v2874
        %v2898 = vpack.c.b16 %v2877, %v2876
        %v2899 = vpack.c.b16 %v2879, %v2878
        %v2900 = vpack.c.b16 %v2881, %v2880
        %v2901 = vpack.c.b16 %v2883, %v2882
        %v2902 = vpack.c.b16 %v2885, %v2884
        %v2903 = vpack.c.b16 %v2887, %v2886
        %2920 = vmatprep.subr.bf16.mxu0 0
        %2921 = vmatpush1.bf16.msra.mxu0 %v2895
        %2922 = vmatprep.subr.bf16.mxu0 0
        %2923 = vmatpush1.bf16.msra.mxu0 %v2894
        %2924 = vmatprep.subr.bf16.mxu0 0
        %2925 = vmatpush1.bf16.msra.mxu0 %v2893
        %2926 = vmatprep.subr.bf16.mxu0 0
        %2927 = vmatpush1.bf16.msra.mxu0 %v2892
        %2928 = vmatprep.subr.bf16.mxu0 0
        %2929 = vmatpush1.bf16.msra.mxu0 %v2891
        %2930 = vmatprep.subr.bf16.mxu0 0
        %2931 = vmatpush1.bf16.msra.mxu0 %v2890
        %2932 = vmatprep.subr.bf16.mxu0 0
        %2933 = vmatpush1.bf16.msra.mxu0 %v2889
        %2934 = vmatprep.subr.bf16.mxu0 0
        %2935 = vmatpush1.bf16.msra.mxu0 %v2888
        %2936 = vmatprep.subr.bf16.mxu0 0
        %2937 = vmatpush2.bf16.msra.mxu0 %v2903
        %2938 = vmatprep.subr.bf16.mxu0 0
        %2939 = vmatpush2.bf16.msra.mxu0 %v2902
        %2940 = vmatprep.subr.bf16.mxu0 0
        %2941 = vmatpush2.bf16.msra.mxu0 %v2901
        %2942 = vmatprep.subr.bf16.mxu0 0
        %2943 = vmatpush2.bf16.msra.mxu0 %v2900
        %2944 = vmatprep.subr.bf16.mxu0 0
        %2945 = vmatpush2.bf16.msra.mxu0 %v2899
        %2946 = vmatprep.subr.bf16.mxu0 0
        %2947 = vmatpush2.bf16.msra.mxu0 %v2898
        %2948 = vmatprep.subr.bf16.mxu0 0
        %2949 = vmatpush2.bf16.msra.mxu0 %v2897
        %2950 = vmatprep.subr.bf16.mxu0 0
        %2951 = vmatpush2.bf16.msra.mxu0 %v2896
        %2952 = vmatprep.mubr.bf16.mxu0 %v2784
        %2953 = vmatmul.mubr.bf16.gmra.mxu0 %v2783
        %v2954 = vpop.f32.mrf.mxu0
        %v2955 = vadd.f32 %v2822, %v2954
        %v2956 = vpop.f32.mrf.mxu0
        %v2957 = vpop.f32.mrf.mxu0
        %v2958 = vpop.f32.mrf.mxu0
        %2959 = vdwg.mxu0
        %v2960 = vadd.f32 %v2955, %v2614
        %v2961 = vld [vmem:[%s12] sm:$0x1]
        %v2962 = vld [vmem:[%s13] sm:$0x1]
        %2963 = vadd.xlane.f32.xlu0 %v2960
        %v2964 = vpop.xlane.xlu0 %2963
        %v2965 = vmul.f32 %v2964, %v2591
        %v2966 = vsub.f32 %v2960, %v2965
        %v2967 = vmul.f32 %v2966, %v2966
        %2968 = vadd.xlane.f32.xlu0 %v2967
        %v2969 = vpop.xlane.xlu0 %2968
        %v2970 = vmul.f32 %v2969, %v2591
        %v2971 = vadd.f32 %v2970, 1e-05
        %v2972 = vrsqrt.pop %v2971
        %v2973 = vmul.f32 %v2966, %v2972
        %v2975 = vlaneseq
        %v2976 = vshrl.u32 %v2975, 7
        %v2977 = vsub.s32 0, %v2976
        %v2978 = vrot.slane %v2961, %v2977
        %v2980 = vmul.f32 %v2973, %v2978
        %v2982 = vlaneseq
        %v2983 = vshrl.u32 %v2982, 7
        %v2984 = vsub.s32 0, %v2983
        %v2985 = vrot.slane %v2962, %v2984
        %v2987 = vadd.f32 %v2980, %v2985
        %v2988 = vpack.c.bf16 %v2987, %v2987
        %2989 = vst [vmem:[%s535] sm:$0xf] %v2988
        %p2990 = scmp.lt.s32.totalorder %s28, 1
        %s2991 = scalar_select %p2990, %s28, 1
        %s2992 = smul.addr %s2991, 4
        %s2993 = scalar_lea.vmem %s14, %s2992
        // Predicated region
        $region93: #{summary_brief_forward.7} parent=75 // pred_check
          %p2994 = pneg %p350
        $region94: #{summary_brief_forward.7} parent=75 // pred_check_branch
          %2996 = sbr.rel (%p2994) target = $region96
        $region95: #{summary_brief_forward.7} parent=75 // pred_region
          _
        $region96: #{summary_brief_forward.7} parent=75 // pred_fallthru
          _
      $region76: #{summary_brief_forward.7} parent=5 // pred_fallthru
        _
      %p2997 = scmp.le.s32.totalorder 2, %s23
      // Predicated region
      $region97: #{summary_brief_forward.7} parent=5 // pred_check
        %p2998 = pneg %p2997
      $region98: #{summary_brief_forward.7} parent=5 // pred_check_branch
        %3000 = sbr.rel (%p2998) target = $region100
      $region99: #{summary_brief_forward.7} parent=5 // pred_region
        %s3001 = ssub.s32 %s23, 2
        // Predicated region
        $region101: #{summary_brief_forward.7} parent=99 // pred_check
          %p3002 = pneg %p356
        $region102: #{summary_brief_forward.7} parent=99 // pred_check_branch
          %3004 = sbr.rel (%p3002) target = $region104
        $region103: #{summary_brief_forward.7} parent=99 // pred_region
          %p3005 = scmp.lt.s32.totalorder %s29, 1
          %s3006 = scalar_select %p3005, %s29, 1
          %s3007 = smul.addr %s3006, 4
          %s3008 = scalar_lea.vmem %s14, %s3007
        $region104: #{summary_brief_forward.7} parent=99 // pred_fallthru
          _
      $region100: #{summary_brief_forward.7} parent=5 // pred_fallthru
        _
    $region6: #{summary_brief_forward.7} parent=1 // loop_footer
      %s27 = sadd.s32 1, %s23
    $region7: #{summary_brief_forward.7} parent=1 // loop_footer_branch
      %22 = sbr.rel target = $region3
    $region8: #{summary_brief_forward.7} parent=1 // loop_exit
      _
    %3009 = vsyncpa [#allocation3], 1
    %s3010 = scalar_lea.sflag [#allocation3], 1
    %3011 = vsyncpa %s3010, 1
    %3012 = vsyncpa [#allocation5], 1
    %3013 = vsyncpa [#allocation8], 1

// kernel: summary_brief_forward.8
$region0: #{summary_brief_forward.8}
  #allocation0 [shape = 'u32[]', space=smem, size = 0x4, offset = 0x4, fixed_abs, tag = 'smem constant byte address 0x4 - core index']
  #allocation1 [shape = 'u32[144,128]{1,0:T(1,128)}', space=vmem, size = 0x12000, scoped, tag = 'internal scratch']
  %s0 = inlined_call_operand.vmem [shape: bf16[2,8,128], index: 0, kind: input, shape index: {}]
  %s1 = inlined_call_operand.vmem [shape: bf16[2,8,128], index: 1, kind: input, shape index: {}]
  %s2 = inlined_call_operand.vmem [shape: f32[2,1,8], index: 2, kind: input, shape index: {}]
  %s3 = inlined_call_operand.vmem [shape: bf16[12,128,32], index: 3, kind: input, shape index: {}]
  %s4 = inlined_call_operand.vmem [shape: f32[12,1,32], index: 4, kind: input, shape index: {}]
  %s5 = inlined_call_operand.hbm [shape: bf16[4,32,128], index: 5, kind: input, shape index: {}]
  %s6 = inlined_call_operand.vmem [shape: f32[1,128], index: 6, kind: input, shape index: {}, may-alias: {6,8,14,16,20,22}]
  %s7 = inlined_call_operand.vmem [shape: f32[1,128], index: 7, kind: input, shape index: {}, may-alias: {7,15,21}]
  %s8 = inlined_call_operand.vmem [shape: f32[1,128], index: 8, kind: input, shape index: {}, may-alias: {6,8,14,16,20,22}]
  %s9 = inlined_call_operand.hbm [shape: bf16[4,128,32], index: 9, kind: input, shape index: {}]
  %s10 = inlined_call_operand.vmem [shape: f32[4,1,32], index: 10, kind: input, shape index: {}]
  %s11 = inlined_call_operand.vmem [shape: bf16[8,128,32], index: 11, kind: input, shape index: {}]
  %s12 = inlined_call_operand.vmem [shape: f32[8,1,32], index: 12, kind: input, shape index: {}]
  %s13 = inlined_call_operand.hbm [shape: bf16[4,32,128], index: 13, kind: input, shape index: {}]
  %s14 = inlined_call_operand.vmem [shape: f32[1,128], index: 14, kind: input, shape index: {}, may-alias: {6,8,14,16,20,22}]
  %s15 = inlined_call_operand.vmem [shape: f32[1,128], index: 15, kind: input, shape index: {}, may-alias: {7,15,21}]
  %s16 = inlined_call_operand.vmem [shape: f32[1,128], index: 16, kind: input, shape index: {}, may-alias: {6,8,14,16,20,22}]
  %s17 = inlined_call_operand.hbm [shape: bf16[128,256], index: 17, kind: input, shape index: {}]
  %s18 = inlined_call_operand.vmem [shape: f32[1,256], index: 18, kind: input, shape index: {}]
  %s19 = inlined_call_operand.vmem [shape: bf16[256,128], index: 19, kind: input, shape index: {}]
  %s20 = inlined_call_operand.vmem [shape: f32[1,128], index: 20, kind: input, shape index: {}, may-alias: {6,8,14,16,20,22}]
  %s21 = inlined_call_operand.vmem [shape: f32[1,128], index: 21, kind: input, shape index: {}, may-alias: {7,15,21}]
  %s22 = inlined_call_operand.vmem [shape: f32[1,128], index: 22, kind: input, shape index: {}, may-alias: {6,8,14,16,20,22}]
  %s23 = inlined_call_operand.vmem [shape: bf16[2,8,128], index: 23, kind: output, shape index: {}]
  %s24 = sld [smem:[#allocation0]]
  $region141: #{summary_brief_forward.8} parent=0
    _
  %s26 = ssub.s32 1, %s24
  %s27 = scalar_select 0, %s26, %s24
  $region1: #{summary_brief_forward.8} parent=0
    #allocation2 [shape = 'u8[32768]{0}', space=vmem, size = 0x8000, scoped, tag = 'input window, operand 5, single buffered']
    #allocation3 [shape = 's32[2]{0}', space=sflag, size = 0x8, scoped, tag = 'scoped memory for summary_brief_forward.8']
    #allocation4 [shape = 'u8[131072]{0}', space=vmem, size = 0x20000, scoped, tag = 'input window, operand 9, single buffered']
    #allocation5 [shape = 's32[1]{0}', space=sflag, size = 0x4, scoped, tag = 'scoped memory for summary_brief_forward.8']
    #allocation6 [shape = 'u8[32768]{0}', space=vmem, size = 0x8000, scoped, tag = 'input window, operand 13, single buffered']
    #allocation7 [shape = 'u8[65536]{0}', space=vmem, size = 0x10000, scoped, tag = 'input window, operand 17, single buffered']
    #allocation8 [shape = 's32[1]{0}', space=sflag, size = 0x4, scoped, tag = 'scoped memory for summary_brief_forward.8']
    %28 = vsyncpa [#allocation3], 0
    %29 = vsyncpa [#allocation5], 0
    %30 = vsyncpa [#allocation8], 0
    loop: start=0, step=1, limit=4
    $region2: #{summary_brief_forward.8} parent=1 // loop_pre_header
      _
    $region3: #{summary_brief_forward.8} parent=1 // loop_header
      %s32 = sphi 0, %s36
      %p33 = scmp.ge.s32.totalorder %s32, 4
      %s42 = sphi 0, %s44
      %s45 = sphi 0, %s42
      %s46 = sphi 0, %s45
      %s62 = sphi 0, %s46
      %s68 = sphi 0, %s70
      %s71 = sphi 0, %s68
      %s72 = sphi 0, %s71
      %s88 = sphi 0, %s72
      %s94 = sphi 0, %s96
      %s97 = sphi 0, %s94
      %s98 = sphi 0, %s97
      %s114 = sphi 0, %s98
      %s118 = sphi 0, %s118
      %s120 = sphi 0, %s118
      %s121 = sphi 0, %s120
      %s135 = sphi 0, %s121
      %s139 = sphi 0, %s139
      %s141 = sphi 0, %s139
      %s142 = sphi 0, %s141
      %s156 = sphi 0, %s142
      %s160 = sphi 0, %s160
      %s162 = sphi 0, %s160
      %s163 = sphi 0, %s162
      %s177 = sphi 0, %s163
      %s181 = sphi 0, %s181
      %s183 = sphi 0, %s181
      %s184 = sphi 0, %s183
      %s198 = sphi 0, %s184
      %s202 = sphi 0, %s202
      %s204 = sphi 0, %s202
      %s205 = sphi 0, %s204
      %s219 = sphi 0, %s205
      %s223 = sphi 0, %s223
      %s225 = sphi 0, %s223
      %s226 = sphi 0, %s225
      %s240 = sphi 0, %s226
      %s244 = sphi 0, %s244
      %s246 = sphi 0, %s244
      %s247 = sphi 0, %s246
      %s261 = sphi 0, %s247
      %s265 = sphi 0, %s265
      %s267 = sphi 0, %s265
      %s268 = sphi 0, %s267
      %s282 = sphi 0, %s268
      %s286 = sphi 0, %s286
      %s288 = sphi 0, %s286
      %s289 = sphi 0, %s288
      %s303 = sphi 0, %s289
      %s307 = sphi 0, %s307
      %s309 = sphi 0, %s307
      %s310 = sphi 0, %s309
      %s324 = sphi 0, %s310
      %s328 = sphi 0, %s328
      %s330 = sphi 0, %s328
      %s331 = sphi 0, %s330
      %s345 = sphi 0, %s331
      %s349 = sphi 0, %s349
      %s351 = sphi 0, %s349
      %s352 = sphi 0, %s351
      %s366 = sphi 0, %s352
      %s370 = sphi 0, %s370
      %s372 = sphi 0, %s370
      %s373 = sphi 0, %s372
      %s387 = sphi 0, %s373
      %s391 = sphi 0, %s391
      %s393 = sphi 0, %s391
      %s394 = sphi 0, %s393
      %s408 = sphi 0, %s394
      %s412 = sphi 0, %s412
      %s414 = sphi 0, %s412
      %s415 = sphi 0, %s414
      %s429 = sphi 0, %s415
      %s433 = sphi 0, %s433
      %s435 = sphi 0, %s433
      %s436 = sphi 0, %s435
      %s450 = sphi 0, %s436
      %s454 = sphi 0, %s454
      %s456 = sphi 0, %s454
      %s457 = sphi 0, %s456
      %s471 = sphi 0, %s457
      %s475 = sphi 0, %s475
      %s477 = sphi 0, %s475
      %s478 = sphi 0, %s477
      %s492 = sphi 0, %s478
      %s496 = sphi 0, %s496
      %s498 = sphi 0, %s496
      %s499 = sphi 0, %s498
      %s513 = sphi 0, %s499
      %s517 = sphi 0, %s517
      %s519 = sphi 0, %s517
      %s520 = sphi 0, %s519
      %s534 = sphi 0, %s520
      %s540 = sphi 0, %s542
      %s543 = sphi 0, %s540
      %s544 = sphi 0, %s543
      %s560 = sphi 0, %s544
    $region4: #{summary_brief_forward.8} parent=1 // loop_header_branch
      %35 = sbr.rel (%p33) target = $region8
    $region5: #{summary_brief_forward.8} parent=1 // loop_body
      %s37 = ssub.s32 %s32, 1
      %s38 = ssub.s32 %s32, 2
      %s39 = sadd.s32 %s32, 1
      %s40 = ssub.s32 %s32, %s39
      %p41 = scmp.eq.s32.totalorder %s40, 0
      %s43 = sadd.s32 %s42, 1
      %s44 = scalar_select %p41, %s42, %s43
      %p47 = pneg %p41
      %p48 = scmp.eq.s32.totalorder %s32, 1
      %p49 = por %p47, %p48
      %p50 = scmp.ne.s32.totalorder %s42, %s45
      %p51 = scmp.eq.s32.totalorder %s32, 0
      %p52 = por %p50, %p51
      %p53 = scmp.ne.s32.totalorder %s42, %s45
      %p54 = scmp.eq.s32.totalorder %s37, 1
      %p55 = por %p53, %p54
      %p56 = scmp.ne.s32.totalorder %s45, %s46
      %p57 = scmp.eq.s32.totalorder %s37, 0
      %p58 = por %p56, %p57
      %p59 = scmp.ne.s32.totalorder %s45, %s46
      %p60 = scmp.eq.s32.totalorder %s38, 1
      %p61 = por %p59, %p60
      %p63 = scmp.ne.s32.totalorder %s46, %s62
      %p64 = scmp.eq.s32.totalorder %s38, 0
      %p65 = por %p63, %p64
      %s66 = ssub.s32 %s32, %s39
      %p67 = scmp.eq.s32.totalorder %s66, 0
      %s69 = sadd.s32 %s68, 1
      %s70 = scalar_select %p67, %s68, %s69
      %p73 = pneg %p67
      %p74 = scmp.eq.s32.totalorder %s32, 1
      %p75 = por %p73, %p74
      %p76 = scmp.ne.s32.totalorder %s68, %s71
      %p77 = scmp.eq.s32.totalorder %s32, 0
      %p78 = por %p76, %p77
      %p79 = scmp.ne.s32.totalorder %s68, %s71
      %p80 = scmp.eq.s32.totalorder %s37, 1
      %p81 = por %p79, %p80
      %p82 = scmp.ne.s32.totalorder %s71, %s72
      %p83 = scmp.eq.s32.totalorder %s37, 0
      %p84 = por %p82, %p83
      %p85 = scmp.ne.s32.totalorder %s71, %s72
      %p86 = scmp.eq.s32.totalorder %s38, 1
      %p87 = por %p85, %p86
      %p89 = scmp.ne.s32.totalorder %s72, %s88
      %p90 = scmp.eq.s32.totalorder %s38, 0
      %p91 = por %p89, %p90
      %s92 = ssub.s32 %s32, %s39
      %p93 = scmp.eq.s32.totalorder %s92, 0
      %s95 = sadd.s32 %s94, 1
      %s96 = scalar_select %p93, %s94, %s95
      %p99 = pneg %p93
      %p100 = scmp.eq.s32.totalorder %s32, 1
      %p101 = por %p99, %p100
      %p102 = scmp.ne.s32.totalorder %s94, %s97
      %p103 = scmp.eq.s32.totalorder %s32, 0
      %p104 = por %p102, %p103
      %p105 = scmp.ne.s32.totalorder %s94, %s97
      %p106 = scmp.eq.s32.totalorder %s37, 1
      %p107 = por %p105, %p106
      %p108 = scmp.ne.s32.totalorder %s97, %s98
      %p109 = scmp.eq.s32.totalorder %s37, 0
      %p110 = por %p108, %p109
      %p111 = scmp.ne.s32.totalorder %s97, %s98
      %p112 = scmp.eq.s32.totalorder %s38, 1
      %p113 = por %p111, %p112
      %p115 = scmp.ne.s32.totalorder %s98, %s114
      %p116 = scmp.eq.s32.totalorder %s38, 0
      %p117 = por %p115, %p116
      %s119 = sadd.s32 %s118, 1
      %p122 = scmp.eq.s32.totalorder %s32, 1
      %p123 = scmp.ne.s32.totalorder %s118, %s120
      %p124 = scmp.eq.s32.totalorder %s32, 0
      %p125 = por %p123, %p124
      %p126 = scmp.ne.s32.totalorder %s118, %s120
      %p127 = scmp.eq.s32.totalorder %s37, 1
      %p128 = por %p126, %p127
      %p129 = scmp.ne.s32.totalorder %s120, %s121
      %p130 = scmp.eq.s32.totalorder %s37, 0
      %p131 = por %p129, %p130
      %p132 = scmp.ne.s32.totalorder %s120, %s121
      %p133 = scmp.eq.s32.totalorder %s38, 1
      %p134 = por %p132, %p133
      %p136 = scmp.ne.s32.totalorder %s121, %s135
      %p137 = scmp.eq.s32.totalorder %s38, 0
      %p138 = por %p136, %p137
      %s140 = sadd.s32 %s139, 1
      %p143 = scmp.eq.s32.totalorder %s32, 1
      %p144 = scmp.ne.s32.totalorder %s139, %s141
      %p145 = scmp.eq.s32.totalorder %s32, 0
      %p146 = por %p144, %p145
      %p147 = scmp.ne.s32.totalorder %s139, %s141
      %p148 = scmp.eq.s32.totalorder %s37, 1
      %p149 = por %p147, %p148
      %p150 = scmp.ne.s32.totalorder %s141, %s142
      %p151 = scmp.eq.s32.totalorder %s37, 0
      %p152 = por %p150, %p151
      %p153 = scmp.ne.s32.totalorder %s141, %s142
      %p154 = scmp.eq.s32.totalorder %s38, 1
      %p155 = por %p153, %p154
      %p157 = scmp.ne.s32.totalorder %s142, %s156
      %p158 = scmp.eq.s32.totalorder %s38, 0
      %p159 = por %p157, %p158
      %s161 = sadd.s32 %s160, 1
      %p164 = scmp.eq.s32.totalorder %s32, 1
      %p165 = scmp.ne.s32.totalorder %s160, %s162
      %p166 = scmp.eq.s32.totalorder %s32, 0
      %p167 = por %p165, %p166
      %p168 = scmp.ne.s32.totalorder %s160, %s162
      %p169 = scmp.eq.s32.totalorder %s37, 1
      %p170 = por %p168, %p169
      %p171 = scmp.ne.s32.totalorder %s162, %s163
      %p172 = scmp.eq.s32.totalorder %s37, 0
      %p173 = por %p171, %p172
      %p174 = scmp.ne.s32.totalorder %s162, %s163
      %p175 = scmp.eq.s32.totalorder %s38, 1
      %p176 = por %p174, %p175
      %p178 = scmp.ne.s32.totalorder %s163, %s177
      %p179 = scmp.eq.s32.totalorder %s38, 0
      %p180 = por %p178, %p179
      %s182 = sadd.s32 %s181, 1
      %p185 = scmp.eq.s32.totalorder %s32, 1
      %p186 = scmp.ne.s32.totalorder %s181, %s183
      %p187 = scmp.eq.s32.totalorder %s32, 0
      %p188 = por %p186, %p187
      %p189 = scmp.ne.s32.totalorder %s181, %s183
      %p190 = scmp.eq.s32.totalorder %s37, 1
      %p191 = por %p189, %p190
      %p192 = scmp.ne.s32.totalorder %s183, %s184
      %p193 = scmp.eq.s32.totalorder %s37, 0
      %p194 = por %p192, %p193
      %p195 = scmp.ne.s32.totalorder %s183, %s184
      %p196 = scmp.eq.s32.totalorder %s38, 1
      %p197 = por %p195, %p196
      %p199 = scmp.ne.s32.totalorder %s184, %s198
      %p200 = scmp.eq.s32.totalorder %s38, 0
      %p201 = por %p199, %p200
      %s203 = sadd.s32 %s202, 1
      %p206 = scmp.eq.s32.totalorder %s32, 1
      %p207 = scmp.ne.s32.totalorder %s202, %s204
      %p208 = scmp.eq.s32.totalorder %s32, 0
      %p209 = por %p207, %p208
      %p210 = scmp.ne.s32.totalorder %s202, %s204
      %p211 = scmp.eq.s32.totalorder %s37, 1
      %p212 = por %p210, %p211
      %p213 = scmp.ne.s32.totalorder %s204, %s205
      %p214 = scmp.eq.s32.totalorder %s37, 0
      %p215 = por %p213, %p214
      %p216 = scmp.ne.s32.totalorder %s204, %s205
      %p217 = scmp.eq.s32.totalorder %s38, 1
      %p218 = por %p216, %p217
      %p220 = scmp.ne.s32.totalorder %s205, %s219
      %p221 = scmp.eq.s32.totalorder %s38, 0
      %p222 = por %p220, %p221
      %s224 = sadd.s32 %s223, 1
      %p227 = scmp.eq.s32.totalorder %s32, 1
      %p228 = scmp.ne.s32.totalorder %s223, %s225
      %p229 = scmp.eq.s32.totalorder %s32, 0
      %p230 = por %p228, %p229
      %p231 = scmp.ne.s32.totalorder %s223, %s225
      %p232 = scmp.eq.s32.totalorder %s37, 1
      %p233 = por %p231, %p232
      %p234 = scmp.ne.s32.totalorder %s225, %s226
      %p235 = scmp.eq.s32.totalorder %s37, 0
      %p236 = por %p234, %p235
      %p237 = scmp.ne.s32.totalorder %s225, %s226
      %p238 = scmp.eq.s32.totalorder %s38, 1
      %p239 = por %p237, %p238
      %p241 = scmp.ne.s32.totalorder %s226, %s240
      %p242 = scmp.eq.s32.totalorder %s38, 0
      %p243 = por %p241, %p242
      %s245 = sadd.s32 %s244, 1
      %p248 = scmp.eq.s32.totalorder %s32, 1
      %p249 = scmp.ne.s32.totalorder %s244, %s246
      %p250 = scmp.eq.s32.totalorder %s32, 0
      %p251 = por %p249, %p250
      %p252 = scmp.ne.s32.totalorder %s244, %s246
      %p253 = scmp.eq.s32.totalorder %s37, 1
      %p254 = por %p252, %p253
      %p255 = scmp.ne.s32.totalorder %s246, %s247
      %p256 = scmp.eq.s32.totalorder %s37, 0
      %p257 = por %p255, %p256
      %p258 = scmp.ne.s32.totalorder %s246, %s247
      %p259 = scmp.eq.s32.totalorder %s38, 1
      %p260 = por %p258, %p259
      %p262 = scmp.ne.s32.totalorder %s247, %s261
      %p263 = scmp.eq.s32.totalorder %s38, 0
      %p264 = por %p262, %p263
      %s266 = sadd.s32 %s265, 1
      %p269 = scmp.eq.s32.totalorder %s32, 1
      %p270 = scmp.ne.s32.totalorder %s265, %s267
      %p271 = scmp.eq.s32.totalorder %s32, 0
      %p272 = por %p270, %p271
      %p273 = scmp.ne.s32.totalorder %s265, %s267
      %p274 = scmp.eq.s32.totalorder %s37, 1
      %p275 = por %p273, %p274
      %p276 = scmp.ne.s32.totalorder %s267, %s268
      %p277 = scmp.eq.s32.totalorder %s37, 0
      %p278 = por %p276, %p277
      %p279 = scmp.ne.s32.totalorder %s267, %s268
      %p280 = scmp.eq.s32.totalorder %s38, 1
      %p281 = por %p279, %p280
      %p283 = scmp.ne.s32.totalorder %s268, %s282
      %p284 = scmp.eq.s32.totalorder %s38, 0
      %p285 = por %p283, %p284
      %s287 = sadd.s32 %s286, 1
      %p290 = scmp.eq.s32.totalorder %s32, 1
      %p291 = scmp.ne.s32.totalorder %s286, %s288
      %p292 = scmp.eq.s32.totalorder %s32, 0
      %p293 = por %p291, %p292
      %p294 = scmp.ne.s32.totalorder %s286, %s288
      %p295 = scmp.eq.s32.totalorder %s37, 1
      %p296 = por %p294, %p295
      %p297 = scmp.ne.s32.totalorder %s288, %s289
      %p298 = scmp.eq.s32.totalorder %s37, 0
      %p299 = por %p297, %p298
      %p300 = scmp.ne.s32.totalorder %s288, %s289
      %p301 = scmp.eq.s32.totalorder %s38, 1
      %p302 = por %p300, %p301
      %p304 = scmp.ne.s32.totalorder %s289, %s303
      %p305 = scmp.eq.s32.totalorder %s38, 0
      %p306 = por %p304, %p305
      %s308 = sadd.s32 %s307, 1
      %p311 = scmp.eq.s32.totalorder %s32, 1
      %p312 = scmp.ne.s32.totalorder %s307, %s309
      %p313 = scmp.eq.s32.totalorder %s32, 0
      %p314 = por %p312, %p313
      %p315 = scmp.ne.s32.totalorder %s307, %s309
      %p316 = scmp.eq.s32.totalorder %s37, 1
      %p317 = por %p315, %p316
      %p318 = scmp.ne.s32.totalorder %s309, %s310
      %p319 = scmp.eq.s32.totalorder %s37, 0
      %p320 = por %p318, %p319
      %p321 = scmp.ne.s32.totalorder %s309, %s310
      %p322 = scmp.eq.s32.totalorder %s38, 1
      %p323 = por %p321, %p322
      %p325 = scmp.ne.s32.totalorder %s310, %s324
      %p326 = scmp.eq.s32.totalorder %s38, 0
      %p327 = por %p325, %p326
      %s329 = sadd.s32 %s328, 1
      %p332 = scmp.eq.s32.totalorder %s32, 1
      %p333 = scmp.ne.s32.totalorder %s328, %s330
      %p334 = scmp.eq.s32.totalorder %s32, 0
      %p335 = por %p333, %p334
      %p336 = scmp.ne.s32.totalorder %s328, %s330
      %p337 = scmp.eq.s32.totalorder %s37, 1
      %p338 = por %p336, %p337
      %p339 = scmp.ne.s32.totalorder %s330, %s331
      %p340 = scmp.eq.s32.totalorder %s37, 0
      %p341 = por %p339, %p340
      %p342 = scmp.ne.s32.totalorder %s330, %s331
      %p343 = scmp.eq.s32.totalorder %s38, 1
      %p344 = por %p342, %p343
      %p346 = scmp.ne.s32.totalorder %s331, %s345
      %p347 = scmp.eq.s32.totalorder %s38, 0
      %p348 = por %p346, %p347
      %s350 = sadd.s32 %s349, 1
      %p353 = scmp.eq.s32.totalorder %s32, 1
      %p354 = scmp.ne.s32.totalorder %s349, %s351
      %p355 = scmp.eq.s32.totalorder %s32, 0
      %p356 = por %p354, %p355
      %p357 = scmp.ne.s32.totalorder %s349, %s351
      %p358 = scmp.eq.s32.totalorder %s37, 1
      %p359 = por %p357, %p358
      %p360 = scmp.ne.s32.totalorder %s351, %s352
      %p361 = scmp.eq.s32.totalorder %s37, 0
      %p362 = por %p360, %p361
      %p363 = scmp.ne.s32.totalorder %s351, %s352
      %p364 = scmp.eq.s32.totalorder %s38, 1
      %p365 = por %p363, %p364
      %p367 = scmp.ne.s32.totalorder %s352, %s366
      %p368 = scmp.eq.s32.totalorder %s38, 0
      %p369 = por %p367, %p368
      %s371 = sadd.s32 %s370, 1
      %p374 = scmp.eq.s32.totalorder %s32, 1
      %p375 = scmp.ne.s32.totalorder %s370, %s372
      %p376 = scmp.eq.s32.totalorder %s32, 0
      %p377 = por %p375, %p376
      %p378 = scmp.ne.s32.totalorder %s370, %s372
      %p379 = scmp.eq.s32.totalorder %s37, 1
      %p380 = por %p378, %p379
      %p381 = scmp.ne.s32.totalorder %s372, %s373
      %p382 = scmp.eq.s32.totalorder %s37, 0
      %p383 = por %p381, %p382
      %p384 = scmp.ne.s32.totalorder %s372, %s373
      %p385 = scmp.eq.s32.totalorder %s38, 1
      %p386 = por %p384, %p385
      %p388 = scmp.ne.s32.totalorder %s373, %s387
      %p389 = scmp.eq.s32.totalorder %s38, 0
      %p390 = por %p388, %p389
      %s392 = sadd.s32 %s391, 1
      %p395 = scmp.eq.s32.totalorder %s32, 1
      %p396 = scmp.ne.s32.totalorder %s391, %s393
      %p397 = scmp.eq.s32.totalorder %s32, 0
      %p398 = por %p396, %p397
      %p399 = scmp.ne.s32.totalorder %s391, %s393
      %p400 = scmp.eq.s32.totalorder %s37, 1
      %p401 = por %p399, %p400
      %p402 = scmp.ne.s32.totalorder %s393, %s394
      %p403 = scmp.eq.s32.totalorder %s37, 0
      %p404 = por %p402, %p403
      %p405 = scmp.ne.s32.totalorder %s393, %s394
      %p406 = scmp.eq.s32.totalorder %s38, 1
      %p407 = por %p405, %p406
      %p409 = scmp.ne.s32.totalorder %s394, %s408
      %p410 = scmp.eq.s32.totalorder %s38, 0
      %p411 = por %p409, %p410
      %s413 = sadd.s32 %s412, 1
      %p416 = scmp.eq.s32.totalorder %s32, 1
      %p417 = scmp.ne.s32.totalorder %s412, %s414
      %p418 = scmp.eq.s32.totalorder %s32, 0
      %p419 = por %p417, %p418
      %p420 = scmp.ne.s32.totalorder %s412, %s414
      %p421 = scmp.eq.s32.totalorder %s37, 1
      %p422 = por %p420, %p421
      %p423 = scmp.ne.s32.totalorder %s414, %s415
      %p424 = scmp.eq.s32.totalorder %s37, 0
      %p425 = por %p423, %p424
      %p426 = scmp.ne.s32.totalorder %s414, %s415
      %p427 = scmp.eq.s32.totalorder %s38, 1
      %p428 = por %p426, %p427
      %p430 = scmp.ne.s32.totalorder %s415, %s429
      %p431 = scmp.eq.s32.totalorder %s38, 0
      %p432 = por %p430, %p431
      %s434 = sadd.s32 %s433, 1
      %p437 = scmp.eq.s32.totalorder %s32, 1
      %p438 = scmp.ne.s32.totalorder %s433, %s435
      %p439 = scmp.eq.s32.totalorder %s32, 0
      %p440 = por %p438, %p439
      %p441 = scmp.ne.s32.totalorder %s433, %s435
      %p442 = scmp.eq.s32.totalorder %s37, 1
      %p443 = por %p441, %p442
      %p444 = scmp.ne.s32.totalorder %s435, %s436
      %p445 = scmp.eq.s32.totalorder %s37, 0
      %p446 = por %p444, %p445
      %p447 = scmp.ne.s32.totalorder %s435, %s436
      %p448 = scmp.eq.s32.totalorder %s38, 1
      %p449 = por %p447, %p448
      %p451 = scmp.ne.s32.totalorder %s436, %s450
      %p452 = scmp.eq.s32.totalorder %s38, 0
      %p453 = por %p451, %p452
      %s455 = sadd.s32 %s454, 1
      %p458 = scmp.eq.s32.totalorder %s32, 1
      %p459 = scmp.ne.s32.totalorder %s454, %s456
      %p460 = scmp.eq.s32.totalorder %s32, 0
      %p461 = por %p459, %p460
      %p462 = scmp.ne.s32.totalorder %s454, %s456
      %p463 = scmp.eq.s32.totalorder %s37, 1
      %p464 = por %p462, %p463
      %p465 = scmp.ne.s32.totalorder %s456, %s457
      %p466 = scmp.eq.s32.totalorder %s37, 0
      %p467 = por %p465, %p466
      %p468 = scmp.ne.s32.totalorder %s456, %s457
      %p469 = scmp.eq.s32.totalorder %s38, 1
      %p470 = por %p468, %p469
      %p472 = scmp.ne.s32.totalorder %s457, %s471
      %p473 = scmp.eq.s32.totalorder %s38, 0
      %p474 = por %p472, %p473
      %s476 = sadd.s32 %s475, 1
      %p479 = scmp.eq.s32.totalorder %s32, 1
      %p480 = scmp.ne.s32.totalorder %s475, %s477
      %p481 = scmp.eq.s32.totalorder %s32, 0
      %p482 = por %p480, %p481
      %p483 = scmp.ne.s32.totalorder %s475, %s477
      %p484 = scmp.eq.s32.totalorder %s37, 1
      %p485 = por %p483, %p484
      %p486 = scmp.ne.s32.totalorder %s477, %s478
      %p487 = scmp.eq.s32.totalorder %s37, 0
      %p488 = por %p486, %p487
      %p489 = scmp.ne.s32.totalorder %s477, %s478
      %p490 = scmp.eq.s32.totalorder %s38, 1
      %p491 = por %p489, %p490
      %p493 = scmp.ne.s32.totalorder %s478, %s492
      %p494 = scmp.eq.s32.totalorder %s38, 0
      %p495 = por %p493, %p494
      %s497 = sadd.s32 %s496, 1
      %p500 = scmp.eq.s32.totalorder %s32, 1
      %p501 = scmp.ne.s32.totalorder %s496, %s498
      %p502 = scmp.eq.s32.totalorder %s32, 0
      %p503 = por %p501, %p502
      %p504 = scmp.ne.s32.totalorder %s496, %s498
      %p505 = scmp.eq.s32.totalorder %s37, 1
      %p506 = por %p504, %p505
      %p507 = scmp.ne.s32.totalorder %s498, %s499
      %p508 = scmp.eq.s32.totalorder %s37, 0
      %p509 = por %p507, %p508
      %p510 = scmp.ne.s32.totalorder %s498, %s499
      %p511 = scmp.eq.s32.totalorder %s38, 1
      %p512 = por %p510, %p511
      %p514 = scmp.ne.s32.totalorder %s499, %s513
      %p515 = scmp.eq.s32.totalorder %s38, 0
      %p516 = por %p514, %p515
      %s518 = sadd.s32 %s517, 1
      %p521 = scmp.eq.s32.totalorder %s32, 1
      %p522 = scmp.ne.s32.totalorder %s517, %s519
      %p523 = scmp.eq.s32.totalorder %s32, 0
      %p524 = por %p522, %p523
      %p525 = scmp.ne.s32.totalorder %s517, %s519
      %p526 = scmp.eq.s32.totalorder %s37, 1
      %p527 = por %p525, %p526
      %p528 = scmp.ne.s32.totalorder %s519, %s520
      %p529 = scmp.eq.s32.totalorder %s37, 0
      %p530 = por %p528, %p529
      %p531 = scmp.ne.s32.totalorder %s519, %s520
      %p532 = scmp.eq.s32.totalorder %s38, 1
      %p533 = por %p531, %p532
      %p535 = scmp.ne.s32.totalorder %s520, %s534
      %p536 = scmp.eq.s32.totalorder %s38, 0
      %p537 = por %p535, %p536
      %s538 = ssub.s32 %s32, %s39
      %p539 = scmp.eq.s32.totalorder %s538, 0
      %s541 = sadd.s32 %s540, 1
      %s542 = scalar_select %p539, %s540, %s541
      %p545 = pneg %p539
      %p546 = scmp.eq.s32.totalorder %s32, 1
      %p547 = por %p545, %p546
      %p548 = scmp.ne.s32.totalorder %s540, %s543
      %p549 = scmp.eq.s32.totalorder %s32, 0
      %p550 = por %p548, %p549
      %p551 = scmp.ne.s32.totalorder %s540, %s543
      %p552 = scmp.eq.s32.totalorder %s37, 1
      %p553 = por %p551, %p552
      %p554 = scmp.ne.s32.totalorder %s543, %s544
      %p555 = scmp.eq.s32.totalorder %s37, 0
      %p556 = por %p554, %p555
      %p557 = scmp.ne.s32.totalorder %s543, %s544
      %p558 = scmp.eq.s32.totalorder %s38, 1
      %p559 = por %p557, %p558
      %p561 = scmp.ne.s32.totalorder %s544, %s560
      %p562 = scmp.eq.s32.totalorder %s38, 0
      %p563 = por %p561, %p562
      %p564 = scmp.le.s32.totalorder 1, %s32
      %p565 = scmp.lt.s32.totalorder %s32, 3
      %p566 = pnand %p564, %p565
      %p567 = pneg %p566
      // Predicated region
      $region9: #{summary_brief_forward.8} parent=5 // pred_check
        _
      $region10: #{summary_brief_forward.8} parent=5 // pred_check_branch
        %569 = sbr.rel (%p566) target = $region12
      $region11: #{summary_brief_forward.8} parent=5 // pred_region
        %s570 = ssub.s32 %s32, 1
        // Predicated region
        $region13: #{summary_brief_forward.8} parent=11 // pred_check
          %p571 = pneg %p131
        $region14: #{summary_brief_forward.8} parent=11 // pred_check_branch
          %573 = sbr.rel (%p571) target = $region16
        $region15: #{summary_brief_forward.8} parent=11 // pred_region
          _
        $region16: #{summary_brief_forward.8} parent=11 // pred_fallthru
          _
        // Predicated region
        $region17: #{summary_brief_forward.8} parent=11 // pred_check
          %p574 = pneg %p152
        $region18: #{summary_brief_forward.8} parent=11 // pred_check_branch
          %576 = sbr.rel (%p574) target = $region20
        $region19: #{summary_brief_forward.8} parent=11 // pred_region
          _
        $region20: #{summary_brief_forward.8} parent=11 // pred_fallthru
          _
        // Predicated region
        $region21: #{summary_brief_forward.8} parent=11 // pred_check
          %p577 = pneg %p173
        $region22: #{summary_brief_forward.8} parent=11 // pred_check_branch
          %579 = sbr.rel (%p577) target = $region24
        $region23: #{summary_brief_forward.8} parent=11 // pred_region
          %s581 = ssub.s32 1024, 1024
          %582 = vsyncadd [#allocation3], %s581
          %s583 = sshll.u32 [#allocation2], 4
          %s584 = int_to_ptr.vmem [resolvable:$true] %s583
          %589 = dma.hbm_to_vmem [thread:$0]  %s5, 1024, %s584, [#allocation3], 64, 64, 4
        $region24: #{summary_brief_forward.8} parent=11 // pred_fallthru
          _
        // Predicated region
        $region25: #{summary_brief_forward.8} parent=11 // pred_check
          %p590 = pneg %p194
        $region26: #{summary_brief_forward.8} parent=11 // pred_check_branch
          %592 = sbr.rel (%p590) target = $region28
        $region27: #{summary_brief_forward.8} parent=11 // pred_region
          _
        $region28: #{summary_brief_forward.8} parent=11 // pred_fallthru
          _
        // Predicated region
        $region29: #{summary_brief_forward.8} parent=11 // pred_check
          %p593 = pneg %p215
        $region30: #{summary_brief_forward.8} parent=11 // pred_check_branch
          %595 = sbr.rel (%p593) target = $region32
        $region31: #{summary_brief_forward.8} parent=11 // pred_region
          _
        $region32: #{summary_brief_forward.8} parent=11 // pred_fallthru
          _
        // Predicated region
        $region33: #{summary_brief_forward.8} parent=11 // pred_check
          %p596 = pneg %p236
        $region34: #{summary_brief_forward.8} parent=11 // pred_check_branch
          %598 = sbr.rel (%p596) target = $region36
        $region35: #{summary_brief_forward.8} parent=11 // pred_region
          _
        $region36: #{summary_brief_forward.8} parent=11 // pred_fallthru
          _
        // Predicated region
        $region37: #{summary_brief_forward.8} parent=11 // pred_check
          %p599 = pneg %p257
        $region38: #{summary_brief_forward.8} parent=11 // pred_check_branch
          %601 = sbr.rel (%p599) target = $region40
        $region39: #{summary_brief_forward.8} parent=11 // pred_region
          %s603 = ssub.s32 4096, 4096
          %604 = vsyncadd [#allocation5], %s603
          %s605 = sshll.u32 [#allocation4], 4
          %s606 = int_to_ptr.vmem [resolvable:$true] %s605
          %611 = dma.hbm_to_vmem [thread:$0]  %s9, 4096, %s606, [#allocation5], 64, 64, 4
        $region40: #{summary_brief_forward.8} parent=11 // pred_fallthru
          _
        // Predicated region
        $region41: #{summary_brief_forward.8} parent=11 // pred_check
          %p612 = pneg %p278
        $region42: #{summary_brief_forward.8} parent=11 // pred_check_branch
          %614 = sbr.rel (%p612) target = $region44
        $region43: #{summary_brief_forward.8} parent=11 // pred_region
          _
        $region44: #{summary_brief_forward.8} parent=11 // pred_fallthru
          _
        // Predicated region
        $region45: #{summary_brief_forward.8} parent=11 // pred_check
          %p615 = pneg %p299
        $region46: #{summary_brief_forward.8} parent=11 // pred_check_branch
          %617 = sbr.rel (%p615) target = $region48
        $region47: #{summary_brief_forward.8} parent=11 // pred_region
          _
        $region48: #{summary_brief_forward.8} parent=11 // pred_fallthru
          _
        // Predicated region
        $region49: #{summary_brief_forward.8} parent=11 // pred_check
          %p618 = pneg %p320
        $region50: #{summary_brief_forward.8} parent=11 // pred_check_branch
          %620 = sbr.rel (%p618) target = $region52
        $region51: #{summary_brief_forward.8} parent=11 // pred_region
          _
        $region52: #{summary_brief_forward.8} parent=11 // pred_fallthru
          _
        // Predicated region
        $region53: #{summary_brief_forward.8} parent=11 // pred_check
          %p621 = pneg %p341
        $region54: #{summary_brief_forward.8} parent=11 // pred_check_branch
          %623 = sbr.rel (%p621) target = $region56
        $region55: #{summary_brief_forward.8} parent=11 // pred_region
          %s625 = ssub.s32 1024, 1024
          %626 = vsyncadd [#allocation5], %s625
          %s627 = sshll.u32 [#allocation6], 4
          %s628 = int_to_ptr.vmem [resolvable:$true] %s627
          %633 = dma.hbm_to_vmem [thread:$0]  %s13, 1024, %s628, [#allocation5], 64, 64, 4
        $region56: #{summary_brief_forward.8} parent=11 // pred_fallthru
          _
        // Predicated region
        $region57: #{summary_brief_forward.8} parent=11 // pred_check
          %p634 = pneg %p362
        $region58: #{summary_brief_forward.8} parent=11 // pred_check_branch
          %636 = sbr.rel (%p634) target = $region60
        $region59: #{summary_brief_forward.8} parent=11 // pred_region
          _
        $region60: #{summary_brief_forward.8} parent=11 // pred_fallthru
          _
        // Predicated region
        $region61: #{summary_brief_forward.8} parent=11 // pred_check
          %p637 = pneg %p383
        $region62: #{summary_brief_forward.8} parent=11 // pred_check_branch
          %639 = sbr.rel (%p637) target = $region64
        $region63: #{summary_brief_forward.8} parent=11 // pred_region
          _
        $region64: #{summary_brief_forward.8} parent=11 // pred_fallthru
          _
        // Predicated region
        $region65: #{summary_brief_forward.8} parent=11 // pred_check
          %p640 = pneg %p404
        $region66: #{summary_brief_forward.8} parent=11 // pred_check_branch
          %642 = sbr.rel (%p640) target = $region68
        $region67: #{summary_brief_forward.8} parent=11 // pred_region
          _
        $region68: #{summary_brief_forward.8} parent=11 // pred_fallthru
          _
        // Predicated region
        $region69: #{summary_brief_forward.8} parent=11 // pred_check
          %p643 = pneg %p425
        $region70: #{summary_brief_forward.8} parent=11 // pred_check_branch
          %645 = sbr.rel (%p643) target = $region72
        $region71: #{summary_brief_forward.8} parent=11 // pred_region
          %s647 = ssub.s32 2048, 2048
          %648 = vsyncadd [#allocation8], %s647
          %s649 = sshll.u32 [#allocation7], 4
          %s650 = int_to_ptr.vmem [resolvable:$true] %s649
          %655 = dma.hbm_to_vmem [thread:$0]  %s17, 2048, %s650, [#allocation8], 128, 128, 8
        $region72: #{summary_brief_forward.8} parent=11 // pred_fallthru
          _
        // Predicated region
        $region73: #{summary_brief_forward.8} parent=11 // pred_check
          %p656 = pneg %p446
        $region74: #{summary_brief_forward.8} parent=11 // pred_check_branch
          %658 = sbr.rel (%p656) target = $region76
        $region75: #{summary_brief_forward.8} parent=11 // pred_region
          _
        $region76: #{summary_brief_forward.8} parent=11 // pred_fallthru
          _
        // Predicated region
        $region77: #{summary_brief_forward.8} parent=11 // pred_check
          %p659 = pneg %p467
        $region78: #{summary_brief_forward.8} parent=11 // pred_check_branch
          %661 = sbr.rel (%p659) target = $region80
        $region79: #{summary_brief_forward.8} parent=11 // pred_region
          _
        $region80: #{summary_brief_forward.8} parent=11 // pred_fallthru
          _
        // Predicated region
        $region81: #{summary_brief_forward.8} parent=11 // pred_check
          %p662 = pneg %p488
        $region82: #{summary_brief_forward.8} parent=11 // pred_check_branch
          %664 = sbr.rel (%p662) target = $region84
        $region83: #{summary_brief_forward.8} parent=11 // pred_region
          _
        $region84: #{summary_brief_forward.8} parent=11 // pred_fallthru
          _
        // Predicated region
        $region85: #{summary_brief_forward.8} parent=11 // pred_check
          %p665 = pneg %p509
        $region86: #{summary_brief_forward.8} parent=11 // pred_check_branch
          %667 = sbr.rel (%p665) target = $region88
        $region87: #{summary_brief_forward.8} parent=11 // pred_region
          _
        $region88: #{summary_brief_forward.8} parent=11 // pred_fallthru
          _
        // Predicated region
        $region89: #{summary_brief_forward.8} parent=11 // pred_check
          %p668 = pneg %p530
        $region90: #{summary_brief_forward.8} parent=11 // pred_check_branch
          %670 = sbr.rel (%p668) target = $region92
        $region91: #{summary_brief_forward.8} parent=11 // pred_region
          _
        $region92: #{summary_brief_forward.8} parent=11 // pred_fallthru
          _
      $region12: #{summary_brief_forward.8} parent=5 // pred_fallthru
        _
      %p671 = scmp.lt.s32.totalorder %s32, 2
      // Predicated region
      $region93: #{summary_brief_forward.8} parent=5 // pred_check
        %p672 = pneg %p671
      $region94: #{summary_brief_forward.8} parent=5 // pred_check_branch
        %674 = sbr.rel (%p672) target = $region96
      $region95: #{summary_brief_forward.8} parent=5 // pred_region
        // Predicated region
        $region97: #{summary_brief_forward.8} parent=95 // pred_check
          %p675 = pneg %p52
        $region98: #{summary_brief_forward.8} parent=95 // pred_check_branch
          %677 = sbr.rel (%p675) target = $region100
        $region99: #{summary_brief_forward.8} parent=95 // pred_region
          %p678 = scmp.lt.s32.totalorder %s32, 1
          %s679 = scalar_select %p678, %s32, 1
          %s680 = smul.addr %s679, 4
          %s681 = scalar_lea.vmem %s0, %s680
        $region100: #{summary_brief_forward.8} parent=95 // pred_fallthru
          _
        // Predicated region
        $region101: #{summary_brief_forward.8} parent=95 // pred_check
          %p682 = pneg %p78
        $region102: #{summary_brief_forward.8} parent=95 // pred_check_branch
          %684 = sbr.rel (%p682) target = $region104
        $region103: #{summary_brief_forward.8} parent=95 // pred_region
          %p685 = scmp.lt.s32.totalorder %s32, 1
          %s686 = scalar_select %p685, %s32, 1
          %s687 = smul.addr %s686, 4
          %s688 = scalar_lea.vmem %s1, %s687
        $region104: #{summary_brief_forward.8} parent=95 // pred_fallthru
          _
        // Predicated region
        $region105: #{summary_brief_forward.8} parent=95 // pred_check
          %p689 = pneg %p104
        $region106: #{summary_brief_forward.8} parent=95 // pred_check_branch
          %691 = sbr.rel (%p689) target = $region108
        $region107: #{summary_brief_forward.8} parent=95 // pred_region
          %p692 = scmp.lt.s32.totalorder %s32, 1
          %s693 = scalar_select %p692, %s32, 1
          %s694 = scalar_lea.vmem %s2, %s693
        $region108: #{summary_brief_forward.8} parent=95 // pred_fallthru
          _
      $region96: #{summary_brief_forward.8} parent=5 // pred_fallthru
        _
      %p695 = scmp.le.s32.totalorder 1, %s32
      %p696 = scmp.lt.s32.totalorder %s32, 3
      %p697 = pnand %p695, %p696
      %p698 = pneg %p697
      // Predicated region
      $region109: #{summary_brief_forward.8} parent=5 // pred_check
        _
      $region110: #{summary_brief_forward.8} parent=5 // pred_check_branch
        %700 = sbr.rel (%p697) target = $region112
      $region111: #{summary_brief_forward.8} parent=5 // pred_region
        %s701 = ssub.s32 %s32, 1
        // Predicated region
        $region113: #{summary_brief_forward.8} parent=111 // pred_check
          %p702 = pneg %p173
        $region114: #{summary_brief_forward.8} parent=111 // pred_check_branch
          %704 = sbr.rel (%p702) target = $region116
        $region115: #{summary_brief_forward.8} parent=111 // pred_region
          %705 = dma.done [#allocation3], 1024
        $region116: #{summary_brief_forward.8} parent=111 // pred_fallthru
          _
        // Predicated region
        $region117: #{summary_brief_forward.8} parent=111 // pred_check
          %p706 = pneg %p257
        $region118: #{summary_brief_forward.8} parent=111 // pred_check_branch
          %708 = sbr.rel (%p706) target = $region120
        $region119: #{summary_brief_forward.8} parent=111 // pred_region
          %709 = dma.done [#allocation5], 4096
        $region120: #{summary_brief_forward.8} parent=111 // pred_fallthru
          _
        // Predicated region
        $region121: #{summary_brief_forward.8} parent=111 // pred_check
          %p710 = pneg %p341
        $region122: #{summary_brief_forward.8} parent=111 // pred_check_branch
          %712 = sbr.rel (%p710) target = $region124
        $region123: #{summary_brief_forward.8} parent=111 // pred_region
          %713 = dma.done [#allocation5], 1024
        $region124: #{summary_brief_forward.8} parent=111 // pred_fallthru
          _
        // Predicated region
        $region125: #{summary_brief_forward.8} parent=111 // pred_check
          %p714 = pneg %p425
        $region126: #{summary_brief_forward.8} parent=111 // pred_check_branch
          %716 = sbr.rel (%p714) target = $region128
        $region127: #{summary_brief_forward.8} parent=111 // pred_region
          %717 = dma.done [#allocation8], 2048
        $region128: #{summary_brief_forward.8} parent=111 // pred_fallthru
          _
        %p718 = scmp.lt.s32.totalorder %s37, 1
        %s719 = scalar_select %p718, %s37, 1
        %s720 = smul.addr %s719, 4
        %s721 = scalar_lea.vmem %s0, %s720
        %p722 = pneg %p58
        %p723 = pneg %p55
        %p724 = scmp.lt.s32.totalorder %s37, 1
        %s725 = scalar_select %p724, %s37, 1
        %s726 = smul.addr %s725, 4
        %s727 = scalar_lea.vmem %s1, %s726
        %p728 = pneg %p84
        %p729 = pneg %p81
        %p730 = scmp.lt.s32.totalorder %s37, 1
        %s731 = scalar_select %p730, %s37, 1
        %s732 = scalar_lea.vmem %s2, %s731
        %p733 = pneg %p110
        %p734 = pneg %p107
        %p735 = pneg %p131
        %p736 = pneg %p128
        %p737 = pneg %p152
        %p738 = pneg %p149
        %p739 = pneg %p173
        %p740 = pneg %p170
        %p741 = pneg %p194
        %p742 = pneg %p191
        %p743 = pneg %p215
        %p744 = pneg %p212
        %p745 = pneg %p236
        %p746 = pneg %p233
        %p747 = pneg %p257
        %p748 = pneg %p254
        %p749 = pneg %p278
        %p750 = pneg %p275
        %p751 = pneg %p299
        %p752 = pneg %p296
        %p753 = pneg %p320
        %p754 = pneg %p317
        %p755 = pneg %p341
        %p756 = pneg %p338
        %p757 = pneg %p362
        %p758 = pneg %p359
        %p759 = pneg %p383
        %p760 = pneg %p380
        %p761 = pneg %p404
        %p762 = pneg %p401
        %p763 = pneg %p425
        %p764 = pneg %p422
        %p765 = pneg %p446
        %p766 = pneg %p443
        %p767 = pneg %p467
        %p768 = pneg %p464
        %p769 = pneg %p488
        %p770 = pneg %p485
        %p771 = pneg %p509
        %p772 = pneg %p506
        %p773 = pneg %p530
        %p774 = pneg %p527
        %p775 = pneg %p556
        %p776 = pneg %p553
        %p777 = scmp.lt.s32.totalorder %s37, 1
        %s778 = scalar_select %p777, %s37, 1
        %s779 = smul.addr %s778, 4
        %s780 = scalar_lea.vmem %s23, %s779
        %p781 = scmp.lt.s32.totalorder %s37, 1
        %s782 = scalar_select %p781, %s37, 1
        %s783 = smul.addr %s782, 4
        %s784 = scalar_lea.vmem %s0, %s783
        %p785 = scmp.lt.s32.totalorder %s37, 1
        %s786 = scalar_select %p785, %s37, 1
        %s787 = smul.addr %s786, 4
        %s788 = scalar_lea.vmem %s1, %s787
        %p789 = scmp.lt.s32.totalorder %s37, 1
        %s790 = scalar_select %p789, %s37, 1
        %s791 = scalar_lea.vmem %s2, %s790
        %p792 = scmp.lt.s32.totalorder %s37, 1
        %s793 = scalar_select %p792, %s37, 1
        %s794 = smul.addr %s793, 4
        %s795 = scalar_lea.vmem %s23, %s794
        %v797 = vld [vmem:[%s784] sm:$0xf]
        %v798 = vld [vmem:[%s788] sm:$0xf]
        %v799 = vlaneseq
        %v800 = vshrl.u32 %v799, 7
        %v801 = vlaneseq
        %v802 = vand.u32 %v801, 127
        %vm803 = vcmp.le.s32.totalorder %v802, %v800
        %v804 = vsel %vm803, 0.0, -1e+09
        %v805 = vld [vmem:[%s3] sm:$0xf]
        %v806 = vld [vmem:[%s3 + $0x4] sm:$0xf]
        %v807 = vld [vmem:[%s3 + $0x8] sm:$0xf]
        %v808 = vld [vmem:[%s3 + $0xc] sm:$0xf]
        %v809 = vld [vmem:[%s3 + $0x10] sm:$0xf]
        %v810 = vld [vmem:[%s3 + $0x14] sm:$0xf]
        %v811 = vld [vmem:[%s3 + $0x18] sm:$0xf]
        %v812 = vld [vmem:[%s3 + $0x1c] sm:$0xf]
        %v813 = vld [vmem:[%s3 + $0x20] sm:$0xf]
        %v814 = vld [vmem:[%s3 + $0x24] sm:$0xf]
        %v815 = vld [vmem:[%s3 + $0x28] sm:$0xf]
        %v816 = vld [vmem:[%s3 + $0x2c] sm:$0xf]
        %v817 = vld [vmem:[%s3 + $0x30] sm:$0xf]
        %v818 = vld [vmem:[%s3 + $0x34] sm:$0xf]
        %v819 = vld [vmem:[%s3 + $0x38] sm:$0xf]
        %v820 = vld [vmem:[%s3 + $0x3c] sm:$0xf]
        %v821 = vld [vmem:[%s4] sm:$0x1]
        %v823 = vlaneseq
        %v824 = vshrl.u32 %v823, 7
        %v825 = vsub.s32 0, %v824
        %v826 = vrot.slane %v821, %v825
        %v844 = vunpack.c.l.b16 %v805
        %v845 = vunpack.c.l.b16 %v806
        %v846 = vunpack.c.l.b16 %v807
        %v847 = vunpack.c.l.b16 %v808
        %v848 = vunpack.c.l.b16 %v809
        %v849 = vunpack.c.l.b16 %v810
        %v850 = vunpack.c.l.b16 %v811
        %v851 = vunpack.c.l.b16 %v812
        %v852 = vunpack.c.l.b16 %v813
        %v853 = vunpack.c.l.b16 %v814
        %v854 = vunpack.c.l.b16 %v815
        %v855 = vunpack.c.l.b16 %v816
        %v856 = vunpack.c.l.b16 %v817
        %v857 = vunpack.c.l.b16 %v818
        %v858 = vunpack.c.l.b16 %v819
        %v859 = vunpack.c.l.b16 %v820
        %v860 = vpack.c.b16 %v845, %v844
        %v861 = vpack.c.b16 %v847, %v846
        %v862 = vpack.c.b16 %v849, %v848
        %v863 = vpack.c.b16 %v851, %v850
        %v864 = vpack.c.b16 %v853, %v852
        %v865 = vpack.c.b16 %v855, %v854
        %v866 = vpack.c.b16 %v857, %v856
        %v867 = vpack.c.b16 %v859, %v858
        %876 = vmatprep.subr.bf16.mxu0 0
        %877 = vmatpush1.bf16.msra.mxu0 %v867
        %878 = vmatprep.subr.bf16.mxu0 0
        %879 = vmatpush1.bf16.msra.mxu0 %v866
        %880 = vmatprep.subr.bf16.mxu0 0
        %881 = vmatpush1.bf16.msra.mxu0 %v865
        %882 = vmatprep.subr.bf16.mxu0 0
        %883 = vmatpush1.bf16.msra.mxu0 %v864
        %884 = vmatprep.subr.bf16.mxu0 0
        %885 = vmatpush1.bf16.msra.mxu0 %v863
        %886 = vmatprep.subr.bf16.mxu0 0
        %887 = vmatpush1.bf16.msra.mxu0 %v862
        %888 = vmatprep.subr.bf16.mxu0 0
        %889 = vmatpush1.bf16.msra.mxu0 %v861
        %890 = vmatprep.subr.bf16.mxu0 0
        %891 = vmatpush1.bf16.msra.mxu0 %v860
        %892 = vmatprep.subr.bf16.mxu0 0
        %893 = vmatpush2.bf16.msra.mxu0 0
        %894 = vmatprep.subr.bf16.mxu0 0
        %895 = vmatpush2.bf16.msra.mxu0 0
        %896 = vmatprep.subr.bf16.mxu0 0
        %897 = vmatpush2.bf16.msra.mxu0 0
        %898 = vmatprep.subr.bf16.mxu0 0
        %899 = vmatpush2.bf16.msra.mxu0 0
        %900 = vmatprep.subr.bf16.mxu0 0
        %901 = vmatpush2.bf16.msra.mxu0 0
        %902 = vmatprep.subr.bf16.mxu0 0
        %903 = vmatpush2.bf16.msra.mxu0 0
        %904 = vmatprep.subr.bf16.mxu0 0
        %905 = vmatpush2.bf16.msra.mxu0 0
        %906 = vmatprep.subr.bf16.mxu0 0
        %907 = vmatpush2.bf16.msra.mxu0 0
        %908 = vmatprep.mubr.bf16.mxu0 0
        %909 = vmatmul.mubr.bf16.gmra.mxu0 %v797
        %v910 = vpop.f32.mrf.mxu0
        %v911 = vadd.f32 %v826, %v910
        %v912 = vpop.f32.mrf.mxu0
        %v913 = vpop.f32.mrf.mxu0
        %v914 = vpop.f32.mrf.mxu0
        %915 = vdwg.mxu0
        %s916 = scalar_lea.vmem %s3, 256
        %v917 = vld [vmem:[%s916] sm:$0xf]
        %v918 = vld [vmem:[%s916 + $0x4] sm:$0xf]
        %v919 = vld [vmem:[%s916 + $0x8] sm:$0xf]
        %v920 = vld [vmem:[%s916 + $0xc] sm:$0xf]
        %v921 = vld [vmem:[%s916 + $0x10] sm:$0xf]
        %v922 = vld [vmem:[%s916 + $0x14] sm:$0xf]
        %v923 = vld [vmem:[%s916 + $0x18] sm:$0xf]
        %v924 = vld [vmem:[%s916 + $0x1c] sm:$0xf]
        %v925 = vld [vmem:[%s916 + $0x20] sm:$0xf]
        %v926 = vld [vmem:[%s916 + $0x24] sm:$0xf]
        %v927 = vld [vmem:[%s916 + $0x28] sm:$0xf]
        %v928 = vld [vmem:[%s916 + $0x2c] sm:$0xf]
        %v929 = vld [vmem:[%s916 + $0x30] sm:$0xf]
        %v930 = vld [vmem:[%s916 + $0x34] sm:$0xf]
        %v931 = vld [vmem:[%s916 + $0x38] sm:$0xf]
        %v932 = vld [vmem:[%s916 + $0x3c] sm:$0xf]
        %s933 = scalar_lea.vmem %s4, 4
        %v934 = vld [vmem:[%s933] sm:$0x1]
        %v936 = vlaneseq
        %v937 = vshrl.u32 %v936, 7
        %v938 = vsub.s32 0, %v937
        %v939 = vrot.slane %v934, %v938
        %v957 = vunpack.c.l.b16 %v917
        %v958 = vunpack.c.l.b16 %v918
        %v959 = vunpack.c.l.b16 %v919
        %v960 = vunpack.c.l.b16 %v920
        %v961 = vunpack.c.l.b16 %v921
        %v962 = vunpack.c.l.b16 %v922
        %v963 = vunpack.c.l.b16 %v923
        %v964 = vunpack.c.l.b16 %v924
        %v965 = vunpack.c.l.b16 %v925
        %v966 = vunpack.c.l.b16 %v926
        %v967 = vunpack.c.l.b16 %v927
        %v968 = vunpack.c.l.b16 %v928
        %v969 = vunpack.c.l.b16 %v929
        %v970 = vunpack.c.l.b16 %v930
        %v971 = vunpack.c.l.b16 %v931
        %v972 = vunpack.c.l.b16 %v932
        %v973 = vpack.c.b16 %v958, %v957
        %v974 = vpack.c.b16 %v960, %v959
        %v975 = vpack.c.b16 %v962, %v961
        %v976 = vpack.c.b16 %v964, %v963
        %v977 = vpack.c.b16 %v966, %v965
        %v978 = vpack.c.b16 %v968, %v967
        %v979 = vpack.c.b16 %v970, %v969
        %v980 = vpack.c.b16 %v972, %v971
        %989 = vmatprep.subr.bf16.mxu0 0
        %990 = vmatpush1.bf16.msra.mxu0 %v980
        %991 = vmatprep.subr.bf16.mxu0 0
        %992 = vmatpush1.bf16.msra.mxu0 %v979
        %993 = vmatprep.subr.bf16.mxu0 0
        %994 = vmatpush1.bf16.msra.mxu0 %v978
        %995 = vmatprep.subr.bf16.mxu0 0
        %996 = vmatpush1.bf16.msra.mxu0 %v977
        %997 = vmatprep.subr.bf16.mxu0 0
        %998 = vmatpush1.bf16.msra.mxu0 %v976
        %999 = vmatprep.subr.bf16.mxu0 0
        %1000 = vmatpush1.bf16.msra.mxu0 %v975
        %1001 = vmatprep.subr.bf16.mxu0 0
        %1002 = vmatpush1.bf16.msra.mxu0 %v974
        %1003 = vmatprep.subr.bf16.mxu0 0
        %1004 = vmatpush1.bf16.msra.mxu0 %v973
        %1005 = vmatprep.subr.bf16.mxu0 0
        %1006 = vmatpush2.bf16.msra.mxu0 0
        %1007 = vmatprep.subr.bf16.mxu0 0
        %1008 = vmatpush2.bf16.msra.mxu0 0
        %1009 = vmatprep.subr.bf16.mxu0 0
        %1010 = vmatpush2.bf16.msra.mxu0 0
        %1011 = vmatprep.subr.bf16.mxu0 0
        %1012 = vmatpush2.bf16.msra.mxu0 0
        %1013 = vmatprep.subr.bf16.mxu0 0
        %1014 = vmatpush2.bf16.msra.mxu0 0
        %1015 = vmatprep.subr.bf16.mxu0 0
        %1016 = vmatpush2.bf16.msra.mxu0 0
        %1017 = vmatprep.subr.bf16.mxu0 0
        %1018 = vmatpush2.bf16.msra.mxu0 0
        %1019 = vmatprep.subr.bf16.mxu0 0
        %1020 = vmatpush2.bf16.msra.mxu0 0
        %1021 = vmatprep.mubr.bf16.mxu0 0
        %1022 = vmatmul.mubr.bf16.gmra.mxu0 %v797
        %v1023 = vpop.f32.mrf.mxu0
        %v1024 = vadd.f32 %v939, %v1023
        %v1025 = vpop.f32.mrf.mxu0
        %v1026 = vpop.f32.mrf.mxu0
        %v1027 = vpop.f32.mrf.mxu0
        %1028 = vdwg.mxu0
        %s1029 = scalar_lea.vmem %s3, 512
        %v1030 = vld [vmem:[%s1029] sm:$0xf]
        %v1031 = vld [vmem:[%s1029 + $0x4] sm:$0xf]
        %v1032 = vld [vmem:[%s1029 + $0x8] sm:$0xf]
        %v1033 = vld [vmem:[%s1029 + $0xc] sm:$0xf]
        %v1034 = vld [vmem:[%s1029 + $0x10] sm:$0xf]
        %v1035 = vld [vmem:[%s1029 + $0x14] sm:$0xf]
        %v1036 = vld [vmem:[%s1029 + $0x18] sm:$0xf]
        %v1037 = vld [vmem:[%s1029 + $0x1c] sm:$0xf]
        %v1038 = vld [vmem:[%s1029 + $0x20] sm:$0xf]
        %v1039 = vld [vmem:[%s1029 + $0x24] sm:$0xf]
        %v1040 = vld [vmem:[%s1029 + $0x28] sm:$0xf]
        %v1041 = vld [vmem:[%s1029 + $0x2c] sm:$0xf]
        %v1042 = vld [vmem:[%s1029 + $0x30] sm:$0xf]
        %v1043 = vld [vmem:[%s1029 + $0x34] sm:$0xf]
        %v1044 = vld [vmem:[%s1029 + $0x38] sm:$0xf]
        %v1045 = vld [vmem:[%s1029 + $0x3c] sm:$0xf]
        %s1046 = scalar_lea.vmem %s4, 8
        %v1047 = vld [vmem:[%s1046] sm:$0x1]
        %v1049 = vlaneseq
        %v1050 = vshrl.u32 %v1049, 7
        %v1051 = vsub.s32 0, %v1050
        %v1052 = vrot.slane %v1047, %v1051
        %v1070 = vunpack.c.l.b16 %v1030
        %v1071 = vunpack.c.l.b16 %v1031
        %v1072 = vunpack.c.l.b16 %v1032
        %v1073 = vunpack.c.l.b16 %v1033
        %v1074 = vunpack.c.l.b16 %v1034
        %v1075 = vunpack.c.l.b16 %v1035
        %v1076 = vunpack.c.l.b16 %v1036
        %v1077 = vunpack.c.l.b16 %v1037
        %v1078 = vunpack.c.l.b16 %v1038
        %v1079 = vunpack.c.l.b16 %v1039
        %v1080 = vunpack.c.l.b16 %v1040
        %v1081 = vunpack.c.l.b16 %v1041
        %v1082 = vunpack.c.l.b16 %v1042
        %v1083 = vunpack.c.l.b16 %v1043
        %v1084 = vunpack.c.l.b16 %v1044
        %v1085 = vunpack.c.l.b16 %v1045
        %v1086 = vpack.c.b16 %v1071, %v1070
        %v1087 = vpack.c.b16 %v1073, %v1072
        %v1088 = vpack.c.b16 %v1075, %v1074
        %v1089 = vpack.c.b16 %v1077, %v1076
        %v1090 = vpack.c.b16 %v1079, %v1078
        %v1091 = vpack.c.b16 %v1081, %v1080
        %v1092 = vpack.c.b16 %v1083, %v1082
        %v1093 = vpack.c.b16 %v1085, %v1084
        %1102 = vmatprep.subr.bf16.mxu0 0
        %1103 = vmatpush1.bf16.msra.mxu0 %v1093
        %1104 = vmatprep.subr.bf16.mxu0 0
        %1105 = vmatpush1.bf16.msra.mxu0 %v1092
        %1106 = vmatprep.subr.bf16.mxu0 0
        %1107 = vmatpush1.bf16.msra.mxu0 %v1091
        %1108 = vmatprep.subr.bf16.mxu0 0
        %1109 = vmatpush1.bf16.msra.mxu0 %v1090
        %1110 = vmatprep.subr.bf16.mxu0 0
        %1111 = vmatpush1.bf16.msra.mxu0 %v1089
        %1112 = vmatprep.subr.bf16.mxu0 0
        %1113 = vmatpush1.bf16.msra.mxu0 %v1088
        %1114 = vmatprep.subr.bf16.mxu0 0
        %1115 = vmatpush1.bf16.msra.mxu0 %v1087
        %1116 = vmatprep.subr.bf16.mxu0 0
        %1117 = vmatpush1.bf16.msra.mxu0 %v1086
        %1118 = vmatprep.subr.bf16.mxu0 0
        %1119 = vmatpush2.bf16.msra.mxu0 0
        %1120 = vmatprep.subr.bf16.mxu0 0
        %1121 = vmatpush2.bf16.msra.mxu0 0
        %1122 = vmatprep.subr.bf16.mxu0 0
        %1123 = vmatpush2.bf16.msra.mxu0 0
        %1124 = vmatprep.subr.bf16.mxu0 0
        %1125 = vmatpush2.bf16.msra.mxu0 0
        %1126 = vmatprep.subr.bf16.mxu0 0
        %1127 = vmatpush2.bf16.msra.mxu0 0
        %1128 = vmatprep.subr.bf16.mxu0 0
        %1129 = vmatpush2.bf16.msra.mxu0 0
        %1130 = vmatprep.subr.bf16.mxu0 0
        %1131 = vmatpush2.bf16.msra.mxu0 0
        %1132 = vmatprep.subr.bf16.mxu0 0
        %1133 = vmatpush2.bf16.msra.mxu0 0
        %1134 = vmatprep.mubr.bf16.mxu0 0
        %1135 = vmatmul.mubr.bf16.gmra.mxu0 %v797
        %v1136 = vpop.f32.mrf.mxu0
        %v1137 = vadd.f32 %v1052, %v1136
        %v1138 = vpop.f32.mrf.mxu0
        %v1139 = vpop.f32.mrf.mxu0
        %v1140 = vpop.f32.mrf.mxu0
        %1141 = vdwg.mxu0
        %v1142 = vpack.c.bf16 %v911, %v911
        %v1143 = vpack.c.bf16 %v1024, %v1024
        %vm1144 = vcmask 261120
        %v1146 = vsel %vm1144, %v1142, 0
        %v1149 = vsel %vm1144, %v1143, 0
        %1151 = vmatprep.subr.bf16.mxu0 0
        %1152 = vmatpush1.bf16.xpose.msra.mxu0 0
        %1153 = vmatprep.subr.bf16.mxu0 0
        %1154 = vmatpush1.bf16.xpose.msra.mxu0 0
        %1155 = vmatprep.subr.bf16.mxu0 0
        %1156 = vmatpush1.bf16.xpose.msra.mxu0 0
        %1157 = vmatprep.subr.bf16.mxu0 0
        %1158 = vmatpush1.bf16.xpose.msra.mxu0 0
        %1159 = vmatprep.subr.bf16.mxu0 0
        %1160 = vmatpush1.bf16.xpose.msra.mxu0 0
        %1161 = vmatprep.subr.bf16.mxu0 0
        %1162 = vmatpush1.bf16.xpose.msra.mxu0 0
        %1163 = vmatprep.subr.bf16.mxu0 0
        %1164 = vmatpush1.bf16.xpose.msra.mxu0 0
        %1165 = vmatprep.subr.bf16.mxu0 0
        %1166 = vmatpush1.bf16.xpose.msra.mxu0 %v1149
        %1167 = vmatprep.subr.bf16.mxu0 0
        %1168 = vmatpush2.bf16.xpose.msra.mxu0 0
        %1169 = vmatprep.subr.bf16.mxu0 0
        %1170 = vmatpush2.bf16.xpose.msra.mxu0 0
        %1171 = vmatprep.subr.bf16.mxu0 0
        %1172 = vmatpush2.bf16.xpose.msra.mxu0 0
        %1173 = vmatprep.subr.bf16.mxu0 0
        %1174 = vmatpush2.bf16.xpose.msra.mxu0 0
        %1175 = vmatprep.subr.bf16.mxu0 0
        %1176 = vmatpush2.bf16.xpose.msra.mxu0 0
        %1177 = vmatprep.subr.bf16.mxu0 0
        %1178 = vmatpush2.bf16.xpose.msra.mxu0 0
        %1179 = vmatprep.subr.bf16.mxu0 0
        %1180 = vmatpush2.bf16.xpose.msra.mxu0 0
        %1181 = vmatprep.subr.bf16.mxu0 0
        %1182 = vmatpush2.bf16.xpose.msra.mxu0 0
        %1183 = vmatprep.mubr.bf16.mxu0 0
        %1184 = vmatmul.mubr.bf16.gmra.mxu0 %v1146
        %v1185 = vpop.f32.mrf.mxu0
        %v1186 = vadd.f32 %v804, %v1185
        %v1187 = vpop.f32.mrf.mxu0
        %v1188 = vpop.f32.mrf.mxu0
        %v1189 = vpop.f32.mrf.mxu0
        %1190 = vdwg.mxu0
        %vm1191 = vcmask 64512
        %v1192 = vsel %vm1191, %v1186, -inf
        %1193 = vmax.xlane.f32.xlu0 %v1192
        %v1194 = vpop.xlane.xlu0 %1193
        %v1195 = vsub.f32 %v1186, %v1194
        %v1196 = vmul.f32 %v1195, 1.442695
        %v1197 = vpow.pop %v1196
        %v1198 = vsel %vm1191, %v1197, 0.0
        %1199 = vadd.xlane.f32.xlu0 %v1198
        %v1200 = vpop.xlane.xlu0 %1199
        %v1201 = vrcp.pop %v1200
        %v1202 = vmul.f32 %v1197, %v1201
        %v1203 = vpack.c.bf16 %v1202, %v1202
        %v1204 = vpack.c.bf16 %v1137, %v1137
        %v1206 = vsel %vm1191, %v1203, 0
        %vm1208 = vcmask 1043456
        %v1210 = vsel %vm1208, %v1204, 0
        %1212 = vmatprep.subr.bf16.mxu0 0
        %1213 = vmatpush1.bf16.msra.mxu0 0
        %1214 = vmatprep.subr.bf16.mxu0 0
        %1215 = vmatpush1.bf16.msra.mxu0 0
        %1216 = vmatprep.subr.bf16.mxu0 0
        %1217 = vmatpush1.bf16.msra.mxu0 0
        %1218 = vmatprep.subr.bf16.mxu0 0
        %1219 = vmatpush1.bf16.msra.mxu0 0
        %1220 = vmatprep.subr.bf16.mxu0 0
        %1221 = vmatpush1.bf16.msra.mxu0 0
        %1222 = vmatprep.subr.bf16.mxu0 0
        %1223 = vmatpush1.bf16.msra.mxu0 0
        %1224 = vmatprep.subr.bf16.mxu0 0
        %1225 = vmatpush1.bf16.msra.mxu0 0
        %1226 = vmatprep.subr.bf16.mxu0 0
        %1227 = vmatpush1.bf16.msra.mxu0 %v1210
        %1228 = vmatprep.subr.bf16.mxu0 0
        %1229 = vmatpush2.bf16.msra.mxu0 0
        %1230 = vmatprep.subr.bf16.mxu0 0
        %1231 = vmatpush2.bf16.msra.mxu0 0
        %1232 = vmatprep.subr.bf16.mxu0 0
        %1233 = vmatpush2.bf16.msra.mxu0 0
        %1234 = vmatprep.subr.bf16.mxu0 0
        %1235 = vmatpush2.bf16.msra.mxu0 0
        %1236 = vmatprep.subr.bf16.mxu0 0
        %1237 = vmatpush2.bf16.msra.mxu0 0
        %1238 = vmatprep.subr.bf16.mxu0 0
        %1239 = vmatpush2.bf16.msra.mxu0 0
        %1240 = vmatprep.subr.bf16.mxu0 0
        %1241 = vmatpush2.bf16.msra.mxu0 0
        %1242 = vmatprep.subr.bf16.mxu0 0
        %1243 = vmatpush2.bf16.msra.mxu0 0
        %1244 = vmatprep.mubr.bf16.mxu0 0
        %1245 = vmatmul.mubr.bf16.gmra.mxu0 %v1206
        %v1246 = vpop.f32.mrf.mxu0
        %v1247 = vadd.f32 0.0, %v1246
        %v1248 = vpop.f32.mrf.mxu0
        %v1249 = vpop.f32.mrf.mxu0
        %v1250 = vpop.f32.mrf.mxu0
        %1251 = vdwg.mxu0
        %v1252 = vpack.c.bf16 %v1247, %v1247
        %v1253 = vld [vmem:[#allocation2] sm:$0xf]
        %v1254 = vld [vmem:[#allocation2 + $0x4] sm:$0xf]
        %v1255 = vld [vmem:[#allocation2 + $0x8] sm:$0xf]
        %v1256 = vld [vmem:[#allocation2 + $0xc] sm:$0xf]
        %s1257 = scalar_lea.vmem %s3, 64
        %v1258 = vld [vmem:[%s1257] sm:$0xf]
        %v1259 = vld [vmem:[%s1257 + $0x4] sm:$0xf]
        %v1260 = vld [vmem:[%s1257 + $0x8] sm:$0xf]
        %v1261 = vld [vmem:[%s1257 + $0xc] sm:$0xf]
        %v1262 = vld [vmem:[%s1257 + $0x10] sm:$0xf]
        %v1263 = vld [vmem:[%s1257 + $0x14] sm:$0xf]
        %v1264 = vld [vmem:[%s1257 + $0x18] sm:$0xf]
        %v1265 = vld [vmem:[%s1257 + $0x1c] sm:$0xf]
        %v1266 = vld [vmem:[%s1257 + $0x20] sm:$0xf]
        %v1267 = vld [vmem:[%s1257 + $0x24] sm:$0xf]
        %v1268 = vld [vmem:[%s1257 + $0x28] sm:$0xf]
        %v1269 = vld [vmem:[%s1257 + $0x2c] sm:$0xf]
        %v1270 = vld [vmem:[%s1257 + $0x30] sm:$0xf]
        %v1271 = vld [vmem:[%s1257 + $0x34] sm:$0xf]
        %v1272 = vld [vmem:[%s1257 + $0x38] sm:$0xf]
        %v1273 = vld [vmem:[%s1257 + $0x3c] sm:$0xf]
        %s1274 = scalar_lea.vmem %s4, 1
        %v1275 = vld [vmem:[%s1274] sm:$0x1]
        %v1277 = vlaneseq
        %v1278 = vshrl.u32 %v1277, 7
        %v1279 = vsub.s32 0, %v1278
        %v1280 = vrot.slane %v1275, %v1279
        %v1298 = vunpack.c.l.b16 %v1258
        %v1299 = vunpack.c.l.b16 %v1259
        %v1300 = vunpack.c.l.b16 %v1260
        %v1301 = vunpack.c.l.b16 %v1261
        %v1302 = vunpack.c.l.b16 %v1262
        %v1303 = vunpack.c.l.b16 %v1263
        %v1304 = vunpack.c.l.b16 %v1264
        %v1305 = vunpack.c.l.b16 %v1265
        %v1306 = vunpack.c.l.b16 %v1266
        %v1307 = vunpack.c.l.b16 %v1267
        %v1308 = vunpack.c.l.b16 %v1268
        %v1309 = vunpack.c.l.b16 %v1269
        %v1310 = vunpack.c.l.b16 %v1270
        %v1311 = vunpack.c.l.b16 %v1271
        %v1312 = vunpack.c.l.b16 %v1272
        %v1313 = vunpack.c.l.b16 %v1273
        %v1314 = vpack.c.b16 %v1299, %v1298
        %v1315 = vpack.c.b16 %v1301, %v1300
        %v1316 = vpack.c.b16 %v1303, %v1302
        %v1317 = vpack.c.b16 %v1305, %v1304
        %v1318 = vpack.c.b16 %v1307, %v1306
        %v1319 = vpack.c.b16 %v1309, %v1308
        %v1320 = vpack.c.b16 %v1311, %v1310
        %v1321 = vpack.c.b16 %v1313, %v1312
        %1330 = vmatprep.subr.bf16.mxu0 0
        %1331 = vmatpush1.bf16.msra.mxu0 %v1321
        %1332 = vmatprep.subr.bf16.mxu0 0
        %1333 = vmatpush1.bf16.msra.mxu0 %v1320
        %1334 = vmatprep.subr.bf16.mxu0 0
        %1335 = vmatpush1.bf16.msra.mxu0 %v1319
        %1336 = vmatprep.subr.bf16.mxu0 0
        %1337 = vmatpush1.bf16.msra.mxu0 %v1318
        %1338 = vmatprep.subr.bf16.mxu0 0
        %1339 = vmatpush1.bf16.msra.mxu0 %v1317
        %1340 = vmatprep.subr.bf16.mxu0 0
        %1341 = vmatpush1.bf16.msra.mxu0 %v1316
        %1342 = vmatprep.subr.bf16.mxu0 0
        %1343 = vmatpush1.bf16.msra.mxu0 %v1315
        %1344 = vmatprep.subr.bf16.mxu0 0
        %1345 = vmatpush1.bf16.msra.mxu0 %v1314
        %1346 = vmatprep.subr.bf16.mxu0 0
        %1347 = vmatpush2.bf16.msra.mxu0 0
        %1348 = vmatprep.subr.bf16.mxu0 0
        %1349 = vmatpush2.bf16.msra.mxu0 0
        %1350 = vmatprep.subr.bf16.mxu0 0
        %1351 = vmatpush2.bf16.msra.mxu0 0
        %1352 = vmatprep.subr.bf16.mxu0 0
        %1353 = vmatpush2.bf16.msra.mxu0 0
        %1354 = vmatprep.subr.bf16.mxu0 0
        %1355 = vmatpush2.bf16.msra.mxu0 0
        %1356 = vmatprep.subr.bf16.mxu0 0
        %1357 = vmatpush2.bf16.msra.mxu0 0
        %1358 = vmatprep.subr.bf16.mxu0 0
        %1359 = vmatpush2.bf16.msra.mxu0 0
        %1360 = vmatprep.subr.bf16.mxu0 0
        %1361 = vmatpush2.bf16.msra.mxu0 0
        %1362 = vmatprep.mubr.bf16.mxu0 0
        %1363 = vmatmul.mubr.bf16.gmra.mxu0 %v797
        %v1364 = vpop.f32.mrf.mxu0
        %v1365 = vadd.f32 %v1280, %v1364
        %v1366 = vpop.f32.mrf.mxu0
        %v1367 = vpop.f32.mrf.mxu0
        %v1368 = vpop.f32.mrf.mxu0
        %1369 = vdwg.mxu0
        %s1370 = scalar_lea.vmem %s3, 320
        %v1371 = vld [vmem:[%s1370] sm:$0xf]
        %v1372 = vld [vmem:[%s1370 + $0x4] sm:$0xf]
        %v1373 = vld [vmem:[%s1370 + $0x8] sm:$0xf]
        %v1374 = vld [vmem:[%s1370 + $0xc] sm:$0xf]
        %v1375 = vld [vmem:[%s1370 + $0x10] sm:$0xf]
        %v1376 = vld [vmem:[%s1370 + $0x14] sm:$0xf]
        %v1377 = vld [vmem:[%s1370 + $0x18] sm:$0xf]
        %v1378 = vld [vmem:[%s1370 + $0x1c] sm:$0xf]
        %v1379 = vld [vmem:[%s1370 + $0x20] sm:$0xf]
        %v1380 = vld [vmem:[%s1370 + $0x24] sm:$0xf]
        %v1381 = vld [vmem:[%s1370 + $0x28] sm:$0xf]
        %v1382 = vld [vmem:[%s1370 + $0x2c] sm:$0xf]
        %v1383 = vld [vmem:[%s1370 + $0x30] sm:$0xf]
        %v1384 = vld [vmem:[%s1370 + $0x34] sm:$0xf]
        %v1385 = vld [vmem:[%s1370 + $0x38] sm:$0xf]
        %v1386 = vld [vmem:[%s1370 + $0x3c] sm:$0xf]
        %s1387 = scalar_lea.vmem %s4, 5
        %v1388 = vld [vmem:[%s1387] sm:$0x1]
        %v1390 = vlaneseq
        %v1391 = vshrl.u32 %v1390, 7
        %v1392 = vsub.s32 0, %v1391
        %v1393 = vrot.slane %v1388, %v1392
        %v1411 = vunpack.c.l.b16 %v1371
        %v1412 = vunpack.c.l.b16 %v1372
        %v1413 = vunpack.c.l.b16 %v1373
        %v1414 = vunpack.c.l.b16 %v1374
        %v1415 = vunpack.c.l.b16 %v1375
        %v1416 = vunpack.c.l.b16 %v1376
        %v1417 = vunpack.c.l.b16 %v1377
        %v1418 = vunpack.c.l.b16 %v1378
        %v1419 = vunpack.c.l.b16 %v1379
        %v1420 = vunpack.c.l.b16 %v1380
        %v1421 = vunpack.c.l.b16 %v1381
        %v1422 = vunpack.c.l.b16 %v1382
        %v1423 = vunpack.c.l.b16 %v1383
        %v1424 = vunpack.c.l.b16 %v1384
        %v1425 = vunpack.c.l.b16 %v1385
        %v1426 = vunpack.c.l.b16 %v1386
        %v1427 = vpack.c.b16 %v1412, %v1411
        %v1428 = vpack.c.b16 %v1414, %v1413
        %v1429 = vpack.c.b16 %v1416, %v1415
        %v1430 = vpack.c.b16 %v1418, %v1417
        %v1431 = vpack.c.b16 %v1420, %v1419
        %v1432 = vpack.c.b16 %v1422, %v1421
        %v1433 = vpack.c.b16 %v1424, %v1423
        %v1434 = vpack.c.b16 %v1426, %v1425
        %1443 = vmatprep.subr.bf16.mxu0 0
        %1444 = vmatpush1.bf16.msra.mxu0 %v1434
        %1445 = vmatprep.subr.bf16.mxu0 0
        %1446 = vmatpush1.bf16.msra.mxu0 %v1433
        %1447 = vmatprep.subr.bf16.mxu0 0
        %1448 = vmatpush1.bf16.msra.mxu0 %v1432
        %1449 = vmatprep.subr.bf16.mxu0 0
        %1450 = vmatpush1.bf16.msra.mxu0 %v1431
        %1451 = vmatprep.subr.bf16.mxu0 0
        %1452 = vmatpush1.bf16.msra.mxu0 %v1430
        %1453 = vmatprep.subr.bf16.mxu0 0
        %1454 = vmatpush1.bf16.msra.mxu0 %v1429
        %1455 = vmatprep.subr.bf16.mxu0 0
        %1456 = vmatpush1.bf16.msra.mxu0 %v1428
        %1457 = vmatprep.subr.bf16.mxu0 0
        %1458 = vmatpush1.bf16.msra.mxu0 %v1427
        %1459 = vmatprep.subr.bf16.mxu0 0
        %1460 = vmatpush2.bf16.msra.mxu0 0
        %1461 = vmatprep.subr.bf16.mxu0 0
        %1462 = vmatpush2.bf16.msra.mxu0 0
        %1463 = vmatprep.subr.bf16.mxu0 0
        %1464 = vmatpush2.bf16.msra.mxu0 0
        %1465 = vmatprep.subr.bf16.mxu0 0
        %1466 = vmatpush2.bf16.msra.mxu0 0
        %1467 = vmatprep.subr.bf16.mxu0 0
        %1468 = vmatpush2.bf16.msra.mxu0 0
        %1469 = vmatprep.subr.bf16.mxu0 0
        %1470 = vmatpush2.bf16.msra.mxu0 0
        %1471 = vmatprep.subr.bf16.mxu0 0
        %1472 = vmatpush2.bf16.msra.mxu0 0
        %1473 = vmatprep.subr.bf16.mxu0 0
        %1474 = vmatpush2.bf16.msra.mxu0 0
        %1475 = vmatprep.mubr.bf16.mxu0 0
        %1476 = vmatmul.mubr.bf16.gmra.mxu0 %v797
        %v1477 = vpop.f32.mrf.mxu0
        %v1478 = vadd.f32 %v1393, %v1477
        %v1479 = vpop.f32.mrf.mxu0
        %v1480 = vpop.f32.mrf.mxu0
        %v1481 = vpop.f32.mrf.mxu0
        %1482 = vdwg.mxu0
        %s1483 = scalar_lea.vmem %s3, 576
        %v1484 = vld [vmem:[%s1483] sm:$0xf]
        %v1485 = vld [vmem:[%s1483 + $0x4] sm:$0xf]
        %v1486 = vld [vmem:[%s1483 + $0x8] sm:$0xf]
        %v1487 = vld [vmem:[%s1483 + $0xc] sm:$0xf]
        %v1488 = vld [vmem:[%s1483 + $0x10] sm:$0xf]
        %v1489 = vld [vmem:[%s1483 + $0x14] sm:$0xf]
        %v1490 = vld [vmem:[%s1483 + $0x18] sm:$0xf]
        %v1491 = vld [vmem:[%s1483 + $0x1c] sm:$0xf]
        %v1492 = vld [vmem:[%s1483 + $0x20] sm:$0xf]
        %v1493 = vld [vmem:[%s1483 + $0x24] sm:$0xf]
        %v1494 = vld [vmem:[%s1483 + $0x28] sm:$0xf]
        %v1495 = vld [vmem:[%s1483 + $0x2c] sm:$0xf]
        %v1496 = vld [vmem:[%s1483 + $0x30] sm:$0xf]
        %v1497 = vld [vmem:[%s1483 + $0x34] sm:$0xf]
        %v1498 = vld [vmem:[%s1483 + $0x38] sm:$0xf]
        %v1499 = vld [vmem:[%s1483 + $0x3c] sm:$0xf]
        %s1500 = scalar_lea.vmem %s4, 9
        %v1501 = vld [vmem:[%s1500] sm:$0x1]
        %v1503 = vlaneseq
        %v1504 = vshrl.u32 %v1503, 7
        %v1505 = vsub.s32 0, %v1504
        %v1506 = vrot.slane %v1501, %v1505
        %v1524 = vunpack.c.l.b16 %v1484
        %v1525 = vunpack.c.l.b16 %v1485
        %v1526 = vunpack.c.l.b16 %v1486
        %v1527 = vunpack.c.l.b16 %v1487
        %v1528 = vunpack.c.l.b16 %v1488
        %v1529 = vunpack.c.l.b16 %v1489
        %v1530 = vunpack.c.l.b16 %v1490
        %v1531 = vunpack.c.l.b16 %v1491
        %v1532 = vunpack.c.l.b16 %v1492
        %v1533 = vunpack.c.l.b16 %v1493
        %v1534 = vunpack.c.l.b16 %v1494
        %v1535 = vunpack.c.l.b16 %v1495
        %v1536 = vunpack.c.l.b16 %v1496
        %v1537 = vunpack.c.l.b16 %v1497
        %v1538 = vunpack.c.l.b16 %v1498
        %v1539 = vunpack.c.l.b16 %v1499
        %v1540 = vpack.c.b16 %v1525, %v1524
        %v1541 = vpack.c.b16 %v1527, %v1526
        %v1542 = vpack.c.b16 %v1529, %v1528
        %v1543 = vpack.c.b16 %v1531, %v1530
        %v1544 = vpack.c.b16 %v1533, %v1532
        %v1545 = vpack.c.b16 %v1535, %v1534
        %v1546 = vpack.c.b16 %v1537, %v1536
        %v1547 = vpack.c.b16 %v1539, %v1538
        %1556 = vmatprep.subr.bf16.mxu0 0
        %1557 = vmatpush1.bf16.msra.mxu0 %v1547
        %1558 = vmatprep.subr.bf16.mxu0 0
        %1559 = vmatpush1.bf16.msra.mxu0 %v1546
        %1560 = vmatprep.subr.bf16.mxu0 0
        %1561 = vmatpush1.bf16.msra.mxu0 %v1545
        %1562 = vmatprep.subr.bf16.mxu0 0
        %1563 = vmatpush1.bf16.msra.mxu0 %v1544
        %1564 = vmatprep.subr.bf16.mxu0 0
        %1565 = vmatpush1.bf16.msra.mxu0 %v1543
        %1566 = vmatprep.subr.bf16.mxu0 0
        %1567 = vmatpush1.bf16.msra.mxu0 %v1542
        %1568 = vmatprep.subr.bf16.mxu0 0
        %1569 = vmatpush1.bf16.msra.mxu0 %v1541
        %1570 = vmatprep.subr.bf16.mxu0 0
        %1571 = vmatpush1.bf16.msra.mxu0 %v1540
        %1572 = vmatprep.subr.bf16.mxu0 0
        %1573 = vmatpush2.bf16.msra.mxu0 0
        %1574 = vmatprep.subr.bf16.mxu0 0
        %1575 = vmatpush2.bf16.msra.mxu0 0
        %1576 = vmatprep.subr.bf16.mxu0 0
        %1577 = vmatpush2.bf16.msra.mxu0 0
        %1578 = vmatprep.subr.bf16.mxu0 0
        %1579 = vmatpush2.bf16.msra.mxu0 0
        %1580 = vmatprep.subr.bf16.mxu0 0
        %1581 = vmatpush2.bf16.msra.mxu0 0
        %1582 = vmatprep.subr.bf16.mxu0 0
        %1583 = vmatpush2.bf16.msra.mxu0 0
        %1584 = vmatprep.subr.bf16.mxu0 0
        %1585 = vmatpush2.bf16.msra.mxu0 0
        %1586 = vmatprep.subr.bf16.mxu0 0
        %1587 = vmatpush2.bf16.msra.mxu0 0
        %1588 = vmatprep.mubr.bf16.mxu0 0
        %1589 = vmatmul.mubr.bf16.gmra.mxu0 %v797
        %v1590 = vpop.f32.mrf.mxu0
        %v1591 = vadd.f32 %v1506, %v1590
        %v1592 = vpop.f32.mrf.mxu0
        %v1593 = vpop.f32.mrf.mxu0
        %v1594 = vpop.f32.mrf.mxu0
        %1595 = vdwg.mxu0
        %v1596 = vpack.c.bf16 %v1365, %v1365
        %v1597 = vpack.c.bf16 %v1478, %v1478
        %v1599 = vsel %vm1144, %v1596, 0
        %v1602 = vsel %vm1144, %v1597, 0
        %1604 = vmatprep.subr.bf16.mxu0 0
        %1605 = vmatpush1.bf16.xpose.msra.mxu0 0
        %1606 = vmatprep.subr.bf16.mxu0 0
        %1607 = vmatpush1.bf16.xpose.msra.mxu0 0
        %1608 = vmatprep.subr.bf16.mxu0 0
        %1609 = vmatpush1.bf16.xpose.msra.mxu0 0
        %1610 = vmatprep.subr.bf16.mxu0 0
        %1611 = vmatpush1.bf16.xpose.msra.mxu0 0
        %1612 = vmatprep.subr.bf16.mxu0 0
        %1613 = vmatpush1.bf16.xpose.msra.mxu0 0
        %1614 = vmatprep.subr.bf16.mxu0 0
        %1615 = vmatpush1.bf16.xpose.msra.mxu0 0
        %1616 = vmatprep.subr.bf16.mxu0 0
        %1617 = vmatpush1.bf16.xpose.msra.mxu0 0
        %1618 = vmatprep.subr.bf16.mxu0 0
        %1619 = vmatpush1.bf16.xpose.msra.mxu0 %v1602
        %1620 = vmatprep.subr.bf16.mxu0 0
        %1621 = vmatpush2.bf16.xpose.msra.mxu0 0
        %1622 = vmatprep.subr.bf16.mxu0 0
        %1623 = vmatpush2.bf16.xpose.msra.mxu0 0
        %1624 = vmatprep.subr.bf16.mxu0 0
        %1625 = vmatpush2.bf16.xpose.msra.mxu0 0
        %1626 = vmatprep.subr.bf16.mxu0 0
        %1627 = vmatpush2.bf16.xpose.msra.mxu0 0
        %1628 = vmatprep.subr.bf16.mxu0 0
        %1629 = vmatpush2.bf16.xpose.msra.mxu0 0
        %1630 = vmatprep.subr.bf16.mxu0 0
        %1631 = vmatpush2.bf16.xpose.msra.mxu0 0
        %1632 = vmatprep.subr.bf16.mxu0 0
        %1633 = vmatpush2.bf16.xpose.msra.mxu0 0
        %1634 = vmatprep.subr.bf16.mxu0 0
        %1635 = vmatpush2.bf16.xpose.msra.mxu0 0
        %1636 = vmatprep.mubr.bf16.mxu0 0
        %1637 = vmatmul.mubr.bf16.gmra.mxu0 %v1599
        %v1638 = vpop.f32.mrf.mxu0
        %v1639 = vadd.f32 %v804, %v1638
        %v1640 = vpop.f32.mrf.mxu0
        %v1641 = vpop.f32.mrf.mxu0
        %v1642 = vpop.f32.mrf.mxu0
        %1643 = vdwg.mxu0
        %v1644 = vsel %vm1191, %v1639, -inf
        %1645 = vmax.xlane.f32.xlu0 %v1644
        %v1646 = vpop.xlane.xlu0 %1645
        %v1647 = vsub.f32 %v1639, %v1646
        %v1648 = vmul.f32 %v1647, 1.442695
        %v1649 = vpow.pop %v1648
        %v1650 = vsel %vm1191, %v1649, 0.0
        %1651 = vadd.xlane.f32.xlu0 %v1650
        %v1652 = vpop.xlane.xlu0 %1651
        %v1653 = vrcp.pop %v1652
        %v1654 = vmul.f32 %v1649, %v1653
        %v1655 = vpack.c.bf16 %v1654, %v1654
        %v1656 = vpack.c.bf16 %v1591, %v1591
        %v1658 = vsel %vm1191, %v1655, 0
        %v1661 = vsel %vm1208, %v1656, 0
        %1663 = vmatprep.subr.bf16.mxu0 0
        %1664 = vmatpush1.bf16.msra.mxu0 0
        %1665 = vmatprep.subr.bf16.mxu0 0
        %1666 = vmatpush1.bf16.msra.mxu0 0
        %1667 = vmatprep.subr.bf16.mxu0 0
        %1668 = vmatpush1.bf16.msra.mxu0 0
        %1669 = vmatprep.subr.bf16.mxu0 0
        %1670 = vmatpush1.bf16.msra.mxu0 0
        %1671 = vmatprep.subr.bf16.mxu0 0
        %1672 = vmatpush1.bf16.msra.mxu0 0
        %1673 = vmatprep.subr.bf16.mxu0 0
        %1674 = vmatpush1.bf16.msra.mxu0 0
        %1675 = vmatprep.subr.bf16.mxu0 0
        %1676 = vmatpush1.bf16.msra.mxu0 0
        %1677 = vmatprep.subr.bf16.mxu0 0
        %1678 = vmatpush1.bf16.msra.mxu0 %v1661
        %1679 = vmatprep.subr.bf16.mxu0 0
        %1680 = vmatpush2.bf16.msra.mxu0 0
        %1681 = vmatprep.subr.bf16.mxu0 0
        %1682 = vmatpush2.bf16.msra.mxu0 0
        %1683 = vmatprep.subr.bf16.mxu0 0
        %1684 = vmatpush2.bf16.msra.mxu0 0
        %1685 = vmatprep.subr.bf16.mxu0 0
        %1686 = vmatpush2.bf16.msra.mxu0 0
        %1687 = vmatprep.subr.bf16.mxu0 0
        %1688 = vmatpush2.bf16.msra.mxu0 0
        %1689 = vmatprep.subr.bf16.mxu0 0
        %1690 = vmatpush2.bf16.msra.mxu0 0
        %1691 = vmatprep.subr.bf16.mxu0 0
        %1692 = vmatpush2.bf16.msra.mxu0 0
        %1693 = vmatprep.subr.bf16.mxu0 0
        %1694 = vmatpush2.bf16.msra.mxu0 0
        %1695 = vmatprep.mubr.bf16.mxu0 0
        %1696 = vmatmul.mubr.bf16.gmra.mxu0 %v1658
        %v1697 = vpop.f32.mrf.mxu0
        %v1698 = vadd.f32 0.0, %v1697
        %v1699 = vpop.f32.mrf.mxu0
        %v1700 = vpop.f32.mrf.mxu0
        %v1701 = vpop.f32.mrf.mxu0
        %1702 = vdwg.mxu0
        %v1703 = vpack.c.bf16 %v1698, %v1698
        %s1704 = scalar_lea.vmem [#allocation2], 16
        %v1705 = vld [vmem:[%s1704] sm:$0xf]
        %v1706 = vld [vmem:[%s1704 + $0x4] sm:$0xf]
        %v1707 = vld [vmem:[%s1704 + $0x8] sm:$0xf]
        %v1708 = vld [vmem:[%s1704 + $0xc] sm:$0xf]
        %v1713 = vunpack.c.l.b16 %v1705
        %v1714 = vunpack.c.l.b16 %v1706
        %v1715 = vunpack.c.l.b16 %v1707
        %v1716 = vunpack.c.l.b16 %v1708
        %v1717 = vpack.c.b16 %v1714, %v1713
        %v1718 = vpack.c.b16 %v1716, %v1715
        %v1722 = vsel %vm1144, %v1703, 0
        %1724 = vmatprep.subr.bf16.mxu0 0
        %1725 = vmatpush1.bf16.msra.mxu0 0
        %1726 = vmatprep.subr.bf16.mxu0 0
        %1727 = vmatpush1.bf16.msra.mxu0 0
        %1728 = vmatprep.subr.bf16.mxu0 0
        %1729 = vmatpush1.bf16.msra.mxu0 0
        %1730 = vmatprep.subr.bf16.mxu0 0
        %1731 = vmatpush1.bf16.msra.mxu0 0
        %1732 = vmatprep.subr.bf16.mxu0 0
        %1733 = vmatpush1.bf16.msra.mxu0 0
        %1734 = vmatprep.subr.bf16.mxu0 0
        %1735 = vmatpush1.bf16.msra.mxu0 0
        %1736 = vmatprep.subr.bf16.mxu0 0
        %1737 = vmatpush1.bf16.msra.mxu0 %v1718
        %1738 = vmatprep.subr.bf16.mxu0 0
        %1739 = vmatpush1.bf16.msra.mxu0 %v1717
        %1740 = vmatprep.subr.bf16.mxu0 0
        %1741 = vmatpush2.bf16.msra.mxu0 0
        %1742 = vmatprep.subr.bf16.mxu0 0
        %1743 = vmatpush2.bf16.msra.mxu0 0
        %1744 = vmatprep.subr.bf16.mxu0 0
        %1745 = vmatpush2.bf16.msra.mxu0 0
        %1746 = vmatprep.subr.bf16.mxu0 0
        %1747 = vmatpush2.bf16.msra.mxu0 0
        %1748 = vmatprep.subr.bf16.mxu0 0
        %1749 = vmatpush2.bf16.msra.mxu0 0
        %1750 = vmatprep.subr.bf16.mxu0 0
        %1751 = vmatpush2.bf16.msra.mxu0 0
        %1752 = vmatprep.subr.bf16.mxu0 0
        %1753 = vmatpush2.bf16.msra.mxu0 0
        %1754 = vmatprep.subr.bf16.mxu0 0
        %1755 = vmatpush2.bf16.msra.mxu0 0
        %1756 = vmatprep.mubr.bf16.mxu0 0
        %1757 = vmatmul.mubr.bf16.gmra.mxu0 %v1722
        %v1758 = vpop.f32.mrf.mxu0
        %v1759 = vadd.f32 0.0, %v1758
        %v1760 = vpop.f32.mrf.mxu0
        %v1761 = vpop.f32.mrf.mxu0
        %v1762 = vpop.f32.mrf.mxu0
        %1763 = vdwg.mxu0
        %v1768 = vunpack.c.l.b16 %v1253
        %v1769 = vunpack.c.l.b16 %v1254
        %v1770 = vunpack.c.l.b16 %v1255
        %v1771 = vunpack.c.l.b16 %v1256
        %v1772 = vpack.c.b16 %v1769, %v1768
        %v1773 = vpack.c.b16 %v1771, %v1770
        %v1777 = vsel %vm1144, %v1252, 0
        %1779 = vmatprep.subr.bf16.mxu0 0
        %1780 = vmatpush1.bf16.msra.mxu0 0
        %1781 = vmatprep.subr.bf16.mxu0 0
        %1782 = vmatpush1.bf16.msra.mxu0 0
        %1783 = vmatprep.subr.bf16.mxu0 0
        %1784 = vmatpush1.bf16.msra.mxu0 0
        %1785 = vmatprep.subr.bf16.mxu0 0
        %1786 = vmatpush1.bf16.msra.mxu0 0
        %1787 = vmatprep.subr.bf16.mxu0 0
        %1788 = vmatpush1.bf16.msra.mxu0 0
        %1789 = vmatprep.subr.bf16.mxu0 0
        %1790 = vmatpush1.bf16.msra.mxu0 0
        %1791 = vmatprep.subr.bf16.mxu0 0
        %1792 = vmatpush1.bf16.msra.mxu0 %v1773
        %1793 = vmatprep.subr.bf16.mxu0 0
        %1794 = vmatpush1.bf16.msra.mxu0 %v1772
        %1795 = vmatprep.subr.bf16.mxu0 0
        %1796 = vmatpush2.bf16.msra.mxu0 0
        %1797 = vmatprep.subr.bf16.mxu0 0
        %1798 = vmatpush2.bf16.msra.mxu0 0
        %1799 = vmatprep.subr.bf16.mxu0 0
        %1800 = vmatpush2.bf16.msra.mxu0 0
        %1801 = vmatprep.subr.bf16.mxu0 0
        %1802 = vmatpush2.bf16.msra.mxu0 0
        %1803 = vmatprep.subr.bf16.mxu0 0
        %1804 = vmatpush2.bf16.msra.mxu0 0
        %1805 = vmatprep.subr.bf16.mxu0 0
        %1806 = vmatpush2.bf16.msra.mxu0 0
        %1807 = vmatprep.subr.bf16.mxu0 0
        %1808 = vmatpush2.bf16.msra.mxu0 0
        %1809 = vmatprep.subr.bf16.mxu0 0
        %1810 = vmatpush2.bf16.msra.mxu0 0
        %1811 = vmatprep.mubr.bf16.mxu0 0
        %1812 = vmatmul.mubr.bf16.gmra.mxu0 %v1777
        %v1813 = vpop.f32.mrf.mxu0
        %v1814 = vadd.f32 %v1759, %v1813
        %v1815 = vpop.f32.mrf.mxu0
        %v1816 = vpop.f32.mrf.mxu0
        %v1817 = vpop.f32.mrf.mxu0
        %1818 = vdwg.mxu0
        %s1819 = scalar_lea.vmem %s3, 128
        %v1820 = vld [vmem:[%s1819] sm:$0xf]
        %v1821 = vld [vmem:[%s1819 + $0x4] sm:$0xf]
        %v1822 = vld [vmem:[%s1819 + $0x8] sm:$0xf]
        %v1823 = vld [vmem:[%s1819 + $0xc] sm:$0xf]
        %v1824 = vld [vmem:[%s1819 + $0x10] sm:$0xf]
        %v1825 = vld [vmem:[%s1819 + $0x14] sm:$0xf]
        %v1826 = vld [vmem:[%s1819 + $0x18] sm:$0xf]
        %v1827 = vld [vmem:[%s1819 + $0x1c] sm:$0xf]
        %v1828 = vld [vmem:[%s1819 + $0x20] sm:$0xf]
        %v1829 = vld [vmem:[%s1819 + $0x24] sm:$0xf]
        %v1830 = vld [vmem:[%s1819 + $0x28] sm:$0xf]
        %v1831 = vld [vmem:[%s1819 + $0x2c] sm:$0xf]
        %v1832 = vld [vmem:[%s1819 + $0x30] sm:$0xf]
        %v1833 = vld [vmem:[%s1819 + $0x34] sm:$0xf]
        %v1834 = vld [vmem:[%s1819 + $0x38] sm:$0xf]
        %v1835 = vld [vmem:[%s1819 + $0x3c] sm:$0xf]
        %s1836 = scalar_lea.vmem %s4, 2
        %v1837 = vld [vmem:[%s1836] sm:$0x1]
        %v1839 = vlaneseq
        %v1840 = vshrl.u32 %v1839, 7
        %v1841 = vsub.s32 0, %v1840
        %v1842 = vrot.slane %v1837, %v1841
        %v1860 = vunpack.c.l.b16 %v1820
        %v1861 = vunpack.c.l.b16 %v1821
        %v1862 = vunpack.c.l.b16 %v1822
        %v1863 = vunpack.c.l.b16 %v1823
        %v1864 = vunpack.c.l.b16 %v1824
        %v1865 = vunpack.c.l.b16 %v1825
        %v1866 = vunpack.c.l.b16 %v1826
        %v1867 = vunpack.c.l.b16 %v1827
        %v1868 = vunpack.c.l.b16 %v1828
        %v1869 = vunpack.c.l.b16 %v1829
        %v1870 = vunpack.c.l.b16 %v1830
        %v1871 = vunpack.c.l.b16 %v1831
        %v1872 = vunpack.c.l.b16 %v1832
        %v1873 = vunpack.c.l.b16 %v1833
        %v1874 = vunpack.c.l.b16 %v1834
        %v1875 = vunpack.c.l.b16 %v1835
        %v1876 = vpack.c.b16 %v1861, %v1860
        %v1877 = vpack.c.b16 %v1863, %v1862
        %v1878 = vpack.c.b16 %v1865, %v1864
        %v1879 = vpack.c.b16 %v1867, %v1866
        %v1880 = vpack.c.b16 %v1869, %v1868
        %v1881 = vpack.c.b16 %v1871, %v1870
        %v1882 = vpack.c.b16 %v1873, %v1872
        %v1883 = vpack.c.b16 %v1875, %v1874
        %1892 = vmatprep.subr.bf16.mxu0 0
        %1893 = vmatpush1.bf16.msra.mxu0 %v1883
        %1894 = vmatprep.subr.bf16.mxu0 0
        %1895 = vmatpush1.bf16.msra.mxu0 %v1882
        %1896 = vmatprep.subr.bf16.mxu0 0
        %1897 = vmatpush1.bf16.msra.mxu0 %v1881
        %1898 = vmatprep.subr.bf16.mxu0 0
        %1899 = vmatpush1.bf16.msra.mxu0 %v1880
        %1900 = vmatprep.subr.bf16.mxu0 0
        %1901 = vmatpush1.bf16.msra.mxu0 %v1879
        %1902 = vmatprep.subr.bf16.mxu0 0
        %1903 = vmatpush1.bf16.msra.mxu0 %v1878
        %1904 = vmatprep.subr.bf16.mxu0 0
        %1905 = vmatpush1.bf16.msra.mxu0 %v1877
        %1906 = vmatprep.subr.bf16.mxu0 0
        %1907 = vmatpush1.bf16.msra.mxu0 %v1876
        %1908 = vmatprep.subr.bf16.mxu0 0
        %1909 = vmatpush2.bf16.msra.mxu0 0
        %1910 = vmatprep.subr.bf16.mxu0 0
        %1911 = vmatpush2.bf16.msra.mxu0 0
        %1912 = vmatprep.subr.bf16.mxu0 0
        %1913 = vmatpush2.bf16.msra.mxu0 0
        %1914 = vmatprep.subr.bf16.mxu0 0
        %1915 = vmatpush2.bf16.msra.mxu0 0
        %1916 = vmatprep.subr.bf16.mxu0 0
        %1917 = vmatpush2.bf16.msra.mxu0 0
        %1918 = vmatprep.subr.bf16.mxu0 0
        %1919 = vmatpush2.bf16.msra.mxu0 0
        %1920 = vmatprep.subr.bf16.mxu0 0
        %1921 = vmatpush2.bf16.msra.mxu0 0
        %1922 = vmatprep.subr.bf16.mxu0 0
        %1923 = vmatpush2.bf16.msra.mxu0 0
        %1924 = vmatprep.mubr.bf16.mxu0 0
        %1925 = vmatmul.mubr.bf16.gmra.mxu0 %v797
        %v1926 = vpop.f32.mrf.mxu0
        %v1927 = vadd.f32 %v1842, %v1926
        %v1928 = vpop.f32.mrf.mxu0
        %v1929 = vpop.f32.mrf.mxu0
        %v1930 = vpop.f32.mrf.mxu0
        %1931 = vdwg.mxu0
        %s1932 = scalar_lea.vmem %s3, 384
        %v1933 = vld [vmem:[%s1932] sm:$0xf]
        %v1934 = vld [vmem:[%s1932 + $0x4] sm:$0xf]
        %v1935 = vld [vmem:[%s1932 + $0x8] sm:$0xf]
        %v1936 = vld [vmem:[%s1932 + $0xc] sm:$0xf]
        %v1937 = vld [vmem:[%s1932 + $0x10] sm:$0xf]
        %v1938 = vld [vmem:[%s1932 + $0x14] sm:$0xf]
        %v1939 = vld [vmem:[%s1932 + $0x18] sm:$0xf]
        %v1940 = vld [vmem:[%s1932 + $0x1c] sm:$0xf]
        %v1941 = vld [vmem:[%s1932 + $0x20] sm:$0xf]
        %v1942 = vld [vmem:[%s1932 + $0x24] sm:$0xf]
        %v1943 = vld [vmem:[%s1932 + $0x28] sm:$0xf]
        %v1944 = vld [vmem:[%s1932 + $0x2c] sm:$0xf]
        %v1945 = vld [vmem:[%s1932 + $0x30] sm:$0xf]
        %v1946 = vld [vmem:[%s1932 + $0x34] sm:$0xf]
        %v1947 = vld [vmem:[%s1932 + $0x38] sm:$0xf]
        %v1948 = vld [vmem:[%s1932 + $0x3c] sm:$0xf]
        %s1949 = scalar_lea.vmem %s4, 6
        %v1950 = vld [vmem:[%s1949] sm:$0x1]
        %v1952 = vlaneseq
        %v1953 = vshrl.u32 %v1952, 7
        %v1954 = vsub.s32 0, %v1953
        %v1955 = vrot.slane %v1950, %v1954
        %v1973 = vunpack.c.l.b16 %v1933
        %v1974 = vunpack.c.l.b16 %v1934
        %v1975 = vunpack.c.l.b16 %v1935
        %v1976 = vunpack.c.l.b16 %v1936
        %v1977 = vunpack.c.l.b16 %v1937
        %v1978 = vunpack.c.l.b16 %v1938
        %v1979 = vunpack.c.l.b16 %v1939
        %v1980 = vunpack.c.l.b16 %v1940
        %v1981 = vunpack.c.l.b16 %v1941
        %v1982 = vunpack.c.l.b16 %v1942
        %v1983 = vunpack.c.l.b16 %v1943
        %v1984 = vunpack.c.l.b16 %v1944
        %v1985 = vunpack.c.l.b16 %v1945
        %v1986 = vunpack.c.l.b16 %v1946
        %v1987 = vunpack.c.l.b16 %v1947
        %v1988 = vunpack.c.l.b16 %v1948
        %v1989 = vpack.c.b16 %v1974, %v1973
        %v1990 = vpack.c.b16 %v1976, %v1975
        %v1991 = vpack.c.b16 %v1978, %v1977
        %v1992 = vpack.c.b16 %v1980, %v1979
        %v1993 = vpack.c.b16 %v1982, %v1981
        %v1994 = vpack.c.b16 %v1984, %v1983
        %v1995 = vpack.c.b16 %v1986, %v1985
        %v1996 = vpack.c.b16 %v1988, %v1987
        %2005 = vmatprep.subr.bf16.mxu0 0
        %2006 = vmatpush1.bf16.msra.mxu0 %v1996
        %2007 = vmatprep.subr.bf16.mxu0 0
        %2008 = vmatpush1.bf16.msra.mxu0 %v1995
        %2009 = vmatprep.subr.bf16.mxu0 0
        %2010 = vmatpush1.bf16.msra.mxu0 %v1994
        %2011 = vmatprep.subr.bf16.mxu0 0
        %2012 = vmatpush1.bf16.msra.mxu0 %v1993
        %2013 = vmatprep.subr.bf16.mxu0 0
        %2014 = vmatpush1.bf16.msra.mxu0 %v1992
        %2015 = vmatprep.subr.bf16.mxu0 0
        %2016 = vmatpush1.bf16.msra.mxu0 %v1991
        %2017 = vmatprep.subr.bf16.mxu0 0
        %2018 = vmatpush1.bf16.msra.mxu0 %v1990
        %2019 = vmatprep.subr.bf16.mxu0 0
        %2020 = vmatpush1.bf16.msra.mxu0 %v1989
        %2021 = vmatprep.subr.bf16.mxu0 0
        %2022 = vmatpush2.bf16.msra.mxu0 0
        %2023 = vmatprep.subr.bf16.mxu0 0
        %2024 = vmatpush2.bf16.msra.mxu0 0
        %2025 = vmatprep.subr.bf16.mxu0 0
        %2026 = vmatpush2.bf16.msra.mxu0 0
        %2027 = vmatprep.subr.bf16.mxu0 0
        %2028 = vmatpush2.bf16.msra.mxu0 0
        %2029 = vmatprep.subr.bf16.mxu0 0
        %2030 = vmatpush2.bf16.msra.mxu0 0
        %2031 = vmatprep.subr.bf16.mxu0 0
        %2032 = vmatpush2.bf16.msra.mxu0 0
        %2033 = vmatprep.subr.bf16.mxu0 0
        %2034 = vmatpush2.bf16.msra.mxu0 0
        %2035 = vmatprep.subr.bf16.mxu0 0
        %2036 = vmatpush2.bf16.msra.mxu0 0
        %2037 = vmatprep.mubr.bf16.mxu0 0
        %2038 = vmatmul.mubr.bf16.gmra.mxu0 %v797
        %v2039 = vpop.f32.mrf.mxu0
        %v2040 = vadd.f32 %v1955, %v2039
        %v2041 = vpop.f32.mrf.mxu0
        %v2042 = vpop.f32.mrf.mxu0
        %v2043 = vpop.f32.mrf.mxu0
        %2044 = vdwg.mxu0
        %s2045 = scalar_lea.vmem %s3, 640
        %v2046 = vld [vmem:[%s2045] sm:$0xf]
        %v2047 = vld [vmem:[%s2045 + $0x4] sm:$0xf]
        %v2048 = vld [vmem:[%s2045 + $0x8] sm:$0xf]
        %v2049 = vld [vmem:[%s2045 + $0xc] sm:$0xf]
        %v2050 = vld [vmem:[%s2045 + $0x10] sm:$0xf]
        %v2051 = vld [vmem:[%s2045 + $0x14] sm:$0xf]
        %v2052 = vld [vmem:[%s2045 + $0x18] sm:$0xf]
        %v2053 = vld [vmem:[%s2045 + $0x1c] sm:$0xf]
        %v2054 = vld [vmem:[%s2045 + $0x20] sm:$0xf]
        %v2055 = vld [vmem:[%s2045 + $0x24] sm:$0xf]
        %v2056 = vld [vmem:[%s2045 + $0x28] sm:$0xf]
        %v2057 = vld [vmem:[%s2045 + $0x2c] sm:$0xf]
        %v2058 = vld [vmem:[%s2045 + $0x30] sm:$0xf]
        %v2059 = vld [vmem:[%s2045 + $0x34] sm:$0xf]
        %v2060 = vld [vmem:[%s2045 + $0x38] sm:$0xf]
        %v2061 = vld [vmem:[%s2045 + $0x3c] sm:$0xf]
        %s2062 = scalar_lea.vmem %s4, 10
        %v2063 = vld [vmem:[%s2062] sm:$0x1]
        %v2065 = vlaneseq
        %v2066 = vshrl.u32 %v2065, 7
        %v2067 = vsub.s32 0, %v2066
        %v2068 = vrot.slane %v2063, %v2067
        %v2086 = vunpack.c.l.b16 %v2046
        %v2087 = vunpack.c.l.b16 %v2047
        %v2088 = vunpack.c.l.b16 %v2048
        %v2089 = vunpack.c.l.b16 %v2049
        %v2090 = vunpack.c.l.b16 %v2050
        %v2091 = vunpack.c.l.b16 %v2051
        %v2092 = vunpack.c.l.b16 %v2052
        %v2093 = vunpack.c.l.b16 %v2053
        %v2094 = vunpack.c.l.b16 %v2054
        %v2095 = vunpack.c.l.b16 %v2055
        %v2096 = vunpack.c.l.b16 %v2056
        %v2097 = vunpack.c.l.b16 %v2057
        %v2098 = vunpack.c.l.b16 %v2058
        %v2099 = vunpack.c.l.b16 %v2059
        %v2100 = vunpack.c.l.b16 %v2060
        %v2101 = vunpack.c.l.b16 %v2061
        %v2102 = vpack.c.b16 %v2087, %v2086
        %v2103 = vpack.c.b16 %v2089, %v2088
        %v2104 = vpack.c.b16 %v2091, %v2090
        %v2105 = vpack.c.b16 %v2093, %v2092
        %v2106 = vpack.c.b16 %v2095, %v2094
        %v2107 = vpack.c.b16 %v2097, %v2096
        %v2108 = vpack.c.b16 %v2099, %v2098
        %v2109 = vpack.c.b16 %v2101, %v2100
        %2118 = vmatprep.subr.bf16.mxu0 0
        %2119 = vmatpush1.bf16.msra.mxu0 %v2109
        %2120 = vmatprep.subr.bf16.mxu0 0
        %2121 = vmatpush1.bf16.msra.mxu0 %v2108
        %2122 = vmatprep.subr.bf16.mxu0 0
        %2123 = vmatpush1.bf16.msra.mxu0 %v2107
        %2124 = vmatprep.subr.bf16.mxu0 0
        %2125 = vmatpush1.bf16.msra.mxu0 %v2106
        %2126 = vmatprep.subr.bf16.mxu0 0
        %2127 = vmatpush1.bf16.msra.mxu0 %v2105
        %2128 = vmatprep.subr.bf16.mxu0 0
        %2129 = vmatpush1.bf16.msra.mxu0 %v2104
        %2130 = vmatprep.subr.bf16.mxu0 0
        %2131 = vmatpush1.bf16.msra.mxu0 %v2103
        %2132 = vmatprep.subr.bf16.mxu0 0
        %2133 = vmatpush1.bf16.msra.mxu0 %v2102
        %2134 = vmatprep.subr.bf16.mxu0 0
        %2135 = vmatpush2.bf16.msra.mxu0 0
        %2136 = vmatprep.subr.bf16.mxu0 0
        %2137 = vmatpush2.bf16.msra.mxu0 0
        %2138 = vmatprep.subr.bf16.mxu0 0
        %2139 = vmatpush2.bf16.msra.mxu0 0
        %2140 = vmatprep.subr.bf16.mxu0 0
        %2141 = vmatpush2.bf16.msra.mxu0 0
        %2142 = vmatprep.subr.bf16.mxu0 0
        %2143 = vmatpush2.bf16.msra.mxu0 0
        %2144 = vmatprep.subr.bf16.mxu0 0
        %2145 = vmatpush2.bf16.msra.mxu0 0
        %2146 = vmatprep.subr.bf16.mxu0 0
        %2147 = vmatpush2.bf16.msra.mxu0 0
        %2148 = vmatprep.subr.bf16.mxu0 0
        %2149 = vmatpush2.bf16.msra.mxu0 0
        %2150 = vmatprep.mubr.bf16.mxu0 0
        %2151 = vmatmul.mubr.bf16.gmra.mxu0 %v797
        %v2152 = vpop.f32.mrf.mxu0
        %v2153 = vadd.f32 %v2068, %v2152
        %v2154 = vpop.f32.mrf.mxu0
        %v2155 = vpop.f32.mrf.mxu0
        %v2156 = vpop.f32.mrf.mxu0
        %2157 = vdwg.mxu0
        %v2158 = vpack.c.bf16 %v1927, %v1927
        %v2159 = vpack.c.bf16 %v2040, %v2040
        %v2161 = vsel %vm1144, %v2158, 0
        %v2164 = vsel %vm1144, %v2159, 0
        %2166 = vmatprep.subr.bf16.mxu0 0
        %2167 = vmatpush1.bf16.xpose.msra.mxu0 0
        %2168 = vmatprep.subr.bf16.mxu0 0
        %2169 = vmatpush1.bf16.xpose.msra.mxu0 0
        %2170 = vmatprep.subr.bf16.mxu0 0
        %2171 = vmatpush1.bf16.xpose.msra.mxu0 0
        %2172 = vmatprep.subr.bf16.mxu0 0
        %2173 = vmatpush1.bf16.xpose.msra.mxu0 0
        %2174 = vmatprep.subr.bf16.mxu0 0
        %2175 = vmatpush1.bf16.xpose.msra.mxu0 0
        %2176 = vmatprep.subr.bf16.mxu0 0
        %2177 = vmatpush1.bf16.xpose.msra.mxu0 0
        %2178 = vmatprep.subr.bf16.mxu0 0
        %2179 = vmatpush1.bf16.xpose.msra.mxu0 0
        %2180 = vmatprep.subr.bf16.mxu0 0
        %2181 = vmatpush1.bf16.xpose.msra.mxu0 %v2164
        %2182 = vmatprep.subr.bf16.mxu0 0
        %2183 = vmatpush2.bf16.xpose.msra.mxu0 0
        %2184 = vmatprep.subr.bf16.mxu0 0
        %2185 = vmatpush2.bf16.xpose.msra.mxu0 0
        %2186 = vmatprep.subr.bf16.mxu0 0
        %2187 = vmatpush2.bf16.xpose.msra.mxu0 0
        %2188 = vmatprep.subr.bf16.mxu0 0
        %2189 = vmatpush2.bf16.xpose.msra.mxu0 0
        %2190 = vmatprep.subr.bf16.mxu0 0
        %2191 = vmatpush2.bf16.xpose.msra.mxu0 0
        %2192 = vmatprep.subr.bf16.mxu0 0
        %2193 = vmatpush2.bf16.xpose.msra.mxu0 0
        %2194 = vmatprep.subr.bf16.mxu0 0
        %2195 = vmatpush2.bf16.xpose.msra.mxu0 0
        %2196 = vmatprep.subr.bf16.mxu0 0
        %2197 = vmatpush2.bf16.xpose.msra.mxu0 0
        %2198 = vmatprep.mubr.bf16.mxu0 0
        %2199 = vmatmul.mubr.bf16.gmra.mxu0 %v2161
        %v2200 = vpop.f32.mrf.mxu0
        %v2201 = vadd.f32 %v804, %v2200
        %v2202 = vpop.f32.mrf.mxu0
        %v2203 = vpop.f32.mrf.mxu0
        %v2204 = vpop.f32.mrf.mxu0
        %2205 = vdwg.mxu0
        %v2206 = vsel %vm1191, %v2201, -inf
        %2207 = vmax.xlane.f32.xlu0 %v2206
        %v2208 = vpop.xlane.xlu0 %2207
        %v2209 = vsub.f32 %v2201, %v2208
        %v2210 = vmul.f32 %v2209, 1.442695
        %v2211 = vpow.pop %v2210
        %v2212 = vsel %vm1191, %v2211, 0.0
        %2213 = vadd.xlane.f32.xlu0 %v2212
        %v2214 = vpop.xlane.xlu0 %2213
        %v2215 = vrcp.pop %v2214
        %v2216 = vmul.f32 %v2211, %v2215
        %v2217 = vpack.c.bf16 %v2216, %v2216
        %v2218 = vpack.c.bf16 %v2153, %v2153
        %v2220 = vsel %vm1191, %v2217, 0
        %v2223 = vsel %vm1208, %v2218, 0
        %2225 = vmatprep.subr.bf16.mxu0 0
        %2226 = vmatpush1.bf16.msra.mxu0 0
        %2227 = vmatprep.subr.bf16.mxu0 0
        %2228 = vmatpush1.bf16.msra.mxu0 0
        %2229 = vmatprep.subr.bf16.mxu0 0
        %2230 = vmatpush1.bf16.msra.mxu0 0
        %2231 = vmatprep.subr.bf16.mxu0 0
        %2232 = vmatpush1.bf16.msra.mxu0 0
        %2233 = vmatprep.subr.bf16.mxu0 0
        %2234 = vmatpush1.bf16.msra.mxu0 0
        %2235 = vmatprep.subr.bf16.mxu0 0
        %2236 = vmatpush1.bf16.msra.mxu0 0
        %2237 = vmatprep.subr.bf16.mxu0 0
        %2238 = vmatpush1.bf16.msra.mxu0 0
        %2239 = vmatprep.subr.bf16.mxu0 0
        %2240 = vmatpush1.bf16.msra.mxu0 %v2223
        %2241 = vmatprep.subr.bf16.mxu0 0
        %2242 = vmatpush2.bf16.msra.mxu0 0
        %2243 = vmatprep.subr.bf16.mxu0 0
        %2244 = vmatpush2.bf16.msra.mxu0 0
        %2245 = vmatprep.subr.bf16.mxu0 0
        %2246 = vmatpush2.bf16.msra.mxu0 0
        %2247 = vmatprep.subr.bf16.mxu0 0
        %2248 = vmatpush2.bf16.msra.mxu0 0
        %2249 = vmatprep.subr.bf16.mxu0 0
        %2250 = vmatpush2.bf16.msra.mxu0 0
        %2251 = vmatprep.subr.bf16.mxu0 0
        %2252 = vmatpush2.bf16.msra.mxu0 0
        %2253 = vmatprep.subr.bf16.mxu0 0
        %2254 = vmatpush2.bf16.msra.mxu0 0
        %2255 = vmatprep.subr.bf16.mxu0 0
        %2256 = vmatpush2.bf16.msra.mxu0 0
        %2257 = vmatprep.mubr.bf16.mxu0 0
        %2258 = vmatmul.mubr.bf16.gmra.mxu0 %v2220
        %v2259 = vpop.f32.mrf.mxu0
        %v2260 = vadd.f32 0.0, %v2259
        %v2261 = vpop.f32.mrf.mxu0
        %v2262 = vpop.f32.mrf.mxu0
        %v2263 = vpop.f32.mrf.mxu0
        %2264 = vdwg.mxu0
        %v2265 = vpack.c.bf16 %v2260, %v2260
        %s2266 = scalar_lea.vmem [#allocation2], 32
        %v2267 = vld [vmem:[%s2266] sm:$0xf]
        %v2268 = vld [vmem:[%s2266 + $0x4] sm:$0xf]
        %v2269 = vld [vmem:[%s2266 + $0x8] sm:$0xf]
        %v2270 = vld [vmem:[%s2266 + $0xc] sm:$0xf]
        %v2275 = vunpack.c.l.b16 %v2267
        %v2276 = vunpack.c.l.b16 %v2268
        %v2277 = vunpack.c.l.b16 %v2269
        %v2278 = vunpack.c.l.b16 %v2270
        %v2279 = vpack.c.b16 %v2276, %v2275
        %v2280 = vpack.c.b16 %v2278, %v2277
        %v2284 = vsel %vm1144, %v2265, 0
        %2286 = vmatprep.subr.bf16.mxu0 0
        %2287 = vmatpush1.bf16.msra.mxu0 0
        %2288 = vmatprep.subr.bf16.mxu0 0
        %2289 = vmatpush1.bf16.msra.mxu0 0
        %2290 = vmatprep.subr.bf16.mxu0 0
        %2291 = vmatpush1.bf16.msra.mxu0 0
        %2292 = vmatprep.subr.bf16.mxu0 0
        %2293 = vmatpush1.bf16.msra.mxu0 0
        %2294 = vmatprep.subr.bf16.mxu0 0
        %2295 = vmatpush1.bf16.msra.mxu0 0
        %2296 = vmatprep.subr.bf16.mxu0 0
        %2297 = vmatpush1.bf16.msra.mxu0 0
        %2298 = vmatprep.subr.bf16.mxu0 0
        %2299 = vmatpush1.bf16.msra.mxu0 %v2280
        %2300 = vmatprep.subr.bf16.mxu0 0
        %2301 = vmatpush1.bf16.msra.mxu0 %v2279
        %2302 = vmatprep.subr.bf16.mxu0 0
        %2303 = vmatpush2.bf16.msra.mxu0 0
        %2304 = vmatprep.subr.bf16.mxu0 0
        %2305 = vmatpush2.bf16.msra.mxu0 0
        %2306 = vmatprep.subr.bf16.mxu0 0
        %2307 = vmatpush2.bf16.msra.mxu0 0
        %2308 = vmatprep.subr.bf16.mxu0 0
        %2309 = vmatpush2.bf16.msra.mxu0 0
        %2310 = vmatprep.subr.bf16.mxu0 0
        %2311 = vmatpush2.bf16.msra.mxu0 0
        %2312 = vmatprep.subr.bf16.mxu0 0
        %2313 = vmatpush2.bf16.msra.mxu0 0
        %2314 = vmatprep.subr.bf16.mxu0 0
        %2315 = vmatpush2.bf16.msra.mxu0 0
        %2316 = vmatprep.subr.bf16.mxu0 0
        %2317 = vmatpush2.bf16.msra.mxu0 0
        %2318 = vmatprep.mubr.bf16.mxu0 0
        %2319 = vmatmul.mubr.bf16.gmra.mxu0 %v2284
        %v2320 = vpop.f32.mrf.mxu0
        %v2321 = vadd.f32 0.0, %v2320
        %v2322 = vpop.f32.mrf.mxu0
        %v2323 = vpop.f32.mrf.mxu0
        %v2324 = vpop.f32.mrf.mxu0
        %2325 = vdwg.mxu0
        %v2326 = vadd.f32 %v1814, %v2321
        %s2327 = scalar_lea.vmem %s3, 192
        %v2328 = vld [vmem:[%s2327] sm:$0xf]
        %v2329 = vld [vmem:[%s2327 + $0x4] sm:$0xf]
        %v2330 = vld [vmem:[%s2327 + $0x8] sm:$0xf]
        %v2331 = vld [vmem:[%s2327 + $0xc] sm:$0xf]
        %v2332 = vld [vmem:[%s2327 + $0x10] sm:$0xf]
        %v2333 = vld [vmem:[%s2327 + $0x14] sm:$0xf]
        %v2334 = vld [vmem:[%s2327 + $0x18] sm:$0xf]
        %v2335 = vld [vmem:[%s2327 + $0x1c] sm:$0xf]
        %v2336 = vld [vmem:[%s2327 + $0x20] sm:$0xf]
        %v2337 = vld [vmem:[%s2327 + $0x24] sm:$0xf]
        %v2338 = vld [vmem:[%s2327 + $0x28] sm:$0xf]
        %v2339 = vld [vmem:[%s2327 + $0x2c] sm:$0xf]
        %v2340 = vld [vmem:[%s2327 + $0x30] sm:$0xf]
        %v2341 = vld [vmem:[%s2327 + $0x34] sm:$0xf]
        %v2342 = vld [vmem:[%s2327 + $0x38] sm:$0xf]
        %v2343 = vld [vmem:[%s2327 + $0x3c] sm:$0xf]
        %s2344 = scalar_lea.vmem %s4, 3
        %v2345 = vld [vmem:[%s2344] sm:$0x1]
        %v2347 = vlaneseq
        %v2348 = vshrl.u32 %v2347, 7
        %v2349 = vsub.s32 0, %v2348
        %v2350 = vrot.slane %v2345, %v2349
        %v2368 = vunpack.c.l.b16 %v2328
        %v2369 = vunpack.c.l.b16 %v2329
        %v2370 = vunpack.c.l.b16 %v2330
        %v2371 = vunpack.c.l.b16 %v2331
        %v2372 = vunpack.c.l.b16 %v2332
        %v2373 = vunpack.c.l.b16 %v2333
        %v2374 = vunpack.c.l.b16 %v2334
        %v2375 = vunpack.c.l.b16 %v2335
        %v2376 = vunpack.c.l.b16 %v2336
        %v2377 = vunpack.c.l.b16 %v2337
        %v2378 = vunpack.c.l.b16 %v2338
        %v2379 = vunpack.c.l.b16 %v2339
        %v2380 = vunpack.c.l.b16 %v2340
        %v2381 = vunpack.c.l.b16 %v2341
        %v2382 = vunpack.c.l.b16 %v2342
        %v2383 = vunpack.c.l.b16 %v2343
        %v2384 = vpack.c.b16 %v2369, %v2368
        %v2385 = vpack.c.b16 %v2371, %v2370
        %v2386 = vpack.c.b16 %v2373, %v2372
        %v2387 = vpack.c.b16 %v2375, %v2374
        %v2388 = vpack.c.b16 %v2377, %v2376
        %v2389 = vpack.c.b16 %v2379, %v2378
        %v2390 = vpack.c.b16 %v2381, %v2380
        %v2391 = vpack.c.b16 %v2383, %v2382
        %2400 = vmatprep.subr.bf16.mxu0 0
        %2401 = vmatpush1.bf16.msra.mxu0 %v2391
        %2402 = vmatprep.subr.bf16.mxu0 0
        %2403 = vmatpush1.bf16.msra.mxu0 %v2390
        %2404 = vmatprep.subr.bf16.mxu0 0
        %2405 = vmatpush1.bf16.msra.mxu0 %v2389
        %2406 = vmatprep.subr.bf16.mxu0 0
        %2407 = vmatpush1.bf16.msra.mxu0 %v2388
        %2408 = vmatprep.subr.bf16.mxu0 0
        %2409 = vmatpush1.bf16.msra.mxu0 %v2387
        %2410 = vmatprep.subr.bf16.mxu0 0
        %2411 = vmatpush1.bf16.msra.mxu0 %v2386
        %2412 = vmatprep.subr.bf16.mxu0 0
        %2413 = vmatpush1.bf16.msra.mxu0 %v2385
        %2414 = vmatprep.subr.bf16.mxu0 0
        %2415 = vmatpush1.bf16.msra.mxu0 %v2384
        %2416 = vmatprep.subr.bf16.mxu0 0
        %2417 = vmatpush2.bf16.msra.mxu0 0
        %2418 = vmatprep.subr.bf16.mxu0 0
        %2419 = vmatpush2.bf16.msra.mxu0 0
        %2420 = vmatprep.subr.bf16.mxu0 0
        %2421 = vmatpush2.bf16.msra.mxu0 0
        %2422 = vmatprep.subr.bf16.mxu0 0
        %2423 = vmatpush2.bf16.msra.mxu0 0
        %2424 = vmatprep.subr.bf16.mxu0 0
        %2425 = vmatpush2.bf16.msra.mxu0 0
        %2426 = vmatprep.subr.bf16.mxu0 0
        %2427 = vmatpush2.bf16.msra.mxu0 0
        %2428 = vmatprep.subr.bf16.mxu0 0
        %2429 = vmatpush2.bf16.msra.mxu0 0
        %2430 = vmatprep.subr.bf16.mxu0 0
        %2431 = vmatpush2.bf16.msra.mxu0 0
        %2432 = vmatprep.mubr.bf16.mxu0 0
        %2433 = vmatmul.mubr.bf16.gmra.mxu0 %v797
        %v2434 = vpop.f32.mrf.mxu0
        %v2435 = vadd.f32 %v2350, %v2434
        %v2436 = vpop.f32.mrf.mxu0
        %v2437 = vpop.f32.mrf.mxu0
        %v2438 = vpop.f32.mrf.mxu0
        %2439 = vdwg.mxu0
        %s2440 = scalar_lea.vmem %s3, 448
        %v2441 = vld [vmem:[%s2440] sm:$0xf]
        %v2442 = vld [vmem:[%s2440 + $0x4] sm:$0xf]
        %v2443 = vld [vmem:[%s2440 + $0x8] sm:$0xf]
        %v2444 = vld [vmem:[%s2440 + $0xc] sm:$0xf]
        %v2445 = vld [vmem:[%s2440 + $0x10] sm:$0xf]
        %v2446 = vld [vmem:[%s2440 + $0x14] sm:$0xf]
        %v2447 = vld [vmem:[%s2440 + $0x18] sm:$0xf]
        %v2448 = vld [vmem:[%s2440 + $0x1c] sm:$0xf]
        %v2449 = vld [vmem:[%s2440 + $0x20] sm:$0xf]
        %v2450 = vld [vmem:[%s2440 + $0x24] sm:$0xf]
        %v2451 = vld [vmem:[%s2440 + $0x28] sm:$0xf]
        %v2452 = vld [vmem:[%s2440 + $0x2c] sm:$0xf]
        %v2453 = vld [vmem:[%s2440 + $0x30] sm:$0xf]
        %v2454 = vld [vmem:[%s2440 + $0x34] sm:$0xf]
        %v2455 = vld [vmem:[%s2440 + $0x38] sm:$0xf]
        %v2456 = vld [vmem:[%s2440 + $0x3c] sm:$0xf]
        %s2457 = scalar_lea.vmem %s4, 7
        %v2458 = vld [vmem:[%s2457] sm:$0x1]
        %v2460 = vlaneseq
        %v2461 = vshrl.u32 %v2460, 7
        %v2462 = vsub.s32 0, %v2461
        %v2463 = vrot.slane %v2458, %v2462
        %v2481 = vunpack.c.l.b16 %v2441
        %v2482 = vunpack.c.l.b16 %v2442
        %v2483 = vunpack.c.l.b16 %v2443
        %v2484 = vunpack.c.l.b16 %v2444
        %v2485 = vunpack.c.l.b16 %v2445
        %v2486 = vunpack.c.l.b16 %v2446
        %v2487 = vunpack.c.l.b16 %v2447
        %v2488 = vunpack.c.l.b16 %v2448
        %v2489 = vunpack.c.l.b16 %v2449
        %v2490 = vunpack.c.l.b16 %v2450
        %v2491 = vunpack.c.l.b16 %v2451
        %v2492 = vunpack.c.l.b16 %v2452
        %v2493 = vunpack.c.l.b16 %v2453
        %v2494 = vunpack.c.l.b16 %v2454
        %v2495 = vunpack.c.l.b16 %v2455
        %v2496 = vunpack.c.l.b16 %v2456
        %v2497 = vpack.c.b16 %v2482, %v2481
        %v2498 = vpack.c.b16 %v2484, %v2483
        %v2499 = vpack.c.b16 %v2486, %v2485
        %v2500 = vpack.c.b16 %v2488, %v2487
        %v2501 = vpack.c.b16 %v2490, %v2489
        %v2502 = vpack.c.b16 %v2492, %v2491
        %v2503 = vpack.c.b16 %v2494, %v2493
        %v2504 = vpack.c.b16 %v2496, %v2495
        %2513 = vmatprep.subr.bf16.mxu0 0
        %2514 = vmatpush1.bf16.msra.mxu0 %v2504
        %2515 = vmatprep.subr.bf16.mxu0 0
        %2516 = vmatpush1.bf16.msra.mxu0 %v2503
        %2517 = vmatprep.subr.bf16.mxu0 0
        %2518 = vmatpush1.bf16.msra.mxu0 %v2502
        %2519 = vmatprep.subr.bf16.mxu0 0
        %2520 = vmatpush1.bf16.msra.mxu0 %v2501
        %2521 = vmatprep.subr.bf16.mxu0 0
        %2522 = vmatpush1.bf16.msra.mxu0 %v2500
        %2523 = vmatprep.subr.bf16.mxu0 0
        %2524 = vmatpush1.bf16.msra.mxu0 %v2499
        %2525 = vmatprep.subr.bf16.mxu0 0
        %2526 = vmatpush1.bf16.msra.mxu0 %v2498
        %2527 = vmatprep.subr.bf16.mxu0 0
        %2528 = vmatpush1.bf16.msra.mxu0 %v2497
        %2529 = vmatprep.subr.bf16.mxu0 0
        %2530 = vmatpush2.bf16.msra.mxu0 0
        %2531 = vmatprep.subr.bf16.mxu0 0
        %2532 = vmatpush2.bf16.msra.mxu0 0
        %2533 = vmatprep.subr.bf16.mxu0 0
        %2534 = vmatpush2.bf16.msra.mxu0 0
        %2535 = vmatprep.subr.bf16.mxu0 0
        %2536 = vmatpush2.bf16.msra.mxu0 0
        %2537 = vmatprep.subr.bf16.mxu0 0
        %2538 = vmatpush2.bf16.msra.mxu0 0
        %2539 = vmatprep.subr.bf16.mxu0 0
        %2540 = vmatpush2.bf16.msra.mxu0 0
        %2541 = vmatprep.subr.bf16.mxu0 0
        %2542 = vmatpush2.bf16.msra.mxu0 0
        %2543 = vmatprep.subr.bf16.mxu0 0
        %2544 = vmatpush2.bf16.msra.mxu0 0
        %2545 = vmatprep.mubr.bf16.mxu0 0
        %2546 = vmatmul.mubr.bf16.gmra.mxu0 %v797
        %v2547 = vpop.f32.mrf.mxu0
        %v2548 = vadd.f32 %v2463, %v2547
        %v2549 = vpop.f32.mrf.mxu0
        %v2550 = vpop.f32.mrf.mxu0
        %v2551 = vpop.f32.mrf.mxu0
        %2552 = vdwg.mxu0
        %s2553 = scalar_lea.vmem %s3, 704
        %v2554 = vld [vmem:[%s2553] sm:$0xf]
        %v2555 = vld [vmem:[%s2553 + $0x4] sm:$0xf]
        %v2556 = vld [vmem:[%s2553 + $0x8] sm:$0xf]
        %v2557 = vld [vmem:[%s2553 + $0xc] sm:$0xf]
        %v2558 = vld [vmem:[%s2553 + $0x10] sm:$0xf]
        %v2559 = vld [vmem:[%s2553 + $0x14] sm:$0xf]
        %v2560 = vld [vmem:[%s2553 + $0x18] sm:$0xf]
        %v2561 = vld [vmem:[%s2553 + $0x1c] sm:$0xf]
        %v2562 = vld [vmem:[%s2553 + $0x20] sm:$0xf]
        %v2563 = vld [vmem:[%s2553 + $0x24] sm:$0xf]
        %v2564 = vld [vmem:[%s2553 + $0x28] sm:$0xf]
        %v2565 = vld [vmem:[%s2553 + $0x2c] sm:$0xf]
        %v2566 = vld [vmem:[%s2553 + $0x30] sm:$0xf]
        %v2567 = vld [vmem:[%s2553 + $0x34] sm:$0xf]
        %v2568 = vld [vmem:[%s2553 + $0x38] sm:$0xf]
        %v2569 = vld [vmem:[%s2553 + $0x3c] sm:$0xf]
        %s2570 = scalar_lea.vmem %s4, 11
        %v2571 = vld [vmem:[%s2570] sm:$0x1]
        %v2573 = vlaneseq
        %v2574 = vshrl.u32 %v2573, 7
        %v2575 = vsub.s32 0, %v2574
        %v2576 = vrot.slane %v2571, %v2575
        %v2594 = vunpack.c.l.b16 %v2554
        %v2595 = vunpack.c.l.b16 %v2555
        %v2596 = vunpack.c.l.b16 %v2556
        %v2597 = vunpack.c.l.b16 %v2557
        %v2598 = vunpack.c.l.b16 %v2558
        %v2599 = vunpack.c.l.b16 %v2559
        %v2600 = vunpack.c.l.b16 %v2560
        %v2601 = vunpack.c.l.b16 %v2561
        %v2602 = vunpack.c.l.b16 %v2562
        %v2603 = vunpack.c.l.b16 %v2563
        %v2604 = vunpack.c.l.b16 %v2564
        %v2605 = vunpack.c.l.b16 %v2565
        %v2606 = vunpack.c.l.b16 %v2566
        %v2607 = vunpack.c.l.b16 %v2567
        %v2608 = vunpack.c.l.b16 %v2568
        %v2609 = vunpack.c.l.b16 %v2569
        %v2610 = vpack.c.b16 %v2595, %v2594
        %v2611 = vpack.c.b16 %v2597, %v2596
        %v2612 = vpack.c.b16 %v2599, %v2598
        %v2613 = vpack.c.b16 %v2601, %v2600
        %v2614 = vpack.c.b16 %v2603, %v2602
        %v2615 = vpack.c.b16 %v2605, %v2604
        %v2616 = vpack.c.b16 %v2607, %v2606
        %v2617 = vpack.c.b16 %v2609, %v2608
        %2626 = vmatprep.subr.bf16.mxu0 0
        %2627 = vmatpush1.bf16.msra.mxu0 %v2617
        %2628 = vmatprep.subr.bf16.mxu0 0
        %2629 = vmatpush1.bf16.msra.mxu0 %v2616
        %2630 = vmatprep.subr.bf16.mxu0 0
        %2631 = vmatpush1.bf16.msra.mxu0 %v2615
        %2632 = vmatprep.subr.bf16.mxu0 0
        %2633 = vmatpush1.bf16.msra.mxu0 %v2614
        %2634 = vmatprep.subr.bf16.mxu0 0
        %2635 = vmatpush1.bf16.msra.mxu0 %v2613
        %2636 = vmatprep.subr.bf16.mxu0 0
        %2637 = vmatpush1.bf16.msra.mxu0 %v2612
        %2638 = vmatprep.subr.bf16.mxu0 0
        %2639 = vmatpush1.bf16.msra.mxu0 %v2611
        %2640 = vmatprep.subr.bf16.mxu0 0
        %2641 = vmatpush1.bf16.msra.mxu0 %v2610
        %2642 = vmatprep.subr.bf16.mxu0 0
        %2643 = vmatpush2.bf16.msra.mxu0 0
        %2644 = vmatprep.subr.bf16.mxu0 0
        %2645 = vmatpush2.bf16.msra.mxu0 0
        %2646 = vmatprep.subr.bf16.mxu0 0
        %2647 = vmatpush2.bf16.msra.mxu0 0
        %2648 = vmatprep.subr.bf16.mxu0 0
        %2649 = vmatpush2.bf16.msra.mxu0 0
        %2650 = vmatprep.subr.bf16.mxu0 0
        %2651 = vmatpush2.bf16.msra.mxu0 0
        %2652 = vmatprep.subr.bf16.mxu0 0
        %2653 = vmatpush2.bf16.msra.mxu0 0
        %2654 = vmatprep.subr.bf16.mxu0 0
        %2655 = vmatpush2.bf16.msra.mxu0 0
        %2656 = vmatprep.subr.bf16.mxu0 0
        %2657 = vmatpush2.bf16.msra.mxu0 0
        %2658 = vmatprep.mubr.bf16.mxu0 0
        %2659 = vmatmul.mubr.bf16.gmra.mxu0 %v797
        %v2660 = vpop.f32.mrf.mxu0
        %v2661 = vadd.f32 %v2576, %v2660
        %v2662 = vpop.f32.mrf.mxu0
        %v2663 = vpop.f32.mrf.mxu0
        %v2664 = vpop.f32.mrf.mxu0
        %2665 = vdwg.mxu0
        %v2666 = vpack.c.bf16 %v2435, %v2435
        %v2667 = vpack.c.bf16 %v2548, %v2548
        %v2669 = vsel %vm1144, %v2666, 0
        %v2672 = vsel %vm1144, %v2667, 0
        %2674 = vmatprep.subr.bf16.mxu0 0
        %2675 = vmatpush1.bf16.xpose.msra.mxu0 0
        %2676 = vmatprep.subr.bf16.mxu0 0
        %2677 = vmatpush1.bf16.xpose.msra.mxu0 0
        %2678 = vmatprep.subr.bf16.mxu0 0
        %2679 = vmatpush1.bf16.xpose.msra.mxu0 0
        %2680 = vmatprep.subr.bf16.mxu0 0
        %2681 = vmatpush1.bf16.xpose.msra.mxu0 0
        %2682 = vmatprep.subr.bf16.mxu0 0
        %2683 = vmatpush1.bf16.xpose.msra.mxu0 0
        %2684 = vmatprep.subr.bf16.mxu0 0
        %2685 = vmatpush1.bf16.xpose.msra.mxu0 0
        %2686 = vmatprep.subr.bf16.mxu0 0
        %2687 = vmatpush1.bf16.xpose.msra.mxu0 0
        %2688 = vmatprep.subr.bf16.mxu0 0
        %2689 = vmatpush1.bf16.xpose.msra.mxu0 %v2672
        %2690 = vmatprep.subr.bf16.mxu0 0
        %2691 = vmatpush2.bf16.xpose.msra.mxu0 0
        %2692 = vmatprep.subr.bf16.mxu0 0
        %2693 = vmatpush2.bf16.xpose.msra.mxu0 0
        %2694 = vmatprep.subr.bf16.mxu0 0
        %2695 = vmatpush2.bf16.xpose.msra.mxu0 0
        %2696 = vmatprep.subr.bf16.mxu0 0
        %2697 = vmatpush2.bf16.xpose.msra.mxu0 0
        %2698 = vmatprep.subr.bf16.mxu0 0
        %2699 = vmatpush2.bf16.xpose.msra.mxu0 0
        %2700 = vmatprep.subr.bf16.mxu0 0
        %2701 = vmatpush2.bf16.xpose.msra.mxu0 0
        %2702 = vmatprep.subr.bf16.mxu0 0
        %2703 = vmatpush2.bf16.xpose.msra.mxu0 0
        %2704 = vmatprep.subr.bf16.mxu0 0
        %2705 = vmatpush2.bf16.xpose.msra.mxu0 0
        %2706 = vmatprep.mubr.bf16.mxu0 0
        %2707 = vmatmul.mubr.bf16.gmra.mxu0 %v2669
        %v2708 = vpop.f32.mrf.mxu0
        %v2709 = vadd.f32 %v804, %v2708
        %v2710 = vpop.f32.mrf.mxu0
        %v2711 = vpop.f32.mrf.mxu0
        %v2712 = vpop.f32.mrf.mxu0
        %2713 = vdwg.mxu0
        %v2714 = vsel %vm1191, %v2709, -inf
        %2715 = vmax.xlane.f32.xlu0 %v2714
        %v2716 = vpop.xlane.xlu0 %2715
        %v2717 = vsub.f32 %v2709, %v2716
        %v2718 = vmul.f32 %v2717, 1.442695
        %v2719 = vpow.pop %v2718
        %v2720 = vsel %vm1191, %v2719, 0.0
        %2721 = vadd.xlane.f32.xlu0 %v2720
        %v2722 = vpop.xlane.xlu0 %2721
        %v2723 = vrcp.pop %v2722
        %v2724 = vmul.f32 %v2719, %v2723
        %v2725 = vpack.c.bf16 %v2724, %v2724
        %v2726 = vpack.c.bf16 %v2661, %v2661
        %v2728 = vsel %vm1191, %v2725, 0
        %v2731 = vsel %vm1208, %v2726, 0
        %2733 = vmatprep.subr.bf16.mxu0 0
        %2734 = vmatpush1.bf16.msra.mxu0 0
        %2735 = vmatprep.subr.bf16.mxu0 0
        %2736 = vmatpush1.bf16.msra.mxu0 0
        %2737 = vmatprep.subr.bf16.mxu0 0
        %2738 = vmatpush1.bf16.msra.mxu0 0
        %2739 = vmatprep.subr.bf16.mxu0 0
        %2740 = vmatpush1.bf16.msra.mxu0 0
        %2741 = vmatprep.subr.bf16.mxu0 0
        %2742 = vmatpush1.bf16.msra.mxu0 0
        %2743 = vmatprep.subr.bf16.mxu0 0
        %2744 = vmatpush1.bf16.msra.mxu0 0
        %2745 = vmatprep.subr.bf16.mxu0 0
        %2746 = vmatpush1.bf16.msra.mxu0 0
        %2747 = vmatprep.subr.bf16.mxu0 0
        %2748 = vmatpush1.bf16.msra.mxu0 %v2731
        %2749 = vmatprep.subr.bf16.mxu0 0
        %2750 = vmatpush2.bf16.msra.mxu0 0
        %2751 = vmatprep.subr.bf16.mxu0 0
        %2752 = vmatpush2.bf16.msra.mxu0 0
        %2753 = vmatprep.subr.bf16.mxu0 0
        %2754 = vmatpush2.bf16.msra.mxu0 0
        %2755 = vmatprep.subr.bf16.mxu0 0
        %2756 = vmatpush2.bf16.msra.mxu0 0
        %2757 = vmatprep.subr.bf16.mxu0 0
        %2758 = vmatpush2.bf16.msra.mxu0 0
        %2759 = vmatprep.subr.bf16.mxu0 0
        %2760 = vmatpush2.bf16.msra.mxu0 0
        %2761 = vmatprep.subr.bf16.mxu0 0
        %2762 = vmatpush2.bf16.msra.mxu0 0
        %2763 = vmatprep.subr.bf16.mxu0 0
        %2764 = vmatpush2.bf16.msra.mxu0 0
        %2765 = vmatprep.mubr.bf16.mxu0 0
        %2766 = vmatmul.mubr.bf16.gmra.mxu0 %v2728
        %v2767 = vpop.f32.mrf.mxu0
        %v2768 = vadd.f32 0.0, %v2767
        %v2769 = vpop.f32.mrf.mxu0
        %v2770 = vpop.f32.mrf.mxu0
        %v2771 = vpop.f32.mrf.mxu0
        %2772 = vdwg.mxu0
        %v2773 = vpack.c.bf16 %v2768, %v2768
        %s2774 = scalar_lea.vmem [#allocation2], 48
        %v2775 = vld [vmem:[%s2774] sm:$0xf]
        %v2776 = vld [vmem:[%s2774 + $0x4] sm:$0xf]
        %v2777 = vld [vmem:[%s2774 + $0x8] sm:$0xf]
        %v2778 = vld [vmem:[%s2774 + $0xc] sm:$0xf]
        %v2783 = vunpack.c.l.b16 %v2775
        %v2784 = vunpack.c.l.b16 %v2776
        %v2785 = vunpack.c.l.b16 %v2777
        %v2786 = vunpack.c.l.b16 %v2778
        %v2787 = vpack.c.b16 %v2784, %v2783
        %v2788 = vpack.c.b16 %v2786, %v2785
        %v2792 = vsel %vm1144, %v2773, 0
        %2794 = vmatprep.subr.bf16.mxu0 0
        %2795 = vmatpush1.bf16.msra.mxu0 0
        %2796 = vmatprep.subr.bf16.mxu0 0
        %2797 = vmatpush1.bf16.msra.mxu0 0
        %2798 = vmatprep.subr.bf16.mxu0 0
        %2799 = vmatpush1.bf16.msra.mxu0 0
        %2800 = vmatprep.subr.bf16.mxu0 0
        %2801 = vmatpush1.bf16.msra.mxu0 0
        %2802 = vmatprep.subr.bf16.mxu0 0
        %2803 = vmatpush1.bf16.msra.mxu0 0
        %2804 = vmatprep.subr.bf16.mxu0 0
        %2805 = vmatpush1.bf16.msra.mxu0 0
        %2806 = vmatprep.subr.bf16.mxu0 0
        %2807 = vmatpush1.bf16.msra.mxu0 %v2788
        %2808 = vmatprep.subr.bf16.mxu0 0
        %2809 = vmatpush1.bf16.msra.mxu0 %v2787
        %2810 = vmatprep.subr.bf16.mxu0 0
        %2811 = vmatpush2.bf16.msra.mxu0 0
        %2812 = vmatprep.subr.bf16.mxu0 0
        %2813 = vmatpush2.bf16.msra.mxu0 0
        %2814 = vmatprep.subr.bf16.mxu0 0
        %2815 = vmatpush2.bf16.msra.mxu0 0
        %2816 = vmatprep.subr.bf16.mxu0 0
        %2817 = vmatpush2.bf16.msra.mxu0 0
        %2818 = vmatprep.subr.bf16.mxu0 0
        %2819 = vmatpush2.bf16.msra.mxu0 0
        %2820 = vmatprep.subr.bf16.mxu0 0
        %2821 = vmatpush2.bf16.msra.mxu0 0
        %2822 = vmatprep.subr.bf16.mxu0 0
        %2823 = vmatpush2.bf16.msra.mxu0 0
        %2824 = vmatprep.subr.bf16.mxu0 0
        %2825 = vmatpush2.bf16.msra.mxu0 0
        %2826 = vmatprep.mubr.bf16.mxu0 0
        %2827 = vmatmul.mubr.bf16.gmra.mxu0 %v2792
        %v2828 = vpop.f32.mrf.mxu0
        %v2829 = vadd.f32 0.0, %v2828
        %v2830 = vpop.f32.mrf.mxu0
        %v2831 = vpop.f32.mrf.mxu0
        %v2832 = vpop.f32.mrf.mxu0
        %2833 = vdwg.mxu0
        %v2834 = vadd.f32 %v2326, %v2829
        %v2835 = vld [vmem:[%s6] sm:$0x1]
        %v2837 = vlaneseq
        %v2838 = vshrl.u32 %v2837, 7
        %v2839 = vsub.s32 0, %v2838
        %v2840 = vrot.slane %v2835, %v2839
        %v2842 = vadd.f32 %v2834, %v2840
        %v2843 = vunpack.c.l.bf16 %v797
        %v2844 = vadd.f32 %v2842, %v2843
        %v2845 = vld [vmem:[%s7] sm:$0x1]
        %v2846 = vld [vmem:[%s8] sm:$0x1]
        %2847 = vadd.xlane.f32.xlu0 %v2844
        %v2848 = vpop.xlane.xlu0 %2847
        %v2849 = vrcp.pop 128.0
        %v2850 = vmul.f32 %v2848, %v2849
        %v2851 = vsub.f32 %v2844, %v2850
        %v2852 = vmul.f32 %v2851, %v2851
        %2853 = vadd.xlane.f32.xlu0 %v2852
        %v2854 = vpop.xlane.xlu0 %2853
        %v2855 = vmul.f32 %v2854, %v2849
        %v2856 = vadd.f32 %v2855, 1e-05
        %v2857 = vrsqrt.pop %v2856
        %v2858 = vmul.f32 %v2851, %v2857
        %v2860 = vlaneseq
        %v2861 = vshrl.u32 %v2860, 7
        %v2862 = vsub.s32 0, %v2861
        %v2863 = vrot.slane %v2845, %v2862
        %v2865 = vmul.f32 %v2858, %v2863
        %v2867 = vlaneseq
        %v2868 = vshrl.u32 %v2867, 7
        %v2869 = vsub.s32 0, %v2868
        %v2870 = vrot.slane %v2846, %v2869
        %v2872 = vadd.f32 %v2865, %v2870
        %v2873 = vpack.c.bf16 %v2872, %v2872
        %v2874 = vld [vmem:[%s791] sm:$0x1]
        %v2875 = vsub.f32 1.0, %v2874
        %v2876 = vmul.f32 %v2875, -1e+09
        %v2878 = vlaneseq
        %v2879 = vshrl.u32 %v2878, 7
        %v2880 = vsub.s32 0, %v2879
        %v2881 = vrot.slane %v2876, %v2880
        %v2883 = vld [vmem:[#allocation4] sm:$0xf]
        %v2884 = vld [vmem:[#allocation4 + $0x4] sm:$0xf]
        %v2885 = vld [vmem:[#allocation4 + $0x8] sm:$0xf]
        %v2886 = vld [vmem:[#allocation4 + $0xc] sm:$0xf]
        %v2887 = vld [vmem:[#allocation4 + $0x10] sm:$0xf]
        %v2888 = vld [vmem:[#allocation4 + $0x14] sm:$0xf]
        %v2889 = vld [vmem:[#allocation4 + $0x18] sm:$0xf]
        %v2890 = vld [vmem:[#allocation4 + $0x1c] sm:$0xf]
        %v2891 = vld [vmem:[#allocation4 + $0x20] sm:$0xf]
        %v2892 = vld [vmem:[#allocation4 + $0x24] sm:$0xf]
        %v2893 = vld [vmem:[#allocation4 + $0x28] sm:$0xf]
        %v2894 = vld [vmem:[#allocation4 + $0x2c] sm:$0xf]
        %v2895 = vld [vmem:[#allocation4 + $0x30] sm:$0xf]
        %v2896 = vld [vmem:[#allocation4 + $0x34] sm:$0xf]
        %v2897 = vld [vmem:[#allocation4 + $0x38] sm:$0xf]
        %v2898 = vld [vmem:[#allocation4 + $0x3c] sm:$0xf]
        %v2899 = vld [vmem:[%s10] sm:$0x1]
        %v2901 = vlaneseq
        %v2902 = vshrl.u32 %v2901, 7
        %v2903 = vsub.s32 0, %v2902
        %v2904 = vrot.slane %v2899, %v2903
        %v2922 = vunpack.c.l.b16 %v2883
        %v2923 = vunpack.c.l.b16 %v2884
        %v2924 = vunpack.c.l.b16 %v2885
        %v2925 = vunpack.c.l.b16 %v2886
        %v2926 = vunpack.c.l.b16 %v2887
        %v2927 = vunpack.c.l.b16 %v2888
        %v2928 = vunpack.c.l.b16 %v2889
        %v2929 = vunpack.c.l.b16 %v2890
        %v2930 = vunpack.c.l.b16 %v2891
        %v2931 = vunpack.c.l.b16 %v2892
        %v2932 = vunpack.c.l.b16 %v2893
        %v2933 = vunpack.c.l.b16 %v2894
        %v2934 = vunpack.c.l.b16 %v2895
        %v2935 = vunpack.c.l.b16 %v2896
        %v2936 = vunpack.c.l.b16 %v2897
        %v2937 = vunpack.c.l.b16 %v2898
        %v2938 = vpack.c.b16 %v2923, %v2922
        %v2939 = vpack.c.b16 %v2925, %v2924
        %v2940 = vpack.c.b16 %v2927, %v2926
        %v2941 = vpack.c.b16 %v2929, %v2928
        %v2942 = vpack.c.b16 %v2931, %v2930
        %v2943 = vpack.c.b16 %v2933, %v2932
        %v2944 = vpack.c.b16 %v2935, %v2934
        %v2945 = vpack.c.b16 %v2937, %v2936
        %2954 = vmatprep.subr.bf16.mxu0 0
        %2955 = vmatpush1.bf16.msra.mxu0 %v2945
        %2956 = vmatprep.subr.bf16.mxu0 0
        %2957 = vmatpush1.bf16.msra.mxu0 %v2944
        %2958 = vmatprep.subr.bf16.mxu0 0
        %2959 = vmatpush1.bf16.msra.mxu0 %v2943
        %2960 = vmatprep.subr.bf16.mxu0 0
        %2961 = vmatpush1.bf16.msra.mxu0 %v2942
        %2962 = vmatprep.subr.bf16.mxu0 0
        %2963 = vmatpush1.bf16.msra.mxu0 %v2941
        %2964 = vmatprep.subr.bf16.mxu0 0
        %2965 = vmatpush1.bf16.msra.mxu0 %v2940
        %2966 = vmatprep.subr.bf16.mxu0 0
        %2967 = vmatpush1.bf16.msra.mxu0 %v2939
        %2968 = vmatprep.subr.bf16.mxu0 0
        %2969 = vmatpush1.bf16.msra.mxu0 %v2938
        %2970 = vmatprep.subr.bf16.mxu0 0
        %2971 = vmatpush2.bf16.msra.mxu0 0
        %2972 = vmatprep.subr.bf16.mxu0 0
        %2973 = vmatpush2.bf16.msra.mxu0 0
        %2974 = vmatprep.subr.bf16.mxu0 0
        %2975 = vmatpush2.bf16.msra.mxu0 0
        %2976 = vmatprep.subr.bf16.mxu0 0
        %2977 = vmatpush2.bf16.msra.mxu0 0
        %2978 = vmatprep.subr.bf16.mxu0 0
        %2979 = vmatpush2.bf16.msra.mxu0 0
        %2980 = vmatprep.subr.bf16.mxu0 0
        %2981 = vmatpush2.bf16.msra.mxu0 0
        %2982 = vmatprep.subr.bf16.mxu0 0
        %2983 = vmatpush2.bf16.msra.mxu0 0
        %2984 = vmatprep.subr.bf16.mxu0 0
        %2985 = vmatpush2.bf16.msra.mxu0 0
        %2986 = vmatprep.mubr.bf16.mxu0 0
        %2987 = vmatmul.mubr.bf16.gmra.mxu0 %v2873
        %v2988 = vpop.f32.mrf.mxu0
        %v2989 = vadd.f32 %v2904, %v2988
        %v2990 = vpop.f32.mrf.mxu0
        %v2991 = vpop.f32.mrf.mxu0
        %v2992 = vpop.f32.mrf.mxu0
        %2993 = vdwg.mxu0
        %v2994 = vld [vmem:[%s11] sm:$0xf]
        %v2995 = vld [vmem:[%s11 + $0x4] sm:$0xf]
        %v2996 = vld [vmem:[%s11 + $0x8] sm:$0xf]
        %v2997 = vld [vmem:[%s11 + $0xc] sm:$0xf]
        %v2998 = vld [vmem:[%s11 + $0x10] sm:$0xf]
        %v2999 = vld [vmem:[%s11 + $0x14] sm:$0xf]
        %v3000 = vld [vmem:[%s11 + $0x18] sm:$0xf]
        %v3001 = vld [vmem:[%s11 + $0x1c] sm:$0xf]
        %v3002 = vld [vmem:[%s11 + $0x20] sm:$0xf]
        %v3003 = vld [vmem:[%s11 + $0x24] sm:$0xf]
        %v3004 = vld [vmem:[%s11 + $0x28] sm:$0xf]
        %v3005 = vld [vmem:[%s11 + $0x2c] sm:$0xf]
        %v3006 = vld [vmem:[%s11 + $0x30] sm:$0xf]
        %v3007 = vld [vmem:[%s11 + $0x34] sm:$0xf]
        %v3008 = vld [vmem:[%s11 + $0x38] sm:$0xf]
        %v3009 = vld [vmem:[%s11 + $0x3c] sm:$0xf]
        %v3010 = vld [vmem:[%s12] sm:$0x1]
        %v3012 = vlaneseq
        %v3013 = vshrl.u32 %v3012, 7
        %v3014 = vsub.s32 0, %v3013
        %v3015 = vrot.slane %v3010, %v3014
        %v3033 = vunpack.c.l.b16 %v2994
        %v3034 = vunpack.c.l.b16 %v2995
        %v3035 = vunpack.c.l.b16 %v2996
        %v3036 = vunpack.c.l.b16 %v2997
        %v3037 = vunpack.c.l.b16 %v2998
        %v3038 = vunpack.c.l.b16 %v2999
        %v3039 = vunpack.c.l.b16 %v3000
        %v3040 = vunpack.c.l.b16 %v3001
        %v3041 = vunpack.c.l.b16 %v3002
        %v3042 = vunpack.c.l.b16 %v3003
        %v3043 = vunpack.c.l.b16 %v3004
        %v3044 = vunpack.c.l.b16 %v3005
        %v3045 = vunpack.c.l.b16 %v3006
        %v3046 = vunpack.c.l.b16 %v3007
        %v3047 = vunpack.c.l.b16 %v3008
        %v3048 = vunpack.c.l.b16 %v3009
        %v3049 = vpack.c.b16 %v3034, %v3033
        %v3050 = vpack.c.b16 %v3036, %v3035
        %v3051 = vpack.c.b16 %v3038, %v3037
        %v3052 = vpack.c.b16 %v3040, %v3039
        %v3053 = vpack.c.b16 %v3042, %v3041
        %v3054 = vpack.c.b16 %v3044, %v3043
        %v3055 = vpack.c.b16 %v3046, %v3045
        %v3056 = vpack.c.b16 %v3048, %v3047
        %3065 = vmatprep.subr.bf16.mxu0 0
        %3066 = vmatpush1.bf16.msra.mxu0 %v3056
        %3067 = vmatprep.subr.bf16.mxu0 0
        %3068 = vmatpush1.bf16.msra.mxu0 %v3055
        %3069 = vmatprep.subr.bf16.mxu0 0
        %3070 = vmatpush1.bf16.msra.mxu0 %v3054
        %3071 = vmatprep.subr.bf16.mxu0 0
        %3072 = vmatpush1.bf16.msra.mxu0 %v3053
        %3073 = vmatprep.subr.bf16.mxu0 0
        %3074 = vmatpush1.bf16.msra.mxu0 %v3052
        %3075 = vmatprep.subr.bf16.mxu0 0
        %3076 = vmatpush1.bf16.msra.mxu0 %v3051
        %3077 = vmatprep.subr.bf16.mxu0 0
        %3078 = vmatpush1.bf16.msra.mxu0 %v3050
        %3079 = vmatprep.subr.bf16.mxu0 0
        %3080 = vmatpush1.bf16.msra.mxu0 %v3049
        %3081 = vmatprep.subr.bf16.mxu0 0
        %3082 = vmatpush2.bf16.msra.mxu0 0
        %3083 = vmatprep.subr.bf16.mxu0 0
        %3084 = vmatpush2.bf16.msra.mxu0 0
        %3085 = vmatprep.subr.bf16.mxu0 0
        %3086 = vmatpush2.bf16.msra.mxu0 0
        %3087 = vmatprep.subr.bf16.mxu0 0
        %3088 = vmatpush2.bf16.msra.mxu0 0
        %3089 = vmatprep.subr.bf16.mxu0 0
        %3090 = vmatpush2.bf16.msra.mxu0 0
        %3091 = vmatprep.subr.bf16.mxu0 0
        %3092 = vmatpush2.bf16.msra.mxu0 0
        %3093 = vmatprep.subr.bf16.mxu0 0
        %3094 = vmatpush2.bf16.msra.mxu0 0
        %3095 = vmatprep.subr.bf16.mxu0 0
        %3096 = vmatpush2.bf16.msra.mxu0 0
        %3097 = vmatprep.mubr.bf16.mxu0 0
        %3098 = vmatmul.mubr.bf16.gmra.mxu0 %v798
        %v3099 = vpop.f32.mrf.mxu0
        %v3100 = vadd.f32 %v3015, %v3099
        %v3101 = vpop.f32.mrf.mxu0
        %v3102 = vpop.f32.mrf.mxu0
        %v3103 = vpop.f32.mrf.mxu0
        %3104 = vdwg.mxu0
        %s3105 = scalar_lea.vmem %s11, 256
        %v3106 = vld [vmem:[%s3105] sm:$0xf]
        %v3107 = vld [vmem:[%s3105 + $0x4] sm:$0xf]
        %v3108 = vld [vmem:[%s3105 + $0x8] sm:$0xf]
        %v3109 = vld [vmem:[%s3105 + $0xc] sm:$0xf]
        %v3110 = vld [vmem:[%s3105 + $0x10] sm:$0xf]
        %v3111 = vld [vmem:[%s3105 + $0x14] sm:$0xf]
        %v3112 = vld [vmem:[%s3105 + $0x18] sm:$0xf]
        %v3113 = vld [vmem:[%s3105 + $0x1c] sm:$0xf]
        %v3114 = vld [vmem:[%s3105 + $0x20] sm:$0xf]
        %v3115 = vld [vmem:[%s3105 + $0x24] sm:$0xf]
        %v3116 = vld [vmem:[%s3105 + $0x28] sm:$0xf]
        %v3117 = vld [vmem:[%s3105 + $0x2c] sm:$0xf]
        %v3118 = vld [vmem:[%s3105 + $0x30] sm:$0xf]
        %v3119 = vld [vmem:[%s3105 + $0x34] sm:$0xf]
        %v3120 = vld [vmem:[%s3105 + $0x38] sm:$0xf]
        %v3121 = vld [vmem:[%s3105 + $0x3c] sm:$0xf]
        %s3122 = scalar_lea.vmem %s12, 4
        %v3123 = vld [vmem:[%s3122] sm:$0x1]
        %v3125 = vlaneseq
        %v3126 = vshrl.u32 %v3125, 7
        %v3127 = vsub.s32 0, %v3126
        %v3128 = vrot.slane %v3123, %v3127
        %v3146 = vunpack.c.l.b16 %v3106
        %v3147 = vunpack.c.l.b16 %v3107
        %v3148 = vunpack.c.l.b16 %v3108
        %v3149 = vunpack.c.l.b16 %v3109
        %v3150 = vunpack.c.l.b16 %v3110
        %v3151 = vunpack.c.l.b16 %v3111
        %v3152 = vunpack.c.l.b16 %v3112
        %v3153 = vunpack.c.l.b16 %v3113
        %v3154 = vunpack.c.l.b16 %v3114
        %v3155 = vunpack.c.l.b16 %v3115
        %v3156 = vunpack.c.l.b16 %v3116
        %v3157 = vunpack.c.l.b16 %v3117
        %v3158 = vunpack.c.l.b16 %v3118
        %v3159 = vunpack.c.l.b16 %v3119
        %v3160 = vunpack.c.l.b16 %v3120
        %v3161 = vunpack.c.l.b16 %v3121
        %v3162 = vpack.c.b16 %v3147, %v3146
        %v3163 = vpack.c.b16 %v3149, %v3148
        %v3164 = vpack.c.b16 %v3151, %v3150
        %v3165 = vpack.c.b16 %v3153, %v3152
        %v3166 = vpack.c.b16 %v3155, %v3154
        %v3167 = vpack.c.b16 %v3157, %v3156
        %v3168 = vpack.c.b16 %v3159, %v3158
        %v3169 = vpack.c.b16 %v3161, %v3160
        %3178 = vmatprep.subr.bf16.mxu0 0
        %3179 = vmatpush1.bf16.msra.mxu0 %v3169
        %3180 = vmatprep.subr.bf16.mxu0 0
        %3181 = vmatpush1.bf16.msra.mxu0 %v3168
        %3182 = vmatprep.subr.bf16.mxu0 0
        %3183 = vmatpush1.bf16.msra.mxu0 %v3167
        %3184 = vmatprep.subr.bf16.mxu0 0
        %3185 = vmatpush1.bf16.msra.mxu0 %v3166
        %3186 = vmatprep.subr.bf16.mxu0 0
        %3187 = vmatpush1.bf16.msra.mxu0 %v3165
        %3188 = vmatprep.subr.bf16.mxu0 0
        %3189 = vmatpush1.bf16.msra.mxu0 %v3164
        %3190 = vmatprep.subr.bf16.mxu0 0
        %3191 = vmatpush1.bf16.msra.mxu0 %v3163
        %3192 = vmatprep.subr.bf16.mxu0 0
        %3193 = vmatpush1.bf16.msra.mxu0 %v3162
        %3194 = vmatprep.subr.bf16.mxu0 0
        %3195 = vmatpush2.bf16.msra.mxu0 0
        %3196 = vmatprep.subr.bf16.mxu0 0
        %3197 = vmatpush2.bf16.msra.mxu0 0
        %3198 = vmatprep.subr.bf16.mxu0 0
        %3199 = vmatpush2.bf16.msra.mxu0 0
        %3200 = vmatprep.subr.bf16.mxu0 0
        %3201 = vmatpush2.bf16.msra.mxu0 0
        %3202 = vmatprep.subr.bf16.mxu0 0
        %3203 = vmatpush2.bf16.msra.mxu0 0
        %3204 = vmatprep.subr.bf16.mxu0 0
        %3205 = vmatpush2.bf16.msra.mxu0 0
        %3206 = vmatprep.subr.bf16.mxu0 0
        %3207 = vmatpush2.bf16.msra.mxu0 0
        %3208 = vmatprep.subr.bf16.mxu0 0
        %3209 = vmatpush2.bf16.msra.mxu0 0
        %3210 = vmatprep.mubr.bf16.mxu0 0
        %3211 = vmatmul.mubr.bf16.gmra.mxu0 %v798
        %v3212 = vpop.f32.mrf.mxu0
        %v3213 = vadd.f32 %v3128, %v3212
        %v3214 = vpop.f32.mrf.mxu0
        %v3215 = vpop.f32.mrf.mxu0
        %v3216 = vpop.f32.mrf.mxu0
        %3217 = vdwg.mxu0
        %v3218 = vpack.c.bf16 %v2989, %v2989
        %v3219 = vpack.c.bf16 %v3100, %v3100
        %v3221 = vsel %vm1144, %v3218, 0
        %v3224 = vsel %vm1144, %v3219, 0
        %3226 = vmatprep.subr.bf16.mxu0 0
        %3227 = vmatpush1.bf16.xpose.msra.mxu0 0
        %3228 = vmatprep.subr.bf16.mxu0 0
        %3229 = vmatpush1.bf16.xpose.msra.mxu0 0
        %3230 = vmatprep.subr.bf16.mxu0 0
        %3231 = vmatpush1.bf16.xpose.msra.mxu0 0
        %3232 = vmatprep.subr.bf16.mxu0 0
        %3233 = vmatpush1.bf16.xpose.msra.mxu0 0
        %3234 = vmatprep.subr.bf16.mxu0 0
        %3235 = vmatpush1.bf16.xpose.msra.mxu0 0
        %3236 = vmatprep.subr.bf16.mxu0 0
        %3237 = vmatpush1.bf16.xpose.msra.mxu0 0
        %3238 = vmatprep.subr.bf16.mxu0 0
        %3239 = vmatpush1.bf16.xpose.msra.mxu0 0
        %3240 = vmatprep.subr.bf16.mxu0 0
        %3241 = vmatpush1.bf16.xpose.msra.mxu0 %v3224
        %3242 = vmatprep.subr.bf16.mxu0 0
        %3243 = vmatpush2.bf16.xpose.msra.mxu0 0
        %3244 = vmatprep.subr.bf16.mxu0 0
        %3245 = vmatpush2.bf16.xpose.msra.mxu0 0
        %3246 = vmatprep.subr.bf16.mxu0 0
        %3247 = vmatpush2.bf16.xpose.msra.mxu0 0
        %3248 = vmatprep.subr.bf16.mxu0 0
        %3249 = vmatpush2.bf16.xpose.msra.mxu0 0
        %3250 = vmatprep.subr.bf16.mxu0 0
        %3251 = vmatpush2.bf16.xpose.msra.mxu0 0
        %3252 = vmatprep.subr.bf16.mxu0 0
        %3253 = vmatpush2.bf16.xpose.msra.mxu0 0
        %3254 = vmatprep.subr.bf16.mxu0 0
        %3255 = vmatpush2.bf16.xpose.msra.mxu0 0
        %3256 = vmatprep.subr.bf16.mxu0 0
        %3257 = vmatpush2.bf16.xpose.msra.mxu0 0
        %3258 = vmatprep.mubr.bf16.mxu0 0
        %3259 = vmatmul.mubr.bf16.gmra.mxu0 %v3221
        %v3260 = vpop.f32.mrf.mxu0
        %v3261 = vadd.f32 %v2881, %v3260
        %v3262 = vpop.f32.mrf.mxu0
        %v3263 = vpop.f32.mrf.mxu0
        %v3264 = vpop.f32.mrf.mxu0
        %3265 = vdwg.mxu0
        %v3266 = vsel %vm1191, %v3261, -inf
        %3267 = vmax.xlane.f32.xlu0 %v3266
        %v3268 = vpop.xlane.xlu0 %3267
        %v3269 = vsub.f32 %v3261, %v3268
        %v3270 = vmul.f32 %v3269, 1.442695
        %v3271 = vpow.pop %v3270
        %v3272 = vsel %vm1191, %v3271, 0.0
        %3273 = vadd.xlane.f32.xlu0 %v3272
        %v3274 = vpop.xlane.xlu0 %3273
        %v3275 = vrcp.pop %v3274
        %v3276 = vmul.f32 %v3271, %v3275
        %v3277 = vpack.c.bf16 %v3276, %v3276
        %v3278 = vpack.c.bf16 %v3213, %v3213
        %v3280 = vsel %vm1191, %v3277, 0
        %v3283 = vsel %vm1208, %v3278, 0
        %3285 = vmatprep.subr.bf16.mxu0 0
        %3286 = vmatpush1.bf16.msra.mxu0 0
        %3287 = vmatprep.subr.bf16.mxu0 0
        %3288 = vmatpush1.bf16.msra.mxu0 0
        %3289 = vmatprep.subr.bf16.mxu0 0
        %3290 = vmatpush1.bf16.msra.mxu0 0
        %3291 = vmatprep.subr.bf16.mxu0 0
        %3292 = vmatpush1.bf16.msra.mxu0 0
        %3293 = vmatprep.subr.bf16.mxu0 0
        %3294 = vmatpush1.bf16.msra.mxu0 0
        %3295 = vmatprep.subr.bf16.mxu0 0
        %3296 = vmatpush1.bf16.msra.mxu0 0
        %3297 = vmatprep.subr.bf16.mxu0 0
        %3298 = vmatpush1.bf16.msra.mxu0 0
        %3299 = vmatprep.subr.bf16.mxu0 0
        %3300 = vmatpush1.bf16.msra.mxu0 %v3283
        %3301 = vmatprep.subr.bf16.mxu0 0
        %3302 = vmatpush2.bf16.msra.mxu0 0
        %3303 = vmatprep.subr.bf16.mxu0 0
        %3304 = vmatpush2.bf16.msra.mxu0 0
        %3305 = vmatprep.subr.bf16.mxu0 0
        %3306 = vmatpush2.bf16.msra.mxu0 0
        %3307 = vmatprep.subr.bf16.mxu0 0
        %3308 = vmatpush2.bf16.msra.mxu0 0
        %3309 = vmatprep.subr.bf16.mxu0 0
        %3310 = vmatpush2.bf16.msra.mxu0 0
        %3311 = vmatprep.subr.bf16.mxu0 0
        %3312 = vmatpush2.bf16.msra.mxu0 0
        %3313 = vmatprep.subr.bf16.mxu0 0
        %3314 = vmatpush2.bf16.msra.mxu0 0
        %3315 = vmatprep.subr.bf16.mxu0 0
        %3316 = vmatpush2.bf16.msra.mxu0 0
        %3317 = vmatprep.mubr.bf16.mxu0 0
        %3318 = vmatmul.mubr.bf16.gmra.mxu0 %v3280
        %v3319 = vpop.f32.mrf.mxu0
        %v3320 = vadd.f32 0.0, %v3319
        %v3321 = vpop.f32.mrf.mxu0
        %v3322 = vpop.f32.mrf.mxu0
        %v3323 = vpop.f32.mrf.mxu0
        %3324 = vdwg.mxu0
        %v3325 = vpack.c.bf16 %v3320, %v3320
        %v3326 = vld [vmem:[#allocation6] sm:$0xf]
        %v3327 = vld [vmem:[#allocation6 + $0x4] sm:$0xf]
        %v3328 = vld [vmem:[#allocation6 + $0x8] sm:$0xf]
        %v3329 = vld [vmem:[#allocation6 + $0xc] sm:$0xf]
        %s3330 = scalar_lea.vmem [#allocation4], 64
        %v3331 = vld [vmem:[%s3330] sm:$0xf]
        %v3332 = vld [vmem:[%s3330 + $0x4] sm:$0xf]
        %v3333 = vld [vmem:[%s3330 + $0x8] sm:$0xf]
        %v3334 = vld [vmem:[%s3330 + $0xc] sm:$0xf]
        %v3335 = vld [vmem:[%s3330 + $0x10] sm:$0xf]
        %v3336 = vld [vmem:[%s3330 + $0x14] sm:$0xf]
        %v3337 = vld [vmem:[%s3330 + $0x18] sm:$0xf]
        %v3338 = vld [vmem:[%s3330 + $0x1c] sm:$0xf]
        %v3339 = vld [vmem:[%s3330 + $0x20] sm:$0xf]
        %v3340 = vld [vmem:[%s3330 + $0x24] sm:$0xf]
        %v3341 = vld [vmem:[%s3330 + $0x28] sm:$0xf]
        %v3342 = vld [vmem:[%s3330 + $0x2c] sm:$0xf]
        %v3343 = vld [vmem:[%s3330 + $0x30] sm:$0xf]
        %v3344 = vld [vmem:[%s3330 + $0x34] sm:$0xf]
        %v3345 = vld [vmem:[%s3330 + $0x38] sm:$0xf]
        %v3346 = vld [vmem:[%s3330 + $0x3c] sm:$0xf]
        %s3347 = scalar_lea.vmem %s10, 1
        %v3348 = vld [vmem:[%s3347] sm:$0x1]
        %v3350 = vlaneseq
        %v3351 = vshrl.u32 %v3350, 7
        %v3352 = vsub.s32 0, %v3351
        %v3353 = vrot.slane %v3348, %v3352
        %v3371 = vunpack.c.l.b16 %v3331
        %v3372 = vunpack.c.l.b16 %v3332
        %v3373 = vunpack.c.l.b16 %v3333
        %v3374 = vunpack.c.l.b16 %v3334
        %v3375 = vunpack.c.l.b16 %v3335
        %v3376 = vunpack.c.l.b16 %v3336
        %v3377 = vunpack.c.l.b16 %v3337
        %v3378 = vunpack.c.l.b16 %v3338
        %v3379 = vunpack.c.l.b16 %v3339
        %v3380 = vunpack.c.l.b16 %v3340
        %v3381 = vunpack.c.l.b16 %v3341
        %v3382 = vunpack.c.l.b16 %v3342
        %v3383 = vunpack.c.l.b16 %v3343
        %v3384 = vunpack.c.l.b16 %v3344
        %v3385 = vunpack.c.l.b16 %v3345
        %v3386 = vunpack.c.l.b16 %v3346
        %v3387 = vpack.c.b16 %v3372, %v3371
        %v3388 = vpack.c.b16 %v3374, %v3373
        %v3389 = vpack.c.b16 %v3376, %v3375
        %v3390 = vpack.c.b16 %v3378, %v3377
        %v3391 = vpack.c.b16 %v3380, %v3379
        %v3392 = vpack.c.b16 %v3382, %v3381
        %v3393 = vpack.c.b16 %v3384, %v3383
        %v3394 = vpack.c.b16 %v3386, %v3385
        %3403 = vmatprep.subr.bf16.mxu0 0
        %3404 = vmatpush1.bf16.msra.mxu0 %v3394
        %3405 = vmatprep.subr.bf16.mxu0 0
        %3406 = vmatpush1.bf16.msra.mxu0 %v3393
        %3407 = vmatprep.subr.bf16.mxu0 0
        %3408 = vmatpush1.bf16.msra.mxu0 %v3392
        %3409 = vmatprep.subr.bf16.mxu0 0
        %3410 = vmatpush1.bf16.msra.mxu0 %v3391
        %3411 = vmatprep.subr.bf16.mxu0 0
        %3412 = vmatpush1.bf16.msra.mxu0 %v3390
        %3413 = vmatprep.subr.bf16.mxu0 0
        %3414 = vmatpush1.bf16.msra.mxu0 %v3389
        %3415 = vmatprep.subr.bf16.mxu0 0
        %3416 = vmatpush1.bf16.msra.mxu0 %v3388
        %3417 = vmatprep.subr.bf16.mxu0 0
        %3418 = vmatpush1.bf16.msra.mxu0 %v3387
        %3419 = vmatprep.subr.bf16.mxu0 0
        %3420 = vmatpush2.bf16.msra.mxu0 0
        %3421 = vmatprep.subr.bf16.mxu0 0
        %3422 = vmatpush2.bf16.msra.mxu0 0
        %3423 = vmatprep.subr.bf16.mxu0 0
        %3424 = vmatpush2.bf16.msra.mxu0 0
        %3425 = vmatprep.subr.bf16.mxu0 0
        %3426 = vmatpush2.bf16.msra.mxu0 0
        %3427 = vmatprep.subr.bf16.mxu0 0
        %3428 = vmatpush2.bf16.msra.mxu0 0
        %3429 = vmatprep.subr.bf16.mxu0 0
        %3430 = vmatpush2.bf16.msra.mxu0 0
        %3431 = vmatprep.subr.bf16.mxu0 0
        %3432 = vmatpush2.bf16.msra.mxu0 0
        %3433 = vmatprep.subr.bf16.mxu0 0
        %3434 = vmatpush2.bf16.msra.mxu0 0
        %3435 = vmatprep.mubr.bf16.mxu0 0
        %3436 = vmatmul.mubr.bf16.gmra.mxu0 %v2873
        %v3437 = vpop.f32.mrf.mxu0
        %v3438 = vadd.f32 %v3353, %v3437
        %v3439 = vpop.f32.mrf.mxu0
        %v3440 = vpop.f32.mrf.mxu0
        %v3441 = vpop.f32.mrf.mxu0
        %3442 = vdwg.mxu0
        %s3443 = scalar_lea.vmem %s11, 64
        %v3444 = vld [vmem:[%s3443] sm:$0xf]
        %v3445 = vld [vmem:[%s3443 + $0x4] sm:$0xf]
        %v3446 = vld [vmem:[%s3443 + $0x8] sm:$0xf]
        %v3447 = vld [vmem:[%s3443 + $0xc] sm:$0xf]
        %v3448 = vld [vmem:[%s3443 + $0x10] sm:$0xf]
        %v3449 = vld [vmem:[%s3443 + $0x14] sm:$0xf]
        %v3450 = vld [vmem:[%s3443 + $0x18] sm:$0xf]
        %v3451 = vld [vmem:[%s3443 + $0x1c] sm:$0xf]
        %v3452 = vld [vmem:[%s3443 + $0x20] sm:$0xf]
        %v3453 = vld [vmem:[%s3443 + $0x24] sm:$0xf]
        %v3454 = vld [vmem:[%s3443 + $0x28] sm:$0xf]
        %v3455 = vld [vmem:[%s3443 + $0x2c] sm:$0xf]
        %v3456 = vld [vmem:[%s3443 + $0x30] sm:$0xf]
        %v3457 = vld [vmem:[%s3443 + $0x34] sm:$0xf]
        %v3458 = vld [vmem:[%s3443 + $0x38] sm:$0xf]
        %v3459 = vld [vmem:[%s3443 + $0x3c] sm:$0xf]
        %s3460 = scalar_lea.vmem %s12, 1
        %v3461 = vld [vmem:[%s3460] sm:$0x1]
        %v3463 = vlaneseq
        %v3464 = vshrl.u32 %v3463, 7
        %v3465 = vsub.s32 0, %v3464
        %v3466 = vrot.slane %v3461, %v3465
        %v3484 = vunpack.c.l.b16 %v3444
        %v3485 = vunpack.c.l.b16 %v3445
        %v3486 = vunpack.c.l.b16 %v3446
        %v3487 = vunpack.c.l.b16 %v3447
        %v3488 = vunpack.c.l.b16 %v3448
        %v3489 = vunpack.c.l.b16 %v3449
        %v3490 = vunpack.c.l.b16 %v3450
        %v3491 = vunpack.c.l.b16 %v3451
        %v3492 = vunpack.c.l.b16 %v3452
        %v3493 = vunpack.c.l.b16 %v3453
        %v3494 = vunpack.c.l.b16 %v3454
        %v3495 = vunpack.c.l.b16 %v3455
        %v3496 = vunpack.c.l.b16 %v3456
        %v3497 = vunpack.c.l.b16 %v3457
        %v3498 = vunpack.c.l.b16 %v3458
        %v3499 = vunpack.c.l.b16 %v3459
        %v3500 = vpack.c.b16 %v3485, %v3484
        %v3501 = vpack.c.b16 %v3487, %v3486
        %v3502 = vpack.c.b16 %v3489, %v3488
        %v3503 = vpack.c.b16 %v3491, %v3490
        %v3504 = vpack.c.b16 %v3493, %v3492
        %v3505 = vpack.c.b16 %v3495, %v3494
        %v3506 = vpack.c.b16 %v3497, %v3496
        %v3507 = vpack.c.b16 %v3499, %v3498
        %3516 = vmatprep.subr.bf16.mxu0 0
        %3517 = vmatpush1.bf16.msra.mxu0 %v3507
        %3518 = vmatprep.subr.bf16.mxu0 0
        %3519 = vmatpush1.bf16.msra.mxu0 %v3506
        %3520 = vmatprep.subr.bf16.mxu0 0
        %3521 = vmatpush1.bf16.msra.mxu0 %v3505
        %3522 = vmatprep.subr.bf16.mxu0 0
        %3523 = vmatpush1.bf16.msra.mxu0 %v3504
        %3524 = vmatprep.subr.bf16.mxu0 0
        %3525 = vmatpush1.bf16.msra.mxu0 %v3503
        %3526 = vmatprep.subr.bf16.mxu0 0
        %3527 = vmatpush1.bf16.msra.mxu0 %v3502
        %3528 = vmatprep.subr.bf16.mxu0 0
        %3529 = vmatpush1.bf16.msra.mxu0 %v3501
        %3530 = vmatprep.subr.bf16.mxu0 0
        %3531 = vmatpush1.bf16.msra.mxu0 %v3500
        %3532 = vmatprep.subr.bf16.mxu0 0
        %3533 = vmatpush2.bf16.msra.mxu0 0
        %3534 = vmatprep.subr.bf16.mxu0 0
        %3535 = vmatpush2.bf16.msra.mxu0 0
        %3536 = vmatprep.subr.bf16.mxu0 0
        %3537 = vmatpush2.bf16.msra.mxu0 0
        %3538 = vmatprep.subr.bf16.mxu0 0
        %3539 = vmatpush2.bf16.msra.mxu0 0
        %3540 = vmatprep.subr.bf16.mxu0 0
        %3541 = vmatpush2.bf16.msra.mxu0 0
        %3542 = vmatprep.subr.bf16.mxu0 0
        %3543 = vmatpush2.bf16.msra.mxu0 0
        %3544 = vmatprep.subr.bf16.mxu0 0
        %3545 = vmatpush2.bf16.msra.mxu0 0
        %3546 = vmatprep.subr.bf16.mxu0 0
        %3547 = vmatpush2.bf16.msra.mxu0 0
        %3548 = vmatprep.mubr.bf16.mxu0 0
        %3549 = vmatmul.mubr.bf16.gmra.mxu0 %v798
        %v3550 = vpop.f32.mrf.mxu0
        %v3551 = vadd.f32 %v3466, %v3550
        %v3552 = vpop.f32.mrf.mxu0
        %v3553 = vpop.f32.mrf.mxu0
        %v3554 = vpop.f32.mrf.mxu0
        %3555 = vdwg.mxu0
        %s3556 = scalar_lea.vmem %s11, 320
        %v3557 = vld [vmem:[%s3556] sm:$0xf]
        %v3558 = vld [vmem:[%s3556 + $0x4] sm:$0xf]
        %v3559 = vld [vmem:[%s3556 + $0x8] sm:$0xf]
        %v3560 = vld [vmem:[%s3556 + $0xc] sm:$0xf]
        %v3561 = vld [vmem:[%s3556 + $0x10] sm:$0xf]
        %v3562 = vld [vmem:[%s3556 + $0x14] sm:$0xf]
        %v3563 = vld [vmem:[%s3556 + $0x18] sm:$0xf]
        %v3564 = vld [vmem:[%s3556 + $0x1c] sm:$0xf]
        %v3565 = vld [vmem:[%s3556 + $0x20] sm:$0xf]
        %v3566 = vld [vmem:[%s3556 + $0x24] sm:$0xf]
        %v3567 = vld [vmem:[%s3556 + $0x28] sm:$0xf]
        %v3568 = vld [vmem:[%s3556 + $0x2c] sm:$0xf]
        %v3569 = vld [vmem:[%s3556 + $0x30] sm:$0xf]
        %v3570 = vld [vmem:[%s3556 + $0x34] sm:$0xf]
        %v3571 = vld [vmem:[%s3556 + $0x38] sm:$0xf]
        %v3572 = vld [vmem:[%s3556 + $0x3c] sm:$0xf]
        %s3573 = scalar_lea.vmem %s12, 5
        %v3574 = vld [vmem:[%s3573] sm:$0x1]
        %v3576 = vlaneseq
        %v3577 = vshrl.u32 %v3576, 7
        %v3578 = vsub.s32 0, %v3577
        %v3579 = vrot.slane %v3574, %v3578
        %v3597 = vunpack.c.l.b16 %v3557
        %v3598 = vunpack.c.l.b16 %v3558
        %v3599 = vunpack.c.l.b16 %v3559
        %v3600 = vunpack.c.l.b16 %v3560
        %v3601 = vunpack.c.l.b16 %v3561
        %v3602 = vunpack.c.l.b16 %v3562
        %v3603 = vunpack.c.l.b16 %v3563
        %v3604 = vunpack.c.l.b16 %v3564
        %v3605 = vunpack.c.l.b16 %v3565
        %v3606 = vunpack.c.l.b16 %v3566
        %v3607 = vunpack.c.l.b16 %v3567
        %v3608 = vunpack.c.l.b16 %v3568
        %v3609 = vunpack.c.l.b16 %v3569
        %v3610 = vunpack.c.l.b16 %v3570
        %v3611 = vunpack.c.l.b16 %v3571
        %v3612 = vunpack.c.l.b16 %v3572
        %v3613 = vpack.c.b16 %v3598, %v3597
        %v3614 = vpack.c.b16 %v3600, %v3599
        %v3615 = vpack.c.b16 %v3602, %v3601
        %v3616 = vpack.c.b16 %v3604, %v3603
        %v3617 = vpack.c.b16 %v3606, %v3605
        %v3618 = vpack.c.b16 %v3608, %v3607
        %v3619 = vpack.c.b16 %v3610, %v3609
        %v3620 = vpack.c.b16 %v3612, %v3611
        %3629 = vmatprep.subr.bf16.mxu0 0
        %3630 = vmatpush1.bf16.msra.mxu0 %v3620
        %3631 = vmatprep.subr.bf16.mxu0 0
        %3632 = vmatpush1.bf16.msra.mxu0 %v3619
        %3633 = vmatprep.subr.bf16.mxu0 0
        %3634 = vmatpush1.bf16.msra.mxu0 %v3618
        %3635 = vmatprep.subr.bf16.mxu0 0
        %3636 = vmatpush1.bf16.msra.mxu0 %v3617
        %3637 = vmatprep.subr.bf16.mxu0 0
        %3638 = vmatpush1.bf16.msra.mxu0 %v3616
        %3639 = vmatprep.subr.bf16.mxu0 0
        %3640 = vmatpush1.bf16.msra.mxu0 %v3615
        %3641 = vmatprep.subr.bf16.mxu0 0
        %3642 = vmatpush1.bf16.msra.mxu0 %v3614
        %3643 = vmatprep.subr.bf16.mxu0 0
        %3644 = vmatpush1.bf16.msra.mxu0 %v3613
        %3645 = vmatprep.subr.bf16.mxu0 0
        %3646 = vmatpush2.bf16.msra.mxu0 0
        %3647 = vmatprep.subr.bf16.mxu0 0
        %3648 = vmatpush2.bf16.msra.mxu0 0
        %3649 = vmatprep.subr.bf16.mxu0 0
        %3650 = vmatpush2.bf16.msra.mxu0 0
        %3651 = vmatprep.subr.bf16.mxu0 0
        %3652 = vmatpush2.bf16.msra.mxu0 0
        %3653 = vmatprep.subr.bf16.mxu0 0
        %3654 = vmatpush2.bf16.msra.mxu0 0
        %3655 = vmatprep.subr.bf16.mxu0 0
        %3656 = vmatpush2.bf16.msra.mxu0 0
        %3657 = vmatprep.subr.bf16.mxu0 0
        %3658 = vmatpush2.bf16.msra.mxu0 0
        %3659 = vmatprep.subr.bf16.mxu0 0
        %3660 = vmatpush2.bf16.msra.mxu0 0
        %3661 = vmatprep.mubr.bf16.mxu0 0
        %3662 = vmatmul.mubr.bf16.gmra.mxu0 %v798
        %v3663 = vpop.f32.mrf.mxu0
        %v3664 = vadd.f32 %v3579, %v3663
        %v3665 = vpop.f32.mrf.mxu0
        %v3666 = vpop.f32.mrf.mxu0
        %v3667 = vpop.f32.mrf.mxu0
        %3668 = vdwg.mxu0
        %v3669 = vpack.c.bf16 %v3438, %v3438
        %v3670 = vpack.c.bf16 %v3551, %v3551
        %v3672 = vsel %vm1144, %v3669, 0
        %v3675 = vsel %vm1144, %v3670, 0
        %3677 = vmatprep.subr.bf16.mxu0 0
        %3678 = vmatpush1.bf16.xpose.msra.mxu0 0
        %3679 = vmatprep.subr.bf16.mxu0 0
        %3680 = vmatpush1.bf16.xpose.msra.mxu0 0
        %3681 = vmatprep.subr.bf16.mxu0 0
        %3682 = vmatpush1.bf16.xpose.msra.mxu0 0
        %3683 = vmatprep.subr.bf16.mxu0 0
        %3684 = vmatpush1.bf16.xpose.msra.mxu0 0
        %3685 = vmatprep.subr.bf16.mxu0 0
        %3686 = vmatpush1.bf16.xpose.msra.mxu0 0
        %3687 = vmatprep.subr.bf16.mxu0 0
        %3688 = vmatpush1.bf16.xpose.msra.mxu0 0
        %3689 = vmatprep.subr.bf16.mxu0 0
        %3690 = vmatpush1.bf16.xpose.msra.mxu0 0
        %3691 = vmatprep.subr.bf16.mxu0 0
        %3692 = vmatpush1.bf16.xpose.msra.mxu0 %v3675
        %3693 = vmatprep.subr.bf16.mxu0 0
        %3694 = vmatpush2.bf16.xpose.msra.mxu0 0
        %3695 = vmatprep.subr.bf16.mxu0 0
        %3696 = vmatpush2.bf16.xpose.msra.mxu0 0
        %3697 = vmatprep.subr.bf16.mxu0 0
        %3698 = vmatpush2.bf16.xpose.msra.mxu0 0
        %3699 = vmatprep.subr.bf16.mxu0 0
        %3700 = vmatpush2.bf16.xpose.msra.mxu0 0
        %3701 = vmatprep.subr.bf16.mxu0 0
        %3702 = vmatpush2.bf16.xpose.msra.mxu0 0
        %3703 = vmatprep.subr.bf16.mxu0 0
        %3704 = vmatpush2.bf16.xpose.msra.mxu0 0
        %3705 = vmatprep.subr.bf16.mxu0 0
        %3706 = vmatpush2.bf16.xpose.msra.mxu0 0
        %3707 = vmatprep.subr.bf16.mxu0 0
        %3708 = vmatpush2.bf16.xpose.msra.mxu0 0
        %3709 = vmatprep.mubr.bf16.mxu0 0
        %3710 = vmatmul.mubr.bf16.gmra.mxu0 %v3672
        %v3711 = vpop.f32.mrf.mxu0
        %v3712 = vadd.f32 %v2881, %v3711
        %v3713 = vpop.f32.mrf.mxu0
        %v3714 = vpop.f32.mrf.mxu0
        %v3715 = vpop.f32.mrf.mxu0
        %3716 = vdwg.mxu0
        %v3717 = vsel %vm1191, %v3712, -inf
        %3718 = vmax.xlane.f32.xlu0 %v3717
        %v3719 = vpop.xlane.xlu0 %3718
        %v3720 = vsub.f32 %v3712, %v3719
        %v3721 = vmul.f32 %v3720, 1.442695
        %v3722 = vpow.pop %v3721
        %v3723 = vsel %vm1191, %v3722, 0.0
        %3724 = vadd.xlane.f32.xlu0 %v3723
        %v3725 = vpop.xlane.xlu0 %3724
        %v3726 = vrcp.pop %v3725
        %v3727 = vmul.f32 %v3722, %v3726
        %v3728 = vpack.c.bf16 %v3727, %v3727
        %v3729 = vpack.c.bf16 %v3664, %v3664
        %v3731 = vsel %vm1191, %v3728, 0
        %v3734 = vsel %vm1208, %v3729, 0
        %3736 = vmatprep.subr.bf16.mxu0 0
        %3737 = vmatpush1.bf16.msra.mxu0 0
        %3738 = vmatprep.subr.bf16.mxu0 0
        %3739 = vmatpush1.bf16.msra.mxu0 0
        %3740 = vmatprep.subr.bf16.mxu0 0
        %3741 = vmatpush1.bf16.msra.mxu0 0
        %3742 = vmatprep.subr.bf16.mxu0 0
        %3743 = vmatpush1.bf16.msra.mxu0 0
        %3744 = vmatprep.subr.bf16.mxu0 0
        %3745 = vmatpush1.bf16.msra.mxu0 0
        %3746 = vmatprep.subr.bf16.mxu0 0
        %3747 = vmatpush1.bf16.msra.mxu0 0
        %3748 = vmatprep.subr.bf16.mxu0 0
        %3749 = vmatpush1.bf16.msra.mxu0 0
        %3750 = vmatprep.subr.bf16.mxu0 0
        %3751 = vmatpush1.bf16.msra.mxu0 %v3734
        %3752 = vmatprep.subr.bf16.mxu0 0
        %3753 = vmatpush2.bf16.msra.mxu0 0
        %3754 = vmatprep.subr.bf16.mxu0 0
        %3755 = vmatpush2.bf16.msra.mxu0 0
        %3756 = vmatprep.subr.bf16.mxu0 0
        %3757 = vmatpush2.bf16.msra.mxu0 0
        %3758 = vmatprep.subr.bf16.mxu0 0
        %3759 = vmatpush2.bf16.msra.mxu0 0
        %3760 = vmatprep.subr.bf16.mxu0 0
        %3761 = vmatpush2.bf16.msra.mxu0 0
        %3762 = vmatprep.subr.bf16.mxu0 0
        %3763 = vmatpush2.bf16.msra.mxu0 0
        %3764 = vmatprep.subr.bf16.mxu0 0
        %3765 = vmatpush2.bf16.msra.mxu0 0
        %3766 = vmatprep.subr.bf16.mxu0 0
        %3767 = vmatpush2.bf16.msra.mxu0 0
        %3768 = vmatprep.mubr.bf16.mxu0 0
        %3769 = vmatmul.mubr.bf16.gmra.mxu0 %v3731
        %v3770 = vpop.f32.mrf.mxu0
        %v3771 = vadd.f32 0.0, %v3770
        %v3772 = vpop.f32.mrf.mxu0
        %v3773 = vpop.f32.mrf.mxu0
        %v3774 = vpop.f32.mrf.mxu0
        %3775 = vdwg.mxu0
        %v3776 = vpack.c.bf16 %v3771, %v3771
        %s3777 = scalar_lea.vmem [#allocation6], 16
        %v3778 = vld [vmem:[%s3777] sm:$0xf]
        %v3779 = vld [vmem:[%s3777 + $0x4] sm:$0xf]
        %v3780 = vld [vmem:[%s3777 + $0x8] sm:$0xf]
        %v3781 = vld [vmem:[%s3777 + $0xc] sm:$0xf]
        %v3786 = vunpack.c.l.b16 %v3778
        %v3787 = vunpack.c.l.b16 %v3779
        %v3788 = vunpack.c.l.b16 %v3780
        %v3789 = vunpack.c.l.b16 %v3781
        %v3790 = vpack.c.b16 %v3787, %v3786
        %v3791 = vpack.c.b16 %v3789, %v3788
        %v3795 = vsel %vm1144, %v3776, 0
        %3797 = vmatprep.subr.bf16.mxu0 0
        %3798 = vmatpush1.bf16.msra.mxu0 0
        %3799 = vmatprep.subr.bf16.mxu0 0
        %3800 = vmatpush1.bf16.msra.mxu0 0
        %3801 = vmatprep.subr.bf16.mxu0 0
        %3802 = vmatpush1.bf16.msra.mxu0 0
        %3803 = vmatprep.subr.bf16.mxu0 0
        %3804 = vmatpush1.bf16.msra.mxu0 0
        %3805 = vmatprep.subr.bf16.mxu0 0
        %3806 = vmatpush1.bf16.msra.mxu0 0
        %3807 = vmatprep.subr.bf16.mxu0 0
        %3808 = vmatpush1.bf16.msra.mxu0 0
        %3809 = vmatprep.subr.bf16.mxu0 0
        %3810 = vmatpush1.bf16.msra.mxu0 %v3791
        %3811 = vmatprep.subr.bf16.mxu0 0
        %3812 = vmatpush1.bf16.msra.mxu0 %v3790
        %3813 = vmatprep.subr.bf16.mxu0 0
        %3814 = vmatpush2.bf16.msra.mxu0 0
        %3815 = vmatprep.subr.bf16.mxu0 0
        %3816 = vmatpush2.bf16.msra.mxu0 0
        %3817 = vmatprep.subr.bf16.mxu0 0
        %3818 = vmatpush2.bf16.msra.mxu0 0
        %3819 = vmatprep.subr.bf16.mxu0 0
        %3820 = vmatpush2.bf16.msra.mxu0 0
        %3821 = vmatprep.subr.bf16.mxu0 0
        %3822 = vmatpush2.bf16.msra.mxu0 0
        %3823 = vmatprep.subr.bf16.mxu0 0
        %3824 = vmatpush2.bf16.msra.mxu0 0
        %3825 = vmatprep.subr.bf16.mxu0 0
        %3826 = vmatpush2.bf16.msra.mxu0 0
        %3827 = vmatprep.subr.bf16.mxu0 0
        %3828 = vmatpush2.bf16.msra.mxu0 0
        %3829 = vmatprep.mubr.bf16.mxu0 0
        %3830 = vmatmul.mubr.bf16.gmra.mxu0 %v3795
        %v3831 = vpop.f32.mrf.mxu0
        %v3832 = vadd.f32 0.0, %v3831
        %v3833 = vpop.f32.mrf.mxu0
        %v3834 = vpop.f32.mrf.mxu0
        %v3835 = vpop.f32.mrf.mxu0
        %3836 = vdwg.mxu0
        %v3841 = vunpack.c.l.b16 %v3326
        %v3842 = vunpack.c.l.b16 %v3327
        %v3843 = vunpack.c.l.b16 %v3328
        %v3844 = vunpack.c.l.b16 %v3329
        %v3845 = vpack.c.b16 %v3842, %v3841
        %v3846 = vpack.c.b16 %v3844, %v3843
        %v3850 = vsel %vm1144, %v3325, 0
        %3852 = vmatprep.subr.bf16.mxu0 0
        %3853 = vmatpush1.bf16.msra.mxu0 0
        %3854 = vmatprep.subr.bf16.mxu0 0
        %3855 = vmatpush1.bf16.msra.mxu0 0
        %3856 = vmatprep.subr.bf16.mxu0 0
        %3857 = vmatpush1.bf16.msra.mxu0 0
        %3858 = vmatprep.subr.bf16.mxu0 0
        %3859 = vmatpush1.bf16.msra.mxu0 0
        %3860 = vmatprep.subr.bf16.mxu0 0
        %3861 = vmatpush1.bf16.msra.mxu0 0
        %3862 = vmatprep.subr.bf16.mxu0 0
        %3863 = vmatpush1.bf16.msra.mxu0 0
        %3864 = vmatprep.subr.bf16.mxu0 0
        %3865 = vmatpush1.bf16.msra.mxu0 %v3846
        %3866 = vmatprep.subr.bf16.mxu0 0
        %3867 = vmatpush1.bf16.msra.mxu0 %v3845
        %3868 = vmatprep.subr.bf16.mxu0 0
        %3869 = vmatpush2.bf16.msra.mxu0 0
        %3870 = vmatprep.subr.bf16.mxu0 0
        %3871 = vmatpush2.bf16.msra.mxu0 0
        %3872 = vmatprep.subr.bf16.mxu0 0
        %3873 = vmatpush2.bf16.msra.mxu0 0
        %3874 = vmatprep.subr.bf16.mxu0 0
        %3875 = vmatpush2.bf16.msra.mxu0 0
        %3876 = vmatprep.subr.bf16.mxu0 0
        %3877 = vmatpush2.bf16.msra.mxu0 0
        %3878 = vmatprep.subr.bf16.mxu0 0
        %3879 = vmatpush2.bf16.msra.mxu0 0
        %3880 = vmatprep.subr.bf16.mxu0 0
        %3881 = vmatpush2.bf16.msra.mxu0 0
        %3882 = vmatprep.subr.bf16.mxu0 0
        %3883 = vmatpush2.bf16.msra.mxu0 0
        %3884 = vmatprep.mubr.bf16.mxu0 0
        %3885 = vmatmul.mubr.bf16.gmra.mxu0 %v3850
        %v3886 = vpop.f32.mrf.mxu0
        %v3887 = vadd.f32 %v3832, %v3886
        %v3888 = vpop.f32.mrf.mxu0
        %v3889 = vpop.f32.mrf.mxu0
        %v3890 = vpop.f32.mrf.mxu0
        %3891 = vdwg.mxu0
        %s3892 = scalar_lea.vmem [#allocation4], 128
        %v3893 = vld [vmem:[%s3892] sm:$0xf]
        %v3894 = vld [vmem:[%s3892 + $0x4] sm:$0xf]
        %v3895 = vld [vmem:[%s3892 + $0x8] sm:$0xf]
        %v3896 = vld [vmem:[%s3892 + $0xc] sm:$0xf]
        %v3897 = vld [vmem:[%s3892 + $0x10] sm:$0xf]
        %v3898 = vld [vmem:[%s3892 + $0x14] sm:$0xf]
        %v3899 = vld [vmem:[%s3892 + $0x18] sm:$0xf]
        %v3900 = vld [vmem:[%s3892 + $0x1c] sm:$0xf]
        %v3901 = vld [vmem:[%s3892 + $0x20] sm:$0xf]
        %v3902 = vld [vmem:[%s3892 + $0x24] sm:$0xf]
        %v3903 = vld [vmem:[%s3892 + $0x28] sm:$0xf]
        %v3904 = vld [vmem:[%s3892 + $0x2c] sm:$0xf]
        %v3905 = vld [vmem:[%s3892 + $0x30] sm:$0xf]
        %v3906 = vld [vmem:[%s3892 + $0x34] sm:$0xf]
        %v3907 = vld [vmem:[%s3892 + $0x38] sm:$0xf]
        %v3908 = vld [vmem:[%s3892 + $0x3c] sm:$0xf]
        %s3909 = scalar_lea.vmem %s10, 2
        %v3910 = vld [vmem:[%s3909] sm:$0x1]
        %v3912 = vlaneseq
        %v3913 = vshrl.u32 %v3912, 7
        %v3914 = vsub.s32 0, %v3913
        %v3915 = vrot.slane %v3910, %v3914
        %v3933 = vunpack.c.l.b16 %v3893
        %v3934 = vunpack.c.l.b16 %v3894
        %v3935 = vunpack.c.l.b16 %v3895
        %v3936 = vunpack.c.l.b16 %v3896
        %v3937 = vunpack.c.l.b16 %v3897
        %v3938 = vunpack.c.l.b16 %v3898
        %v3939 = vunpack.c.l.b16 %v3899
        %v3940 = vunpack.c.l.b16 %v3900
        %v3941 = vunpack.c.l.b16 %v3901
        %v3942 = vunpack.c.l.b16 %v3902
        %v3943 = vunpack.c.l.b16 %v3903
        %v3944 = vunpack.c.l.b16 %v3904
        %v3945 = vunpack.c.l.b16 %v3905
        %v3946 = vunpack.c.l.b16 %v3906
        %v3947 = vunpack.c.l.b16 %v3907
        %v3948 = vunpack.c.l.b16 %v3908
        %v3949 = vpack.c.b16 %v3934, %v3933
        %v3950 = vpack.c.b16 %v3936, %v3935
        %v3951 = vpack.c.b16 %v3938, %v3937
        %v3952 = vpack.c.b16 %v3940, %v3939
        %v3953 = vpack.c.b16 %v3942, %v3941
        %v3954 = vpack.c.b16 %v3944, %v3943
        %v3955 = vpack.c.b16 %v3946, %v3945
        %v3956 = vpack.c.b16 %v3948, %v3947
        %3965 = vmatprep.subr.bf16.mxu0 0
        %3966 = vmatpush1.bf16.msra.mxu0 %v3956
        %3967 = vmatprep.subr.bf16.mxu0 0
        %3968 = vmatpush1.bf16.msra.mxu0 %v3955
        %3969 = vmatprep.subr.bf16.mxu0 0
        %3970 = vmatpush1.bf16.msra.mxu0 %v3954
        %3971 = vmatprep.subr.bf16.mxu0 0
        %3972 = vmatpush1.bf16.msra.mxu0 %v3953
        %3973 = vmatprep.subr.bf16.mxu0 0
        %3974 = vmatpush1.bf16.msra.mxu0 %v3952
        %3975 = vmatprep.subr.bf16.mxu0 0
        %3976 = vmatpush1.bf16.msra.mxu0 %v3951
        %3977 = vmatprep.subr.bf16.mxu0 0
        %3978 = vmatpush1.bf16.msra.mxu0 %v3950
        %3979 = vmatprep.subr.bf16.mxu0 0
        %3980 = vmatpush1.bf16.msra.mxu0 %v3949
        %3981 = vmatprep.subr.bf16.mxu0 0
        %3982 = vmatpush2.bf16.msra.mxu0 0
        %3983 = vmatprep.subr.bf16.mxu0 0
        %3984 = vmatpush2.bf16.msra.mxu0 0
        %3985 = vmatprep.subr.bf16.mxu0 0
        %3986 = vmatpush2.bf16.msra.mxu0 0
        %3987 = vmatprep.subr.bf16.mxu0 0
        %3988 = vmatpush2.bf16.msra.mxu0 0
        %3989 = vmatprep.subr.bf16.mxu0 0
        %3990 = vmatpush2.bf16.msra.mxu0 0
        %3991 = vmatprep.subr.bf16.mxu0 0
        %3992 = vmatpush2.bf16.msra.mxu0 0
        %3993 = vmatprep.subr.bf16.mxu0 0
        %3994 = vmatpush2.bf16.msra.mxu0 0
        %3995 = vmatprep.subr.bf16.mxu0 0
        %3996 = vmatpush2.bf16.msra.mxu0 0
        %3997 = vmatprep.mubr.bf16.mxu0 0
        %3998 = vmatmul.mubr.bf16.gmra.mxu0 %v2873
        %v3999 = vpop.f32.mrf.mxu0
        %v4000 = vadd.f32 %v3915, %v3999
        %v4001 = vpop.f32.mrf.mxu0
        %v4002 = vpop.f32.mrf.mxu0
        %v4003 = vpop.f32.mrf.mxu0
        %4004 = vdwg.mxu0
        %s4005 = scalar_lea.vmem %s11, 128
        %v4006 = vld [vmem:[%s4005] sm:$0xf]
        %v4007 = vld [vmem:[%s4005 + $0x4] sm:$0xf]
        %v4008 = vld [vmem:[%s4005 + $0x8] sm:$0xf]
        %v4009 = vld [vmem:[%s4005 + $0xc] sm:$0xf]
        %v4010 = vld [vmem:[%s4005 + $0x10] sm:$0xf]
        %v4011 = vld [vmem:[%s4005 + $0x14] sm:$0xf]
        %v4012 = vld [vmem:[%s4005 + $0x18] sm:$0xf]
        %v4013 = vld [vmem:[%s4005 + $0x1c] sm:$0xf]
        %v4014 = vld [vmem:[%s4005 + $0x20] sm:$0xf]
        %v4015 = vld [vmem:[%s4005 + $0x24] sm:$0xf]
        %v4016 = vld [vmem:[%s4005 + $0x28] sm:$0xf]
        %v4017 = vld [vmem:[%s4005 + $0x2c] sm:$0xf]
        %v4018 = vld [vmem:[%s4005 + $0x30] sm:$0xf]
        %v4019 = vld [vmem:[%s4005 + $0x34] sm:$0xf]
        %v4020 = vld [vmem:[%s4005 + $0x38] sm:$0xf]
        %v4021 = vld [vmem:[%s4005 + $0x3c] sm:$0xf]
        %s4022 = scalar_lea.vmem %s12, 2
        %v4023 = vld [vmem:[%s4022] sm:$0x1]
        %v4025 = vlaneseq
        %v4026 = vshrl.u32 %v4025, 7
        %v4027 = vsub.s32 0, %v4026
        %v4028 = vrot.slane %v4023, %v4027
        %v4046 = vunpack.c.l.b16 %v4006
        %v4047 = vunpack.c.l.b16 %v4007
        %v4048 = vunpack.c.l.b16 %v4008
        %v4049 = vunpack.c.l.b16 %v4009
        %v4050 = vunpack.c.l.b16 %v4010
        %v4051 = vunpack.c.l.b16 %v4011
        %v4052 = vunpack.c.l.b16 %v4012
        %v4053 = vunpack.c.l.b16 %v4013
        %v4054 = vunpack.c.l.b16 %v4014
        %v4055 = vunpack.c.l.b16 %v4015
        %v4056 = vunpack.c.l.b16 %v4016
        %v4057 = vunpack.c.l.b16 %v4017
        %v4058 = vunpack.c.l.b16 %v4018
        %v4059 = vunpack.c.l.b16 %v4019
        %v4060 = vunpack.c.l.b16 %v4020
        %v4061 = vunpack.c.l.b16 %v4021
        %v4062 = vpack.c.b16 %v4047, %v4046
        %v4063 = vpack.c.b16 %v4049, %v4048
        %v4064 = vpack.c.b16 %v4051, %v4050
        %v4065 = vpack.c.b16 %v4053, %v4052
        %v4066 = vpack.c.b16 %v4055, %v4054
        %v4067 = vpack.c.b16 %v4057, %v4056
        %v4068 = vpack.c.b16 %v4059, %v4058
        %v4069 = vpack.c.b16 %v4061, %v4060
        %4078 = vmatprep.subr.bf16.mxu0 0
        %4079 = vmatpush1.bf16.msra.mxu0 %v4069
        %4080 = vmatprep.subr.bf16.mxu0 0
        %4081 = vmatpush1.bf16.msra.mxu0 %v4068
        %4082 = vmatprep.subr.bf16.mxu0 0
        %4083 = vmatpush1.bf16.msra.mxu0 %v4067
        %4084 = vmatprep.subr.bf16.mxu0 0
        %4085 = vmatpush1.bf16.msra.mxu0 %v4066
        %4086 = vmatprep.subr.bf16.mxu0 0
        %4087 = vmatpush1.bf16.msra.mxu0 %v4065
        %4088 = vmatprep.subr.bf16.mxu0 0
        %4089 = vmatpush1.bf16.msra.mxu0 %v4064
        %4090 = vmatprep.subr.bf16.mxu0 0
        %4091 = vmatpush1.bf16.msra.mxu0 %v4063
        %4092 = vmatprep.subr.bf16.mxu0 0
        %4093 = vmatpush1.bf16.msra.mxu0 %v4062
        %4094 = vmatprep.subr.bf16.mxu0 0
        %4095 = vmatpush2.bf16.msra.mxu0 0
        %4096 = vmatprep.subr.bf16.mxu0 0
        %4097 = vmatpush2.bf16.msra.mxu0 0
        %4098 = vmatprep.subr.bf16.mxu0 0
        %4099 = vmatpush2.bf16.msra.mxu0 0
        %4100 = vmatprep.subr.bf16.mxu0 0
        %4101 = vmatpush2.bf16.msra.mxu0 0
        %4102 = vmatprep.subr.bf16.mxu0 0
        %4103 = vmatpush2.bf16.msra.mxu0 0
        %4104 = vmatprep.subr.bf16.mxu0 0
        %4105 = vmatpush2.bf16.msra.mxu0 0
        %4106 = vmatprep.subr.bf16.mxu0 0
        %4107 = vmatpush2.bf16.msra.mxu0 0
        %4108 = vmatprep.subr.bf16.mxu0 0
        %4109 = vmatpush2.bf16.msra.mxu0 0
        %4110 = vmatprep.mubr.bf16.mxu0 0
        %4111 = vmatmul.mubr.bf16.gmra.mxu0 %v798
        %v4112 = vpop.f32.mrf.mxu0
        %v4113 = vadd.f32 %v4028, %v4112
        %v4114 = vpop.f32.mrf.mxu0
        %v4115 = vpop.f32.mrf.mxu0
        %v4116 = vpop.f32.mrf.mxu0
        %4117 = vdwg.mxu0
        %s4118 = scalar_lea.vmem %s11, 384
        %v4119 = vld [vmem:[%s4118] sm:$0xf]
        %v4120 = vld [vmem:[%s4118 + $0x4] sm:$0xf]
        %v4121 = vld [vmem:[%s4118 + $0x8] sm:$0xf]
        %v4122 = vld [vmem:[%s4118 + $0xc] sm:$0xf]
        %v4123 = vld [vmem:[%s4118 + $0x10] sm:$0xf]
        %v4124 = vld [vmem:[%s4118 + $0x14] sm:$0xf]
        %v4125 = vld [vmem:[%s4118 + $0x18] sm:$0xf]
        %v4126 = vld [vmem:[%s4118 + $0x1c] sm:$0xf]
        %v4127 = vld [vmem:[%s4118 + $0x20] sm:$0xf]
        %v4128 = vld [vmem:[%s4118 + $0x24] sm:$0xf]
        %v4129 = vld [vmem:[%s4118 + $0x28] sm:$0xf]
        %v4130 = vld [vmem:[%s4118 + $0x2c] sm:$0xf]
        %v4131 = vld [vmem:[%s4118 + $0x30] sm:$0xf]
        %v4132 = vld [vmem:[%s4118 + $0x34] sm:$0xf]
        %v4133 = vld [vmem:[%s4118 + $0x38] sm:$0xf]
        %v4134 = vld [vmem:[%s4118 + $0x3c] sm:$0xf]
        %s4135 = scalar_lea.vmem %s12, 6
        %v4136 = vld [vmem:[%s4135] sm:$0x1]
        %v4138 = vlaneseq
        %v4139 = vshrl.u32 %v4138, 7
        %v4140 = vsub.s32 0, %v4139
        %v4141 = vrot.slane %v4136, %v4140
        %v4159 = vunpack.c.l.b16 %v4119
        %v4160 = vunpack.c.l.b16 %v4120
        %v4161 = vunpack.c.l.b16 %v4121
        %v4162 = vunpack.c.l.b16 %v4122
        %v4163 = vunpack.c.l.b16 %v4123
        %v4164 = vunpack.c.l.b16 %v4124
        %v4165 = vunpack.c.l.b16 %v4125
        %v4166 = vunpack.c.l.b16 %v4126
        %v4167 = vunpack.c.l.b16 %v4127
        %v4168 = vunpack.c.l.b16 %v4128
        %v4169 = vunpack.c.l.b16 %v4129
        %v4170 = vunpack.c.l.b16 %v4130
        %v4171 = vunpack.c.l.b16 %v4131
        %v4172 = vunpack.c.l.b16 %v4132
        %v4173 = vunpack.c.l.b16 %v4133
        %v4174 = vunpack.c.l.b16 %v4134
        %v4175 = vpack.c.b16 %v4160, %v4159
        %v4176 = vpack.c.b16 %v4162, %v4161
        %v4177 = vpack.c.b16 %v4164, %v4163
        %v4178 = vpack.c.b16 %v4166, %v4165
        %v4179 = vpack.c.b16 %v4168, %v4167
        %v4180 = vpack.c.b16 %v4170, %v4169
        %v4181 = vpack.c.b16 %v4172, %v4171
        %v4182 = vpack.c.b16 %v4174, %v4173
        %4191 = vmatprep.subr.bf16.mxu0 0
        %4192 = vmatpush1.bf16.msra.mxu0 %v4182
        %4193 = vmatprep.subr.bf16.mxu0 0
        %4194 = vmatpush1.bf16.msra.mxu0 %v4181
        %4195 = vmatprep.subr.bf16.mxu0 0
        %4196 = vmatpush1.bf16.msra.mxu0 %v4180
        %4197 = vmatprep.subr.bf16.mxu0 0
        %4198 = vmatpush1.bf16.msra.mxu0 %v4179
        %4199 = vmatprep.subr.bf16.mxu0 0
        %4200 = vmatpush1.bf16.msra.mxu0 %v4178
        %4201 = vmatprep.subr.bf16.mxu0 0
        %4202 = vmatpush1.bf16.msra.mxu0 %v4177
        %4203 = vmatprep.subr.bf16.mxu0 0
        %4204 = vmatpush1.bf16.msra.mxu0 %v4176
        %4205 = vmatprep.subr.bf16.mxu0 0
        %4206 = vmatpush1.bf16.msra.mxu0 %v4175
        %4207 = vmatprep.subr.bf16.mxu0 0
        %4208 = vmatpush2.bf16.msra.mxu0 0
        %4209 = vmatprep.subr.bf16.mxu0 0
        %4210 = vmatpush2.bf16.msra.mxu0 0
        %4211 = vmatprep.subr.bf16.mxu0 0
        %4212 = vmatpush2.bf16.msra.mxu0 0
        %4213 = vmatprep.subr.bf16.mxu0 0
        %4214 = vmatpush2.bf16.msra.mxu0 0
        %4215 = vmatprep.subr.bf16.mxu0 0
        %4216 = vmatpush2.bf16.msra.mxu0 0
        %4217 = vmatprep.subr.bf16.mxu0 0
        %4218 = vmatpush2.bf16.msra.mxu0 0
        %4219 = vmatprep.subr.bf16.mxu0 0
        %4220 = vmatpush2.bf16.msra.mxu0 0
        %4221 = vmatprep.subr.bf16.mxu0 0
        %4222 = vmatpush2.bf16.msra.mxu0 0
        %4223 = vmatprep.mubr.bf16.mxu0 0
        %4224 = vmatmul.mubr.bf16.gmra.mxu0 %v798
        %v4225 = vpop.f32.mrf.mxu0
        %v4226 = vadd.f32 %v4141, %v4225
        %v4227 = vpop.f32.mrf.mxu0
        %v4228 = vpop.f32.mrf.mxu0
        %v4229 = vpop.f32.mrf.mxu0
        %4230 = vdwg.mxu0
        %v4231 = vpack.c.bf16 %v4000, %v4000
        %v4232 = vpack.c.bf16 %v4113, %v4113
        %v4234 = vsel %vm1144, %v4231, 0
        %v4237 = vsel %vm1144, %v4232, 0
        %4239 = vmatprep.subr.bf16.mxu0 0
        %4240 = vmatpush1.bf16.xpose.msra.mxu0 0
        %4241 = vmatprep.subr.bf16.mxu0 0
        %4242 = vmatpush1.bf16.xpose.msra.mxu0 0
        %4243 = vmatprep.subr.bf16.mxu0 0
        %4244 = vmatpush1.bf16.xpose.msra.mxu0 0
        %4245 = vmatprep.subr.bf16.mxu0 0
        %4246 = vmatpush1.bf16.xpose.msra.mxu0 0
        %4247 = vmatprep.subr.bf16.mxu0 0
        %4248 = vmatpush1.bf16.xpose.msra.mxu0 0
        %4249 = vmatprep.subr.bf16.mxu0 0
        %4250 = vmatpush1.bf16.xpose.msra.mxu0 0
        %4251 = vmatprep.subr.bf16.mxu0 0
        %4252 = vmatpush1.bf16.xpose.msra.mxu0 0
        %4253 = vmatprep.subr.bf16.mxu0 0
        %4254 = vmatpush1.bf16.xpose.msra.mxu0 %v4237
        %4255 = vmatprep.subr.bf16.mxu0 0
        %4256 = vmatpush2.bf16.xpose.msra.mxu0 0
        %4257 = vmatprep.subr.bf16.mxu0 0
        %4258 = vmatpush2.bf16.xpose.msra.mxu0 0
        %4259 = vmatprep.subr.bf16.mxu0 0
        %4260 = vmatpush2.bf16.xpose.msra.mxu0 0
        %4261 = vmatprep.subr.bf16.mxu0 0
        %4262 = vmatpush2.bf16.xpose.msra.mxu0 0
        %4263 = vmatprep.subr.bf16.mxu0 0
        %4264 = vmatpush2.bf16.xpose.msra.mxu0 0
        %4265 = vmatprep.subr.bf16.mxu0 0
        %4266 = vmatpush2.bf16.xpose.msra.mxu0 0
        %4267 = vmatprep.subr.bf16.mxu0 0
        %4268 = vmatpush2.bf16.xpose.msra.mxu0 0
        %4269 = vmatprep.subr.bf16.mxu0 0
        %4270 = vmatpush2.bf16.xpose.msra.mxu0 0
        %4271 = vmatprep.mubr.bf16.mxu0 0
        %4272 = vmatmul.mubr.bf16.gmra.mxu0 %v4234
        %v4273 = vpop.f32.mrf.mxu0
        %v4274 = vadd.f32 %v2881, %v4273
        %v4275 = vpop.f32.mrf.mxu0
        %v4276 = vpop.f32.mrf.mxu0
        %v4277 = vpop.f32.mrf.mxu0
        %4278 = vdwg.mxu0
        %v4279 = vsel %vm1191, %v4274, -inf
        %4280 = vmax.xlane.f32.xlu0 %v4279
        %v4281 = vpop.xlane.xlu0 %4280
        %v4282 = vsub.f32 %v4274, %v4281
        %v4283 = vmul.f32 %v4282, 1.442695
        %v4284 = vpow.pop %v4283
        %v4285 = vsel %vm1191, %v4284, 0.0
        %4286 = vadd.xlane.f32.xlu0 %v4285
        %v4287 = vpop.xlane.xlu0 %4286
        %v4288 = vrcp.pop %v4287
        %v4289 = vmul.f32 %v4284, %v4288
        %v4290 = vpack.c.bf16 %v4289, %v4289
        %v4291 = vpack.c.bf16 %v4226, %v4226
        %v4293 = vsel %vm1191, %v4290, 0
        %v4296 = vsel %vm1208, %v4291, 0
        %4298 = vmatprep.subr.bf16.mxu0 0
        %4299 = vmatpush1.bf16.msra.mxu0 0
        %4300 = vmatprep.subr.bf16.mxu0 0
        %4301 = vmatpush1.bf16.msra.mxu0 0
        %4302 = vmatprep.subr.bf16.mxu0 0
        %4303 = vmatpush1.bf16.msra.mxu0 0
        %4304 = vmatprep.subr.bf16.mxu0 0
        %4305 = vmatpush1.bf16.msra.mxu0 0
        %4306 = vmatprep.subr.bf16.mxu0 0
        %4307 = vmatpush1.bf16.msra.mxu0 0
        %4308 = vmatprep.subr.bf16.mxu0 0
        %4309 = vmatpush1.bf16.msra.mxu0 0
        %4310 = vmatprep.subr.bf16.mxu0 0
        %4311 = vmatpush1.bf16.msra.mxu0 0
        %4312 = vmatprep.subr.bf16.mxu0 0
        %4313 = vmatpush1.bf16.msra.mxu0 %v4296
        %4314 = vmatprep.subr.bf16.mxu0 0
        %4315 = vmatpush2.bf16.msra.mxu0 0
        %4316 = vmatprep.subr.bf16.mxu0 0
        %4317 = vmatpush2.bf16.msra.mxu0 0
        %4318 = vmatprep.subr.bf16.mxu0 0
        %4319 = vmatpush2.bf16.msra.mxu0 0
        %4320 = vmatprep.subr.bf16.mxu0 0
        %4321 = vmatpush2.bf16.msra.mxu0 0
        %4322 = vmatprep.subr.bf16.mxu0 0
        %4323 = vmatpush2.bf16.msra.mxu0 0
        %4324 = vmatprep.subr.bf16.mxu0 0
        %4325 = vmatpush2.bf16.msra.mxu0 0
        %4326 = vmatprep.subr.bf16.mxu0 0
        %4327 = vmatpush2.bf16.msra.mxu0 0
        %4328 = vmatprep.subr.bf16.mxu0 0
        %4329 = vmatpush2.bf16.msra.mxu0 0
        %4330 = vmatprep.mubr.bf16.mxu0 0
        %4331 = vmatmul.mubr.bf16.gmra.mxu0 %v4293
        %v4332 = vpop.f32.mrf.mxu0
        %v4333 = vadd.f32 0.0, %v4332
        %v4334 = vpop.f32.mrf.mxu0
        %v4335 = vpop.f32.mrf.mxu0
        %v4336 = vpop.f32.mrf.mxu0
        %4337 = vdwg.mxu0
        %v4338 = vpack.c.bf16 %v4333, %v4333
        %s4339 = scalar_lea.vmem [#allocation6], 32
        %v4340 = vld [vmem:[%s4339] sm:$0xf]
        %v4341 = vld [vmem:[%s4339 + $0x4] sm:$0xf]
        %v4342 = vld [vmem:[%s4339 + $0x8] sm:$0xf]
        %v4343 = vld [vmem:[%s4339 + $0xc] sm:$0xf]
        %v4348 = vunpack.c.l.b16 %v4340
        %v4349 = vunpack.c.l.b16 %v4341
        %v4350 = vunpack.c.l.b16 %v4342
        %v4351 = vunpack.c.l.b16 %v4343
        %v4352 = vpack.c.b16 %v4349, %v4348
        %v4353 = vpack.c.b16 %v4351, %v4350
        %v4357 = vsel %vm1144, %v4338, 0
        %4359 = vmatprep.subr.bf16.mxu0 0
        %4360 = vmatpush1.bf16.msra.mxu0 0
        %4361 = vmatprep.subr.bf16.mxu0 0
        %4362 = vmatpush1.bf16.msra.mxu0 0
        %4363 = vmatprep.subr.bf16.mxu0 0
        %4364 = vmatpush1.bf16.msra.mxu0 0
        %4365 = vmatprep.subr.bf16.mxu0 0
        %4366 = vmatpush1.bf16.msra.mxu0 0
        %4367 = vmatprep.subr.bf16.mxu0 0
        %4368 = vmatpush1.bf16.msra.mxu0 0
        %4369 = vmatprep.subr.bf16.mxu0 0
        %4370 = vmatpush1.bf16.msra.mxu0 0
        %4371 = vmatprep.subr.bf16.mxu0 0
        %4372 = vmatpush1.bf16.msra.mxu0 %v4353
        %4373 = vmatprep.subr.bf16.mxu0 0
        %4374 = vmatpush1.bf16.msra.mxu0 %v4352
        %4375 = vmatprep.subr.bf16.mxu0 0
        %4376 = vmatpush2.bf16.msra.mxu0 0
        %4377 = vmatprep.subr.bf16.mxu0 0
        %4378 = vmatpush2.bf16.msra.mxu0 0
        %4379 = vmatprep.subr.bf16.mxu0 0
        %4380 = vmatpush2.bf16.msra.mxu0 0
        %4381 = vmatprep.subr.bf16.mxu0 0
        %4382 = vmatpush2.bf16.msra.mxu0 0
        %4383 = vmatprep.subr.bf16.mxu0 0
        %4384 = vmatpush2.bf16.msra.mxu0 0
        %4385 = vmatprep.subr.bf16.mxu0 0
        %4386 = vmatpush2.bf16.msra.mxu0 0
        %4387 = vmatprep.subr.bf16.mxu0 0
        %4388 = vmatpush2.bf16.msra.mxu0 0
        %4389 = vmatprep.subr.bf16.mxu0 0
        %4390 = vmatpush2.bf16.msra.mxu0 0
        %4391 = vmatprep.mubr.bf16.mxu0 0
        %4392 = vmatmul.mubr.bf16.gmra.mxu0 %v4357
        %v4393 = vpop.f32.mrf.mxu0
        %v4394 = vadd.f32 0.0, %v4393
        %v4395 = vpop.f32.mrf.mxu0
        %v4396 = vpop.f32.mrf.mxu0
        %v4397 = vpop.f32.mrf.mxu0
        %4398 = vdwg.mxu0
        %v4399 = vadd.f32 %v3887, %v4394
        %s4400 = scalar_lea.vmem [#allocation4], 192
        %v4401 = vld [vmem:[%s4400] sm:$0xf]
        %v4402 = vld [vmem:[%s4400 + $0x4] sm:$0xf]
        %v4403 = vld [vmem:[%s4400 + $0x8] sm:$0xf]
        %v4404 = vld [vmem:[%s4400 + $0xc] sm:$0xf]
        %v4405 = vld [vmem:[%s4400 + $0x10] sm:$0xf]
        %v4406 = vld [vmem:[%s4400 + $0x14] sm:$0xf]
        %v4407 = vld [vmem:[%s4400 + $0x18] sm:$0xf]
        %v4408 = vld [vmem:[%s4400 + $0x1c] sm:$0xf]
        %v4409 = vld [vmem:[%s4400 + $0x20] sm:$0xf]
        %v4410 = vld [vmem:[%s4400 + $0x24] sm:$0xf]
        %v4411 = vld [vmem:[%s4400 + $0x28] sm:$0xf]
        %v4412 = vld [vmem:[%s4400 + $0x2c] sm:$0xf]
        %v4413 = vld [vmem:[%s4400 + $0x30] sm:$0xf]
        %v4414 = vld [vmem:[%s4400 + $0x34] sm:$0xf]
        %v4415 = vld [vmem:[%s4400 + $0x38] sm:$0xf]
        %v4416 = vld [vmem:[%s4400 + $0x3c] sm:$0xf]
        %s4417 = scalar_lea.vmem %s10, 3
        %v4418 = vld [vmem:[%s4417] sm:$0x1]
        %v4420 = vlaneseq
        %v4421 = vshrl.u32 %v4420, 7
        %v4422 = vsub.s32 0, %v4421
        %v4423 = vrot.slane %v4418, %v4422
        %v4441 = vunpack.c.l.b16 %v4401
        %v4442 = vunpack.c.l.b16 %v4402
        %v4443 = vunpack.c.l.b16 %v4403
        %v4444 = vunpack.c.l.b16 %v4404
        %v4445 = vunpack.c.l.b16 %v4405
        %v4446 = vunpack.c.l.b16 %v4406
        %v4447 = vunpack.c.l.b16 %v4407
        %v4448 = vunpack.c.l.b16 %v4408
        %v4449 = vunpack.c.l.b16 %v4409
        %v4450 = vunpack.c.l.b16 %v4410
        %v4451 = vunpack.c.l.b16 %v4411
        %v4452 = vunpack.c.l.b16 %v4412
        %v4453 = vunpack.c.l.b16 %v4413
        %v4454 = vunpack.c.l.b16 %v4414
        %v4455 = vunpack.c.l.b16 %v4415
        %v4456 = vunpack.c.l.b16 %v4416
        %v4457 = vpack.c.b16 %v4442, %v4441
        %v4458 = vpack.c.b16 %v4444, %v4443
        %v4459 = vpack.c.b16 %v4446, %v4445
        %v4460 = vpack.c.b16 %v4448, %v4447
        %v4461 = vpack.c.b16 %v4450, %v4449
        %v4462 = vpack.c.b16 %v4452, %v4451
        %v4463 = vpack.c.b16 %v4454, %v4453
        %v4464 = vpack.c.b16 %v4456, %v4455
        %4473 = vmatprep.subr.bf16.mxu0 0
        %4474 = vmatpush1.bf16.msra.mxu0 %v4464
        %4475 = vmatprep.subr.bf16.mxu0 0
        %4476 = vmatpush1.bf16.msra.mxu0 %v4463
        %4477 = vmatprep.subr.bf16.mxu0 0
        %4478 = vmatpush1.bf16.msra.mxu0 %v4462
        %4479 = vmatprep.subr.bf16.mxu0 0
        %4480 = vmatpush1.bf16.msra.mxu0 %v4461
        %4481 = vmatprep.subr.bf16.mxu0 0
        %4482 = vmatpush1.bf16.msra.mxu0 %v4460
        %4483 = vmatprep.subr.bf16.mxu0 0
        %4484 = vmatpush1.bf16.msra.mxu0 %v4459
        %4485 = vmatprep.subr.bf16.mxu0 0
        %4486 = vmatpush1.bf16.msra.mxu0 %v4458
        %4487 = vmatprep.subr.bf16.mxu0 0
        %4488 = vmatpush1.bf16.msra.mxu0 %v4457
        %4489 = vmatprep.subr.bf16.mxu0 0
        %4490 = vmatpush2.bf16.msra.mxu0 0
        %4491 = vmatprep.subr.bf16.mxu0 0
        %4492 = vmatpush2.bf16.msra.mxu0 0
        %4493 = vmatprep.subr.bf16.mxu0 0
        %4494 = vmatpush2.bf16.msra.mxu0 0
        %4495 = vmatprep.subr.bf16.mxu0 0
        %4496 = vmatpush2.bf16.msra.mxu0 0
        %4497 = vmatprep.subr.bf16.mxu0 0
        %4498 = vmatpush2.bf16.msra.mxu0 0
        %4499 = vmatprep.subr.bf16.mxu0 0
        %4500 = vmatpush2.bf16.msra.mxu0 0
        %4501 = vmatprep.subr.bf16.mxu0 0
        %4502 = vmatpush2.bf16.msra.mxu0 0
        %4503 = vmatprep.subr.bf16.mxu0 0
        %4504 = vmatpush2.bf16.msra.mxu0 0
        %4505 = vmatprep.mubr.bf16.mxu0 0
        %4506 = vmatmul.mubr.bf16.gmra.mxu0 %v2873
        %v4507 = vpop.f32.mrf.mxu0
        %v4508 = vadd.f32 %v4423, %v4507
        %v4509 = vpop.f32.mrf.mxu0
        %v4510 = vpop.f32.mrf.mxu0
        %v4511 = vpop.f32.mrf.mxu0
        %4512 = vdwg.mxu0
        %s4513 = scalar_lea.vmem %s11, 192
        %v4514 = vld [vmem:[%s4513] sm:$0xf]
        %v4515 = vld [vmem:[%s4513 + $0x4] sm:$0xf]
        %v4516 = vld [vmem:[%s4513 + $0x8] sm:$0xf]
        %v4517 = vld [vmem:[%s4513 + $0xc] sm:$0xf]
        %v4518 = vld [vmem:[%s4513 + $0x10] sm:$0xf]
        %v4519 = vld [vmem:[%s4513 + $0x14] sm:$0xf]
        %v4520 = vld [vmem:[%s4513 + $0x18] sm:$0xf]
        %v4521 = vld [vmem:[%s4513 + $0x1c] sm:$0xf]
        %v4522 = vld [vmem:[%s4513 + $0x20] sm:$0xf]
        %v4523 = vld [vmem:[%s4513 + $0x24] sm:$0xf]
        %v4524 = vld [vmem:[%s4513 + $0x28] sm:$0xf]
        %v4525 = vld [vmem:[%s4513 + $0x2c] sm:$0xf]
        %v4526 = vld [vmem:[%s4513 + $0x30] sm:$0xf]
        %v4527 = vld [vmem:[%s4513 + $0x34] sm:$0xf]
        %v4528 = vld [vmem:[%s4513 + $0x38] sm:$0xf]
        %v4529 = vld [vmem:[%s4513 + $0x3c] sm:$0xf]
        %s4530 = scalar_lea.vmem %s12, 3
        %v4531 = vld [vmem:[%s4530] sm:$0x1]
        %v4533 = vlaneseq
        %v4534 = vshrl.u32 %v4533, 7
        %v4535 = vsub.s32 0, %v4534
        %v4536 = vrot.slane %v4531, %v4535
        %v4554 = vunpack.c.l.b16 %v4514
        %v4555 = vunpack.c.l.b16 %v4515
        %v4556 = vunpack.c.l.b16 %v4516
        %v4557 = vunpack.c.l.b16 %v4517
        %v4558 = vunpack.c.l.b16 %v4518
        %v4559 = vunpack.c.l.b16 %v4519
        %v4560 = vunpack.c.l.b16 %v4520
        %v4561 = vunpack.c.l.b16 %v4521
        %v4562 = vunpack.c.l.b16 %v4522
        %v4563 = vunpack.c.l.b16 %v4523
        %v4564 = vunpack.c.l.b16 %v4524
        %v4565 = vunpack.c.l.b16 %v4525
        %v4566 = vunpack.c.l.b16 %v4526
        %v4567 = vunpack.c.l.b16 %v4527
        %v4568 = vunpack.c.l.b16 %v4528
        %v4569 = vunpack.c.l.b16 %v4529
        %v4570 = vpack.c.b16 %v4555, %v4554
        %v4571 = vpack.c.b16 %v4557, %v4556
        %v4572 = vpack.c.b16 %v4559, %v4558
        %v4573 = vpack.c.b16 %v4561, %v4560
        %v4574 = vpack.c.b16 %v4563, %v4562
        %v4575 = vpack.c.b16 %v4565, %v4564
        %v4576 = vpack.c.b16 %v4567, %v4566
        %v4577 = vpack.c.b16 %v4569, %v4568
        %4586 = vmatprep.subr.bf16.mxu0 0
        %4587 = vmatpush1.bf16.msra.mxu0 %v4577
        %4588 = vmatprep.subr.bf16.mxu0 0
        %4589 = vmatpush1.bf16.msra.mxu0 %v4576
        %4590 = vmatprep.subr.bf16.mxu0 0
        %4591 = vmatpush1.bf16.msra.mxu0 %v4575
        %4592 = vmatprep.subr.bf16.mxu0 0
        %4593 = vmatpush1.bf16.msra.mxu0 %v4574
        %4594 = vmatprep.subr.bf16.mxu0 0
        %4595 = vmatpush1.bf16.msra.mxu0 %v4573
        %4596 = vmatprep.subr.bf16.mxu0 0
        %4597 = vmatpush1.bf16.msra.mxu0 %v4572
        %4598 = vmatprep.subr.bf16.mxu0 0
        %4599 = vmatpush1.bf16.msra.mxu0 %v4571
        %4600 = vmatprep.subr.bf16.mxu0 0
        %4601 = vmatpush1.bf16.msra.mxu0 %v4570
        %4602 = vmatprep.subr.bf16.mxu0 0
        %4603 = vmatpush2.bf16.msra.mxu0 0
        %4604 = vmatprep.subr.bf16.mxu0 0
        %4605 = vmatpush2.bf16.msra.mxu0 0
        %4606 = vmatprep.subr.bf16.mxu0 0
        %4607 = vmatpush2.bf16.msra.mxu0 0
        %4608 = vmatprep.subr.bf16.mxu0 0
        %4609 = vmatpush2.bf16.msra.mxu0 0
        %4610 = vmatprep.subr.bf16.mxu0 0
        %4611 = vmatpush2.bf16.msra.mxu0 0
        %4612 = vmatprep.subr.bf16.mxu0 0
        %4613 = vmatpush2.bf16.msra.mxu0 0
        %4614 = vmatprep.subr.bf16.mxu0 0
        %4615 = vmatpush2.bf16.msra.mxu0 0
        %4616 = vmatprep.subr.bf16.mxu0 0
        %4617 = vmatpush2.bf16.msra.mxu0 0
        %4618 = vmatprep.mubr.bf16.mxu0 0
        %4619 = vmatmul.mubr.bf16.gmra.mxu0 %v798
        %v4620 = vpop.f32.mrf.mxu0
        %v4621 = vadd.f32 %v4536, %v4620
        %v4622 = vpop.f32.mrf.mxu0
        %v4623 = vpop.f32.mrf.mxu0
        %v4624 = vpop.f32.mrf.mxu0
        %4625 = vdwg.mxu0
        %s4626 = scalar_lea.vmem %s11, 448
        %v4627 = vld [vmem:[%s4626] sm:$0xf]
        %v4628 = vld [vmem:[%s4626 + $0x4] sm:$0xf]
        %v4629 = vld [vmem:[%s4626 + $0x8] sm:$0xf]
        %v4630 = vld [vmem:[%s4626 + $0xc] sm:$0xf]
        %v4631 = vld [vmem:[%s4626 + $0x10] sm:$0xf]
        %v4632 = vld [vmem:[%s4626 + $0x14] sm:$0xf]
        %v4633 = vld [vmem:[%s4626 + $0x18] sm:$0xf]
        %v4634 = vld [vmem:[%s4626 + $0x1c] sm:$0xf]
        %v4635 = vld [vmem:[%s4626 + $0x20] sm:$0xf]
        %v4636 = vld [vmem:[%s4626 + $0x24] sm:$0xf]
        %v4637 = vld [vmem:[%s4626 + $0x28] sm:$0xf]
        %v4638 = vld [vmem:[%s4626 + $0x2c] sm:$0xf]
        %v4639 = vld [vmem:[%s4626 + $0x30] sm:$0xf]
        %v4640 = vld [vmem:[%s4626 + $0x34] sm:$0xf]
        %v4641 = vld [vmem:[%s4626 + $0x38] sm:$0xf]
        %v4642 = vld [vmem:[%s4626 + $0x3c] sm:$0xf]
        %s4643 = scalar_lea.vmem %s12, 7
        %v4644 = vld [vmem:[%s4643] sm:$0x1]
        %v4646 = vlaneseq
        %v4647 = vshrl.u32 %v4646, 7
        %v4648 = vsub.s32 0, %v4647
        %v4649 = vrot.slane %v4644, %v4648
        %v4667 = vunpack.c.l.b16 %v4627
        %v4668 = vunpack.c.l.b16 %v4628
        %v4669 = vunpack.c.l.b16 %v4629
        %v4670 = vunpack.c.l.b16 %v4630
        %v4671 = vunpack.c.l.b16 %v4631
        %v4672 = vunpack.c.l.b16 %v4632
        %v4673 = vunpack.c.l.b16 %v4633
        %v4674 = vunpack.c.l.b16 %v4634
        %v4675 = vunpack.c.l.b16 %v4635
        %v4676 = vunpack.c.l.b16 %v4636
        %v4677 = vunpack.c.l.b16 %v4637
        %v4678 = vunpack.c.l.b16 %v4638
        %v4679 = vunpack.c.l.b16 %v4639
        %v4680 = vunpack.c.l.b16 %v4640
        %v4681 = vunpack.c.l.b16 %v4641
        %v4682 = vunpack.c.l.b16 %v4642
        %v4683 = vpack.c.b16 %v4668, %v4667
        %v4684 = vpack.c.b16 %v4670, %v4669
        %v4685 = vpack.c.b16 %v4672, %v4671
        %v4686 = vpack.c.b16 %v4674, %v4673
        %v4687 = vpack.c.b16 %v4676, %v4675
        %v4688 = vpack.c.b16 %v4678, %v4677
        %v4689 = vpack.c.b16 %v4680, %v4679
        %v4690 = vpack.c.b16 %v4682, %v4681
        %4699 = vmatprep.subr.bf16.mxu0 0
        %4700 = vmatpush1.bf16.msra.mxu0 %v4690
        %4701 = vmatprep.subr.bf16.mxu0 0
        %4702 = vmatpush1.bf16.msra.mxu0 %v4689
        %4703 = vmatprep.subr.bf16.mxu0 0
        %4704 = vmatpush1.bf16.msra.mxu0 %v4688
        %4705 = vmatprep.subr.bf16.mxu0 0
        %4706 = vmatpush1.bf16.msra.mxu0 %v4687
        %4707 = vmatprep.subr.bf16.mxu0 0
        %4708 = vmatpush1.bf16.msra.mxu0 %v4686
        %4709 = vmatprep.subr.bf16.mxu0 0
        %4710 = vmatpush1.bf16.msra.mxu0 %v4685
        %4711 = vmatprep.subr.bf16.mxu0 0
        %4712 = vmatpush1.bf16.msra.mxu0 %v4684
        %4713 = vmatprep.subr.bf16.mxu0 0
        %4714 = vmatpush1.bf16.msra.mxu0 %v4683
        %4715 = vmatprep.subr.bf16.mxu0 0
        %4716 = vmatpush2.bf16.msra.mxu0 0
        %4717 = vmatprep.subr.bf16.mxu0 0
        %4718 = vmatpush2.bf16.msra.mxu0 0
        %4719 = vmatprep.subr.bf16.mxu0 0
        %4720 = vmatpush2.bf16.msra.mxu0 0
        %4721 = vmatprep.subr.bf16.mxu0 0
        %4722 = vmatpush2.bf16.msra.mxu0 0
        %4723 = vmatprep.subr.bf16.mxu0 0
        %4724 = vmatpush2.bf16.msra.mxu0 0
        %4725 = vmatprep.subr.bf16.mxu0 0
        %4726 = vmatpush2.bf16.msra.mxu0 0
        %4727 = vmatprep.subr.bf16.mxu0 0
        %4728 = vmatpush2.bf16.msra.mxu0 0
        %4729 = vmatprep.subr.bf16.mxu0 0
        %4730 = vmatpush2.bf16.msra.mxu0 0
        %4731 = vmatprep.mubr.bf16.mxu0 0
        %4732 = vmatmul.mubr.bf16.gmra.mxu0 %v798
        %v4733 = vpop.f32.mrf.mxu0
        %v4734 = vadd.f32 %v4649, %v4733
        %v4735 = vpop.f32.mrf.mxu0
        %v4736 = vpop.f32.mrf.mxu0
        %v4737 = vpop.f32.mrf.mxu0
        %4738 = vdwg.mxu0
        %v4739 = vpack.c.bf16 %v4508, %v4508
        %v4740 = vpack.c.bf16 %v4621, %v4621
        %v4742 = vsel %vm1144, %v4739, 0
        %v4745 = vsel %vm1144, %v4740, 0
        %4747 = vmatprep.subr.bf16.mxu0 0
        %4748 = vmatpush1.bf16.xpose.msra.mxu0 0
        %4749 = vmatprep.subr.bf16.mxu0 0
        %4750 = vmatpush1.bf16.xpose.msra.mxu0 0
        %4751 = vmatprep.subr.bf16.mxu0 0
        %4752 = vmatpush1.bf16.xpose.msra.mxu0 0
        %4753 = vmatprep.subr.bf16.mxu0 0
        %4754 = vmatpush1.bf16.xpose.msra.mxu0 0
        %4755 = vmatprep.subr.bf16.mxu0 0
        %4756 = vmatpush1.bf16.xpose.msra.mxu0 0
        %4757 = vmatprep.subr.bf16.mxu0 0
        %4758 = vmatpush1.bf16.xpose.msra.mxu0 0
        %4759 = vmatprep.subr.bf16.mxu0 0
        %4760 = vmatpush1.bf16.xpose.msra.mxu0 0
        %4761 = vmatprep.subr.bf16.mxu0 0
        %4762 = vmatpush1.bf16.xpose.msra.mxu0 %v4745
        %4763 = vmatprep.subr.bf16.mxu0 0
        %4764 = vmatpush2.bf16.xpose.msra.mxu0 0
        %4765 = vmatprep.subr.bf16.mxu0 0
        %4766 = vmatpush2.bf16.xpose.msra.mxu0 0
        %4767 = vmatprep.subr.bf16.mxu0 0
        %4768 = vmatpush2.bf16.xpose.msra.mxu0 0
        %4769 = vmatprep.subr.bf16.mxu0 0
        %4770 = vmatpush2.bf16.xpose.msra.mxu0 0
        %4771 = vmatprep.subr.bf16.mxu0 0
        %4772 = vmatpush2.bf16.xpose.msra.mxu0 0
        %4773 = vmatprep.subr.bf16.mxu0 0
        %4774 = vmatpush2.bf16.xpose.msra.mxu0 0
        %4775 = vmatprep.subr.bf16.mxu0 0
        %4776 = vmatpush2.bf16.xpose.msra.mxu0 0
        %4777 = vmatprep.subr.bf16.mxu0 0
        %4778 = vmatpush2.bf16.xpose.msra.mxu0 0
        %4779 = vmatprep.mubr.bf16.mxu0 0
        %4780 = vmatmul.mubr.bf16.gmra.mxu0 %v4742
        %v4781 = vpop.f32.mrf.mxu0
        %v4782 = vadd.f32 %v2881, %v4781
        %v4783 = vpop.f32.mrf.mxu0
        %v4784 = vpop.f32.mrf.mxu0
        %v4785 = vpop.f32.mrf.mxu0
        %4786 = vdwg.mxu0
        %v4787 = vsel %vm1191, %v4782, -inf
        %4788 = vmax.xlane.f32.xlu0 %v4787
        %v4789 = vpop.xlane.xlu0 %4788
        %v4790 = vsub.f32 %v4782, %v4789
        %v4791 = vmul.f32 %v4790, 1.442695
        %v4792 = vpow.pop %v4791
        %v4793 = vsel %vm1191, %v4792, 0.0
        %4794 = vadd.xlane.f32.xlu0 %v4793
        %v4795 = vpop.xlane.xlu0 %4794
        %v4796 = vrcp.pop %v4795
        %v4797 = vmul.f32 %v4792, %v4796
        %v4798 = vpack.c.bf16 %v4797, %v4797
        %v4799 = vpack.c.bf16 %v4734, %v4734
        %v4801 = vsel %vm1191, %v4798, 0
        %v4804 = vsel %vm1208, %v4799, 0
        %4806 = vmatprep.subr.bf16.mxu0 0
        %4807 = vmatpush1.bf16.msra.mxu0 0
        %4808 = vmatprep.subr.bf16.mxu0 0
        %4809 = vmatpush1.bf16.msra.mxu0 0
        %4810 = vmatprep.subr.bf16.mxu0 0
        %4811 = vmatpush1.bf16.msra.mxu0 0
        %4812 = vmatprep.subr.bf16.mxu0 0
        %4813 = vmatpush1.bf16.msra.mxu0 0
        %4814 = vmatprep.subr.bf16.mxu0 0
        %4815 = vmatpush1.bf16.msra.mxu0 0
        %4816 = vmatprep.subr.bf16.mxu0 0
        %4817 = vmatpush1.bf16.msra.mxu0 0
        %4818 = vmatprep.subr.bf16.mxu0 0
        %4819 = vmatpush1.bf16.msra.mxu0 0
        %4820 = vmatprep.subr.bf16.mxu0 0
        %4821 = vmatpush1.bf16.msra.mxu0 %v4804
        %4822 = vmatprep.subr.bf16.mxu0 0
        %4823 = vmatpush2.bf16.msra.mxu0 0
        %4824 = vmatprep.subr.bf16.mxu0 0
        %4825 = vmatpush2.bf16.msra.mxu0 0
        %4826 = vmatprep.subr.bf16.mxu0 0
        %4827 = vmatpush2.bf16.msra.mxu0 0
        %4828 = vmatprep.subr.bf16.mxu0 0
        %4829 = vmatpush2.bf16.msra.mxu0 0
        %4830 = vmatprep.subr.bf16.mxu0 0
        %4831 = vmatpush2.bf16.msra.mxu0 0
        %4832 = vmatprep.subr.bf16.mxu0 0
        %4833 = vmatpush2.bf16.msra.mxu0 0
        %4834 = vmatprep.subr.bf16.mxu0 0
        %4835 = vmatpush2.bf16.msra.mxu0 0
        %4836 = vmatprep.subr.bf16.mxu0 0
        %4837 = vmatpush2.bf16.msra.mxu0 0
        %4838 = vmatprep.mubr.bf16.mxu0 0
        %4839 = vmatmul.mubr.bf16.gmra.mxu0 %v4801
        %v4840 = vpop.f32.mrf.mxu0
        %v4841 = vadd.f32 0.0, %v4840
        %v4842 = vpop.f32.mrf.mxu0
        %v4843 = vpop.f32.mrf.mxu0
        %v4844 = vpop.f32.mrf.mxu0
        %4845 = vdwg.mxu0
        %v4846 = vpack.c.bf16 %v4841, %v4841
        %s4847 = scalar_lea.vmem [#allocation6], 48
        %v4848 = vld [vmem:[%s4847] sm:$0xf]
        %v4849 = vld [vmem:[%s4847 + $0x4] sm:$0xf]
        %v4850 = vld [vmem:[%s4847 + $0x8] sm:$0xf]
        %v4851 = vld [vmem:[%s4847 + $0xc] sm:$0xf]
        %v4856 = vunpack.c.l.b16 %v4848
        %v4857 = vunpack.c.l.b16 %v4849
        %v4858 = vunpack.c.l.b16 %v4850
        %v4859 = vunpack.c.l.b16 %v4851
        %v4860 = vpack.c.b16 %v4857, %v4856
        %v4861 = vpack.c.b16 %v4859, %v4858
        %v4865 = vsel %vm1144, %v4846, 0
        %4867 = vmatprep.subr.bf16.mxu0 0
        %4868 = vmatpush1.bf16.msra.mxu0 0
        %4869 = vmatprep.subr.bf16.mxu0 0
        %4870 = vmatpush1.bf16.msra.mxu0 0
        %4871 = vmatprep.subr.bf16.mxu0 0
        %4872 = vmatpush1.bf16.msra.mxu0 0
        %4873 = vmatprep.subr.bf16.mxu0 0
        %4874 = vmatpush1.bf16.msra.mxu0 0
        %4875 = vmatprep.subr.bf16.mxu0 0
        %4876 = vmatpush1.bf16.msra.mxu0 0
        %4877 = vmatprep.subr.bf16.mxu0 0
        %4878 = vmatpush1.bf16.msra.mxu0 0
        %4879 = vmatprep.subr.bf16.mxu0 0
        %4880 = vmatpush1.bf16.msra.mxu0 %v4861
        %4881 = vmatprep.subr.bf16.mxu0 0
        %4882 = vmatpush1.bf16.msra.mxu0 %v4860
        %4883 = vmatprep.subr.bf16.mxu0 0
        %4884 = vmatpush2.bf16.msra.mxu0 0
        %4885 = vmatprep.subr.bf16.mxu0 0
        %4886 = vmatpush2.bf16.msra.mxu0 0
        %4887 = vmatprep.subr.bf16.mxu0 0
        %4888 = vmatpush2.bf16.msra.mxu0 0
        %4889 = vmatprep.subr.bf16.mxu0 0
        %4890 = vmatpush2.bf16.msra.mxu0 0
        %4891 = vmatprep.subr.bf16.mxu0 0
        %4892 = vmatpush2.bf16.msra.mxu0 0
        %4893 = vmatprep.subr.bf16.mxu0 0
        %4894 = vmatpush2.bf16.msra.mxu0 0
        %4895 = vmatprep.subr.bf16.mxu0 0
        %4896 = vmatpush2.bf16.msra.mxu0 0
        %4897 = vmatprep.subr.bf16.mxu0 0
        %4898 = vmatpush2.bf16.msra.mxu0 0
        %4899 = vmatprep.mubr.bf16.mxu0 0
        %4900 = vmatmul.mubr.bf16.gmra.mxu0 %v4865
        %v4901 = vpop.f32.mrf.mxu0
        %v4902 = vadd.f32 0.0, %v4901
        %v4903 = vpop.f32.mrf.mxu0
        %v4904 = vpop.f32.mrf.mxu0
        %v4905 = vpop.f32.mrf.mxu0
        %4906 = vdwg.mxu0
        %v4907 = vadd.f32 %v4399, %v4902
        %v4908 = vld [vmem:[%s14] sm:$0x1]
        %v4910 = vlaneseq
        %v4911 = vshrl.u32 %v4910, 7
        %v4912 = vsub.s32 0, %v4911
        %v4913 = vrot.slane %v4908, %v4912
        %v4915 = vadd.f32 %v4907, %v4913
        %v4916 = vadd.f32 %v4915, %v2872
        %v4917 = vld [vmem:[%s15] sm:$0x1]
        %v4918 = vld [vmem:[%s16] sm:$0x1]
        %4919 = vadd.xlane.f32.xlu0 %v4916
        %v4920 = vpop.xlane.xlu0 %4919
        %v4921 = vmul.f32 %v4920, %v2849
        %v4922 = vsub.f32 %v4916, %v4921
        %v4923 = vmul.f32 %v4922, %v4922
        %4924 = vadd.xlane.f32.xlu0 %v4923
        %v4925 = vpop.xlane.xlu0 %4924
        %v4926 = vmul.f32 %v4925, %v2849
        %v4927 = vadd.f32 %v4926, 1e-05
        %v4928 = vrsqrt.pop %v4927
        %v4929 = vmul.f32 %v4922, %v4928
        %v4931 = vlaneseq
        %v4932 = vshrl.u32 %v4931, 7
        %v4933 = vsub.s32 0, %v4932
        %v4934 = vrot.slane %v4917, %v4933
        %v4936 = vmul.f32 %v4929, %v4934
        %v4938 = vlaneseq
        %v4939 = vshrl.u32 %v4938, 7
        %v4940 = vsub.s32 0, %v4939
        %v4941 = vrot.slane %v4918, %v4940
        %v4943 = vadd.f32 %v4936, %v4941
        %v4944 = vpack.c.bf16 %v4943, %v4943
        %v4945 = vld [vmem:[#allocation7] sm:$0xff]
        %v4946 = vld [vmem:[#allocation7 + $0x8] sm:$0xff]
        %v4947 = vld [vmem:[#allocation7 + $0x10] sm:$0xff]
        %v4948 = vld [vmem:[#allocation7 + $0x18] sm:$0xff]
        %v4949 = vld [vmem:[#allocation7 + $0x20] sm:$0xff]
        %v4950 = vld [vmem:[#allocation7 + $0x28] sm:$0xff]
        %v4951 = vld [vmem:[#allocation7 + $0x30] sm:$0xff]
        %v4952 = vld [vmem:[#allocation7 + $0x38] sm:$0xff]
        %v4953 = vld [vmem:[#allocation7 + $0x40] sm:$0xff]
        %v4954 = vld [vmem:[#allocation7 + $0x48] sm:$0xff]
        %v4955 = vld [vmem:[#allocation7 + $0x50] sm:$0xff]
        %v4956 = vld [vmem:[#allocation7 + $0x58] sm:$0xff]
        %v4957 = vld [vmem:[#allocation7 + $0x60] sm:$0xff]
        %v4958 = vld [vmem:[#allocation7 + $0x68] sm:$0xff]
        %v4959 = vld [vmem:[#allocation7 + $0x70] sm:$0xff]
        %v4960 = vld [vmem:[#allocation7 + $0x78] sm:$0xff]
        %v4961 = vld [vmem:[%s18] sm:$0x3]
        %v4963 = vlaneseq
        %v4964 = vshrl.u32 %v4963, 7
        %v4965 = vsub.s32 0, %v4964
        %v4966 = vrot.slane %v4961, %v4965
        %v4967 = vlaneseq
        %v4968 = vshrl.u32 %v4967, 7
        %v4969 = vsub.s32 1, %v4968
        %v4970 = vrot.slane %v4961, %v4969
        %v4989 = vunpack.c.l.b16 %v4945
        %v4990 = vunpack.c.h.b16 %v4945
        %v4991 = vunpack.c.l.b16 %v4946
        %v4992 = vunpack.c.h.b16 %v4946
        %v4993 = vunpack.c.l.b16 %v4947
        %v4994 = vunpack.c.h.b16 %v4947
        %v4995 = vunpack.c.l.b16 %v4948
        %v4996 = vunpack.c.h.b16 %v4948
        %v4997 = vunpack.c.l.b16 %v4949
        %v4998 = vunpack.c.h.b16 %v4949
        %v4999 = vunpack.c.l.b16 %v4950
        %v5000 = vunpack.c.h.b16 %v4950
        %v5001 = vunpack.c.l.b16 %v4951
        %v5002 = vunpack.c.h.b16 %v4951
        %v5003 = vunpack.c.l.b16 %v4952
        %v5004 = vunpack.c.h.b16 %v4952
        %v5005 = vunpack.c.l.b16 %v4953
        %v5006 = vunpack.c.h.b16 %v4953
        %v5007 = vunpack.c.l.b16 %v4954
        %v5008 = vunpack.c.h.b16 %v4954
        %v5009 = vunpack.c.l.b16 %v4955
        %v5010 = vunpack.c.h.b16 %v4955
        %v5011 = vunpack.c.l.b16 %v4956
        %v5012 = vunpack.c.h.b16 %v4956
        %v5013 = vunpack.c.l.b16 %v4957
        %v5014 = vunpack.c.h.b16 %v4957
        %v5015 = vunpack.c.l.b16 %v4958
        %v5016 = vunpack.c.h.b16 %v4958
        %v5017 = vunpack.c.l.b16 %v4959
        %v5018 = vunpack.c.h.b16 %v4959
        %v5019 = vunpack.c.l.b16 %v4960
        %v5020 = vunpack.c.h.b16 %v4960
        %v5021 = vpack.c.b16 %v4991, %v4989
        %v5022 = vpack.c.b16 %v4992, %v4990
        %v5023 = vpack.c.b16 %v4995, %v4993
        %v5024 = vpack.c.b16 %v4996, %v4994
        %v5025 = vpack.c.b16 %v4999, %v4997
        %v5026 = vpack.c.b16 %v5000, %v4998
        %v5027 = vpack.c.b16 %v5003, %v5001
        %v5028 = vpack.c.b16 %v5004, %v5002
        %v5029 = vpack.c.b16 %v5007, %v5005
        %v5030 = vpack.c.b16 %v5008, %v5006
        %v5031 = vpack.c.b16 %v5011, %v5009
        %v5032 = vpack.c.b16 %v5012, %v5010
        %v5033 = vpack.c.b16 %v5015, %v5013
        %v5034 = vpack.c.b16 %v5016, %v5014
        %v5035 = vpack.c.b16 %v5019, %v5017
        %v5036 = vpack.c.b16 %v5020, %v5018
        %5053 = vmatprep.subr.bf16.mxu0 %v5036
        %5054 = vmatpush1.bf16.msra.mxu0 %v5035
        %5055 = vmatprep.subr.bf16.mxu0 %v5034
        %5056 = vmatpush1.bf16.msra.mxu0 %v5033
        %5057 = vmatprep.subr.bf16.mxu0 %v5032
        %5058 = vmatpush1.bf16.msra.mxu0 %v5031
        %5059 = vmatprep.subr.bf16.mxu0 %v5030
        %5060 = vmatpush1.bf16.msra.mxu0 %v5029
        %5061 = vmatprep.subr.bf16.mxu0 %v5028
        %5062 = vmatpush1.bf16.msra.mxu0 %v5027
        %5063 = vmatprep.subr.bf16.mxu0 %v5026
        %5064 = vmatpush1.bf16.msra.mxu0 %v5025
        %5065 = vmatprep.subr.bf16.mxu0 %v5024
        %5066 = vmatpush1.bf16.msra.mxu0 %v5023
        %5067 = vmatprep.subr.bf16.mxu0 %v5022
        %5068 = vmatpush1.bf16.msra.mxu0 %v5021
        %5069 = vmatprep.subr.bf16.mxu0 0
        %5070 = vmatpush2.bf16.msra.mxu0 0
        %5071 = vmatprep.subr.bf16.mxu0 0
        %5072 = vmatpush2.bf16.msra.mxu0 0
        %5073 = vmatprep.subr.bf16.mxu0 0
        %5074 = vmatpush2.bf16.msra.mxu0 0
        %5075 = vmatprep.subr.bf16.mxu0 0
        %5076 = vmatpush2.bf16.msra.mxu0 0
        %5077 = vmatprep.subr.bf16.mxu0 0
        %5078 = vmatpush2.bf16.msra.mxu0 0
        %5079 = vmatprep.subr.bf16.mxu0 0
        %5080 = vmatpush2.bf16.msra.mxu0 0
        %5081 = vmatprep.subr.bf16.mxu0 0
        %5082 = vmatpush2.bf16.msra.mxu0 0
        %5083 = vmatprep.subr.bf16.mxu0 0
        %5084 = vmatpush2.bf16.msra.mxu0 0
        %5085 = vmatprep.mubr.bf16.mxu0 0
        %5086 = vmatmul.mubr.bf16.gmra.mxu0 %v4944
        %v5087 = vpop.f32.mrf.mxu0
        %v5088 = vadd.f32 %v4966, %v5087
        %v5089 = vpop.f32.mrf.mxu0
        %v5090 = vadd.f32 %v4970, %v5089
        %v5091 = vpop.f32.mrf.mxu0
        %v5092 = vpop.f32.mrf.mxu0
        %5093 = vdwg.mxu0
        %v5094 = vmul.f32 %v5088, %v5088
        %v5095 = vmul.f32 %v5090, %v5090
        %v5096 = vmul.f32 %v5088, %v5094
        %v5097 = vmul.f32 %v5090, %v5095
        %v5098 = vmul.f32 %v5096, 0.044715
        %v5099 = vmul.f32 %v5097, 0.044715
        %v5100 = vadd.f32 %v5088, %v5098
        %v5101 = vadd.f32 %v5090, %v5099
        %v5102 = vmul.f32 %v5100, 0.7978846
        %v5103 = vmul.f32 %v5101, 0.7978846
        %v5104 = vtanh.pop %v5102
        %v5105 = vtanh.pop %v5103
        %v5106 = vadd.f32 %v5104, 1.0
        %v5107 = vadd.f32 %v5105, 1.0
        %v5108 = vmul.f32 %v5106, 0.5
        %v5109 = vmul.f32 %v5107, 0.5
        %v5110 = vmul.f32 %v5088, %v5108
        %v5111 = vmul.f32 %v5090, %v5109
        %v5112 = vpack.c.bf16 %v5110, %v5110
        %v5113 = vpack.c.bf16 %v5111, %v5111
        %v5114 = vld [vmem:[%s19] sm:$0xf]
        %v5115 = vld [vmem:[%s19 + $0x4] sm:$0xf]
        %v5116 = vld [vmem:[%s19 + $0x8] sm:$0xf]
        %v5117 = vld [vmem:[%s19 + $0xc] sm:$0xf]
        %v5118 = vld [vmem:[%s19 + $0x10] sm:$0xf]
        %v5119 = vld [vmem:[%s19 + $0x14] sm:$0xf]
        %v5120 = vld [vmem:[%s19 + $0x18] sm:$0xf]
        %v5121 = vld [vmem:[%s19 + $0x1c] sm:$0xf]
        %v5122 = vld [vmem:[%s19 + $0x20] sm:$0xf]
        %v5123 = vld [vmem:[%s19 + $0x24] sm:$0xf]
        %v5124 = vld [vmem:[%s19 + $0x28] sm:$0xf]
        %v5125 = vld [vmem:[%s19 + $0x2c] sm:$0xf]
        %v5126 = vld [vmem:[%s19 + $0x30] sm:$0xf]
        %v5127 = vld [vmem:[%s19 + $0x34] sm:$0xf]
        %v5128 = vld [vmem:[%s19 + $0x38] sm:$0xf]
        %v5129 = vld [vmem:[%s19 + $0x3c] sm:$0xf]
        %v5130 = vld [vmem:[%s19 + $0x40] sm:$0xf]
        %v5131 = vld [vmem:[%s19 + $0x44] sm:$0xf]
        %v5132 = vld [vmem:[%s19 + $0x48] sm:$0xf]
        %v5133 = vld [vmem:[%s19 + $0x4c] sm:$0xf]
        %v5134 = vld [vmem:[%s19 + $0x50] sm:$0xf]
        %v5135 = vld [vmem:[%s19 + $0x54] sm:$0xf]
        %v5136 = vld [vmem:[%s19 + $0x58] sm:$0xf]
        %v5137 = vld [vmem:[%s19 + $0x5c] sm:$0xf]
        %v5138 = vld [vmem:[%s19 + $0x60] sm:$0xf]
        %v5139 = vld [vmem:[%s19 + $0x64] sm:$0xf]
        %v5140 = vld [vmem:[%s19 + $0x68] sm:$0xf]
        %v5141 = vld [vmem:[%s19 + $0x6c] sm:$0xf]
        %v5142 = vld [vmem:[%s19 + $0x70] sm:$0xf]
        %v5143 = vld [vmem:[%s19 + $0x74] sm:$0xf]
        %v5144 = vld [vmem:[%s19 + $0x78] sm:$0xf]
        %v5145 = vld [vmem:[%s19 + $0x7c] sm:$0xf]
        %v5146 = vld [vmem:[%s20] sm:$0x1]
        %v5148 = vlaneseq
        %v5149 = vshrl.u32 %v5148, 7
        %v5150 = vsub.s32 0, %v5149
        %v5151 = vrot.slane %v5146, %v5150
        %v5185 = vunpack.c.l.b16 %v5114
        %v5186 = vunpack.c.l.b16 %v5115
        %v5187 = vunpack.c.l.b16 %v5116
        %v5188 = vunpack.c.l.b16 %v5117
        %v5189 = vunpack.c.l.b16 %v5118
        %v5190 = vunpack.c.l.b16 %v5119
        %v5191 = vunpack.c.l.b16 %v5120
        %v5192 = vunpack.c.l.b16 %v5121
        %v5193 = vunpack.c.l.b16 %v5122
        %v5194 = vunpack.c.l.b16 %v5123
        %v5195 = vunpack.c.l.b16 %v5124
        %v5196 = vunpack.c.l.b16 %v5125
        %v5197 = vunpack.c.l.b16 %v5126
        %v5198 = vunpack.c.l.b16 %v5127
        %v5199 = vunpack.c.l.b16 %v5128
        %v5200 = vunpack.c.l.b16 %v5129
        %v5201 = vunpack.c.l.b16 %v5130
        %v5202 = vunpack.c.l.b16 %v5131
        %v5203 = vunpack.c.l.b16 %v5132
        %v5204 = vunpack.c.l.b16 %v5133
        %v5205 = vunpack.c.l.b16 %v5134
        %v5206 = vunpack.c.l.b16 %v5135
        %v5207 = vunpack.c.l.b16 %v5136
        %v5208 = vunpack.c.l.b16 %v5137
        %v5209 = vunpack.c.l.b16 %v5138
        %v5210 = vunpack.c.l.b16 %v5139
        %v5211 = vunpack.c.l.b16 %v5140
        %v5212 = vunpack.c.l.b16 %v5141
        %v5213 = vunpack.c.l.b16 %v5142
        %v5214 = vunpack.c.l.b16 %v5143
        %v5215 = vunpack.c.l.b16 %v5144
        %v5216 = vunpack.c.l.b16 %v5145
        %v5217 = vpack.c.b16 %v5186, %v5185
        %v5218 = vpack.c.b16 %v5188, %v5187
        %v5219 = vpack.c.b16 %v5190, %v5189
        %v5220 = vpack.c.b16 %v5192, %v5191
        %v5221 = vpack.c.b16 %v5194, %v5193
        %v5222 = vpack.c.b16 %v5196, %v5195
        %v5223 = vpack.c.b16 %v5198, %v5197
        %v5224 = vpack.c.b16 %v5200, %v5199
        %v5225 = vpack.c.b16 %v5202, %v5201
        %v5226 = vpack.c.b16 %v5204, %v5203
        %v5227 = vpack.c.b16 %v5206, %v5205
        %v5228 = vpack.c.b16 %v5208, %v5207
        %v5229 = vpack.c.b16 %v5210, %v5209
        %v5230 = vpack.c.b16 %v5212, %v5211
        %v5231 = vpack.c.b16 %v5214, %v5213
        %v5232 = vpack.c.b16 %v5216, %v5215
        %5249 = vmatprep.subr.bf16.mxu0 0
        %5250 = vmatpush1.bf16.msra.mxu0 %v5224
        %5251 = vmatprep.subr.bf16.mxu0 0
        %5252 = vmatpush1.bf16.msra.mxu0 %v5223
        %5253 = vmatprep.subr.bf16.mxu0 0
        %5254 = vmatpush1.bf16.msra.mxu0 %v5222
        %5255 = vmatprep.subr.bf16.mxu0 0
        %5256 = vmatpush1.bf16.msra.mxu0 %v5221
        %5257 = vmatprep.subr.bf16.mxu0 0
        %5258 = vmatpush1.bf16.msra.mxu0 %v5220
        %5259 = vmatprep.subr.bf16.mxu0 0
        %5260 = vmatpush1.bf16.msra.mxu0 %v5219
        %5261 = vmatprep.subr.bf16.mxu0 0
        %5262 = vmatpush1.bf16.msra.mxu0 %v5218
        %5263 = vmatprep.subr.bf16.mxu0 0
        %5264 = vmatpush1.bf16.msra.mxu0 %v5217
        %5265 = vmatprep.subr.bf16.mxu0 0
        %5266 = vmatpush2.bf16.msra.mxu0 %v5232
        %5267 = vmatprep.subr.bf16.mxu0 0
        %5268 = vmatpush2.bf16.msra.mxu0 %v5231
        %5269 = vmatprep.subr.bf16.mxu0 0
        %5270 = vmatpush2.bf16.msra.mxu0 %v5230
        %5271 = vmatprep.subr.bf16.mxu0 0
        %5272 = vmatpush2.bf16.msra.mxu0 %v5229
        %5273 = vmatprep.subr.bf16.mxu0 0
        %5274 = vmatpush2.bf16.msra.mxu0 %v5228
        %5275 = vmatprep.subr.bf16.mxu0 0
        %5276 = vmatpush2.bf16.msra.mxu0 %v5227
        %5277 = vmatprep.subr.bf16.mxu0 0
        %5278 = vmatpush2.bf16.msra.mxu0 %v5226
        %5279 = vmatprep.subr.bf16.mxu0 0
        %5280 = vmatpush2.bf16.msra.mxu0 %v5225
        %5281 = vmatprep.mubr.bf16.mxu0 %v5113
        %5282 = vmatmul.mubr.bf16.gmra.mxu0 %v5112
        %v5283 = vpop.f32.mrf.mxu0
        %v5284 = vadd.f32 %v5151, %v5283
        %v5285 = vpop.f32.mrf.mxu0
        %v5286 = vpop.f32.mrf.mxu0
        %v5287 = vpop.f32.mrf.mxu0
        %5288 = vdwg.mxu0
        %v5289 = vadd.f32 %v5284, %v4943
        %v5290 = vld [vmem:[%s21] sm:$0x1]
        %v5291 = vld [vmem:[%s22] sm:$0x1]
        %5292 = vadd.xlane.f32.xlu0 %v5289
        %v5293 = vpop.xlane.xlu0 %5292
        %v5294 = vmul.f32 %v5293, %v2849
        %v5295 = vsub.f32 %v5289, %v5294
        %v5296 = vmul.f32 %v5295, %v5295
        %5297 = vadd.xlane.f32.xlu0 %v5296
        %v5298 = vpop.xlane.xlu0 %5297
        %v5299 = vmul.f32 %v5298, %v2849
        %v5300 = vadd.f32 %v5299, 1e-05
        %v5301 = vrsqrt.pop %v5300
        %v5302 = vmul.f32 %v5295, %v5301
        %v5304 = vlaneseq
        %v5305 = vshrl.u32 %v5304, 7
        %v5306 = vsub.s32 0, %v5305
        %v5307 = vrot.slane %v5290, %v5306
        %v5309 = vmul.f32 %v5302, %v5307
        %v5311 = vlaneseq
        %v5312 = vshrl.u32 %v5311, 7
        %v5313 = vsub.s32 0, %v5312
        %v5314 = vrot.slane %v5291, %v5313
        %v5316 = vadd.f32 %v5309, %v5314
        %v5317 = vpack.c.bf16 %v5316, %v5316
        %5318 = vst [vmem:[%s795] sm:$0xf] %v5317
        %p5319 = scmp.lt.s32.totalorder %s37, 1
        %s5320 = scalar_select %p5319, %s37, 1
        %s5321 = smul.addr %s5320, 4
        %s5322 = scalar_lea.vmem %s23, %s5321
        // Predicated region
        $region129: #{summary_brief_forward.8} parent=111 // pred_check
          %p5323 = pneg %p553
        $region130: #{summary_brief_forward.8} parent=111 // pred_check_branch
          %5325 = sbr.rel (%p5323) target = $region132
        $region131: #{summary_brief_forward.8} parent=111 // pred_region
          _
        $region132: #{summary_brief_forward.8} parent=111 // pred_fallthru
          _
      $region112: #{summary_brief_forward.8} parent=5 // pred_fallthru
        _
      %p5326 = scmp.le.s32.totalorder 2, %s32
      // Predicated region
      $region133: #{summary_brief_forward.8} parent=5 // pred_check
        %p5327 = pneg %p5326
      $region134: #{summary_brief_forward.8} parent=5 // pred_check_branch
        %5329 = sbr.rel (%p5327) target = $region136
      $region135: #{summary_brief_forward.8} parent=5 // pred_region
        %s5330 = ssub.s32 %s32, 2
        // Predicated region
        $region137: #{summary_brief_forward.8} parent=135 // pred_check
          %p5331 = pneg %p559
        $region138: #{summary_brief_forward.8} parent=135 // pred_check_branch
          %5333 = sbr.rel (%p5331) target = $region140
        $region139: #{summary_brief_forward.8} parent=135 // pred_region
          %p5334 = scmp.lt.s32.totalorder %s38, 1
          %s5335 = scalar_select %p5334, %s38, 1
          %s5336 = smul.addr %s5335, 4
          %s5337 = scalar_lea.vmem %s23, %s5336
        $region140: #{summary_brief_forward.8} parent=135 // pred_fallthru
          _
      $region136: #{summary_brief_forward.8} parent=5 // pred_fallthru
        _
    $region6: #{summary_brief_forward.8} parent=1 // loop_footer
      %s36 = sadd.s32 1, %s32
    $region7: #{summary_brief_forward.8} parent=1 // loop_footer_branch
      %31 = sbr.rel target = $region3
    $region8: #{summary_brief_forward.8} parent=1 // loop_exit
      _
    %5338 = vsyncpa [#allocation3], 1
    %s5339 = scalar_lea.sflag [#allocation3], 1
    %5340 = vsyncpa %s5339, 1
    %5341 = vsyncpa [#allocation5], 1
    %5342 = vsyncpa [#allocation8], 1

</llo_original>
